<compile_context>
chip_gen: v6e
topology: v6e:2x2x1
jax: 0.10.0
libtpu: 0.0.40
codegen_flags: <defaults>
</compile_context>

<pallas_src>
import functools

import jax
import jax.numpy as jnp
from jax import lax
from jax.experimental import pallas as pl
from jax.experimental.pallas import tpu as pltpu

NEG_SLOPE = 0.01   # F.leaky_relu default
BN_EPS = 1e-5      # nn.BatchNorm2d default


def _leaky(y):
    return jnp.where(y >= 0, y, NEG_SLOPE * y)


# ----------------------------- Pallas kernels -------------------------------

def _upconv_kernel(x_ref, w_ref, b_ref, o_ref, *, compute_dtype):
    # ConvTranspose2d(k=2, s=2): one (batch, row-tile, ki) grid step.
    # x_ref: (1, TH, W, Cin)            input rows (f32)
    # w_ref: (1, Cin, 2*Cout)           tap ki, columns ordered (kj, cout)
    # b_ref: (1, 2*Cout)                bias tiled over kj (f32)
    # o_ref: (1, TH, 1, W, 2*Cout)      -> reshapes (free) to interleaved rows
    _, th, w, cin = x_ref.shape
    x2 = x_ref[0].reshape(th * w, cin).astype(compute_dtype)
    y = jnp.dot(x2, w_ref[0], preferred_element_type=jnp.float32) + b_ref[...]
    o_ref[...] = y.reshape(o_ref.shape).astype(o_ref.dtype)


def _convblock_kernel(u_ref, s_ref, w1_ref, sc1_ref, sh1_ref,
                      w2_ref, sc2_ref, sh2_ref, o_ref,
                      cat_pad, y1_pad):
    # Fused: concat(upconv, skip) + zero-pad + conv1(3x3) + BN1 + LReLU
    #        + zero-pad + conv2(3x3) + BN2 + LReLU, one batch element per step.
    # u_ref : (1, P, Q, Cu)   up-conv output (compute dtype)
    # s_ref : (1, P, Q, Cs)   cropped skip (f32; cast in-kernel)
    # w1_ref: (3, 3, Cu+Cs, Co)   w2_ref: (3, 3, Co, Co)
    # sc/sh : (1, Co)  folded BN scale / shift (f32)
    # o_ref : (1, P, Q, Co)  f32
    # cat_pad: VMEM (P+2, Q+2, Cu+Cs)   y1_pad: VMEM (P+2, Q+2, Co)
    _, P, Q, Cu = u_ref.shape
    Cs = s_ref.shape[3]
    Co = o_ref.shape[3]
    Cc = Cu + Cs
    cdt = cat_pad.dtype

    # crop+concat + 'same' padding fused into a VMEM scratch (no HBM passes)
    cat_pad[...] = jnp.zeros_like(cat_pad)
    cat_pad[1:P + 1, 1:Q + 1, 0:Cu] = u_ref[0].astype(cdt)
    cat_pad[1:P + 1, 1:Q + 1, Cu:Cc] = s_ref[0].astype(cdt)

    # conv1: 9 shifted-window matmuls, f32 accumulation on the MXU.
    acc = jnp.zeros((P * Q, Co), jnp.float32)
    for di in range(3):
        for dj in range(3):
            patch = cat_pad[di:di + P, dj:dj + Q, :].reshape(P * Q, Cc)
            acc = acc + jnp.dot(patch, w1_ref[di, dj],
                                preferred_element_type=jnp.float32)
    y1 = _leaky(acc * sc1_ref[...] + sh1_ref[...])

    y1_pad[...] = jnp.zeros_like(y1_pad)
    y1_pad[1:P + 1, 1:Q + 1, :] = y1.reshape(P, Q, Co).astype(cdt)

    # conv2
    acc2 = jnp.zeros((P * Q, Co), jnp.float32)
    for di in range(3):
        for dj in range(3):
            patch = y1_pad[di:di + P, dj:dj + Q, :].reshape(P * Q, Co)
            acc2 = acc2 + jnp.dot(patch, w2_ref[di, dj],
                                  preferred_element_type=jnp.float32)
    y2 = _leaky(acc2 * sc2_ref[...] + sh2_ref[...])
    o_ref[...] = y2.reshape(1, P, Q, Co).astype(o_ref.dtype)


# ------------------------------- wrappers ------------------------------------

def conv_transpose2x2_s2(x_nhwc, up_w, up_b, *, compute_dtype):
    """ConvTranspose2d(kernel=2, stride=2). up_w: PyTorch (Cin, Cout, 2, 2)."""
    N, H, W, Cin = x_nhwc.shape
    Cout = up_w.shape[1]
    # (Cin, Cout, ki, kj) -> (ki, Cin, kj*Cout + cout)
    w_pack = jnp.transpose(up_w, (2, 0, 3, 1)).reshape(2, Cin, 2 * Cout)
    w_pack = w_pack.astype(compute_dtype)
    b2 = jnp.tile(up_b.astype(jnp.float32), 2).reshape(1, 2 * Cout)

    th = H if H <= 128 else 128
    if H % th:
        th = H
    kern = functools.partial(_upconv_kernel, compute_dtype=compute_dtype)

    u5 = pl.pallas_call(
        kern,
        out_shape=jax.ShapeDtypeStruct((N, H, 2, W, 2 * Cout), compute_dtype),
        grid=(N, H // th, 2),
        in_specs=[
            pl.BlockSpec((1, th, W, Cin), lambda n, t, k: (n, t, 0, 0)),
            pl.BlockSpec((1, Cin, 2 * Cout), lambda n, t, k: (k, 0, 0)),
            pl.BlockSpec((1, 2 * Cout), lambda n, t, k: (0, 0)),
        ],
        out_specs=pl.BlockSpec((1, th, 1, W, 2 * Cout),
                               lambda n, t, k: (n, t, k, 0, 0)),
        compiler_params=pltpu.CompilerParams(
            dimension_semantics=("parallel", "parallel", "parallel")),
    )(x_nhwc, w_pack, b2)
    # Free, layout-preserving reshape: (N, H, 2, W, 2*Cout) -> (N, 2H, 2W, Cout)
    return u5.reshape(N, 2 * H, 2 * W, Cout)


def conv_block_fused(u, s_crop, w1, sc1, sh1, w2, sc2, sh2, *, compute_dtype):
    """Fused concat + [conv3x3 'same' + folded-BN + LeakyReLU] x 2."""
    N, P, Q, Cu = u.shape
    Cs = s_crop.shape[3]
    Co = w1.shape[-1]
    Cc = Cu + Cs

    w1c = w1.astype(compute_dtype)
    w2c = w2.astype(compute_dtype)
    sc1 = sc1.reshape(1, Co).astype(jnp.float32)
    sh1 = sh1.reshape(1, Co).astype(jnp.float32)
    sc2 = sc2.reshape(1, Co).astype(jnp.float32)
    sh2 = sh2.reshape(1, Co).astype(jnp.float32)

    return pl.pallas_call(
        _convblock_kernel,
        out_shape=jax.ShapeDtypeStruct((N, P, Q, Co), jnp.float32),
        grid=(N,),
        in_specs=[
            pl.BlockSpec((1, P, Q, Cu), lambda n: (n, 0, 0, 0)),
            pl.BlockSpec((1, P, Q, Cs), lambda n: (n, 0, 0, 0)),
            pl.BlockSpec((3, 3, Cc, Co), lambda n: (0, 0, 0, 0)),
            pl.BlockSpec((1, Co), lambda n: (0, 0)),
            pl.BlockSpec((1, Co), lambda n: (0, 0)),
            pl.BlockSpec((3, 3, Co, Co), lambda n: (0, 0, 0, 0)),
            pl.BlockSpec((1, Co), lambda n: (0, 0)),
            pl.BlockSpec((1, Co), lambda n: (0, 0)),
        ],
        out_specs=pl.BlockSpec((1, P, Q, Co), lambda n: (n, 0, 0, 0)),
        scratch_shapes=[
            pltpu.VMEM((P + 2, Q + 2, Cc), compute_dtype),
            pltpu.VMEM((P + 2, Q + 2, Co), compute_dtype),
        ],
        compiler_params=pltpu.CompilerParams(
            dimension_semantics=("parallel",)),
    )(u, s_crop, w1c, sc1, sh1, w2c, sc2, sh2)


def decoder_block_forward(params, inputs_nchw, skip_nchw,
                          compute_dtype=jnp.bfloat16):
    """decoder_block.forward. inputs/skip/output are NCHW (PyTorch layout)."""
    x = jnp.transpose(inputs_nchw, (0, 2, 3, 1)).astype(jnp.float32)   # NHWC
    s = jnp.transpose(skip_nchw, (0, 2, 3, 1)).astype(jnp.float32)

    # up_conv (kernel fused, interleaving done via a free reshape)
    u = conv_transpose2x2_s2(x, params["up_w"], params["up_b"],
                             compute_dtype=compute_dtype)

    # center-crop skip to u's spatial size (static slice; no-op when equal)
    d2 = s.shape[1] - u.shape[1]
    d3 = s.shape[2] - u.shape[2]
    s_crop = s[:, d2 // 2: d2 // 2 + u.shape[1],
               d3 // 2: d3 // 2 + u.shape[2], :]

    # fused concat + conv_block
    y = conv_block_fused(u, s_crop,
                         params["w1"], params["scale1"], params["shift1"],
                         params["w2"], params["scale2"], params["shift2"],
                         compute_dtype=compute_dtype)
    return jnp.transpose(y, (0, 3, 1, 2))   # back to NCHW


# ----------------------- deterministic parameter init ------------------------

def make_params(in_c, out_c, key):
    ks = jax.random.split(key, 10)
    cat_c = out_c + out_c

    def fold_bn(conv_b, gamma, beta, mean, var):
        scale = gamma / jnp.sqrt(var + BN_EPS)
        shift = (conv_b - mean) * scale + beta
        return scale, shift

    # ConvTranspose2d(in_c, out_c, 2, 2) -- PyTorch weight layout (Cin, Cout, 2, 2)
    up_w = 0.1 * jax.random.normal(ks[0], (in_c, out_c, 2, 2), jnp.float32)
    up_b = 0.05 * jax.random.normal(ks[1], (out_c,), jnp.float32)

    # conv1: Conv2d(cat_c, out_c, 3) -> HWIO (3, 3, cat_c, out_c)
    w1 = 0.1 * jax.random.normal(ks[2], (3, 3, cat_c, out_c), jnp.float32)
    b1 = 0.05 * jax.random.normal(ks[3], (out_c,), jnp.float32)
    g1 = 1.0 + 0.1 * jax.random.normal(ks[4], (out_c,), jnp.float32)
    be1 = 0.1 * jax.random.normal(ks[5], (out_c,), jnp.float32)
    m1 = 0.1 * jax.random.normal(ks[6], (out_c,), jnp.float32)
    v1 = 1.0 + 0.1 * jax.random.uniform(ks[7], (out_c,), jnp.float32)
    scale1, shift1 = fold_bn(b1, g1, be1, m1, v1)

    # conv2: Conv2d(out_c, out_c, 3)
    w2 = 0.1 * jax.random.normal(ks[8], (3, 3, out_c, out_c), jnp.float32)
    b2 = 0.05 * jax.random.normal(ks[9], (out_c,), jnp.float32)
    g2 = jnp.full((out_c,), 0.9, jnp.float32)
    be2 = jnp.full((out_c,), 0.05, jnp.float32)
    m2 = jnp.full((out_c,), 0.02, jnp.float32)
    v2 = jnp.full((out_c,), 1.1, jnp.float32)
    scale2, shift2 = fold_bn(b2, g2, be2, m2, v2)

    return dict(up_w=up_w, up_b=up_b,
                w1=w1, scale1=scale1, shift1=shift1,
                w2=w2, scale2=scale2, shift2=shift2)


# ------------------------------ pure-JAX ref ----------------------------------

def _ref_forward(params, inputs_nchw, skip_nchw):
    x = jnp.transpose(inputs_nchw, (0, 2, 3, 1)).astype(jnp.float32)
    s = jnp.transpose(skip_nchw, (0, 2, 3, 1)).astype(jnp.float32)

    # transpose conv, kernel 2 stride 2
    N, H, W, Cin = x.shape
    wt = params["up_w"]
    Cout = wt.shape[1]
    y = jnp.einsum("nhwc,coij->nhiwjo", x, wt).reshape(N, 2 * H, 2 * W, Cout)
    y = y + params["up_b"]

    d2 = s.shape[1] - y.shape[1]
    d3 = s.shape[2] - y.shape[2]
    s_crop = s[:, d2 // 2: d2 // 2 + y.shape[1],
               d3 // 2: d3 // 2 + y.shape[2], :]
    y = jnp.concatenate([y, s_crop], axis=-1)

    def conv_bn_lrelu(z, w, sc, sh):
        z = lax.conv_general_dilated(
            z, w, window_strides=(1, 1), padding="SAME",
            dimension_numbers=("NHWC", "HWIO", "NHWC"))
        z = z * sc + sh
        return jnp.where(z >= 0, z, NEG_SLOPE * z)

    y = conv_bn_lrelu(y, params["w1"], params["scale1"], params["shift1"])
    y = conv_bn_lrelu(y, params["w2"], params["scale2"], params["shift2"])
    return jnp.transpose(y, (0, 3, 1, 2))


# ----------------------------------- main -------------------------------------

if __name__ == "__main__":
    key = jax.random.PRNGKey(0)
    k_in, k_skip, k_par = jax.random.split(key, 3)

    N, in_c, out_c = 2, 8, 4
    H = W = 8                        # inputs spatial; up-conv doubles it to 16
    inputs = jax.random.normal(k_in, (N, in_c, H, W), jnp.float32)       # NCHW
    skip = jax.random.normal(k_skip, (N, out_c, 2 * H, 2 * W), jnp.float32)

    params = make_params(in_c, out_c, k_par)

    ref = jax.block_until_ready(_ref_forward(params, inputs, skip))

    fwd = jax.jit(decoder_block_forward, static_argnames=("compute_dtype",))

    # exact-semantics path: f32 matmul inputs
    out_f32 = jax.block_until_ready(
        fwd(params, inputs, skip, compute_dtype=jnp.float32))
    assert out_f32.shape == (N, out_c, 2 * H, 2 * W), out_f32.shape
    assert jnp.allclose(out_f32, ref, atol=1e-4, rtol=1e-4), \
        float(jnp.max(jnp.abs(out_f32 - ref)))

    # performance path: bf16 matmul inputs, f32 accumulation
    out_bf16 = jax.block_until_ready(
        fwd(params, inputs, skip, compute_dtype=jnp.bfloat16))
    assert out_bf16.shape == (N, out_c, 2 * H, 2 * W), out_bf16.shape
    assert jnp.allclose(out_bf16, ref, atol=5e-2, rtol=5e-2), \
        float(jnp.max(jnp.abs(out_bf16 - ref)))

    print("KERNEL_OK")
</pallas_src>

<mosaic_0001>
module attributes {stable_mosaic.version = 11 : i64} {
  func.func @_upconv_kernel(%arg0: i32, %arg1: i32, %arg2: i32, %arg3: memref<1x8x8x8xf32, #tpu.memory_space<vmem>>, %arg4: memref<1x8x8xf32, #tpu.memory_space<vmem>>, %arg5: memref<1x8xf32, #tpu.memory_space<vmem>>, %arg6: memref<1x8x1x8x8xf32, #tpu.memory_space<vmem>>) attributes {dimension_semantics = [#tpu.dimension_semantics<parallel>, #tpu.dimension_semantics<parallel>, #tpu.dimension_semantics<parallel>], iteration_bounds = array<i64: 2, 1, 2>, scalar_prefetch = 0 : i64, scratch_operands = 0 : i64, tpu.core_type = #tpu.core_type<tc>, window_params = [{transform_indices = @transform_0, window_bounds = array<i64: 1, 8, 8, 8>}, {transform_indices = @transform_1, window_bounds = array<i64: 1, 8, 8>}, {pipeline_mode = #tpu.pipeline_mode<synchronous>, transform_indices = @transform_2, window_bounds = array<i64: 1, 8>}, {transform_indices = @transform_3, window_bounds = array<i64: 1, 8, 1, 8, 8>}]} {
    %c0 = arith.constant 0 : index
    %c0_0 = arith.constant 0 : index
    %c0_1 = arith.constant 0 : index
    %c0_2 = arith.constant 0 : index
    %0 = vector.load %arg3[%c0, %c0_0, %c0_1, %c0_2] : memref<1x8x8x8xf32, #tpu.memory_space<vmem>>, vector<1x8x8x8xf32>
    %1 = vector.shape_cast %0 : vector<1x8x8x8xf32> to vector<8x8x8xf32>
    %2 = vector.shape_cast %1 : vector<8x8x8xf32> to vector<64x8xf32>
    %c0_3 = arith.constant 0 : index
    %c0_4 = arith.constant 0 : index
    %c0_5 = arith.constant 0 : index
    %3 = vector.load %arg4[%c0_3, %c0_4, %c0_5] : memref<1x8x8xf32, #tpu.memory_space<vmem>>, vector<1x8x8xf32>
    %4 = vector.shape_cast %3 : vector<1x8x8xf32> to vector<8x8xf32>
    %cst = arith.constant dense<0.000000e+00> : vector<64x8xf32>
    %5 = tpu.matmul %2, %4, %cst {dimension_numbers = #tpu.dot_dimension_numbers<[1], [0], [0], [1], [0, 0, 1, 1], [], []>} : vector<64x8xf32>, vector<8x8xf32>, vector<64x8xf32> -> vector<64x8xf32>
    %c0_6 = arith.constant 0 : index
    %c0_7 = arith.constant 0 : index
    %6 = vector.load %arg5[%c0_6, %c0_7] : memref<1x8xf32, #tpu.memory_space<vmem>>, vector<1x8xf32>
    %7 = vector.broadcast %6 : vector<1x8xf32> to vector<64x8xf32>
    %8 = arith.addf %5, %7 : vector<64x8xf32>
    %9 = vector.shape_cast %8 : vector<64x8xf32> to vector<1x8x1x8x8xf32>
    %c0_8 = arith.constant 0 : index
    %c0_9 = arith.constant 0 : index
    %c0_10 = arith.constant 0 : index
    %c0_11 = arith.constant 0 : index
    %c0_12 = arith.constant 0 : index
    %10 = vector.load %arg6[%c0_8, %c0_9, %c0_10, %c0_11, %c0_12] : memref<1x8x1x8x8xf32, #tpu.memory_space<vmem>>, vector<1x8x1x8x8xf32>
    tpu.vector_store %arg6[%c0_8, %c0_9, %c0_10, %c0_11, %c0_12], %9 {strides = array<i32>} : memref<1x8x1x8x8xf32, #tpu.memory_space<vmem>>, vector<1x8x1x8x8xf32>,
    return
  }
  func.func @transform_0(%arg0: i32, %arg1: i32, %arg2: i32) -> (i32, i32, i32, i32) {
    %c0_i32 = arith.constant 0 : i32
    %c0_i32_0 = arith.constant 0 : i32
    %c0_i32_1 = arith.constant 0 : i32
    return %arg0, %arg1, %c0_i32, %c0_i32_0 : i32, i32, i32, i32
  }
  func.func @transform_1(%arg0: i32, %arg1: i32, %arg2: i32) -> (i32, i32, i32) {
    %c0_i32 = arith.constant 0 : i32
    %c0_i32_0 = arith.constant 0 : i32
    %c0_i32_1 = arith.constant 0 : i32
    return %arg2, %c0_i32, %c0_i32_0 : i32, i32, i32
  }
  func.func @transform_2(%arg0: i32, %arg1: i32, %arg2: i32) -> (i32, i32) {
    %c0_i32 = arith.constant 0 : i32
    %c0_i32_0 = arith.constant 0 : i32
    %c0_i32_1 = arith.constant 0 : i32
    return %c0_i32, %c0_i32_0 : i32, i32
  }
  func.func @transform_3(%arg0: i32, %arg1: i32, %arg2: i32) -> (i32, i32, i32, i32, i32) {
    %c0_i32 = arith.constant 0 : i32
    %c0_i32_0 = arith.constant 0 : i32
    %c0_i32_1 = arith.constant 0 : i32
    return %arg0, %arg1, %arg2, %c0_i32, %c0_i32_0 : i32, i32, i32, i32, i32
  }
}

module attributes {stable_mosaic.version = 11 : i64} {
  func.func @_convblock_kernel(%arg0: i32, %arg1: memref<1x16x16x4xf32, #tpu.memory_space<vmem>>, %arg2: memref<1x16x16x4xf32, #tpu.memory_space<vmem>>, %arg3: memref<3x3x8x4xf32, #tpu.memory_space<vmem>>, %arg4: memref<1x4xf32, #tpu.memory_space<vmem>>, %arg5: memref<1x4xf32, #tpu.memory_space<vmem>>, %arg6: memref<3x3x4x4xf32, #tpu.memory_space<vmem>>, %arg7: memref<1x4xf32, #tpu.memory_space<vmem>>, %arg8: memref<1x4xf32, #tpu.memory_space<vmem>>, %arg9: memref<1x16x16x4xf32, #tpu.memory_space<vmem>>, %arg10: memref<18x18x8xf32, #tpu.memory_space<vmem>>, %arg11: memref<18x18x4xf32, #tpu.memory_space<vmem>>) attributes {dimension_semantics = [#tpu.dimension_semantics<parallel>], iteration_bounds = array<i64: 2>, scalar_prefetch = 0 : i64, scratch_operands = 2 : i64, tpu.core_type = #tpu.core_type<tc>, window_params = [{transform_indices = @transform_0, window_bounds = array<i64: 1, 16, 16, 4>}, {transform_indices = @transform_1, window_bounds = array<i64: 1, 16, 16, 4>}, {pipeline_mode = #tpu.pipeline_mode<synchronous>, transform_indices = @transform_2, window_bounds = array<i64: 3, 3, 8, 4>}, {pipeline_mode = #tpu.pipeline_mode<synchronous>, transform_indices = @transform_3, window_bounds = array<i64: 1, 4>}, {pipeline_mode = #tpu.pipeline_mode<synchronous>, transform_indices = @transform_4, window_bounds = array<i64: 1, 4>}, {pipeline_mode = #tpu.pipeline_mode<synchronous>, transform_indices = @transform_5, window_bounds = array<i64: 3, 3, 4, 4>}, {pipeline_mode = #tpu.pipeline_mode<synchronous>, transform_indices = @transform_6, window_bounds = array<i64: 1, 4>}, {pipeline_mode = #tpu.pipeline_mode<synchronous>, transform_indices = @transform_7, window_bounds = array<i64: 1, 4>}, {transform_indices = @transform_8, window_bounds = array<i64: 1, 16, 16, 4>}]} {
    %cst = arith.constant 0.000000e+00 : f32
    %0 = vector.broadcast %cst : f32 to vector<18x18x8xf32>
    %c0 = arith.constant 0 : index
    %c0_0 = arith.constant 0 : index
    %c0_1 = arith.constant 0 : index
    %1 = vector.load %arg10[%c0, %c0_0, %c0_1] : memref<18x18x8xf32, #tpu.memory_space<vmem>>, vector<18x18x8xf32>
    tpu.vector_store %arg10[%c0, %c0_0, %c0_1], %0 {strides = array<i32>} : memref<18x18x8xf32, #tpu.memory_space<vmem>>, vector<18x18x8xf32>,
    %c0_2 = arith.constant 0 : index
    %c0_3 = arith.constant 0 : index
    %c0_4 = arith.constant 0 : index
    %c0_5 = arith.constant 0 : index
    %2 = vector.load %arg1[%c0_2, %c0_3, %c0_4, %c0_5] : memref<1x16x16x4xf32, #tpu.memory_space<vmem>>, vector<1x16x16x4xf32>
    %3 = vector.shape_cast %2 : vector<1x16x16x4xf32> to vector<16x16x4xf32>
    %c1 = arith.constant 1 : index
    %c1_6 = arith.constant 1 : index
    %c0_7 = arith.constant 0 : index
    %4 = vector.load %arg10[%c1, %c1_6, %c0_7] : memref<18x18x8xf32, #tpu.memory_space<vmem>>, vector<16x16x4xf32>
    tpu.vector_store %arg10[%c1, %c1_6, %c0_7], %3 {strides = array<i32>} : memref<18x18x8xf32, #tpu.memory_space<vmem>>, vector<16x16x4xf32>,
    %c0_8 = arith.constant 0 : index
    %c0_9 = arith.constant 0 : index
    %c0_10 = arith.constant 0 : index
    %c0_11 = arith.constant 0 : index
    %5 = vector.load %arg2[%c0_8, %c0_9, %c0_10, %c0_11] : memref<1x16x16x4xf32, #tpu.memory_space<vmem>>, vector<1x16x16x4xf32>
    %6 = vector.shape_cast %5 : vector<1x16x16x4xf32> to vector<16x16x4xf32>
    %c1_12 = arith.constant 1 : index
    %c1_13 = arith.constant 1 : index
    %c4 = arith.constant 4 : index
    %7 = vector.load %arg10[%c1_12, %c1_13, %c4] : memref<18x18x8xf32, #tpu.memory_space<vmem>>, vector<16x16x4xf32>
    tpu.vector_store %arg10[%c1_12, %c1_13, %c4], %6 {strides = array<i32>} : memref<18x18x8xf32, #tpu.memory_space<vmem>>, vector<16x16x4xf32>,
    %cst_14 = arith.constant 0.000000e+00 : f32
    %8 = vector.broadcast %cst_14 : f32 to vector<256x4xf32>
    %c0_15 = arith.constant 0 : index
    %c0_16 = arith.constant 0 : index
    %c0_17 = arith.constant 0 : index
    %9 = vector.load %arg10[%c0_15, %c0_16, %c0_17] : memref<18x18x8xf32, #tpu.memory_space<vmem>>, vector<16x16x8xf32>
    %10 = vector.shape_cast %9 : vector<16x16x8xf32> to vector<256x8xf32>
    %c0_18 = arith.constant 0 : index
    %c0_19 = arith.constant 0 : index
    %c0_20 = arith.constant 0 : index
    %c0_21 = arith.constant 0 : index
    %11 = vector.load %arg3[%c0_18, %c0_19, %c0_20, %c0_21] : memref<3x3x8x4xf32, #tpu.memory_space<vmem>>, vector<1x1x8x4xf32>
    %12 = vector.shape_cast %11 : vector<1x1x8x4xf32> to vector<8x4xf32>
    %cst_22 = arith.constant dense<0.000000e+00> : vector<256x4xf32>
    %13 = tpu.matmul %10, %12, %cst_22 {dimension_numbers = #tpu.dot_dimension_numbers<[1], [0], [0], [1], [0, 0, 1, 1], [], []>} : vector<256x8xf32>, vector<8x4xf32>, vector<256x4xf32> -> vector<256x4xf32>
    %14 = arith.addf %8, %13 : vector<256x4xf32>
    %c0_23 = arith.constant 0 : index
    %c1_24 = arith.constant 1 : index
    %c0_25 = arith.constant 0 : index
    %15 = vector.load %arg10[%c0_23, %c1_24, %c0_25] : memref<18x18x8xf32, #tpu.memory_space<vmem>>, vector<16x16x8xf32>
    %16 = vector.shape_cast %15 : vector<16x16x8xf32> to vector<256x8xf32>
    %c0_26 = arith.constant 0 : index
    %c1_27 = arith.constant 1 : index
    %c0_28 = arith.constant 0 : index
    %c0_29 = arith.constant 0 : index
    %17 = vector.load %arg3[%c0_26, %c1_27, %c0_28, %c0_29] : memref<3x3x8x4xf32, #tpu.memory_space<vmem>>, vector<1x1x8x4xf32>
    %18 = vector.shape_cast %17 : vector<1x1x8x4xf32> to vector<8x4xf32>
    %cst_30 = arith.constant dense<0.000000e+00> : vector<256x4xf32>
    %19 = tpu.matmul %16, %18, %cst_30 {dimension_numbers = #tpu.dot_dimension_numbers<[1], [0], [0], [1], [0, 0, 1, 1], [], []>} : vector<256x8xf32>, vector<8x4xf32>, vector<256x4xf32> -> vector<256x4xf32>
    %20 = arith.addf %14, %19 : vector<256x4xf32>
    %c0_31 = arith.constant 0 : index
    %c2 = arith.constant 2 : index
    %c0_32 = arith.constant 0 : index
    %21 = vector.load %arg10[%c0_31, %c2, %c0_32] : memref<18x18x8xf32, #tpu.memory_space<vmem>>, vector<16x16x8xf32>
    %22 = vector.shape_cast %21 : vector<16x16x8xf32> to vector<256x8xf32>
    %c0_33 = arith.constant 0 : index
    %c2_34 = arith.constant 2 : index
    %c0_35 = arith.constant 0 : index
    %c0_36 = arith.constant 0 : index
    %23 = vector.load %arg3[%c0_33, %c2_34, %c0_35, %c0_36] : memref<3x3x8x4xf32, #tpu.memory_space<vmem>>, vector<1x1x8x4xf32>
    %24 = vector.shape_cast %23 : vector<1x1x8x4xf32> to vector<8x4xf32>
    %cst_37 = arith.constant dense<0.000000e+00> : vector<256x4xf32>
    %25 = tpu.matmul %22, %24, %cst_37 {dimension_numbers = #tpu.dot_dimension_numbers<[1], [0], [0], [1], [0, 0, 1, 1], [], []>} : vector<256x8xf32>, vector<8x4xf32>, vector<256x4xf32> -> vector<256x4xf32>
    %26 = arith.addf %20, %25 : vector<256x4xf32>
    %c1_38 = arith.constant 1 : index
    %c0_39 = arith.constant 0 : index
    %c0_40 = arith.constant 0 : index
    %27 = vector.load %arg10[%c1_38, %c0_39, %c0_40] : memref<18x18x8xf32, #tpu.memory_space<vmem>>, vector<16x16x8xf32>
    %28 = vector.shape_cast %27 : vector<16x16x8xf32> to vector<256x8xf32>
    %c1_41 = arith.constant 1 : index
    %c0_42 = arith.constant 0 : index
    %c0_43 = arith.constant 0 : index
    %c0_44 = arith.constant 0 : index
    %29 = vector.load %arg3[%c1_41, %c0_42, %c0_43, %c0_44] : memref<3x3x8x4xf32, #tpu.memory_space<vmem>>, vector<1x1x8x4xf32>
    %30 = vector.shape_cast %29 : vector<1x1x8x4xf32> to vector<8x4xf32>
    %cst_45 = arith.constant dense<0.000000e+00> : vector<256x4xf32>
    %31 = tpu.matmul %28, %30, %cst_45 {dimension_numbers = #tpu.dot_dimension_numbers<[1], [0], [0], [1], [0, 0, 1, 1], [], []>} : vector<256x8xf32>, vector<8x4xf32>, vector<256x4xf32> -> vector<256x4xf32>
    %32 = arith.addf %26, %31 : vector<256x4xf32>
    %c1_46 = arith.constant 1 : index
    %c1_47 = arith.constant 1 : index
    %c0_48 = arith.constant 0 : index
    %33 = vector.load %arg10[%c1_46, %c1_47, %c0_48] : memref<18x18x8xf32, #tpu.memory_space<vmem>>, vector<16x16x8xf32>
    %34 = vector.shape_cast %33 : vector<16x16x8xf32> to vector<256x8xf32>
    %c1_49 = arith.constant 1 : index
    %c1_50 = arith.constant 1 : index
    %c0_51 = arith.constant 0 : index
    %c0_52 = arith.constant 0 : index
    %35 = vector.load %arg3[%c1_49, %c1_50, %c0_51, %c0_52] : memref<3x3x8x4xf32, #tpu.memory_space<vmem>>, vector<1x1x8x4xf32>
    %36 = vector.shape_cast %35 : vector<1x1x8x4xf32> to vector<8x4xf32>
    %cst_53 = arith.constant dense<0.000000e+00> : vector<256x4xf32>
    %37 = tpu.matmul %34, %36, %cst_53 {dimension_numbers = #tpu.dot_dimension_numbers<[1], [0], [0], [1], [0, 0, 1, 1], [], []>} : vector<256x8xf32>, vector<8x4xf32>, vector<256x4xf32> -> vector<256x4xf32>
    %38 = arith.addf %32, %37 : vector<256x4xf32>
    %c1_54 = arith.constant 1 : index
    %c2_55 = arith.constant 2 : index
    %c0_56 = arith.constant 0 : index
    %39 = vector.load %arg10[%c1_54, %c2_55, %c0_56] : memref<18x18x8xf32, #tpu.memory_space<vmem>>, vector<16x16x8xf32>
    %40 = vector.shape_cast %39 : vector<16x16x8xf32> to vector<256x8xf32>
    %c1_57 = arith.constant 1 : index
    %c2_58 = arith.constant 2 : index
    %c0_59 = arith.constant 0 : index
    %c0_60 = arith.constant 0 : index
    %41 = vector.load %arg3[%c1_57, %c2_58, %c0_59, %c0_60] : memref<3x3x8x4xf32, #tpu.memory_space<vmem>>, vector<1x1x8x4xf32>
    %42 = vector.shape_cast %41 : vector<1x1x8x4xf32> to vector<8x4xf32>
    %cst_61 = arith.constant dense<0.000000e+00> : vector<256x4xf32>
    %43 = tpu.matmul %40, %42, %cst_61 {dimension_numbers = #tpu.dot_dimension_numbers<[1], [0], [0], [1], [0, 0, 1, 1], [], []>} : vector<256x8xf32>, vector<8x4xf32>, vector<256x4xf32> -> vector<256x4xf32>
    %44 = arith.addf %38, %43 : vector<256x4xf32>
    %c2_62 = arith.constant 2 : index
    %c0_63 = arith.constant 0 : index
    %c0_64 = arith.constant 0 : index
    %45 = vector.load %arg10[%c2_62, %c0_63, %c0_64] : memref<18x18x8xf32, #tpu.memory_space<vmem>>, vector<16x16x8xf32>
    %46 = vector.shape_cast %45 : vector<16x16x8xf32> to vector<256x8xf32>
    %c2_65 = arith.constant 2 : index
    %c0_66 = arith.constant 0 : index
    %c0_67 = arith.constant 0 : index
    %c0_68 = arith.constant 0 : index
    %47 = vector.load %arg3[%c2_65, %c0_66, %c0_67, %c0_68] : memref<3x3x8x4xf32, #tpu.memory_space<vmem>>, vector<1x1x8x4xf32>
    %48 = vector.shape_cast %47 : vector<1x1x8x4xf32> to vector<8x4xf32>
    %cst_69 = arith.constant dense<0.000000e+00> : vector<256x4xf32>
    %49 = tpu.matmul %46, %48, %cst_69 {dimension_numbers = #tpu.dot_dimension_numbers<[1], [0], [0], [1], [0, 0, 1, 1], [], []>} : vector<256x8xf32>, vector<8x4xf32>, vector<256x4xf32> -> vector<256x4xf32>
    %50 = arith.addf %44, %49 : vector<256x4xf32>
    %c2_70 = arith.constant 2 : index
    %c1_71 = arith.constant 1 : index
    %c0_72 = arith.constant 0 : index
    %51 = vector.load %arg10[%c2_70, %c1_71, %c0_72] : memref<18x18x8xf32, #tpu.memory_space<vmem>>, vector<16x16x8xf32>
    %52 = vector.shape_cast %51 : vector<16x16x8xf32> to vector<256x8xf32>
    %c2_73 = arith.constant 2 : index
    %c1_74 = arith.constant 1 : index
    %c0_75 = arith.constant 0 : index
    %c0_76 = arith.constant 0 : index
    %53 = vector.load %arg3[%c2_73, %c1_74, %c0_75, %c0_76] : memref<3x3x8x4xf32, #tpu.memory_space<vmem>>, vector<1x1x8x4xf32>
    %54 = vector.shape_cast %53 : vector<1x1x8x4xf32> to vector<8x4xf32>
    %cst_77 = arith.constant dense<0.000000e+00> : vector<256x4xf32>
    %55 = tpu.matmul %52, %54, %cst_77 {dimension_numbers = #tpu.dot_dimension_numbers<[1], [0], [0], [1], [0, 0, 1, 1], [], []>} : vector<256x8xf32>, vector<8x4xf32>, vector<256x4xf32> -> vector<256x4xf32>
    %56 = arith.addf %50, %55 : vector<256x4xf32>
    %c2_78 = arith.constant 2 : index
    %c2_79 = arith.constant 2 : index
    %c0_80 = arith.constant 0 : index
    %57 = vector.load %arg10[%c2_78, %c2_79, %c0_80] : memref<18x18x8xf32, #tpu.memory_space<vmem>>, vector<16x16x8xf32>
    %58 = vector.shape_cast %57 : vector<16x16x8xf32> to vector<256x8xf32>
    %c2_81 = arith.constant 2 : index
    %c2_82 = arith.constant 2 : index
    %c0_83 = arith.constant 0 : index
    %c0_84 = arith.constant 0 : index
    %59 = vector.load %arg3[%c2_81, %c2_82, %c0_83, %c0_84] : memref<3x3x8x4xf32, #tpu.memory_space<vmem>>, vector<1x1x8x4xf32>
    %60 = vector.shape_cast %59 : vector<1x1x8x4xf32> to vector<8x4xf32>
    %cst_85 = arith.constant dense<0.000000e+00> : vector<256x4xf32>
    %61 = tpu.matmul %58, %60, %cst_85 {dimension_numbers = #tpu.dot_dimension_numbers<[1], [0], [0], [1], [0, 0, 1, 1], [], []>} : vector<256x8xf32>, vector<8x4xf32>, vector<256x4xf32> -> vector<256x4xf32>
    %62 = arith.addf %56, %61 : vector<256x4xf32>
    %c0_86 = arith.constant 0 : index
    %c0_87 = arith.constant 0 : index
    %63 = vector.load %arg4[%c0_86, %c0_87] : memref<1x4xf32, #tpu.memory_space<vmem>>, vector<1x4xf32>
    %64 = vector.broadcast %63 : vector<1x4xf32> to vector<256x4xf32>
    %65 = arith.mulf %62, %64 : vector<256x4xf32>
    %c0_88 = arith.constant 0 : index
    %c0_89 = arith.constant 0 : index
    %66 = vector.load %arg5[%c0_88, %c0_89] : memref<1x4xf32, #tpu.memory_space<vmem>>, vector<1x4xf32>
    %67 = vector.broadcast %66 : vector<1x4xf32> to vector<256x4xf32>
    %68 = arith.addf %65, %67 : vector<256x4xf32>
    %cst_90 = arith.constant 0.000000e+00 : f32
    %69 = vector.broadcast %cst_90 : f32 to vector<256x4xf32>
    %70 = arith.cmpf oge, %68, %69 : vector<256x4xf32>
    %cst_91 = arith.constant 0.00999999977 : f32
    %71 = vector.broadcast %cst_91 : f32 to vector<256x4xf32>
    %72 = arith.mulf %71, %68 : vector<256x4xf32>
    %73 = arith.select %70, %68, %72 : vector<256x4xi1>, vector<256x4xf32>
    %cst_92 = arith.constant 0.000000e+00 : f32
    %74 = vector.broadcast %cst_92 : f32 to vector<18x18x4xf32>
    %c0_93 = arith.constant 0 : index
    %c0_94 = arith.constant 0 : index
    %c0_95 = arith.constant 0 : index
    %75 = vector.load %arg11[%c0_93, %c0_94, %c0_95] : memref<18x18x4xf32, #tpu.memory_space<vmem>>, vector<18x18x4xf32>
    tpu.vector_store %arg11[%c0_93, %c0_94, %c0_95], %74 {strides = array<i32>} : memref<18x18x4xf32, #tpu.memory_space<vmem>>, vector<18x18x4xf32>,
    %76 = vector.shape_cast %73 : vector<256x4xf32> to vector<16x16x4xf32>
    %c1_96 = arith.constant 1 : index
    %c1_97 = arith.constant 1 : index
    %c0_98 = arith.constant 0 : index
    %77 = vector.load %arg11[%c1_96, %c1_97, %c0_98] : memref<18x18x4xf32, #tpu.memory_space<vmem>>, vector<16x16x4xf32>
    tpu.vector_store %arg11[%c1_96, %c1_97, %c0_98], %76 {strides = array<i32>} : memref<18x18x4xf32, #tpu.memory_space<vmem>>, vector<16x16x4xf32>,
    %cst_99 = arith.constant 0.000000e+00 : f32
    %78 = vector.broadcast %cst_99 : f32 to vector<256x4xf32>
    %c0_100 = arith.constant 0 : index
    %c0_101 = arith.constant 0 : index
    %c0_102 = arith.constant 0 : index
    %79 = vector.load %arg11[%c0_100, %c0_101, %c0_102] : memref<18x18x4xf32, #tpu.memory_space<vmem>>, vector<16x16x4xf32>
    %80 = vector.shape_cast %79 : vector<16x16x4xf32> to vector<256x4xf32>
    %c0_103 = arith.constant 0 : index
    %c0_104 = arith.constant 0 : index
    %c0_105 = arith.constant 0 : index
    %c0_106 = arith.constant 0 : index
    %81 = vector.load %arg6[%c0_103, %c0_104, %c0_105, %c0_106] : memref<3x3x4x4xf32, #tpu.memory_space<vmem>>, vector<1x1x4x4xf32>
    %82 = vector.shape_cast %81 : vector<1x1x4x4xf32> to vector<4x4xf32>
    %cst_107 = arith.constant dense<0.000000e+00> : vector<256x4xf32>
    %83 = tpu.matmul %80, %82, %cst_107 {dimension_numbers = #tpu.dot_dimension_numbers<[1], [0], [0], [1], [0, 0, 1, 1], [], []>} : vector<256x4xf32>, vector<4x4xf32>, vector<256x4xf32> -> vector<256x4xf32>
    %84 = arith.addf %78, %83 : vector<256x4xf32>
    %c0_108 = arith.constant 0 : index
    %c1_109 = arith.constant 1 : index
    %c0_110 = arith.constant 0 : index
    %85 = vector.load %arg11[%c0_108, %c1_109, %c0_110] : memref<18x18x4xf32, #tpu.memory_space<vmem>>, vector<16x16x4xf32>
    %86 = vector.shape_cast %85 : vector<16x16x4xf32> to vector<256x4xf32>
    %c0_111 = arith.constant 0 : index
    %c1_112 = arith.constant 1 : index
    %c0_113 = arith.constant 0 : index
    %c0_114 = arith.constant 0 : index
    %87 = vector.load %arg6[%c0_111, %c1_112, %c0_113, %c0_114] : memref<3x3x4x4xf32, #tpu.memory_space<vmem>>, vector<1x1x4x4xf32>
    %88 = vector.shape_cast %87 : vector<1x1x4x4xf32> to vector<4x4xf32>
    %cst_115 = arith.constant dense<0.000000e+00> : vector<256x4xf32>
    %89 = tpu.matmul %86, %88, %cst_115 {dimension_numbers = #tpu.dot_dimension_numbers<[1], [0], [0], [1], [0, 0, 1, 1], [], []>} : vector<256x4xf32>, vector<4x4xf32>, vector<256x4xf32> -> vector<256x4xf32>
    %90 = arith.addf %84, %89 : vector<256x4xf32>
    %c0_116 = arith.constant 0 : index
    %c2_117 = arith.constant 2 : index
    %c0_118 = arith.constant 0 : index
    %91 = vector.load %arg11[%c0_116, %c2_117, %c0_118] : memref<18x18x4xf32, #tpu.memory_space<vmem>>, vector<16x16x4xf32>
    %92 = vector.shape_cast %91 : vector<16x16x4xf32> to vector<256x4xf32>
    %c0_119 = arith.constant 0 : index
    %c2_120 = arith.constant 2 : index
    %c0_121 = arith.constant 0 : index
    %c0_122 = arith.constant 0 : index
    %93 = vector.load %arg6[%c0_119, %c2_120, %c0_121, %c0_122] : memref<3x3x4x4xf32, #tpu.memory_space<vmem>>, vector<1x1x4x4xf32>
    %94 = vector.shape_cast %93 : vector<1x1x4x4xf32> to vector<4x4xf32>
    %cst_123 = arith.constant dense<0.000000e+00> : vector<256x4xf32>
    %95 = tpu.matmul %92, %94, %cst_123 {dimension_numbers = #tpu.dot_dimension_numbers<[1], [0], [0], [1], [0, 0, 1, 1], [], []>} : vector<256x4xf32>, vector<4x4xf32>, vector<256x4xf32> -> vector<256x4xf32>
    %96 = arith.addf %90, %95 : vector<256x4xf32>
    %c1_124 = arith.constant 1 : index
    %c0_125 = arith.constant 0 : index
    %c0_126 = arith.constant 0 : index
    %97 = vector.load %arg11[%c1_124, %c0_125, %c0_126] : memref<18x18x4xf32, #tpu.memory_space<vmem>>, vector<16x16x4xf32>
    %98 = vector.shape_cast %97 : vector<16x16x4xf32> to vector<256x4xf32>
    %c1_127 = arith.constant 1 : index
    %c0_128 = arith.constant 0 : index
    %c0_129 = arith.constant 0 : index
    %c0_130 = arith.constant 0 : index
    %99 = vector.load %arg6[%c1_127, %c0_128, %c0_129, %c0_130] : memref<3x3x4x4xf32, #tpu.memory_space<vmem>>, vector<1x1x4x4xf32>
    %100 = vector.shape_cast %99 : vector<1x1x4x4xf32> to vector<4x4xf32>
    %cst_131 = arith.constant dense<0.000000e+00> : vector<256x4xf32>
    %101 = tpu.matmul %98, %100, %cst_131 {dimension_numbers = #tpu.dot_dimension_numbers<[1], [0], [0], [1], [0, 0, 1, 1], [], []>} : vector<256x4xf32>, vector<4x4xf32>, vector<256x4xf32> -> vector<256x4xf32>
    %102 = arith.addf %96, %101 : vector<256x4xf32>
    %c1_132 = arith.constant 1 : index
    %c1_133 = arith.constant 1 : index
    %c0_134 = arith.constant 0 : index
    %103 = vector.load %arg11[%c1_132, %c1_133, %c0_134] : memref<18x18x4xf32, #tpu.memory_space<vmem>>, vector<16x16x4xf32>
    %104 = vector.shape_cast %103 : vector<16x16x4xf32> to vector<256x4xf32>
    %c1_135 = arith.constant 1 : index
    %c1_136 = arith.constant 1 : index
    %c0_137 = arith.constant 0 : index
    %c0_138 = arith.constant 0 : index
    %105 = vector.load %arg6[%c1_135, %c1_136, %c0_137, %c0_138] : memref<3x3x4x4xf32, #tpu.memory_space<vmem>>, vector<1x1x4x4xf32>
    %106 = vector.shape_cast %105 : vector<1x1x4x4xf32> to vector<4x4xf32>
    %cst_139 = arith.constant dense<0.000000e+00> : vector<256x4xf32>
    %107 = tpu.matmul %104, %106, %cst_139 {dimension_numbers = #tpu.dot_dimension_numbers<[1], [0], [0], [1], [0, 0, 1, 1], [], []>} : vector<256x4xf32>, vector<4x4xf32>, vector<256x4xf32> -> vector<256x4xf32>
    %108 = arith.addf %102, %107 : vector<256x4xf32>
    %c1_140 = arith.constant 1 : index
    %c2_141 = arith.constant 2 : index
    %c0_142 = arith.constant 0 : index
    %109 = vector.load %arg11[%c1_140, %c2_141, %c0_142] : memref<18x18x4xf32, #tpu.memory_space<vmem>>, vector<16x16x4xf32>
    %110 = vector.shape_cast %109 : vector<16x16x4xf32> to vector<256x4xf32>
    %c1_143 = arith.constant 1 : index
    %c2_144 = arith.constant 2 : index
    %c0_145 = arith.constant 0 : index
    %c0_146 = arith.constant 0 : index
    %111 = vector.load %arg6[%c1_143, %c2_144, %c0_145, %c0_146] : memref<3x3x4x4xf32, #tpu.memory_space<vmem>>, vector<1x1x4x4xf32>
    %112 = vector.shape_cast %111 : vector<1x1x4x4xf32> to vector<4x4xf32>
    %cst_147 = arith.constant dense<0.000000e+00> : vector<256x4xf32>
    %113 = tpu.matmul %110, %112, %cst_147 {dimension_numbers = #tpu.dot_dimension_numbers<[1], [0], [0], [1], [0, 0, 1, 1], [], []>} : vector<256x4xf32>, vector<4x4xf32>, vector<256x4xf32> -> vector<256x4xf32>
    %114 = arith.addf %108, %113 : vector<256x4xf32>
    %c2_148 = arith.constant 2 : index
    %c0_149 = arith.constant 0 : index
    %c0_150 = arith.constant 0 : index
    %115 = vector.load %arg11[%c2_148, %c0_149, %c0_150] : memref<18x18x4xf32, #tpu.memory_space<vmem>>, vector<16x16x4xf32>
    %116 = vector.shape_cast %115 : vector<16x16x4xf32> to vector<256x4xf32>
    %c2_151 = arith.constant 2 : index
    %c0_152 = arith.constant 0 : index
    %c0_153 = arith.constant 0 : index
    %c0_154 = arith.constant 0 : index
    %117 = vector.load %arg6[%c2_151, %c0_152, %c0_153, %c0_154] : memref<3x3x4x4xf32, #tpu.memory_space<vmem>>, vector<1x1x4x4xf32>
    %118 = vector.shape_cast %117 : vector<1x1x4x4xf32> to vector<4x4xf32>
    %cst_155 = arith.constant dense<0.000000e+00> : vector<256x4xf32>
    %119 = tpu.matmul %116, %118, %cst_155 {dimension_numbers = #tpu.dot_dimension_numbers<[1], [0], [0], [1], [0, 0, 1, 1], [], []>} : vector<256x4xf32>, vector<4x4xf32>, vector<256x4xf32> -> vector<256x4xf32>
    %120 = arith.addf %114, %119 : vector<256x4xf32>
    %c2_156 = arith.constant 2 : index
    %c1_157 = arith.constant 1 : index
    %c0_158 = arith.constant 0 : index
    %121 = vector.load %arg11[%c2_156, %c1_157, %c0_158] : memref<18x18x4xf32, #tpu.memory_space<vmem>>, vector<16x16x4xf32>
    %122 = vector.shape_cast %121 : vector<16x16x4xf32> to vector<256x4xf32>
    %c2_159 = arith.constant 2 : index
    %c1_160 = arith.constant 1 : index
    %c0_161 = arith.constant 0 : index
    %c0_162 = arith.constant 0 : index
    %123 = vector.load %arg6[%c2_159, %c1_160, %c0_161, %c0_162] : memref<3x3x4x4xf32, #tpu.memory_space<vmem>>, vector<1x1x4x4xf32>
    %124 = vector.shape_cast %123 : vector<1x1x4x4xf32> to vector<4x4xf32>
    %cst_163 = arith.constant dense<0.000000e+00> : vector<256x4xf32>
    %125 = tpu.matmul %122, %124, %cst_163 {dimension_numbers = #tpu.dot_dimension_numbers<[1], [0], [0], [1], [0, 0, 1, 1], [], []>} : vector<256x4xf32>, vector<4x4xf32>, vector<256x4xf32> -> vector<256x4xf32>
    %126 = arith.addf %120, %125 : vector<256x4xf32>
    %c2_164 = arith.constant 2 : index
    %c2_165 = arith.constant 2 : index
    %c0_166 = arith.constant 0 : index
    %127 = vector.load %arg11[%c2_164, %c2_165, %c0_166] : memref<18x18x4xf32, #tpu.memory_space<vmem>>, vector<16x16x4xf32>
    %128 = vector.shape_cast %127 : vector<16x16x4xf32> to vector<256x4xf32>
    %c2_167 = arith.constant 2 : index
    %c2_168 = arith.constant 2 : index
    %c0_169 = arith.constant 0 : index
    %c0_170 = arith.constant 0 : index
    %129 = vector.load %arg6[%c2_167, %c2_168, %c0_169, %c0_170] : memref<3x3x4x4xf32, #tpu.memory_space<vmem>>, vector<1x1x4x4xf32>
    %130 = vector.shape_cast %129 : vector<1x1x4x4xf32> to vector<4x4xf32>
    %cst_171 = arith.constant dense<0.000000e+00> : vector<256x4xf32>
    %131 = tpu.matmul %128, %130, %cst_171 {dimension_numbers = #tpu.dot_dimension_numbers<[1], [0], [0], [1], [0, 0, 1, 1], [], []>} : vector<256x4xf32>, vector<4x4xf32>, vector<256x4xf32> -> vector<256x4xf32>
    %132 = arith.addf %126, %131 : vector<256x4xf32>
    %c0_172 = arith.constant 0 : index
    %c0_173 = arith.constant 0 : index
    %133 = vector.load %arg7[%c0_172, %c0_173] : memref<1x4xf32, #tpu.memory_space<vmem>>, vector<1x4xf32>
    %134 = vector.broadcast %133 : vector<1x4xf32> to vector<256x4xf32>
    %135 = arith.mulf %132, %134 : vector<256x4xf32>
    %c0_174 = arith.constant 0 : index
    %c0_175 = arith.constant 0 : index
    %136 = vector.load %arg8[%c0_174, %c0_175] : memref<1x4xf32, #tpu.memory_space<vmem>>, vector<1x4xf32>
    %137 = vector.broadcast %136 : vector<1x4xf32> to vector<256x4xf32>
    %138 = arith.addf %135, %137 : vector<256x4xf32>
    %cst_176 = arith.constant 0.000000e+00 : f32
    %139 = vector.broadcast %cst_176 : f32 to vector<256x4xf32>
    %140 = arith.cmpf oge, %138, %139 : vector<256x4xf32>
    %cst_177 = arith.constant 0.00999999977 : f32
    %141 = vector.broadcast %cst_177 : f32 to vector<256x4xf32>
    %142 = arith.mulf %141, %138 : vector<256x4xf32>
    %143 = arith.select %140, %138, %142 : vector<256x4xi1>, vector<256x4xf32>
    %144 = vector.shape_cast %143 : vector<256x4xf32> to vector<1x16x16x4xf32>
    %c0_178 = arith.constant 0 : index
    %c0_179 = arith.constant 0 : index
    %c0_180 = arith.constant 0 : index
    %c0_181 = arith.constant 0 : index
    %145 = vector.load %arg9[%c0_178, %c0_179, %c0_180, %c0_181] : memref<1x16x16x4xf32, #tpu.memory_space<vmem>>, vector<1x16x16x4xf32>
    tpu.vector_store %arg9[%c0_178, %c0_179, %c0_180, %c0_181], %144 {strides = array<i32>} : memref<1x16x16x4xf32, #tpu.memory_space<vmem>>, vector<1x16x16x4xf32>,
    return
  }
  func.func @transform_0(%arg0: i32) -> (i32, i32, i32, i32) {
    %c0_i32 = arith.constant 0 : i32
    %c0_i32_0 = arith.constant 0 : i32
    %c0_i32_1 = arith.constant 0 : i32
    %c0_i32_2 = arith.constant 0 : i32
    return %arg0, %c0_i32, %c0_i32_0, %c0_i32_1 : i32, i32, i32, i32
  }
  func.func @transform_1(%arg0: i32) -> (i32, i32, i32, i32) {
    %c0_i32 = arith.constant 0 : i32
    %c0_i32_0 = arith.constant 0 : i32
    %c0_i32_1 = arith.constant 0 : i32
    %c0_i32_2 = arith.constant 0 : i32
    return %arg0, %c0_i32, %c0_i32_0, %c0_i32_1 : i32, i32, i32, i32
  }
  func.func @transform_2(%arg0: i32) -> (i32, i32, i32, i32) {
    %c0_i32 = arith.constant 0 : i32
    %c0_i32_0 = arith.constant 0 : i32
    %c0_i32_1 = arith.constant 0 : i32
    %c0_i32_2 = arith.constant 0 : i32
    %c0_i32_3 = arith.constant 0 : i32
    return %c0_i32, %c0_i32_0, %c0_i32_1, %c0_i32_2 : i32, i32, i32, i32
  }
  func.func @transform_3(%arg0: i32) -> (i32, i32) {
    %c0_i32 = arith.constant 0 : i32
    %c0_i32_0 = arith.constant 0 : i32
    %c0_i32_1 = arith.constant 0 : i32
    return %c0_i32, %c0_i32_0 : i32, i32
  }
  func.func @transform_4(%arg0: i32) -> (i32, i32) {
    %c0_i32 = arith.constant 0 : i32
    %c0_i32_0 = arith.constant 0 : i32
    %c0_i32_1 = arith.constant 0 : i32
    return %c0_i32, %c0_i32_0 : i32, i32
  }
  func.func @transform_5(%arg0: i32) -> (i32, i32, i32, i32) {
    %c0_i32 = arith.constant 0 : i32
    %c0_i32_0 = arith.constant 0 : i32
    %c0_i32_1 = arith.constant 0 : i32
    %c0_i32_2 = arith.constant 0 : i32
    %c0_i32_3 = arith.constant 0 : i32
    return %c0_i32, %c0_i32_0, %c0_i32_1, %c0_i32_2 : i32, i32, i32, i32
  }
  func.func @transform_6(%arg0: i32) -> (i32, i32) {
    %c0_i32 = arith.constant 0 : i32
    %c0_i32_0 = arith.constant 0 : i32
    %c0_i32_1 = arith.constant 0 : i32
    return %c0_i32, %c0_i32_0 : i32, i32
  }
  func.func @transform_7(%arg0: i32) -> (i32, i32) {
    %c0_i32 = arith.constant 0 : i32
    %c0_i32_0 = arith.constant 0 : i32
    %c0_i32_1 = arith.constant 0 : i32
    return %c0_i32, %c0_i32_0 : i32, i32
  }
  func.func @transform_8(%arg0: i32) -> (i32, i32, i32, i32) {
    %c0_i32 = arith.constant 0 : i32
    %c0_i32_0 = arith.constant 0 : i32
    %c0_i32_1 = arith.constant 0 : i32
    %c0_i32_2 = arith.constant 0 : i32
    return %arg0, %c0_i32, %c0_i32_0, %c0_i32_1 : i32, i32, i32, i32
  }
}

</mosaic_0001>

<llo_original>
// kernel: tile.9
$region0: #{tile.9}
  %s0 = inlined_call_operand.vmem [shape: f32[2,4], index: 0, kind: input, shape index: {}]
  %s1 = inlined_call_operand.vmem [shape: f32[1,8], index: 1, kind: output, shape index: {}]
  $region1: #{tile.9} parent=0
    #allocation0 [shape = 'u8[4096]{0}', space=vmem, size = 0x1000, scoped, tag = 'scoped mem for output reshape']
    #allocation1 [shape = 'u8[4096]{0}', space=vmem, size = 0x1000, scoped, tag = 'scoped mem for input reshape']
    %s3 = sshll.u32 1, 2
    %s4 = ssub.s32 %s3, 1
    %v5 = vld [vmem:[%s0] sm:%s4]
    %6 = vst [vmem:[#allocation1] sm:%s4] %v5
    %v7 = vld [vmem:[#allocation1] sm:$0x1]
    %vm8 = vcmask 31744
    %9 = vst.msk [vmem:[#allocation0] sm:$0x1] %vm8, %v7
    %s10 = scalar_lea.vmem [#allocation1], 1
    %v11 = vld [vmem:[%s10] sm:$0x1]
    %12 = vrot.lane.b32.xlu0 %v11, 4
    %v13 = vpop.permute.xlu0 %12
    %vm14 = vcmask 64544
    %15 = vst.msk [vmem:[#allocation0] sm:$0x1] %vm14, %v13
    %s17 = sshll.u32 1, 1
    %s18 = ssub.s32 %s17, 1
    %v20 = vld [vmem:[#allocation0] sm:%s18]
    %s21 = sshll.u32 1, 1
    %s22 = ssub.s32 %s21, 1
    %23 = vst [vmem:[%s1] sm:%s22] %v20

// kernel: tile.8
$region0: #{tile.8}
  #allocation2 [shape = 's32[1]{0}', space=sflag, size = 0x4, scoped, tag = 'scoped memory for tile.8']
  %s0 = inlined_call_operand.hbm [shape: f32[4], index: 0, kind: input, shape index: {}]
  %s1 = inlined_call_operand.vmem [shape: f32[2,4], index: 1, kind: output, shape index: {}]
  $region1: #{tile.8} parent=0
    #allocation0 [shape = 'u8[512]{0}', space=vmem, size = 0x400, scoped, tag = 'operand span for operand 0']
    #allocation1 [shape = 's32[1]{0}', space=sflag, size = 0x4, scoped, tag = 'scoped memory for tile.8']
    %2 = vsyncpa [#allocation1], 0
    // Predicated region
    $region2: #{tile.8} parent=1 // pred_check
      _
    $region3: #{tile.8} parent=1 // pred_check_branch
      %4 = sbr.rel (0) target = $region5
    $region4: #{tile.8} parent=1 // pred_region
      %s6 = ssub.s32 16, 16
      %7 = vsyncadd [#allocation1], %s6
      %s9 = sshll.u32 [#allocation0], 4
      %s10 = int_to_ptr.vmem [resolvable:$true] %s9
      %12 = dma.hbm_to_vmem [thread:$0]  %s0, 16, %s10, [#allocation1]
    $region5: #{tile.8} parent=1 // pred_fallthru
      _
    // Predicated region
    $region6: #{tile.8} parent=1 // pred_check
      _
    $region7: #{tile.8} parent=1 // pred_check_branch
      %14 = sbr.rel (0) target = $region9
    $region8: #{tile.8} parent=1 // pred_region
      %15 = dma.done [#allocation1], 16
    $region9: #{tile.8} parent=1 // pred_fallthru
      _
    %v16 = vld [vmem:[#allocation0] ss:$0 sm:$0xff]
    %17 = vst [vmem:[%s1] sm:$0x3] %v16
    %18 = vsyncpa [#allocation1], 1

// kernel: decoder_block_forward.2
$region0: #{decoder_block_forward.2}
  #allocation0 [shape = 'u32[]', space=smem, size = 0x4, offset = 0x4, fixed_abs, tag = 'smem constant byte address 0x4 - core index']
  #allocation1 [shape = 'u32[144,128]{1,0:T(1,128)}', space=vmem, size = 0x12000, scoped, tag = 'internal scratch']
  %s0 = inlined_call_operand.vmem [shape: f32[2,8,8,8], index: 0, kind: input, shape index: {}]
  %s1 = inlined_call_operand.vmem [shape: f32[2,8,8], index: 1, kind: input, shape index: {}]
  %s2 = inlined_call_operand.vmem [shape: f32[1,8], index: 2, kind: input, shape index: {}]
  %s3 = inlined_call_operand.vmem [shape: f32[2,8,2,8,8], index: 3, kind: output, shape index: {}]
  %s4 = sld [smem:[#allocation0]]
  $region79: #{decoder_block_forward.2} parent=0
    _
  %s6 = ssub.s32 1, %s4
  %s7 = scalar_select 0, %s6, %s4
  $region1: #{decoder_block_forward.2} parent=0
    #allocation2 [shape = 'u8[65536]{0}', space=vmem, size = 0x10000, scoped, tag = 'output window, operand 0']
    loop: start=0, step=1, limit=6
    $region2: #{decoder_block_forward.2} parent=1 // loop_pre_header
      _
    $region3: #{decoder_block_forward.2} parent=1 // loop_header
      %s9 = sphi 0, %s13
      %p10 = scmp.ge.s32.totalorder %s9, 6
      %s16 = sphi 0, %s35
      %s17 = sphi 0, %s31
      %s18 = sphi 0, %s27
      %s19 = sphi 0, %s16
      %s20 = sphi 0, %s17
      %s21 = sphi 0, %s18
      %s22 = sphi 0, %s19
      %s23 = sphi 0, %s20
      %s24 = sphi 0, %s21
      %s40 = sphi 0, %s42
      %s43 = sphi 0, %s40
      %s44 = sphi 0, %s43
      %s60 = sphi 0, %s44
      %s66 = sphi 0, %s68
      %s69 = sphi 0, %s66
      %s70 = sphi 0, %s69
      %s86 = sphi 0, %s70
      %s90 = sphi 0, %s90
      %s92 = sphi 0, %s90
      %s93 = sphi 0, %s92
      %s107 = sphi 0, %s93
      %s117 = sphi 0, %s119
      %s120 = sphi 0, %s117
      %s121 = sphi 0, %s120
      %s137 = sphi 0, %s121
    $region4: #{decoder_block_forward.2} parent=1 // loop_header_branch
      %12 = sbr.rel (%p10) target = $region8
    $region5: #{decoder_block_forward.2} parent=1 // loop_body
      %s14 = ssub.s32 %s9, 1
      %s15 = ssub.s32 %s9, 2
      %s25 = sadd.s32 1, %s18
      %p26 = scmp.ge.s32.totalorder %s25, 2
      %s27 = scalar_select %p26, 0, %s25
      %s28 = sadd.s32 1, %s17
      %s29 = scalar_select %p26, %s28, %s17
      %p30 = scmp.ge.s32.totalorder %s29, 1
      %s31 = scalar_select %p30, 0, %s29
      %s32 = sadd.s32 1, %s16
      %s33 = scalar_select %p30, %s32, %s16
      %p34 = scmp.ge.s32.totalorder %s33, 2
      %s35 = scalar_select %p34, 0, %s33
      %s36 = ssub.s32 %s16, %s35
      %s37 = ssub.s32 %s17, %s31
      %s38 = sor.u32 %s36, %s37
      %p39 = scmp.eq.s32.totalorder %s38, 0
      %s41 = sadd.s32 %s40, 1
      %s42 = scalar_select %p39, %s40, %s41
      %p45 = pneg %p39
      %p46 = scmp.eq.s32.totalorder %s9, 3
      %p47 = por %p45, %p46
      %p48 = scmp.ne.s32.totalorder %s40, %s43
      %p49 = scmp.eq.s32.totalorder %s9, 0
      %p50 = por %p48, %p49
      %p51 = scmp.ne.s32.totalorder %s40, %s43
      %p52 = scmp.eq.s32.totalorder %s14, 3
      %p53 = por %p51, %p52
      %p54 = scmp.ne.s32.totalorder %s43, %s44
      %p55 = scmp.eq.s32.totalorder %s14, 0
      %p56 = por %p54, %p55
      %p57 = scmp.ne.s32.totalorder %s43, %s44
      %p58 = scmp.eq.s32.totalorder %s15, 3
      %p59 = por %p57, %p58
      %p61 = scmp.ne.s32.totalorder %s44, %s60
      %p62 = scmp.eq.s32.totalorder %s15, 0
      %p63 = por %p61, %p62
      %s64 = ssub.s32 %s18, %s27
      %p65 = scmp.eq.s32.totalorder %s64, 0
      %s67 = sadd.s32 %s66, 1
      %s68 = scalar_select %p65, %s66, %s67
      %p71 = pneg %p65
      %p72 = scmp.eq.s32.totalorder %s9, 3
      %p73 = por %p71, %p72
      %p74 = scmp.ne.s32.totalorder %s66, %s69
      %p75 = scmp.eq.s32.totalorder %s9, 0
      %p76 = por %p74, %p75
      %p77 = scmp.ne.s32.totalorder %s66, %s69
      %p78 = scmp.eq.s32.totalorder %s14, 3
      %p79 = por %p77, %p78
      %p80 = scmp.ne.s32.totalorder %s69, %s70
      %p81 = scmp.eq.s32.totalorder %s14, 0
      %p82 = por %p80, %p81
      %p83 = scmp.ne.s32.totalorder %s69, %s70
      %p84 = scmp.eq.s32.totalorder %s15, 3
      %p85 = por %p83, %p84
      %p87 = scmp.ne.s32.totalorder %s70, %s86
      %p88 = scmp.eq.s32.totalorder %s15, 0
      %p89 = por %p87, %p88
      %s91 = sadd.s32 %s90, 1
      %p94 = scmp.eq.s32.totalorder %s9, 3
      %p95 = scmp.ne.s32.totalorder %s90, %s92
      %p96 = scmp.eq.s32.totalorder %s9, 0
      %p97 = por %p95, %p96
      %p98 = scmp.ne.s32.totalorder %s90, %s92
      %p99 = scmp.eq.s32.totalorder %s14, 3
      %p100 = por %p98, %p99
      %p101 = scmp.ne.s32.totalorder %s92, %s93
      %p102 = scmp.eq.s32.totalorder %s14, 0
      %p103 = por %p101, %p102
      %p104 = scmp.ne.s32.totalorder %s92, %s93
      %p105 = scmp.eq.s32.totalorder %s15, 3
      %p106 = por %p104, %p105
      %p108 = scmp.ne.s32.totalorder %s93, %s107
      %p109 = scmp.eq.s32.totalorder %s15, 0
      %p110 = por %p108, %p109
      %s111 = ssub.s32 %s16, %s35
      %s112 = ssub.s32 %s17, %s31
      %s113 = sor.u32 %s111, %s112
      %s114 = ssub.s32 %s18, %s27
      %s115 = sor.u32 %s113, %s114
      %p116 = scmp.eq.s32.totalorder %s115, 0
      %s118 = sadd.s32 %s117, 1
      %s119 = scalar_select %p116, %s117, %s118
      %p122 = pneg %p116
      %p123 = scmp.eq.s32.totalorder %s9, 3
      %p124 = por %p122, %p123
      %p125 = scmp.ne.s32.totalorder %s117, %s120
      %p126 = scmp.eq.s32.totalorder %s9, 0
      %p127 = por %p125, %p126
      %p128 = scmp.ne.s32.totalorder %s117, %s120
      %p129 = scmp.eq.s32.totalorder %s14, 3
      %p130 = por %p128, %p129
      %p131 = scmp.ne.s32.totalorder %s120, %s121
      %p132 = scmp.eq.s32.totalorder %s14, 0
      %p133 = por %p131, %p132
      %p134 = scmp.ne.s32.totalorder %s120, %s121
      %p135 = scmp.eq.s32.totalorder %s15, 3
      %p136 = por %p134, %p135
      %p138 = scmp.ne.s32.totalorder %s121, %s137
      %p139 = scmp.eq.s32.totalorder %s15, 0
      %p140 = por %p138, %p139
      %p141 = scmp.le.s32.totalorder 1, %s9
      %p142 = scmp.lt.s32.totalorder %s9, 5
      %p143 = pnand %p141, %p142
      %p144 = pneg %p143
      // Predicated region
      $region9: #{decoder_block_forward.2} parent=5 // pred_check
        _
      $region10: #{decoder_block_forward.2} parent=5 // pred_check_branch
        %146 = sbr.rel (%p143) target = $region12
      $region11: #{decoder_block_forward.2} parent=5 // pred_region
        %s147 = ssub.s32 %s9, 1
        // Predicated region
        $region13: #{decoder_block_forward.2} parent=11 // pred_check
          %p148 = pneg %p103
        $region14: #{decoder_block_forward.2} parent=11 // pred_check_branch
          %150 = sbr.rel (%p148) target = $region16
        $region15: #{decoder_block_forward.2} parent=11 // pred_region
          _
        $region16: #{decoder_block_forward.2} parent=11 // pred_fallthru
          _
      $region12: #{decoder_block_forward.2} parent=5 // pred_fallthru
        _
      %p151 = scmp.lt.s32.totalorder %s9, 4
      // Predicated region
      $region17: #{decoder_block_forward.2} parent=5 // pred_check
        %p152 = pneg %p151
      $region18: #{decoder_block_forward.2} parent=5 // pred_check_branch
        %154 = sbr.rel (%p152) target = $region20
      $region19: #{decoder_block_forward.2} parent=5 // pred_region
        // Predicated region
        $region21: #{decoder_block_forward.2} parent=19 // pred_check
          %p155 = pneg %p50
        $region22: #{decoder_block_forward.2} parent=19 // pred_check_branch
          %157 = sbr.rel (%p155) target = $region24
        $region23: #{decoder_block_forward.2} parent=19 // pred_region
          %s158 = smul.u32 8, %s17
          %p159 = scmp.lt.s32.totalorder %s16, 1
          %s160 = scalar_select %p159, %s16, 1
          %p161 = scmp.lt.s32.totalorder %s158, 7
          %s162 = scalar_select %p161, %s158, 7
          %s163 = smul.addr %s160, 8
          %s164 = sadd.s32 %s162, %s163
          %s165 = smul.addr %s164, 8
          %s166 = scalar_lea.vmem %s0, %s165
          %s167 = smul.u32 8, %s17
        $region24: #{decoder_block_forward.2} parent=19 // pred_fallthru
          _
        // Predicated region
        $region25: #{decoder_block_forward.2} parent=19 // pred_check
          %p168 = pneg %p76
        $region26: #{decoder_block_forward.2} parent=19 // pred_check_branch
          %170 = sbr.rel (%p168) target = $region28
        $region27: #{decoder_block_forward.2} parent=19 // pred_region
          %p171 = scmp.lt.s32.totalorder %s18, 1
          %s172 = scalar_select %p171, %s18, 1
          %s173 = smul.addr %s172, 8
          %s174 = scalar_lea.vmem %s1, %s173
        $region28: #{decoder_block_forward.2} parent=19 // pred_fallthru
          _
      $region20: #{decoder_block_forward.2} parent=5 // pred_fallthru
        _
      %p175 = scmp.le.s32.totalorder 1, %s9
      %p176 = scmp.lt.s32.totalorder %s9, 5
      %p177 = pnand %p175, %p176
      %p178 = pneg %p177
      // Predicated region
      $region29: #{decoder_block_forward.2} parent=5 // pred_check
        _
      $region30: #{decoder_block_forward.2} parent=5 // pred_check_branch
        %180 = sbr.rel (%p177) target = $region32
      $region31: #{decoder_block_forward.2} parent=5 // pred_region
        %s181 = ssub.s32 %s9, 1
        %s182 = smul.u32 8, %s20
        %p183 = scmp.lt.s32.totalorder %s19, 1
        %s184 = scalar_select %p183, %s19, 1
        %p185 = scmp.lt.s32.totalorder %s182, 7
        %s186 = scalar_select %p185, %s182, 7
        %s187 = smul.addr %s184, 8
        %s188 = sadd.s32 %s186, %s187
        %s189 = smul.addr %s188, 8
        %s190 = scalar_lea.vmem %s0, %s189
        %p191 = pneg %p56
        %p192 = pneg %p53
        %p193 = scmp.lt.s32.totalorder %s21, 1
        %s194 = scalar_select %p193, %s21, 1
        %s195 = smul.addr %s194, 8
        %s196 = scalar_lea.vmem %s1, %s195
        %p197 = pneg %p82
        %p198 = pneg %p79
        %p199 = pneg %p103
        %p200 = pneg %p100
        %p201 = pneg %p133
        %p202 = pneg %p130
        %s203 = sand.u32 %s120, 1
        %s204 = sand.u32 %s120, 1
        %s205 = smul.addr %s204, 64
        %s206 = scalar_lea.vmem [#allocation2], %s205
        %s207 = smul.u32 8, %s20
        %p208 = scmp.lt.s32.totalorder %s19, 1
        %s209 = scalar_select %p208, %s19, 1
        %p210 = scmp.lt.s32.totalorder %s207, 7
        %s211 = scalar_select %p210, %s207, 7
        %s212 = smul.addr %s209, 8
        %s213 = sadd.s32 %s211, %s212
        %s214 = smul.addr %s213, 8
        %s215 = scalar_lea.vmem %s0, %s214
        %s216 = smul.u32 8, %s20
        %p217 = scmp.lt.s32.totalorder %s21, 1
        %s218 = scalar_select %p217, %s21, 1
        %s219 = smul.addr %s218, 8
        %s220 = scalar_lea.vmem %s1, %s219
        %s221 = smul.u32 8, %s20
        %v222 = vld [vmem:[%s215] sm:$0xff]
        %v223 = vld [vmem:[%s215 + $0x8] sm:$0xff]
        %v224 = vld [vmem:[%s215 + $0x10] sm:$0xff]
        %v225 = vld [vmem:[%s215 + $0x18] sm:$0xff]
        %v226 = vld [vmem:[%s215 + $0x20] sm:$0xff]
        %v227 = vld [vmem:[%s215 + $0x28] sm:$0xff]
        %v228 = vld [vmem:[%s215 + $0x30] sm:$0xff]
        %v229 = vld [vmem:[%s215 + $0x38] sm:$0xff]
        %v230 = vld [vmem:[%s220] sm:$0xff]
        %v231 = vld [vmem:[%s2] sm:$0x1]
        %v233 = vlaneseq
        %v234 = vshrl.u32 %v233, 7
        %v235 = vsub.s32 0, %v234
        %v236 = vrot.slane %v231, %v235
        %vm238 = vcmask 64512
        %v240 = vsel %vm238, %v222, 0
        %v243 = vsel %vm238, %v223, 0
        %v246 = vsel %vm238, %v224, 0
        %v249 = vsel %vm238, %v225, 0
        %v252 = vsel %vm238, %v226, 0
        %v255 = vsel %vm238, %v227, 0
        %v258 = vsel %vm238, %v228, 0
        %v261 = vsel %vm238, %v229, 0
        %263 = vmatprep.subr.mxu0 0.0
        %264 = vmatpush1.msra.mxu0 0.0
        %265 = vmatprep.subr.mxu0 0.0
        %266 = vmatpush1.msra.mxu0 0.0
        %267 = vmatprep.subr.mxu0 0.0
        %268 = vmatpush1.msra.mxu0 0.0
        %269 = vmatprep.subr.mxu0 0.0
        %270 = vmatpush1.msra.mxu0 0.0
        %271 = vmatprep.subr.mxu0 0.0
        %272 = vmatpush1.msra.mxu0 0.0
        %273 = vmatprep.subr.mxu0 0.0
        %274 = vmatpush1.msra.mxu0 0.0
        %275 = vmatprep.subr.mxu0 0.0
        %276 = vmatpush1.msra.mxu0 0.0
        %277 = vmatprep.subr.mxu0 0.0
        %278 = vmatpush1.msra.mxu0 0.0
        %279 = vmatprep.subr.mxu0 0.0
        %280 = vmatpush1.msra.mxu0 0.0
        %281 = vmatprep.subr.mxu0 0.0
        %282 = vmatpush1.msra.mxu0 0.0
        %283 = vmatprep.subr.mxu0 0.0
        %284 = vmatpush1.msra.mxu0 0.0
        %285 = vmatprep.subr.mxu0 0.0
        %286 = vmatpush1.msra.mxu0 0.0
        %287 = vmatprep.subr.mxu0 0.0
        %288 = vmatpush1.msra.mxu0 0.0
        %289 = vmatprep.subr.mxu0 0.0
        %290 = vmatpush1.msra.mxu0 0.0
        %291 = vmatprep.subr.mxu0 0.0
        %292 = vmatpush1.msra.mxu0 0.0
        %293 = vmatprep.subr.mxu0 0.0
        %294 = vmatpush1.msra.mxu0 %v230
        %295 = vmatprep.subr.mxu0 0.0
        %296 = vmatpush2.msra.mxu0 0.0
        %297 = vmatprep.subr.mxu0 0.0
        %298 = vmatpush2.msra.mxu0 0.0
        %299 = vmatprep.subr.mxu0 0.0
        %300 = vmatpush2.msra.mxu0 0.0
        %301 = vmatprep.subr.mxu0 0.0
        %302 = vmatpush2.msra.mxu0 0.0
        %303 = vmatprep.subr.mxu0 0.0
        %304 = vmatpush2.msra.mxu0 0.0
        %305 = vmatprep.subr.mxu0 0.0
        %306 = vmatpush2.msra.mxu0 0.0
        %307 = vmatprep.subr.mxu0 0.0
        %308 = vmatpush2.msra.mxu0 0.0
        %309 = vmatprep.subr.mxu0 0.0
        %310 = vmatpush2.msra.mxu0 0.0
        %311 = vmatprep.subr.mxu0 0.0
        %312 = vmatpush2.msra.mxu0 0.0
        %313 = vmatprep.subr.mxu0 0.0
        %314 = vmatpush2.msra.mxu0 0.0
        %315 = vmatprep.subr.mxu0 0.0
        %316 = vmatpush2.msra.mxu0 0.0
        %317 = vmatprep.subr.mxu0 0.0
        %318 = vmatpush2.msra.mxu0 0.0
        %319 = vmatprep.subr.mxu0 0.0
        %320 = vmatpush2.msra.mxu0 0.0
        %321 = vmatprep.subr.mxu0 0.0
        %322 = vmatpush2.msra.mxu0 0.0
        %323 = vmatprep.subr.mxu0 0.0
        %324 = vmatpush2.msra.mxu0 0.0
        %325 = vmatprep.subr.mxu0 0.0
        %326 = vmatpush2.msra.mxu0 0.0
        %327 = vmatprep.mubr.f32.mxu0 0.0
        %328 = vmatmul.mubr.f32.gmra.mxu0 %v240
        %v329 = vpop.f32.mrf.mxu0
        %v330 = vadd.f32 %v236, %v329
        %v331 = vpop.f32.mrf.mxu0
        %332 = vmatprep.mubr.f32.mxu0 0.0
        %333 = vmatmul.mubr.f32.gmra.mxu0 %v243
        %v334 = vpop.f32.mrf.mxu0
        %v335 = vadd.f32 %v236, %v334
        %v336 = vpop.f32.mrf.mxu0
        %337 = vmatprep.mubr.f32.mxu0 0.0
        %338 = vmatmul.mubr.f32.gmra.mxu0 %v246
        %v339 = vpop.f32.mrf.mxu0
        %v340 = vadd.f32 %v236, %v339
        %v341 = vpop.f32.mrf.mxu0
        %342 = vmatprep.mubr.f32.mxu0 0.0
        %343 = vmatmul.mubr.f32.gmra.mxu0 %v249
        %v344 = vpop.f32.mrf.mxu0
        %v345 = vadd.f32 %v236, %v344
        %v346 = vpop.f32.mrf.mxu0
        %347 = vmatprep.mubr.f32.mxu0 0.0
        %348 = vmatmul.mubr.f32.gmra.mxu0 %v252
        %v349 = vpop.f32.mrf.mxu0
        %v350 = vadd.f32 %v236, %v349
        %v351 = vpop.f32.mrf.mxu0
        %352 = vmatprep.mubr.f32.mxu0 0.0
        %353 = vmatmul.mubr.f32.gmra.mxu0 %v255
        %v354 = vpop.f32.mrf.mxu0
        %v355 = vadd.f32 %v236, %v354
        %v356 = vpop.f32.mrf.mxu0
        %357 = vmatprep.mubr.f32.mxu0 0.0
        %358 = vmatmul.mubr.f32.gmra.mxu0 %v258
        %v359 = vpop.f32.mrf.mxu0
        %v360 = vadd.f32 %v236, %v359
        %v361 = vpop.f32.mrf.mxu0
        %362 = vmatprep.mubr.f32.mxu0 0.0
        %363 = vmatmul.mubr.f32.gmra.mxu0 %v261
        %v364 = vpop.f32.mrf.mxu0
        %v365 = vadd.f32 %v236, %v364
        %v366 = vpop.f32.mrf.mxu0
        %367 = vdwg.mxu0
        %368 = vst.msk [vmem:[%s206] sm:$0xff] %vm238, %v330
        %369 = vst.msk [vmem:[%s206 + $0x8] sm:$0xff] %vm238, %v335
        %370 = vst.msk [vmem:[%s206 + $0x10] sm:$0xff] %vm238, %v340
        %371 = vst.msk [vmem:[%s206 + $0x18] sm:$0xff] %vm238, %v345
        %372 = vst.msk [vmem:[%s206 + $0x20] sm:$0xff] %vm238, %v350
        %373 = vst.msk [vmem:[%s206 + $0x28] sm:$0xff] %vm238, %v355
        %374 = vst.msk [vmem:[%s206 + $0x30] sm:$0xff] %vm238, %v360
        %375 = vst.msk [vmem:[%s206 + $0x38] sm:$0xff] %vm238, %v365
        %s376 = sand.u32 %s120, 1
        %s377 = sand.u32 %s120, 1
        %s378 = smul.addr %s377, 64
        %s379 = scalar_lea.vmem [#allocation2], %s378
        // Predicated region
        $region33: #{decoder_block_forward.2} parent=31 // pred_check
          %p380 = pneg %p130
        $region34: #{decoder_block_forward.2} parent=31 // pred_check_branch
          %382 = sbr.rel (%p380) target = $region36
        $region35: #{decoder_block_forward.2} parent=31 // pred_region
          %s383 = smul.u32 8, %s20
          %s384 = smul.addr %s383, 2
          %s385 = sadd.s32 %s21, %s384
          %s386 = smul.addr %s19, 16
          %s387 = sadd.s32 %s385, %s386
          %s388 = smul.addr %s387, 8
          %s389 = scalar_lea.vmem %s3, %s388
          // Predicated region
          $region37: #{decoder_block_forward.2} parent=35 // pred_check
            _
          $region38: #{decoder_block_forward.2} parent=35 // pred_check_branch
            %391 = sbr.rel (0) target = $region40
          $region39: #{decoder_block_forward.2} parent=35 // pred_region
            // Predicated region
            $region41: #{decoder_block_forward.2} parent=39 // pred_check
              _
            $region42: #{decoder_block_forward.2} parent=39 // pred_check_branch
              %393 = sbr.rel (0) target = $region44
            $region43: #{decoder_block_forward.2} parent=39 // pred_region
              // Predicated region
              $region56: #{decoder_block_forward.2} parent=43 // pred_check
                _
              $region57: #{decoder_block_forward.2} parent=43 // pred_check_branch
                %423 = sbr.rel (0) target = $region59
              $region58: #{decoder_block_forward.2} parent=43 // pred_region
                loop: start=0, step=1, limit=1
                $region60: #{decoder_block_forward.2} parent=58 // loop_pre_header
                  _
                $region61: #{decoder_block_forward.2} parent=58 // loop_header
                  %s425 = sphi 0, %s429
                  %p426 = scmp.ge.s32.totalorder %s425, 1
                  %s430 = sphi %s379, %s379
                  %s431 = sphi %s389, %s389
                $region62: #{decoder_block_forward.2} parent=58 // loop_header_branch
                  %428 = sbr.rel (%p426) target = $region66
                $region63: #{decoder_block_forward.2} parent=58 // loop_body
                  %v432 = vld [vmem:[%s430] sm:$0xff]
                  %433 = vst [vmem:[%s431] sm:$0xff] %v432
                  %v434 = vld [vmem:[%s430 + $0x8] sm:$0xff]
                  %435 = vst [vmem:[%s431 + $0x10] sm:$0xff] %v434
                  %v436 = vld [vmem:[%s430 + $0x10] sm:$0xff]
                  %437 = vst [vmem:[%s431 + $0x20] sm:$0xff] %v436
                  %v438 = vld [vmem:[%s430 + $0x18] sm:$0xff]
                  %439 = vst [vmem:[%s431 + $0x30] sm:$0xff] %v438
                  %v440 = vld [vmem:[%s430 + $0x20] sm:$0xff]
                  %441 = vst [vmem:[%s431 + $0x40] sm:$0xff] %v440
                  %v442 = vld [vmem:[%s430 + $0x28] sm:$0xff]
                  %443 = vst [vmem:[%s431 + $0x50] sm:$0xff] %v442
                  %v444 = vld [vmem:[%s430 + $0x30] sm:$0xff]
                  %445 = vst [vmem:[%s431 + $0x60] sm:$0xff] %v444
                  %v446 = vld [vmem:[%s430 + $0x38] sm:$0xff]
                  %447 = vst [vmem:[%s431 + $0x70] sm:$0xff] %v446
                $region64: #{decoder_block_forward.2} parent=58 // loop_footer
                  %s429 = sadd.s32 1, %s425
                $region65: #{decoder_block_forward.2} parent=58 // loop_footer_branch
                  %424 = sbr.rel target = $region61
                $region66: #{decoder_block_forward.2} parent=58 // loop_exit
                  _
              $region59: #{decoder_block_forward.2} parent=43 // pred_fallthru
                _
              // Predicated region
              $region67: #{decoder_block_forward.2} parent=43 // pred_check
                _
              $region68: #{decoder_block_forward.2} parent=43 // pred_check_branch
                %449 = sbr.rel target = $region70
              $region69: #{decoder_block_forward.2} parent=43 // pred_region
                _
              $region70: #{decoder_block_forward.2} parent=43 // pred_fallthru
                _
            $region44: #{decoder_block_forward.2} parent=39 // pred_fallthru
              _
            // Predicated region
            $region45: #{decoder_block_forward.2} parent=39 // pred_check
              _
            $region46: #{decoder_block_forward.2} parent=39 // pred_check_branch
              %395 = sbr.rel target = $region48
            $region47: #{decoder_block_forward.2} parent=39 // pred_region
              %s397 = ssub.s32 256, 1
              loop: start=0, step=1, limit=1
              $region49: #{decoder_block_forward.2} parent=47 // loop_pre_header
                _
              $region50: #{decoder_block_forward.2} parent=47 // loop_header
                %s399 = sphi 0, %s403
                %p400 = scmp.ge.s32.totalorder %s399, 1
                %s404 = sphi %s379, %s379
                %s405 = sphi %s389, %s389
              $region51: #{decoder_block_forward.2} parent=47 // loop_header_branch
                %402 = sbr.rel (%p400) target = $region55
              $region52: #{decoder_block_forward.2} parent=47 // loop_body
                %v406 = vld [vmem:[%s404] sm:%s397]
                %407 = vst [vmem:[%s405] sm:%s397] %v406
                %v408 = vld [vmem:[%s404 + $0x8] sm:%s397]
                %409 = vst [vmem:[%s405 + $0x10] sm:%s397] %v408
                %v410 = vld [vmem:[%s404 + $0x10] sm:%s397]
                %411 = vst [vmem:[%s405 + $0x20] sm:%s397] %v410
                %v412 = vld [vmem:[%s404 + $0x18] sm:%s397]
                %413 = vst [vmem:[%s405 + $0x30] sm:%s397] %v412
                %v414 = vld [vmem:[%s404 + $0x20] sm:%s397]
                %415 = vst [vmem:[%s405 + $0x40] sm:%s397] %v414
                %v416 = vld [vmem:[%s404 + $0x28] sm:%s397]
                %417 = vst [vmem:[%s405 + $0x50] sm:%s397] %v416
                %v418 = vld [vmem:[%s404 + $0x30] sm:%s397]
                %419 = vst [vmem:[%s405 + $0x60] sm:%s397] %v418
                %v420 = vld [vmem:[%s404 + $0x38] sm:%s397]
                %421 = vst [vmem:[%s405 + $0x70] sm:%s397] %v420
              $region53: #{decoder_block_forward.2} parent=47 // loop_footer
                %s403 = sadd.s32 1, %s399
              $region54: #{decoder_block_forward.2} parent=47 // loop_footer_branch
                %398 = sbr.rel target = $region50
              $region55: #{decoder_block_forward.2} parent=47 // loop_exit
                _
            $region48: #{decoder_block_forward.2} parent=39 // pred_fallthru
              _
          $region40: #{decoder_block_forward.2} parent=35 // pred_fallthru
            _
          %450 = vnop
        $region36: #{decoder_block_forward.2} parent=31 // pred_fallthru
          _
      $region32: #{decoder_block_forward.2} parent=5 // pred_fallthru
        _
      %p451 = scmp.le.s32.totalorder 2, %s9
      // Predicated region
      $region71: #{decoder_block_forward.2} parent=5 // pred_check
        %p452 = pneg %p451
      $region72: #{decoder_block_forward.2} parent=5 // pred_check_branch
        %454 = sbr.rel (%p452) target = $region74
      $region73: #{decoder_block_forward.2} parent=5 // pred_region
        %s455 = ssub.s32 %s9, 2
        // Predicated region
        $region75: #{decoder_block_forward.2} parent=73 // pred_check
          %p456 = pneg %p136
        $region76: #{decoder_block_forward.2} parent=73 // pred_check_branch
          %458 = sbr.rel (%p456) target = $region78
        $region77: #{decoder_block_forward.2} parent=73 // pred_region
          %s459 = sand.u32 %s121, 1
          %s460 = sand.u32 %s121, 1
          %s461 = smul.addr %s460, 64
          %s462 = scalar_lea.vmem [#allocation2], %s461
        $region78: #{decoder_block_forward.2} parent=73 // pred_fallthru
          _
      $region74: #{decoder_block_forward.2} parent=5 // pred_fallthru
        _
    $region6: #{decoder_block_forward.2} parent=1 // loop_footer
      %s13 = sadd.s32 1, %s9
    $region7: #{decoder_block_forward.2} parent=1 // loop_footer_branch
      %8 = sbr.rel target = $region3
    $region8: #{decoder_block_forward.2} parent=1 // loop_exit
      _

// kernel: decoder_block_forward.3
$region0: #{decoder_block_forward.3}
  #allocation0 [shape = 'u32[]', space=smem, size = 0x4, offset = 0x4, fixed_abs, tag = 'smem constant byte address 0x4 - core index']
  #allocation1 [shape = 'u32[144,128]{1,0:T(1,128)}', space=vmem, size = 0x12000, scoped, tag = 'internal scratch']
  #allocation2 [shape = 'f32[18,18,8]{2,1,0:T(8,128)}', space=vmem, size = 0x36000, scoped, tag = 'scratch operand']
  #allocation3 [shape = 'f32[18,18,4]{2,1,0:T(8,128)}', space=vmem, size = 0x36000, scoped, tag = 'scratch operand']
  %s0 = inlined_call_operand.vmem [shape: f32[2,16,16,4], index: 0, kind: input, shape index: {}]
  %s1 = inlined_call_operand.vmem [shape: f32[2,16,16,4], index: 1, kind: input, shape index: {}]
  %s2 = inlined_call_operand.vmem [shape: f32[3,3,8,4], index: 2, kind: input, shape index: {}]
  %s3 = inlined_call_operand.vmem [shape: f32[1,4], index: 3, kind: input, shape index: {}]
  %s4 = inlined_call_operand.vmem [shape: f32[1,4], index: 4, kind: input, shape index: {}]
  %s5 = inlined_call_operand.vmem [shape: f32[3,3,4,4], index: 5, kind: input, shape index: {}]
  %s6 = inlined_call_operand.vmem [shape: f32[1,4], index: 6, kind: input, shape index: {}]
  %s7 = inlined_call_operand.vmem [shape: f32[1,4], index: 7, kind: input, shape index: {}]
  %s8 = inlined_call_operand.vmem [shape: f32[2,16,16,4], index: 8, kind: output, shape index: {}]
  %s9 = sld [smem:[#allocation0]]
  $region65: #{decoder_block_forward.3} parent=0
    _
  %s11 = ssub.s32 1, %s9
  %s12 = scalar_select 0, %s11, %s9
  loop: start=0, step=1, limit=4
  $region2: #{decoder_block_forward.3} parent=0 // loop_pre_header
    _
  $region3: #{decoder_block_forward.3} parent=0 // loop_header
    %s14 = sphi 0, %s18
    %p15 = scmp.ge.s32.totalorder %s14, 4
    %s24 = sphi 0, %s26
    %s27 = sphi 0, %s24
    %s28 = sphi 0, %s27
    %s44 = sphi 0, %s28
    %s50 = sphi 0, %s52
    %s53 = sphi 0, %s50
    %s54 = sphi 0, %s53
    %s70 = sphi 0, %s54
    %s74 = sphi 0, %s74
    %s76 = sphi 0, %s74
    %s77 = sphi 0, %s76
    %s91 = sphi 0, %s77
    %s95 = sphi 0, %s95
    %s97 = sphi 0, %s95
    %s98 = sphi 0, %s97
    %s112 = sphi 0, %s98
    %s116 = sphi 0, %s116
    %s118 = sphi 0, %s116
    %s119 = sphi 0, %s118
    %s133 = sphi 0, %s119
    %s137 = sphi 0, %s137
    %s139 = sphi 0, %s137
    %s140 = sphi 0, %s139
    %s154 = sphi 0, %s140
    %s158 = sphi 0, %s158
    %s160 = sphi 0, %s158
    %s161 = sphi 0, %s160
    %s175 = sphi 0, %s161
    %s179 = sphi 0, %s179
    %s181 = sphi 0, %s179
    %s182 = sphi 0, %s181
    %s196 = sphi 0, %s182
    %s202 = sphi 0, %s204
    %s205 = sphi 0, %s202
    %s206 = sphi 0, %s205
    %s222 = sphi 0, %s206
  $region4: #{decoder_block_forward.3} parent=0 // loop_header_branch
    %17 = sbr.rel (%p15) target = $region8
  $region5: #{decoder_block_forward.3} parent=0 // loop_body
    %s19 = ssub.s32 %s14, 1
    %s20 = ssub.s32 %s14, 2
    %s21 = sadd.s32 %s14, 1
    %s22 = ssub.s32 %s14, %s21
    %p23 = scmp.eq.s32.totalorder %s22, 0
    %s25 = sadd.s32 %s24, 1
    %s26 = scalar_select %p23, %s24, %s25
    %p29 = pneg %p23
    %p30 = scmp.eq.s32.totalorder %s14, 1
    %p31 = por %p29, %p30
    %p32 = scmp.ne.s32.totalorder %s24, %s27
    %p33 = scmp.eq.s32.totalorder %s14, 0
    %p34 = por %p32, %p33
    %p35 = scmp.ne.s32.totalorder %s24, %s27
    %p36 = scmp.eq.s32.totalorder %s19, 1
    %p37 = por %p35, %p36
    %p38 = scmp.ne.s32.totalorder %s27, %s28
    %p39 = scmp.eq.s32.totalorder %s19, 0
    %p40 = por %p38, %p39
    %p41 = scmp.ne.s32.totalorder %s27, %s28
    %p42 = scmp.eq.s32.totalorder %s20, 1
    %p43 = por %p41, %p42
    %p45 = scmp.ne.s32.totalorder %s28, %s44
    %p46 = scmp.eq.s32.totalorder %s20, 0
    %p47 = por %p45, %p46
    %s48 = ssub.s32 %s14, %s21
    %p49 = scmp.eq.s32.totalorder %s48, 0
    %s51 = sadd.s32 %s50, 1
    %s52 = scalar_select %p49, %s50, %s51
    %p55 = pneg %p49
    %p56 = scmp.eq.s32.totalorder %s14, 1
    %p57 = por %p55, %p56
    %p58 = scmp.ne.s32.totalorder %s50, %s53
    %p59 = scmp.eq.s32.totalorder %s14, 0
    %p60 = por %p58, %p59
    %p61 = scmp.ne.s32.totalorder %s50, %s53
    %p62 = scmp.eq.s32.totalorder %s19, 1
    %p63 = por %p61, %p62
    %p64 = scmp.ne.s32.totalorder %s53, %s54
    %p65 = scmp.eq.s32.totalorder %s19, 0
    %p66 = por %p64, %p65
    %p67 = scmp.ne.s32.totalorder %s53, %s54
    %p68 = scmp.eq.s32.totalorder %s20, 1
    %p69 = por %p67, %p68
    %p71 = scmp.ne.s32.totalorder %s54, %s70
    %p72 = scmp.eq.s32.totalorder %s20, 0
    %p73 = por %p71, %p72
    %s75 = sadd.s32 %s74, 1
    %p78 = scmp.eq.s32.totalorder %s14, 1
    %p79 = scmp.ne.s32.totalorder %s74, %s76
    %p80 = scmp.eq.s32.totalorder %s14, 0
    %p81 = por %p79, %p80
    %p82 = scmp.ne.s32.totalorder %s74, %s76
    %p83 = scmp.eq.s32.totalorder %s19, 1
    %p84 = por %p82, %p83
    %p85 = scmp.ne.s32.totalorder %s76, %s77
    %p86 = scmp.eq.s32.totalorder %s19, 0
    %p87 = por %p85, %p86
    %p88 = scmp.ne.s32.totalorder %s76, %s77
    %p89 = scmp.eq.s32.totalorder %s20, 1
    %p90 = por %p88, %p89
    %p92 = scmp.ne.s32.totalorder %s77, %s91
    %p93 = scmp.eq.s32.totalorder %s20, 0
    %p94 = por %p92, %p93
    %s96 = sadd.s32 %s95, 1
    %p99 = scmp.eq.s32.totalorder %s14, 1
    %p100 = scmp.ne.s32.totalorder %s95, %s97
    %p101 = scmp.eq.s32.totalorder %s14, 0
    %p102 = por %p100, %p101
    %p103 = scmp.ne.s32.totalorder %s95, %s97
    %p104 = scmp.eq.s32.totalorder %s19, 1
    %p105 = por %p103, %p104
    %p106 = scmp.ne.s32.totalorder %s97, %s98
    %p107 = scmp.eq.s32.totalorder %s19, 0
    %p108 = por %p106, %p107
    %p109 = scmp.ne.s32.totalorder %s97, %s98
    %p110 = scmp.eq.s32.totalorder %s20, 1
    %p111 = por %p109, %p110
    %p113 = scmp.ne.s32.totalorder %s98, %s112
    %p114 = scmp.eq.s32.totalorder %s20, 0
    %p115 = por %p113, %p114
    %s117 = sadd.s32 %s116, 1
    %p120 = scmp.eq.s32.totalorder %s14, 1
    %p121 = scmp.ne.s32.totalorder %s116, %s118
    %p122 = scmp.eq.s32.totalorder %s14, 0
    %p123 = por %p121, %p122
    %p124 = scmp.ne.s32.totalorder %s116, %s118
    %p125 = scmp.eq.s32.totalorder %s19, 1
    %p126 = por %p124, %p125
    %p127 = scmp.ne.s32.totalorder %s118, %s119
    %p128 = scmp.eq.s32.totalorder %s19, 0
    %p129 = por %p127, %p128
    %p130 = scmp.ne.s32.totalorder %s118, %s119
    %p131 = scmp.eq.s32.totalorder %s20, 1
    %p132 = por %p130, %p131
    %p134 = scmp.ne.s32.totalorder %s119, %s133
    %p135 = scmp.eq.s32.totalorder %s20, 0
    %p136 = por %p134, %p135
    %s138 = sadd.s32 %s137, 1
    %p141 = scmp.eq.s32.totalorder %s14, 1
    %p142 = scmp.ne.s32.totalorder %s137, %s139
    %p143 = scmp.eq.s32.totalorder %s14, 0
    %p144 = por %p142, %p143
    %p145 = scmp.ne.s32.totalorder %s137, %s139
    %p146 = scmp.eq.s32.totalorder %s19, 1
    %p147 = por %p145, %p146
    %p148 = scmp.ne.s32.totalorder %s139, %s140
    %p149 = scmp.eq.s32.totalorder %s19, 0
    %p150 = por %p148, %p149
    %p151 = scmp.ne.s32.totalorder %s139, %s140
    %p152 = scmp.eq.s32.totalorder %s20, 1
    %p153 = por %p151, %p152
    %p155 = scmp.ne.s32.totalorder %s140, %s154
    %p156 = scmp.eq.s32.totalorder %s20, 0
    %p157 = por %p155, %p156
    %s159 = sadd.s32 %s158, 1
    %p162 = scmp.eq.s32.totalorder %s14, 1
    %p163 = scmp.ne.s32.totalorder %s158, %s160
    %p164 = scmp.eq.s32.totalorder %s14, 0
    %p165 = por %p163, %p164
    %p166 = scmp.ne.s32.totalorder %s158, %s160
    %p167 = scmp.eq.s32.totalorder %s19, 1
    %p168 = por %p166, %p167
    %p169 = scmp.ne.s32.totalorder %s160, %s161
    %p170 = scmp.eq.s32.totalorder %s19, 0
    %p171 = por %p169, %p170
    %p172 = scmp.ne.s32.totalorder %s160, %s161
    %p173 = scmp.eq.s32.totalorder %s20, 1
    %p174 = por %p172, %p173
    %p176 = scmp.ne.s32.totalorder %s161, %s175
    %p177 = scmp.eq.s32.totalorder %s20, 0
    %p178 = por %p176, %p177
    %s180 = sadd.s32 %s179, 1
    %p183 = scmp.eq.s32.totalorder %s14, 1
    %p184 = scmp.ne.s32.totalorder %s179, %s181
    %p185 = scmp.eq.s32.totalorder %s14, 0
    %p186 = por %p184, %p185
    %p187 = scmp.ne.s32.totalorder %s179, %s181
    %p188 = scmp.eq.s32.totalorder %s19, 1
    %p189 = por %p187, %p188
    %p190 = scmp.ne.s32.totalorder %s181, %s182
    %p191 = scmp.eq.s32.totalorder %s19, 0
    %p192 = por %p190, %p191
    %p193 = scmp.ne.s32.totalorder %s181, %s182
    %p194 = scmp.eq.s32.totalorder %s20, 1
    %p195 = por %p193, %p194
    %p197 = scmp.ne.s32.totalorder %s182, %s196
    %p198 = scmp.eq.s32.totalorder %s20, 0
    %p199 = por %p197, %p198
    %s200 = ssub.s32 %s14, %s21
    %p201 = scmp.eq.s32.totalorder %s200, 0
    %s203 = sadd.s32 %s202, 1
    %s204 = scalar_select %p201, %s202, %s203
    %p207 = pneg %p201
    %p208 = scmp.eq.s32.totalorder %s14, 1
    %p209 = por %p207, %p208
    %p210 = scmp.ne.s32.totalorder %s202, %s205
    %p211 = scmp.eq.s32.totalorder %s14, 0
    %p212 = por %p210, %p211
    %p213 = scmp.ne.s32.totalorder %s202, %s205
    %p214 = scmp.eq.s32.totalorder %s19, 1
    %p215 = por %p213, %p214
    %p216 = scmp.ne.s32.totalorder %s205, %s206
    %p217 = scmp.eq.s32.totalorder %s19, 0
    %p218 = por %p216, %p217
    %p219 = scmp.ne.s32.totalorder %s205, %s206
    %p220 = scmp.eq.s32.totalorder %s20, 1
    %p221 = por %p219, %p220
    %p223 = scmp.ne.s32.totalorder %s206, %s222
    %p224 = scmp.eq.s32.totalorder %s20, 0
    %p225 = por %p223, %p224
    %p226 = scmp.le.s32.totalorder 1, %s14
    %p227 = scmp.lt.s32.totalorder %s14, 3
    %p228 = pnand %p226, %p227
    %p229 = pneg %p228
    // Predicated region
    $region9: #{decoder_block_forward.3} parent=5 // pred_check
      _
    $region10: #{decoder_block_forward.3} parent=5 // pred_check_branch
      %231 = sbr.rel (%p228) target = $region12
    $region11: #{decoder_block_forward.3} parent=5 // pred_region
      %s232 = ssub.s32 %s14, 1
      // Predicated region
      $region13: #{decoder_block_forward.3} parent=11 // pred_check
        %p233 = pneg %p87
      $region14: #{decoder_block_forward.3} parent=11 // pred_check_branch
        %235 = sbr.rel (%p233) target = $region16
      $region15: #{decoder_block_forward.3} parent=11 // pred_region
        _
      $region16: #{decoder_block_forward.3} parent=11 // pred_fallthru
        _
      // Predicated region
      $region17: #{decoder_block_forward.3} parent=11 // pred_check
        %p236 = pneg %p108
      $region18: #{decoder_block_forward.3} parent=11 // pred_check_branch
        %238 = sbr.rel (%p236) target = $region20
      $region19: #{decoder_block_forward.3} parent=11 // pred_region
        _
      $region20: #{decoder_block_forward.3} parent=11 // pred_fallthru
        _
      // Predicated region
      $region21: #{decoder_block_forward.3} parent=11 // pred_check
        %p239 = pneg %p129
      $region22: #{decoder_block_forward.3} parent=11 // pred_check_branch
        %241 = sbr.rel (%p239) target = $region24
      $region23: #{decoder_block_forward.3} parent=11 // pred_region
        _
      $region24: #{decoder_block_forward.3} parent=11 // pred_fallthru
        _
      // Predicated region
      $region25: #{decoder_block_forward.3} parent=11 // pred_check
        %p242 = pneg %p150
      $region26: #{decoder_block_forward.3} parent=11 // pred_check_branch
        %244 = sbr.rel (%p242) target = $region28
      $region27: #{decoder_block_forward.3} parent=11 // pred_region
        _
      $region28: #{decoder_block_forward.3} parent=11 // pred_fallthru
        _
      // Predicated region
      $region29: #{decoder_block_forward.3} parent=11 // pred_check
        %p245 = pneg %p171
      $region30: #{decoder_block_forward.3} parent=11 // pred_check_branch
        %247 = sbr.rel (%p245) target = $region32
      $region31: #{decoder_block_forward.3} parent=11 // pred_region
        _
      $region32: #{decoder_block_forward.3} parent=11 // pred_fallthru
        _
      // Predicated region
      $region33: #{decoder_block_forward.3} parent=11 // pred_check
        %p248 = pneg %p192
      $region34: #{decoder_block_forward.3} parent=11 // pred_check_branch
        %250 = sbr.rel (%p248) target = $region36
      $region35: #{decoder_block_forward.3} parent=11 // pred_region
        _
      $region36: #{decoder_block_forward.3} parent=11 // pred_fallthru
        _
    $region12: #{decoder_block_forward.3} parent=5 // pred_fallthru
      _
    %p251 = scmp.lt.s32.totalorder %s14, 2
    // Predicated region
    $region37: #{decoder_block_forward.3} parent=5 // pred_check
      %p252 = pneg %p251
    $region38: #{decoder_block_forward.3} parent=5 // pred_check_branch
      %254 = sbr.rel (%p252) target = $region40
    $region39: #{decoder_block_forward.3} parent=5 // pred_region
      // Predicated region
      $region41: #{decoder_block_forward.3} parent=39 // pred_check
        %p255 = pneg %p34
      $region42: #{decoder_block_forward.3} parent=39 // pred_check_branch
        %257 = sbr.rel (%p255) target = $region44
      $region43: #{decoder_block_forward.3} parent=39 // pred_region
        %p258 = scmp.lt.s32.totalorder %s14, 1
        %s259 = scalar_select %p258, %s14, 1
        %s260 = smul.addr %s259, 32
        %s261 = smul.addr %s260, 8
        %s262 = scalar_lea.vmem %s0, %s261
      $region44: #{decoder_block_forward.3} parent=39 // pred_fallthru
        _
      // Predicated region
      $region45: #{decoder_block_forward.3} parent=39 // pred_check
        %p263 = pneg %p60
      $region46: #{decoder_block_forward.3} parent=39 // pred_check_branch
        %265 = sbr.rel (%p263) target = $region48
      $region47: #{decoder_block_forward.3} parent=39 // pred_region
        %p266 = scmp.lt.s32.totalorder %s14, 1
        %s267 = scalar_select %p266, %s14, 1
        %s268 = smul.addr %s267, 32
        %s269 = smul.addr %s268, 8
        %s270 = scalar_lea.vmem %s1, %s269
      $region48: #{decoder_block_forward.3} parent=39 // pred_fallthru
        _
    $region40: #{decoder_block_forward.3} parent=5 // pred_fallthru
      _
    %p271 = scmp.le.s32.totalorder 1, %s14
    %p272 = scmp.lt.s32.totalorder %s14, 3
    %p273 = pnand %p271, %p272
    %p274 = pneg %p273
    // Predicated region
    $region49: #{decoder_block_forward.3} parent=5 // pred_check
      _
    $region50: #{decoder_block_forward.3} parent=5 // pred_check_branch
      %276 = sbr.rel (%p273) target = $region52
    $region51: #{decoder_block_forward.3} parent=5 // pred_region
      %s277 = ssub.s32 %s14, 1
      %p278 = scmp.lt.s32.totalorder %s19, 1
      %s279 = scalar_select %p278, %s19, 1
      %s280 = smul.addr %s279, 32
      %s281 = smul.addr %s280, 8
      %s282 = scalar_lea.vmem %s0, %s281
      %p283 = pneg %p40
      %p284 = pneg %p37
      %p285 = scmp.lt.s32.totalorder %s19, 1
      %s286 = scalar_select %p285, %s19, 1
      %s287 = smul.addr %s286, 32
      %s288 = smul.addr %s287, 8
      %s289 = scalar_lea.vmem %s1, %s288
      %p290 = pneg %p66
      %p291 = pneg %p63
      %p292 = pneg %p87
      %p293 = pneg %p84
      %p294 = pneg %p108
      %p295 = pneg %p105
      %p296 = pneg %p129
      %p297 = pneg %p126
      %p298 = pneg %p150
      %p299 = pneg %p147
      %p300 = pneg %p171
      %p301 = pneg %p168
      %p302 = pneg %p192
      %p303 = pneg %p189
      %p304 = pneg %p218
      %p305 = pneg %p215
      %p306 = scmp.lt.s32.totalorder %s19, 1
      %s307 = scalar_select %p306, %s19, 1
      %s308 = smul.addr %s307, 32
      %s309 = smul.addr %s308, 8
      %s310 = scalar_lea.vmem %s8, %s309
      %p311 = scmp.lt.s32.totalorder %s19, 1
      %s312 = scalar_select %p311, %s19, 1
      %s313 = smul.addr %s312, 32
      %s314 = smul.addr %s313, 8
      %s315 = scalar_lea.vmem %s0, %s314
      %p316 = scmp.lt.s32.totalorder %s19, 1
      %s317 = scalar_select %p316, %s19, 1
      %s318 = smul.addr %s317, 32
      %s319 = smul.addr %s318, 8
      %s320 = scalar_lea.vmem %s1, %s319
      %p321 = scmp.lt.s32.totalorder %s19, 1
      %s322 = scalar_select %p321, %s19, 1
      %s323 = smul.addr %s322, 32
      %s324 = smul.addr %s323, 8
      %s325 = scalar_lea.vmem %s8, %s324
      %vm326 = vcmask 64512
      %327 = vst.msk [vmem:[#allocation2] sm:$0xff] %vm326, 0.0
      %328 = vst.msk [vmem:[#allocation2 + $0x8] sm:$0xff] %vm326, 0.0
      %vm329 = vcmask 58368
      %330 = vst.msk [vmem:[#allocation2 + $0x10] sm:$0x3] %vm329, 0.0
      %331 = vst.msk [vmem:[#allocation2 + $0x18] sm:$0xff] %vm326, 0.0
      %332 = vst.msk [vmem:[#allocation2 + $0x20] sm:$0xff] %vm326, 0.0
      %333 = vst.msk [vmem:[#allocation2 + $0x28] sm:$0x3] %vm329, 0.0
      %334 = vst.msk [vmem:[#allocation2 + $0x30] sm:$0xff] %vm326, 0.0
      %335 = vst.msk [vmem:[#allocation2 + $0x38] sm:$0xff] %vm326, 0.0
      %336 = vst.msk [vmem:[#allocation2 + $0x40] sm:$0x3] %vm329, 0.0
      %337 = vst.msk [vmem:[#allocation2 + $0x48] sm:$0xff] %vm326, 0.0
      %338 = vst.msk [vmem:[#allocation2 + $0x50] sm:$0xff] %vm326, 0.0
      %339 = vst.msk [vmem:[#allocation2 + $0x58] sm:$0x3] %vm329, 0.0
      %340 = vst.msk [vmem:[#allocation2 + $0x60] sm:$0xff] %vm326, 0.0
      %341 = vst.msk [vmem:[#allocation2 + $0x68] sm:$0xff] %vm326, 0.0
      %342 = vst.msk [vmem:[#allocation2 + $0x70] sm:$0x3] %vm329, 0.0
      %343 = vst.msk [vmem:[#allocation2 + $0x78] sm:$0xff] %vm326, 0.0
      %344 = vst.msk [vmem:[#allocation2 + $0x80] sm:$0xff] %vm326, 0.0
      %345 = vst.msk [vmem:[#allocation2 + $0x88] sm:$0x3] %vm329, 0.0
      %346 = vst.msk [vmem:[#allocation2 + $0x90] sm:$0xff] %vm326, 0.0
      %347 = vst.msk [vmem:[#allocation2 + $0x98] sm:$0xff] %vm326, 0.0
      %348 = vst.msk [vmem:[#allocation2 + $0xa0] sm:$0x3] %vm329, 0.0
      %349 = vst.msk [vmem:[#allocation2 + $0xa8] sm:$0xff] %vm326, 0.0
      %350 = vst.msk [vmem:[#allocation2 + $0xb0] sm:$0xff] %vm326, 0.0
      %351 = vst.msk [vmem:[#allocation2 + $0xb8] sm:$0x3] %vm329, 0.0
      %352 = vst.msk [vmem:[#allocation2 + $0xc0] sm:$0xff] %vm326, 0.0
      %353 = vst.msk [vmem:[#allocation2 + $0xc8] sm:$0xff] %vm326, 0.0
      %354 = vst.msk [vmem:[#allocation2 + $0xd0] sm:$0x3] %vm329, 0.0
      %355 = vst.msk [vmem:[#allocation2 + $0xd8] sm:$0xff] %vm326, 0.0
      %356 = vst.msk [vmem:[#allocation2 + $0xe0] sm:$0xff] %vm326, 0.0
      %357 = vst.msk [vmem:[#allocation2 + $0xe8] sm:$0x3] %vm329, 0.0
      %358 = vst.msk [vmem:[#allocation2 + $0xf0] sm:$0xff] %vm326, 0.0
      %359 = vst.msk [vmem:[#allocation2 + $0xf8] sm:$0xff] %vm326, 0.0
      %360 = vst.msk [vmem:[#allocation2 + $0x100] sm:$0x3] %vm329, 0.0
      %361 = vst.msk [vmem:[#allocation2 + $0x108] sm:$0xff] %vm326, 0.0
      %362 = vst.msk [vmem:[#allocation2 + $0x110] sm:$0xff] %vm326, 0.0
      %363 = vst.msk [vmem:[#allocation2 + $0x118] sm:$0x3] %vm329, 0.0
      %364 = vst.msk [vmem:[#allocation2 + $0x120] sm:$0xff] %vm326, 0.0
      %365 = vst.msk [vmem:[#allocation2 + $0x128] sm:$0xff] %vm326, 0.0
      %366 = vst.msk [vmem:[#allocation2 + $0x130] sm:$0x3] %vm329, 0.0
      %367 = vst.msk [vmem:[#allocation2 + $0x138] sm:$0xff] %vm326, 0.0
      %368 = vst.msk [vmem:[#allocation2 + $0x140] sm:$0xff] %vm326, 0.0
      %369 = vst.msk [vmem:[#allocation2 + $0x148] sm:$0x3] %vm329, 0.0
      %370 = vst.msk [vmem:[#allocation2 + $0x150] sm:$0xff] %vm326, 0.0
      %371 = vst.msk [vmem:[#allocation2 + $0x158] sm:$0xff] %vm326, 0.0
      %372 = vst.msk [vmem:[#allocation2 + $0x160] sm:$0x3] %vm329, 0.0
      %373 = vst.msk [vmem:[#allocation2 + $0x168] sm:$0xff] %vm326, 0.0
      %374 = vst.msk [vmem:[#allocation2 + $0x170] sm:$0xff] %vm326, 0.0
      %375 = vst.msk [vmem:[#allocation2 + $0x178] sm:$0x3] %vm329, 0.0
      %376 = vst.msk [vmem:[#allocation2 + $0x180] sm:$0xff] %vm326, 0.0
      %377 = vst.msk [vmem:[#allocation2 + $0x188] sm:$0xff] %vm326, 0.0
      %378 = vst.msk [vmem:[#allocation2 + $0x190] sm:$0x3] %vm329, 0.0
      %379 = vst.msk [vmem:[#allocation2 + $0x198] sm:$0xff] %vm326, 0.0
      %380 = vst.msk [vmem:[#allocation2 + $0x1a0] sm:$0xff] %vm326, 0.0
      %381 = vst.msk [vmem:[#allocation2 + $0x1a8] sm:$0x3] %vm329, 0.0
      %v382 = vld [vmem:[%s315] sm:$0xff]
      %v383 = vld [vmem:[%s315 + $0x8] sm:$0xff]
      %v384 = vld [vmem:[%s315 + $0x10] sm:$0xff]
      %v385 = vld [vmem:[%s315 + $0x18] sm:$0xff]
      %v386 = vld [vmem:[%s315 + $0x20] sm:$0xff]
      %v387 = vld [vmem:[%s315 + $0x28] sm:$0xff]
      %v388 = vld [vmem:[%s315 + $0x30] sm:$0xff]
      %v389 = vld [vmem:[%s315 + $0x38] sm:$0xff]
      %v390 = vld [vmem:[%s315 + $0x40] sm:$0xff]
      %v391 = vld [vmem:[%s315 + $0x48] sm:$0xff]
      %v392 = vld [vmem:[%s315 + $0x50] sm:$0xff]
      %v393 = vld [vmem:[%s315 + $0x58] sm:$0xff]
      %v394 = vld [vmem:[%s315 + $0x60] sm:$0xff]
      %v395 = vld [vmem:[%s315 + $0x68] sm:$0xff]
      %v396 = vld [vmem:[%s315 + $0x70] sm:$0xff]
      %v397 = vld [vmem:[%s315 + $0x78] sm:$0xff]
      %v398 = vld [vmem:[%s315 + $0x80] sm:$0xff]
      %v399 = vld [vmem:[%s315 + $0x88] sm:$0xff]
      %v400 = vld [vmem:[%s315 + $0x90] sm:$0xff]
      %v401 = vld [vmem:[%s315 + $0x98] sm:$0xff]
      %v402 = vld [vmem:[%s315 + $0xa0] sm:$0xff]
      %v403 = vld [vmem:[%s315 + $0xa8] sm:$0xff]
      %v404 = vld [vmem:[%s315 + $0xb0] sm:$0xff]
      %v405 = vld [vmem:[%s315 + $0xb8] sm:$0xff]
      %v406 = vld [vmem:[%s315 + $0xc0] sm:$0xff]
      %v407 = vld [vmem:[%s315 + $0xc8] sm:$0xff]
      %v408 = vld [vmem:[%s315 + $0xd0] sm:$0xff]
      %v409 = vld [vmem:[%s315 + $0xd8] sm:$0xff]
      %v410 = vld [vmem:[%s315 + $0xe0] sm:$0xff]
      %v411 = vld [vmem:[%s315 + $0xe8] sm:$0xff]
      %v412 = vld [vmem:[%s315 + $0xf0] sm:$0xff]
      %v413 = vld [vmem:[%s315 + $0xf8] sm:$0xff]
      %s414 = scalar_lea.vmem [#allocation2], 24
      %vm415 = vcmask 31744
      %416 = vst.msk [vmem:[%s414 + $0x1] sm:$0xff] %vm415, %v382
      %417 = vst.msk [vmem:[%s414 + $0x9] sm:$0xff] %vm415, %v383
      %418 = vst.msk [vmem:[%s414 + $0x19] sm:$0xff] %vm415, %v384
      %419 = vst.msk [vmem:[%s414 + $0x21] sm:$0xff] %vm415, %v385
      %420 = vst.msk [vmem:[%s414 + $0x31] sm:$0xff] %vm415, %v386
      %421 = vst.msk [vmem:[%s414 + $0x39] sm:$0xff] %vm415, %v387
      %422 = vst.msk [vmem:[%s414 + $0x49] sm:$0xff] %vm415, %v388
      %423 = vst.msk [vmem:[%s414 + $0x51] sm:$0xff] %vm415, %v389
      %424 = vst.msk [vmem:[%s414 + $0x61] sm:$0xff] %vm415, %v390
      %425 = vst.msk [vmem:[%s414 + $0x69] sm:$0xff] %vm415, %v391
      %426 = vst.msk [vmem:[%s414 + $0x79] sm:$0xff] %vm415, %v392
      %427 = vst.msk [vmem:[%s414 + $0x81] sm:$0xff] %vm415, %v393
      %428 = vst.msk [vmem:[%s414 + $0x91] sm:$0xff] %vm415, %v394
      %429 = vst.msk [vmem:[%s414 + $0x99] sm:$0xff] %vm415, %v395
      %430 = vst.msk [vmem:[%s414 + $0xa9] sm:$0xff] %vm415, %v396
      %431 = vst.msk [vmem:[%s414 + $0xb1] sm:$0xff] %vm415, %v397
      %432 = vst.msk [vmem:[%s414 + $0xc1] sm:$0xff] %vm415, %v398
      %433 = vst.msk [vmem:[%s414 + $0xc9] sm:$0xff] %vm415, %v399
      %434 = vst.msk [vmem:[%s414 + $0xd9] sm:$0xff] %vm415, %v400
      %435 = vst.msk [vmem:[%s414 + $0xe1] sm:$0xff] %vm415, %v401
      %436 = vst.msk [vmem:[%s414 + $0xf1] sm:$0xff] %vm415, %v402
      %437 = vst.msk [vmem:[%s414 + $0xf9] sm:$0xff] %vm415, %v403
      %438 = vst.msk [vmem:[%s414 + $0x109] sm:$0xff] %vm415, %v404
      %439 = vst.msk [vmem:[%s414 + $0x111] sm:$0xff] %vm415, %v405
      %440 = vst.msk [vmem:[%s414 + $0x121] sm:$0xff] %vm415, %v406
      %441 = vst.msk [vmem:[%s414 + $0x129] sm:$0xff] %vm415, %v407
      %442 = vst.msk [vmem:[%s414 + $0x139] sm:$0xff] %vm415, %v408
      %443 = vst.msk [vmem:[%s414 + $0x141] sm:$0xff] %vm415, %v409
      %444 = vst.msk [vmem:[%s414 + $0x151] sm:$0xff] %vm415, %v410
      %445 = vst.msk [vmem:[%s414 + $0x159] sm:$0xff] %vm415, %v411
      %446 = vst.msk [vmem:[%s414 + $0x169] sm:$0xff] %vm415, %v412
      %447 = vst.msk [vmem:[%s414 + $0x171] sm:$0xff] %vm415, %v413
      %v448 = vld [vmem:[%s320] sm:$0xff]
      %v449 = vld [vmem:[%s320 + $0x8] sm:$0xff]
      %v450 = vld [vmem:[%s320 + $0x10] sm:$0xff]
      %v451 = vld [vmem:[%s320 + $0x18] sm:$0xff]
      %v452 = vld [vmem:[%s320 + $0x20] sm:$0xff]
      %v453 = vld [vmem:[%s320 + $0x28] sm:$0xff]
      %v454 = vld [vmem:[%s320 + $0x30] sm:$0xff]
      %v455 = vld [vmem:[%s320 + $0x38] sm:$0xff]
      %v456 = vld [vmem:[%s320 + $0x40] sm:$0xff]
      %v457 = vld [vmem:[%s320 + $0x48] sm:$0xff]
      %v458 = vld [vmem:[%s320 + $0x50] sm:$0xff]
      %v459 = vld [vmem:[%s320 + $0x58] sm:$0xff]
      %v460 = vld [vmem:[%s320 + $0x60] sm:$0xff]
      %v461 = vld [vmem:[%s320 + $0x68] sm:$0xff]
      %v462 = vld [vmem:[%s320 + $0x70] sm:$0xff]
      %v463 = vld [vmem:[%s320 + $0x78] sm:$0xff]
      %v464 = vld [vmem:[%s320 + $0x80] sm:$0xff]
      %v465 = vld [vmem:[%s320 + $0x88] sm:$0xff]
      %v466 = vld [vmem:[%s320 + $0x90] sm:$0xff]
      %v467 = vld [vmem:[%s320 + $0x98] sm:$0xff]
      %v468 = vld [vmem:[%s320 + $0xa0] sm:$0xff]
      %v469 = vld [vmem:[%s320 + $0xa8] sm:$0xff]
      %v470 = vld [vmem:[%s320 + $0xb0] sm:$0xff]
      %v471 = vld [vmem:[%s320 + $0xb8] sm:$0xff]
      %v472 = vld [vmem:[%s320 + $0xc0] sm:$0xff]
      %v473 = vld [vmem:[%s320 + $0xc8] sm:$0xff]
      %v474 = vld [vmem:[%s320 + $0xd0] sm:$0xff]
      %v475 = vld [vmem:[%s320 + $0xd8] sm:$0xff]
      %v476 = vld [vmem:[%s320 + $0xe0] sm:$0xff]
      %v477 = vld [vmem:[%s320 + $0xe8] sm:$0xff]
      %v478 = vld [vmem:[%s320 + $0xf0] sm:$0xff]
      %v479 = vld [vmem:[%s320 + $0xf8] sm:$0xff]
      %512 = vrot.lane.b32.xlu0 %v448, 4
      %v513 = vpop.permute.xlu0 %512
      %514 = vrot.lane.b32.xlu0 %v449, 4
      %v515 = vpop.permute.xlu0 %514
      %516 = vrot.lane.b32.xlu0 %v450, 4
      %v517 = vpop.permute.xlu0 %516
      %518 = vrot.lane.b32.xlu0 %v451, 4
      %v519 = vpop.permute.xlu0 %518
      %520 = vrot.lane.b32.xlu0 %v452, 4
      %v521 = vpop.permute.xlu0 %520
      %522 = vrot.lane.b32.xlu0 %v453, 4
      %v523 = vpop.permute.xlu0 %522
      %524 = vrot.lane.b32.xlu0 %v454, 4
      %v525 = vpop.permute.xlu0 %524
      %526 = vrot.lane.b32.xlu0 %v455, 4
      %v527 = vpop.permute.xlu0 %526
      %528 = vrot.lane.b32.xlu0 %v456, 4
      %v529 = vpop.permute.xlu0 %528
      %530 = vrot.lane.b32.xlu0 %v457, 4
      %v531 = vpop.permute.xlu0 %530
      %532 = vrot.lane.b32.xlu0 %v458, 4
      %v533 = vpop.permute.xlu0 %532
      %534 = vrot.lane.b32.xlu0 %v459, 4
      %v535 = vpop.permute.xlu0 %534
      %536 = vrot.lane.b32.xlu0 %v460, 4
      %v537 = vpop.permute.xlu0 %536
      %538 = vrot.lane.b32.xlu0 %v461, 4
      %v539 = vpop.permute.xlu0 %538
      %540 = vrot.lane.b32.xlu0 %v462, 4
      %v541 = vpop.permute.xlu0 %540
      %542 = vrot.lane.b32.xlu0 %v463, 4
      %v543 = vpop.permute.xlu0 %542
      %544 = vrot.lane.b32.xlu0 %v464, 4
      %v545 = vpop.permute.xlu0 %544
      %546 = vrot.lane.b32.xlu0 %v465, 4
      %v547 = vpop.permute.xlu0 %546
      %548 = vrot.lane.b32.xlu0 %v466, 4
      %v549 = vpop.permute.xlu0 %548
      %550 = vrot.lane.b32.xlu0 %v467, 4
      %v551 = vpop.permute.xlu0 %550
      %552 = vrot.lane.b32.xlu0 %v468, 4
      %v553 = vpop.permute.xlu0 %552
      %554 = vrot.lane.b32.xlu0 %v469, 4
      %v555 = vpop.permute.xlu0 %554
      %556 = vrot.lane.b32.xlu0 %v470, 4
      %v557 = vpop.permute.xlu0 %556
      %558 = vrot.lane.b32.xlu0 %v471, 4
      %v559 = vpop.permute.xlu0 %558
      %560 = vrot.lane.b32.xlu0 %v472, 4
      %v561 = vpop.permute.xlu0 %560
      %562 = vrot.lane.b32.xlu0 %v473, 4
      %v563 = vpop.permute.xlu0 %562
      %564 = vrot.lane.b32.xlu0 %v474, 4
      %v565 = vpop.permute.xlu0 %564
      %566 = vrot.lane.b32.xlu0 %v475, 4
      %v567 = vpop.permute.xlu0 %566
      %568 = vrot.lane.b32.xlu0 %v476, 4
      %v569 = vpop.permute.xlu0 %568
      %570 = vrot.lane.b32.xlu0 %v477, 4
      %v571 = vpop.permute.xlu0 %570
      %572 = vrot.lane.b32.xlu0 %v478, 4
      %v573 = vpop.permute.xlu0 %572
      %574 = vrot.lane.b32.xlu0 %v479, 4
      %v575 = vpop.permute.xlu0 %574
      %vm608 = vcmask 64544
      %609 = vst.msk [vmem:[%s414 + $0x1] sm:$0xff] %vm608, %v513
      %610 = vst.msk [vmem:[%s414 + $0x9] sm:$0xff] %vm608, %v515
      %611 = vst.msk [vmem:[%s414 + $0x19] sm:$0xff] %vm608, %v517
      %612 = vst.msk [vmem:[%s414 + $0x21] sm:$0xff] %vm608, %v519
      %613 = vst.msk [vmem:[%s414 + $0x31] sm:$0xff] %vm608, %v521
      %614 = vst.msk [vmem:[%s414 + $0x39] sm:$0xff] %vm608, %v523
      %615 = vst.msk [vmem:[%s414 + $0x49] sm:$0xff] %vm608, %v525
      %616 = vst.msk [vmem:[%s414 + $0x51] sm:$0xff] %vm608, %v527
      %617 = vst.msk [vmem:[%s414 + $0x61] sm:$0xff] %vm608, %v529
      %618 = vst.msk [vmem:[%s414 + $0x69] sm:$0xff] %vm608, %v531
      %619 = vst.msk [vmem:[%s414 + $0x79] sm:$0xff] %vm608, %v533
      %620 = vst.msk [vmem:[%s414 + $0x81] sm:$0xff] %vm608, %v535
      %621 = vst.msk [vmem:[%s414 + $0x91] sm:$0xff] %vm608, %v537
      %622 = vst.msk [vmem:[%s414 + $0x99] sm:$0xff] %vm608, %v539
      %623 = vst.msk [vmem:[%s414 + $0xa9] sm:$0xff] %vm608, %v541
      %624 = vst.msk [vmem:[%s414 + $0xb1] sm:$0xff] %vm608, %v543
      %625 = vst.msk [vmem:[%s414 + $0xc1] sm:$0xff] %vm608, %v545
      %626 = vst.msk [vmem:[%s414 + $0xc9] sm:$0xff] %vm608, %v547
      %627 = vst.msk [vmem:[%s414 + $0xd9] sm:$0xff] %vm608, %v549
      %628 = vst.msk [vmem:[%s414 + $0xe1] sm:$0xff] %vm608, %v551
      %629 = vst.msk [vmem:[%s414 + $0xf1] sm:$0xff] %vm608, %v553
      %630 = vst.msk [vmem:[%s414 + $0xf9] sm:$0xff] %vm608, %v555
      %631 = vst.msk [vmem:[%s414 + $0x109] sm:$0xff] %vm608, %v557
      %632 = vst.msk [vmem:[%s414 + $0x111] sm:$0xff] %vm608, %v559
      %633 = vst.msk [vmem:[%s414 + $0x121] sm:$0xff] %vm608, %v561
      %634 = vst.msk [vmem:[%s414 + $0x129] sm:$0xff] %vm608, %v563
      %635 = vst.msk [vmem:[%s414 + $0x139] sm:$0xff] %vm608, %v565
      %636 = vst.msk [vmem:[%s414 + $0x141] sm:$0xff] %vm608, %v567
      %637 = vst.msk [vmem:[%s414 + $0x151] sm:$0xff] %vm608, %v569
      %638 = vst.msk [vmem:[%s414 + $0x159] sm:$0xff] %vm608, %v571
      %639 = vst.msk [vmem:[%s414 + $0x169] sm:$0xff] %vm608, %v573
      %640 = vst.msk [vmem:[%s414 + $0x171] sm:$0xff] %vm608, %v575
      %v641 = vld [vmem:[#allocation2] sm:$0xff]
      %v642 = vld [vmem:[#allocation2 + $0x8] sm:$0xff]
      %v643 = vld [vmem:[#allocation2 + $0x18] sm:$0xff]
      %v644 = vld [vmem:[#allocation2 + $0x20] sm:$0xff]
      %v645 = vld [vmem:[#allocation2 + $0x30] sm:$0xff]
      %v646 = vld [vmem:[#allocation2 + $0x38] sm:$0xff]
      %v647 = vld [vmem:[#allocation2 + $0x48] sm:$0xff]
      %v648 = vld [vmem:[#allocation2 + $0x50] sm:$0xff]
      %v649 = vld [vmem:[#allocation2 + $0x60] sm:$0xff]
      %v650 = vld [vmem:[#allocation2 + $0x68] sm:$0xff]
      %v651 = vld [vmem:[#allocation2 + $0x78] sm:$0xff]
      %v652 = vld [vmem:[#allocation2 + $0x80] sm:$0xff]
      %v653 = vld [vmem:[#allocation2 + $0x90] sm:$0xff]
      %v654 = vld [vmem:[#allocation2 + $0x98] sm:$0xff]
      %v655 = vld [vmem:[#allocation2 + $0xa8] sm:$0xff]
      %v656 = vld [vmem:[#allocation2 + $0xb0] sm:$0xff]
      %v657 = vld [vmem:[#allocation2 + $0xc0] sm:$0xff]
      %v658 = vld [vmem:[#allocation2 + $0xc8] sm:$0xff]
      %v659 = vld [vmem:[#allocation2 + $0xd8] sm:$0xff]
      %v660 = vld [vmem:[#allocation2 + $0xe0] sm:$0xff]
      %v661 = vld [vmem:[#allocation2 + $0xf0] sm:$0xff]
      %v662 = vld [vmem:[#allocation2 + $0xf8] sm:$0xff]
      %v663 = vld [vmem:[#allocation2 + $0x108] sm:$0xff]
      %v664 = vld [vmem:[#allocation2 + $0x110] sm:$0xff]
      %v665 = vld [vmem:[#allocation2 + $0x120] sm:$0xff]
      %v666 = vld [vmem:[#allocation2 + $0x128] sm:$0xff]
      %v667 = vld [vmem:[#allocation2 + $0x138] sm:$0xff]
      %v668 = vld [vmem:[#allocation2 + $0x140] sm:$0xff]
      %v669 = vld [vmem:[#allocation2 + $0x150] sm:$0xff]
      %v670 = vld [vmem:[#allocation2 + $0x158] sm:$0xff]
      %v671 = vld [vmem:[#allocation2 + $0x168] sm:$0xff]
      %v672 = vld [vmem:[#allocation2 + $0x170] sm:$0xff]
      %v673 = vld [vmem:[%s2] sm:$0xff]
      %v674 = vld [vmem:[#allocation2 + $0x1] sm:$0xff]
      %v675 = vld [vmem:[#allocation2 + $0x9] sm:$0xff]
      %v676 = vld [vmem:[#allocation2 + $0x19] sm:$0xff]
      %v677 = vld [vmem:[#allocation2 + $0x21] sm:$0xff]
      %v678 = vld [vmem:[#allocation2 + $0x31] sm:$0xff]
      %v679 = vld [vmem:[#allocation2 + $0x39] sm:$0xff]
      %v680 = vld [vmem:[#allocation2 + $0x49] sm:$0xff]
      %v681 = vld [vmem:[#allocation2 + $0x51] sm:$0xff]
      %v682 = vld [vmem:[#allocation2 + $0x61] sm:$0xff]
      %v683 = vld [vmem:[#allocation2 + $0x69] sm:$0xff]
      %v684 = vld [vmem:[#allocation2 + $0x79] sm:$0xff]
      %v685 = vld [vmem:[#allocation2 + $0x81] sm:$0xff]
      %v686 = vld [vmem:[#allocation2 + $0x91] sm:$0xff]
      %v687 = vld [vmem:[#allocation2 + $0x99] sm:$0xff]
      %v688 = vld [vmem:[#allocation2 + $0xa9] sm:$0xff]
      %v689 = vld [vmem:[#allocation2 + $0xb1] sm:$0xff]
      %v690 = vld [vmem:[#allocation2 + $0xc1] sm:$0xff]
      %v691 = vld [vmem:[#allocation2 + $0xc9] sm:$0xff]
      %v692 = vld [vmem:[#allocation2 + $0xd9] sm:$0xff]
      %v693 = vld [vmem:[#allocation2 + $0xe1] sm:$0xff]
      %v694 = vld [vmem:[#allocation2 + $0xf1] sm:$0xff]
      %v695 = vld [vmem:[#allocation2 + $0xf9] sm:$0xff]
      %v696 = vld [vmem:[#allocation2 + $0x109] sm:$0xff]
      %v697 = vld [vmem:[#allocation2 + $0x111] sm:$0xff]
      %v698 = vld [vmem:[#allocation2 + $0x121] sm:$0xff]
      %v699 = vld [vmem:[#allocation2 + $0x129] sm:$0xff]
      %v700 = vld [vmem:[#allocation2 + $0x139] sm:$0xff]
      %v701 = vld [vmem:[#allocation2 + $0x141] sm:$0xff]
      %v702 = vld [vmem:[#allocation2 + $0x151] sm:$0xff]
      %v703 = vld [vmem:[#allocation2 + $0x159] sm:$0xff]
      %v704 = vld [vmem:[#allocation2 + $0x169] sm:$0xff]
      %v705 = vld [vmem:[#allocation2 + $0x171] sm:$0xff]
      %s706 = scalar_lea.vmem %s2, 8
      %v707 = vld [vmem:[%s706] sm:$0xff]
      %v709 = vsel %vm326, %v674, 0
      %v712 = vsel %vm326, %v675, 0
      %v715 = vsel %vm326, %v676, 0
      %v718 = vsel %vm326, %v677, 0
      %v721 = vsel %vm326, %v678, 0
      %v724 = vsel %vm326, %v679, 0
      %v727 = vsel %vm326, %v680, 0
      %v730 = vsel %vm326, %v681, 0
      %v733 = vsel %vm326, %v682, 0
      %v736 = vsel %vm326, %v683, 0
      %v739 = vsel %vm326, %v684, 0
      %v742 = vsel %vm326, %v685, 0
      %v745 = vsel %vm326, %v686, 0
      %v748 = vsel %vm326, %v687, 0
      %v751 = vsel %vm326, %v688, 0
      %v754 = vsel %vm326, %v689, 0
      %v757 = vsel %vm326, %v690, 0
      %v760 = vsel %vm326, %v691, 0
      %v763 = vsel %vm326, %v692, 0
      %v766 = vsel %vm326, %v693, 0
      %v769 = vsel %vm326, %v694, 0
      %v772 = vsel %vm326, %v695, 0
      %v775 = vsel %vm326, %v696, 0
      %v778 = vsel %vm326, %v697, 0
      %v781 = vsel %vm326, %v698, 0
      %v784 = vsel %vm326, %v699, 0
      %v787 = vsel %vm326, %v700, 0
      %v790 = vsel %vm326, %v701, 0
      %v793 = vsel %vm326, %v702, 0
      %v796 = vsel %vm326, %v703, 0
      %v799 = vsel %vm326, %v704, 0
      %v802 = vsel %vm326, %v705, 0
      %804 = vmatprep.subr.mxu0 0.0
      %805 = vmatpush1.msra.mxu0 0.0
      %806 = vmatprep.subr.mxu0 0.0
      %807 = vmatpush1.msra.mxu0 0.0
      %808 = vmatprep.subr.mxu0 0.0
      %809 = vmatpush1.msra.mxu0 0.0
      %810 = vmatprep.subr.mxu0 0.0
      %811 = vmatpush1.msra.mxu0 0.0
      %812 = vmatprep.subr.mxu0 0.0
      %813 = vmatpush1.msra.mxu0 0.0
      %814 = vmatprep.subr.mxu0 0.0
      %815 = vmatpush1.msra.mxu0 0.0
      %816 = vmatprep.subr.mxu0 0.0
      %817 = vmatpush1.msra.mxu0 0.0
      %818 = vmatprep.subr.mxu0 0.0
      %819 = vmatpush1.msra.mxu0 0.0
      %820 = vmatprep.subr.mxu0 0.0
      %821 = vmatpush1.msra.mxu0 0.0
      %822 = vmatprep.subr.mxu0 0.0
      %823 = vmatpush1.msra.mxu0 0.0
      %824 = vmatprep.subr.mxu0 0.0
      %825 = vmatpush1.msra.mxu0 0.0
      %826 = vmatprep.subr.mxu0 0.0
      %827 = vmatpush1.msra.mxu0 0.0
      %828 = vmatprep.subr.mxu0 0.0
      %829 = vmatpush1.msra.mxu0 0.0
      %830 = vmatprep.subr.mxu0 0.0
      %831 = vmatpush1.msra.mxu0 0.0
      %832 = vmatprep.subr.mxu0 0.0
      %833 = vmatpush1.msra.mxu0 0.0
      %834 = vmatprep.subr.mxu0 0.0
      %835 = vmatpush1.msra.mxu0 %v707
      %836 = vmatprep.subr.mxu0 0.0
      %837 = vmatpush2.msra.mxu0 0.0
      %838 = vmatprep.subr.mxu0 0.0
      %839 = vmatpush2.msra.mxu0 0.0
      %840 = vmatprep.subr.mxu0 0.0
      %841 = vmatpush2.msra.mxu0 0.0
      %842 = vmatprep.subr.mxu0 0.0
      %843 = vmatpush2.msra.mxu0 0.0
      %844 = vmatprep.subr.mxu0 0.0
      %845 = vmatpush2.msra.mxu0 0.0
      %846 = vmatprep.subr.mxu0 0.0
      %847 = vmatpush2.msra.mxu0 0.0
      %848 = vmatprep.subr.mxu0 0.0
      %849 = vmatpush2.msra.mxu0 0.0
      %850 = vmatprep.subr.mxu0 0.0
      %851 = vmatpush2.msra.mxu0 0.0
      %852 = vmatprep.subr.mxu0 0.0
      %853 = vmatpush2.msra.mxu0 0.0
      %854 = vmatprep.subr.mxu0 0.0
      %855 = vmatpush2.msra.mxu0 0.0
      %856 = vmatprep.subr.mxu0 0.0
      %857 = vmatpush2.msra.mxu0 0.0
      %858 = vmatprep.subr.mxu0 0.0
      %859 = vmatpush2.msra.mxu0 0.0
      %860 = vmatprep.subr.mxu0 0.0
      %861 = vmatpush2.msra.mxu0 0.0
      %862 = vmatprep.subr.mxu0 0.0
      %863 = vmatpush2.msra.mxu0 0.0
      %864 = vmatprep.subr.mxu0 0.0
      %865 = vmatpush2.msra.mxu0 0.0
      %866 = vmatprep.subr.mxu0 0.0
      %867 = vmatpush2.msra.mxu0 0.0
      %868 = vmatprep.mubr.f32.mxu0 0.0
      %869 = vmatmul.mubr.f32.gmra.mxu0 %v709
      %v870 = vpop.f32.mrf.mxu0
      %v871 = vadd.f32 0.0, %v870
      %v872 = vpop.f32.mrf.mxu0
      %873 = vmatprep.mubr.f32.mxu0 0.0
      %874 = vmatmul.mubr.f32.gmra.mxu0 %v712
      %v875 = vpop.f32.mrf.mxu0
      %v876 = vadd.f32 0.0, %v875
      %v877 = vpop.f32.mrf.mxu0
      %878 = vmatprep.mubr.f32.mxu0 0.0
      %879 = vmatmul.mubr.f32.gmra.mxu0 %v715
      %v880 = vpop.f32.mrf.mxu0
      %v881 = vadd.f32 0.0, %v880
      %v882 = vpop.f32.mrf.mxu0
      %883 = vmatprep.mubr.f32.mxu0 0.0
      %884 = vmatmul.mubr.f32.gmra.mxu0 %v718
      %v885 = vpop.f32.mrf.mxu0
      %v886 = vadd.f32 0.0, %v885
      %v887 = vpop.f32.mrf.mxu0
      %888 = vmatprep.mubr.f32.mxu0 0.0
      %889 = vmatmul.mubr.f32.gmra.mxu0 %v721
      %v890 = vpop.f32.mrf.mxu0
      %v891 = vadd.f32 0.0, %v890
      %v892 = vpop.f32.mrf.mxu0
      %893 = vmatprep.mubr.f32.mxu0 0.0
      %894 = vmatmul.mubr.f32.gmra.mxu0 %v724
      %v895 = vpop.f32.mrf.mxu0
      %v896 = vadd.f32 0.0, %v895
      %v897 = vpop.f32.mrf.mxu0
      %898 = vmatprep.mubr.f32.mxu0 0.0
      %899 = vmatmul.mubr.f32.gmra.mxu0 %v727
      %v900 = vpop.f32.mrf.mxu0
      %v901 = vadd.f32 0.0, %v900
      %v902 = vpop.f32.mrf.mxu0
      %903 = vmatprep.mubr.f32.mxu0 0.0
      %904 = vmatmul.mubr.f32.gmra.mxu0 %v730
      %v905 = vpop.f32.mrf.mxu0
      %v906 = vadd.f32 0.0, %v905
      %v907 = vpop.f32.mrf.mxu0
      %908 = vmatprep.mubr.f32.mxu0 0.0
      %909 = vmatmul.mubr.f32.gmra.mxu0 %v733
      %v910 = vpop.f32.mrf.mxu0
      %v911 = vadd.f32 0.0, %v910
      %v912 = vpop.f32.mrf.mxu0
      %913 = vmatprep.mubr.f32.mxu0 0.0
      %914 = vmatmul.mubr.f32.gmra.mxu0 %v736
      %v915 = vpop.f32.mrf.mxu0
      %v916 = vadd.f32 0.0, %v915
      %v917 = vpop.f32.mrf.mxu0
      %918 = vmatprep.mubr.f32.mxu0 0.0
      %919 = vmatmul.mubr.f32.gmra.mxu0 %v739
      %v920 = vpop.f32.mrf.mxu0
      %v921 = vadd.f32 0.0, %v920
      %v922 = vpop.f32.mrf.mxu0
      %923 = vmatprep.mubr.f32.mxu0 0.0
      %924 = vmatmul.mubr.f32.gmra.mxu0 %v742
      %v925 = vpop.f32.mrf.mxu0
      %v926 = vadd.f32 0.0, %v925
      %v927 = vpop.f32.mrf.mxu0
      %928 = vmatprep.mubr.f32.mxu0 0.0
      %929 = vmatmul.mubr.f32.gmra.mxu0 %v745
      %v930 = vpop.f32.mrf.mxu0
      %v931 = vadd.f32 0.0, %v930
      %v932 = vpop.f32.mrf.mxu0
      %933 = vmatprep.mubr.f32.mxu0 0.0
      %934 = vmatmul.mubr.f32.gmra.mxu0 %v748
      %v935 = vpop.f32.mrf.mxu0
      %v936 = vadd.f32 0.0, %v935
      %v937 = vpop.f32.mrf.mxu0
      %938 = vmatprep.mubr.f32.mxu0 0.0
      %939 = vmatmul.mubr.f32.gmra.mxu0 %v751
      %v940 = vpop.f32.mrf.mxu0
      %v941 = vadd.f32 0.0, %v940
      %v942 = vpop.f32.mrf.mxu0
      %943 = vmatprep.mubr.f32.mxu0 0.0
      %944 = vmatmul.mubr.f32.gmra.mxu0 %v754
      %v945 = vpop.f32.mrf.mxu0
      %v946 = vadd.f32 0.0, %v945
      %v947 = vpop.f32.mrf.mxu0
      %948 = vmatprep.mubr.f32.mxu0 0.0
      %949 = vmatmul.mubr.f32.gmra.mxu0 %v757
      %v950 = vpop.f32.mrf.mxu0
      %v951 = vadd.f32 0.0, %v950
      %v952 = vpop.f32.mrf.mxu0
      %953 = vmatprep.mubr.f32.mxu0 0.0
      %954 = vmatmul.mubr.f32.gmra.mxu0 %v760
      %v955 = vpop.f32.mrf.mxu0
      %v956 = vadd.f32 0.0, %v955
      %v957 = vpop.f32.mrf.mxu0
      %958 = vmatprep.mubr.f32.mxu0 0.0
      %959 = vmatmul.mubr.f32.gmra.mxu0 %v763
      %v960 = vpop.f32.mrf.mxu0
      %v961 = vadd.f32 0.0, %v960
      %v962 = vpop.f32.mrf.mxu0
      %963 = vmatprep.mubr.f32.mxu0 0.0
      %964 = vmatmul.mubr.f32.gmra.mxu0 %v766
      %v965 = vpop.f32.mrf.mxu0
      %v966 = vadd.f32 0.0, %v965
      %v967 = vpop.f32.mrf.mxu0
      %968 = vmatprep.mubr.f32.mxu0 0.0
      %969 = vmatmul.mubr.f32.gmra.mxu0 %v769
      %v970 = vpop.f32.mrf.mxu0
      %v971 = vadd.f32 0.0, %v970
      %v972 = vpop.f32.mrf.mxu0
      %973 = vmatprep.mubr.f32.mxu0 0.0
      %974 = vmatmul.mubr.f32.gmra.mxu0 %v772
      %v975 = vpop.f32.mrf.mxu0
      %v976 = vadd.f32 0.0, %v975
      %v977 = vpop.f32.mrf.mxu0
      %978 = vmatprep.mubr.f32.mxu0 0.0
      %979 = vmatmul.mubr.f32.gmra.mxu0 %v775
      %v980 = vpop.f32.mrf.mxu0
      %v981 = vadd.f32 0.0, %v980
      %v982 = vpop.f32.mrf.mxu0
      %983 = vmatprep.mubr.f32.mxu0 0.0
      %984 = vmatmul.mubr.f32.gmra.mxu0 %v778
      %v985 = vpop.f32.mrf.mxu0
      %v986 = vadd.f32 0.0, %v985
      %v987 = vpop.f32.mrf.mxu0
      %988 = vmatprep.mubr.f32.mxu0 0.0
      %989 = vmatmul.mubr.f32.gmra.mxu0 %v781
      %v990 = vpop.f32.mrf.mxu0
      %v991 = vadd.f32 0.0, %v990
      %v992 = vpop.f32.mrf.mxu0
      %993 = vmatprep.mubr.f32.mxu0 0.0
      %994 = vmatmul.mubr.f32.gmra.mxu0 %v784
      %v995 = vpop.f32.mrf.mxu0
      %v996 = vadd.f32 0.0, %v995
      %v997 = vpop.f32.mrf.mxu0
      %998 = vmatprep.mubr.f32.mxu0 0.0
      %999 = vmatmul.mubr.f32.gmra.mxu0 %v787
      %v1000 = vpop.f32.mrf.mxu0
      %v1001 = vadd.f32 0.0, %v1000
      %v1002 = vpop.f32.mrf.mxu0
      %1003 = vmatprep.mubr.f32.mxu0 0.0
      %1004 = vmatmul.mubr.f32.gmra.mxu0 %v790
      %v1005 = vpop.f32.mrf.mxu0
      %v1006 = vadd.f32 0.0, %v1005
      %v1007 = vpop.f32.mrf.mxu0
      %1008 = vmatprep.mubr.f32.mxu0 0.0
      %1009 = vmatmul.mubr.f32.gmra.mxu0 %v793
      %v1010 = vpop.f32.mrf.mxu0
      %v1011 = vadd.f32 0.0, %v1010
      %v1012 = vpop.f32.mrf.mxu0
      %1013 = vmatprep.mubr.f32.mxu0 0.0
      %1014 = vmatmul.mubr.f32.gmra.mxu0 %v796
      %v1015 = vpop.f32.mrf.mxu0
      %v1016 = vadd.f32 0.0, %v1015
      %v1017 = vpop.f32.mrf.mxu0
      %1018 = vmatprep.mubr.f32.mxu0 0.0
      %1019 = vmatmul.mubr.f32.gmra.mxu0 %v799
      %v1020 = vpop.f32.mrf.mxu0
      %v1021 = vadd.f32 0.0, %v1020
      %v1022 = vpop.f32.mrf.mxu0
      %1023 = vmatprep.mubr.f32.mxu0 0.0
      %1024 = vmatmul.mubr.f32.gmra.mxu0 %v802
      %v1025 = vpop.f32.mrf.mxu0
      %v1026 = vadd.f32 0.0, %v1025
      %v1027 = vpop.f32.mrf.mxu0
      %1028 = vdwg.mxu0
      %v1030 = vsel %vm326, %v641, 0
      %v1033 = vsel %vm326, %v642, 0
      %v1036 = vsel %vm326, %v643, 0
      %v1039 = vsel %vm326, %v644, 0
      %v1042 = vsel %vm326, %v645, 0
      %v1045 = vsel %vm326, %v646, 0
      %v1048 = vsel %vm326, %v647, 0
      %v1051 = vsel %vm326, %v648, 0
      %v1054 = vsel %vm326, %v649, 0
      %v1057 = vsel %vm326, %v650, 0
      %v1060 = vsel %vm326, %v651, 0
      %v1063 = vsel %vm326, %v652, 0
      %v1066 = vsel %vm326, %v653, 0
      %v1069 = vsel %vm326, %v654, 0
      %v1072 = vsel %vm326, %v655, 0
      %v1075 = vsel %vm326, %v656, 0
      %v1078 = vsel %vm326, %v657, 0
      %v1081 = vsel %vm326, %v658, 0
      %v1084 = vsel %vm326, %v659, 0
      %v1087 = vsel %vm326, %v660, 0
      %v1090 = vsel %vm326, %v661, 0
      %v1093 = vsel %vm326, %v662, 0
      %v1096 = vsel %vm326, %v663, 0
      %v1099 = vsel %vm326, %v664, 0
      %v1102 = vsel %vm326, %v665, 0
      %v1105 = vsel %vm326, %v666, 0
      %v1108 = vsel %vm326, %v667, 0
      %v1111 = vsel %vm326, %v668, 0
      %v1114 = vsel %vm326, %v669, 0
      %v1117 = vsel %vm326, %v670, 0
      %v1120 = vsel %vm326, %v671, 0
      %v1123 = vsel %vm326, %v672, 0
      %1125 = vmatprep.subr.mxu0 0.0
      %1126 = vmatpush1.msra.mxu0 0.0
      %1127 = vmatprep.subr.mxu0 0.0
      %1128 = vmatpush1.msra.mxu0 0.0
      %1129 = vmatprep.subr.mxu0 0.0
      %1130 = vmatpush1.msra.mxu0 0.0
      %1131 = vmatprep.subr.mxu0 0.0
      %1132 = vmatpush1.msra.mxu0 0.0
      %1133 = vmatprep.subr.mxu0 0.0
      %1134 = vmatpush1.msra.mxu0 0.0
      %1135 = vmatprep.subr.mxu0 0.0
      %1136 = vmatpush1.msra.mxu0 0.0
      %1137 = vmatprep.subr.mxu0 0.0
      %1138 = vmatpush1.msra.mxu0 0.0
      %1139 = vmatprep.subr.mxu0 0.0
      %1140 = vmatpush1.msra.mxu0 0.0
      %1141 = vmatprep.subr.mxu0 0.0
      %1142 = vmatpush1.msra.mxu0 0.0
      %1143 = vmatprep.subr.mxu0 0.0
      %1144 = vmatpush1.msra.mxu0 0.0
      %1145 = vmatprep.subr.mxu0 0.0
      %1146 = vmatpush1.msra.mxu0 0.0
      %1147 = vmatprep.subr.mxu0 0.0
      %1148 = vmatpush1.msra.mxu0 0.0
      %1149 = vmatprep.subr.mxu0 0.0
      %1150 = vmatpush1.msra.mxu0 0.0
      %1151 = vmatprep.subr.mxu0 0.0
      %1152 = vmatpush1.msra.mxu0 0.0
      %1153 = vmatprep.subr.mxu0 0.0
      %1154 = vmatpush1.msra.mxu0 0.0
      %1155 = vmatprep.subr.mxu0 0.0
      %1156 = vmatpush1.msra.mxu0 %v673
      %1157 = vmatprep.subr.mxu0 0.0
      %1158 = vmatpush2.msra.mxu0 0.0
      %1159 = vmatprep.subr.mxu0 0.0
      %1160 = vmatpush2.msra.mxu0 0.0
      %1161 = vmatprep.subr.mxu0 0.0
      %1162 = vmatpush2.msra.mxu0 0.0
      %1163 = vmatprep.subr.mxu0 0.0
      %1164 = vmatpush2.msra.mxu0 0.0
      %1165 = vmatprep.subr.mxu0 0.0
      %1166 = vmatpush2.msra.mxu0 0.0
      %1167 = vmatprep.subr.mxu0 0.0
      %1168 = vmatpush2.msra.mxu0 0.0
      %1169 = vmatprep.subr.mxu0 0.0
      %1170 = vmatpush2.msra.mxu0 0.0
      %1171 = vmatprep.subr.mxu0 0.0
      %1172 = vmatpush2.msra.mxu0 0.0
      %1173 = vmatprep.subr.mxu0 0.0
      %1174 = vmatpush2.msra.mxu0 0.0
      %1175 = vmatprep.subr.mxu0 0.0
      %1176 = vmatpush2.msra.mxu0 0.0
      %1177 = vmatprep.subr.mxu0 0.0
      %1178 = vmatpush2.msra.mxu0 0.0
      %1179 = vmatprep.subr.mxu0 0.0
      %1180 = vmatpush2.msra.mxu0 0.0
      %1181 = vmatprep.subr.mxu0 0.0
      %1182 = vmatpush2.msra.mxu0 0.0
      %1183 = vmatprep.subr.mxu0 0.0
      %1184 = vmatpush2.msra.mxu0 0.0
      %1185 = vmatprep.subr.mxu0 0.0
      %1186 = vmatpush2.msra.mxu0 0.0
      %1187 = vmatprep.subr.mxu0 0.0
      %1188 = vmatpush2.msra.mxu0 0.0
      %1189 = vmatprep.mubr.f32.mxu0 0.0
      %1190 = vmatmul.mubr.f32.gmra.mxu0 %v1030
      %v1191 = vpop.f32.mrf.mxu0
      %v1192 = vadd.f32 %v871, %v1191
      %v1193 = vpop.f32.mrf.mxu0
      %1194 = vmatprep.mubr.f32.mxu0 0.0
      %1195 = vmatmul.mubr.f32.gmra.mxu0 %v1033
      %v1196 = vpop.f32.mrf.mxu0
      %v1197 = vadd.f32 %v876, %v1196
      %v1198 = vpop.f32.mrf.mxu0
      %1199 = vmatprep.mubr.f32.mxu0 0.0
      %1200 = vmatmul.mubr.f32.gmra.mxu0 %v1036
      %v1201 = vpop.f32.mrf.mxu0
      %v1202 = vadd.f32 %v881, %v1201
      %v1203 = vpop.f32.mrf.mxu0
      %1204 = vmatprep.mubr.f32.mxu0 0.0
      %1205 = vmatmul.mubr.f32.gmra.mxu0 %v1039
      %v1206 = vpop.f32.mrf.mxu0
      %v1207 = vadd.f32 %v886, %v1206
      %v1208 = vpop.f32.mrf.mxu0
      %1209 = vmatprep.mubr.f32.mxu0 0.0
      %1210 = vmatmul.mubr.f32.gmra.mxu0 %v1042
      %v1211 = vpop.f32.mrf.mxu0
      %v1212 = vadd.f32 %v891, %v1211
      %v1213 = vpop.f32.mrf.mxu0
      %1214 = vmatprep.mubr.f32.mxu0 0.0
      %1215 = vmatmul.mubr.f32.gmra.mxu0 %v1045
      %v1216 = vpop.f32.mrf.mxu0
      %v1217 = vadd.f32 %v896, %v1216
      %v1218 = vpop.f32.mrf.mxu0
      %1219 = vmatprep.mubr.f32.mxu0 0.0
      %1220 = vmatmul.mubr.f32.gmra.mxu0 %v1048
      %v1221 = vpop.f32.mrf.mxu0
      %v1222 = vadd.f32 %v901, %v1221
      %v1223 = vpop.f32.mrf.mxu0
      %1224 = vmatprep.mubr.f32.mxu0 0.0
      %1225 = vmatmul.mubr.f32.gmra.mxu0 %v1051
      %v1226 = vpop.f32.mrf.mxu0
      %v1227 = vadd.f32 %v906, %v1226
      %v1228 = vpop.f32.mrf.mxu0
      %1229 = vmatprep.mubr.f32.mxu0 0.0
      %1230 = vmatmul.mubr.f32.gmra.mxu0 %v1054
      %v1231 = vpop.f32.mrf.mxu0
      %v1232 = vadd.f32 %v911, %v1231
      %v1233 = vpop.f32.mrf.mxu0
      %1234 = vmatprep.mubr.f32.mxu0 0.0
      %1235 = vmatmul.mubr.f32.gmra.mxu0 %v1057
      %v1236 = vpop.f32.mrf.mxu0
      %v1237 = vadd.f32 %v916, %v1236
      %v1238 = vpop.f32.mrf.mxu0
      %1239 = vmatprep.mubr.f32.mxu0 0.0
      %1240 = vmatmul.mubr.f32.gmra.mxu0 %v1060
      %v1241 = vpop.f32.mrf.mxu0
      %v1242 = vadd.f32 %v921, %v1241
      %v1243 = vpop.f32.mrf.mxu0
      %1244 = vmatprep.mubr.f32.mxu0 0.0
      %1245 = vmatmul.mubr.f32.gmra.mxu0 %v1063
      %v1246 = vpop.f32.mrf.mxu0
      %v1247 = vadd.f32 %v926, %v1246
      %v1248 = vpop.f32.mrf.mxu0
      %1249 = vmatprep.mubr.f32.mxu0 0.0
      %1250 = vmatmul.mubr.f32.gmra.mxu0 %v1066
      %v1251 = vpop.f32.mrf.mxu0
      %v1252 = vadd.f32 %v931, %v1251
      %v1253 = vpop.f32.mrf.mxu0
      %1254 = vmatprep.mubr.f32.mxu0 0.0
      %1255 = vmatmul.mubr.f32.gmra.mxu0 %v1069
      %v1256 = vpop.f32.mrf.mxu0
      %v1257 = vadd.f32 %v936, %v1256
      %v1258 = vpop.f32.mrf.mxu0
      %1259 = vmatprep.mubr.f32.mxu0 0.0
      %1260 = vmatmul.mubr.f32.gmra.mxu0 %v1072
      %v1261 = vpop.f32.mrf.mxu0
      %v1262 = vadd.f32 %v941, %v1261
      %v1263 = vpop.f32.mrf.mxu0
      %1264 = vmatprep.mubr.f32.mxu0 0.0
      %1265 = vmatmul.mubr.f32.gmra.mxu0 %v1075
      %v1266 = vpop.f32.mrf.mxu0
      %v1267 = vadd.f32 %v946, %v1266
      %v1268 = vpop.f32.mrf.mxu0
      %1269 = vmatprep.mubr.f32.mxu0 0.0
      %1270 = vmatmul.mubr.f32.gmra.mxu0 %v1078
      %v1271 = vpop.f32.mrf.mxu0
      %v1272 = vadd.f32 %v951, %v1271
      %v1273 = vpop.f32.mrf.mxu0
      %1274 = vmatprep.mubr.f32.mxu0 0.0
      %1275 = vmatmul.mubr.f32.gmra.mxu0 %v1081
      %v1276 = vpop.f32.mrf.mxu0
      %v1277 = vadd.f32 %v956, %v1276
      %v1278 = vpop.f32.mrf.mxu0
      %1279 = vmatprep.mubr.f32.mxu0 0.0
      %1280 = vmatmul.mubr.f32.gmra.mxu0 %v1084
      %v1281 = vpop.f32.mrf.mxu0
      %v1282 = vadd.f32 %v961, %v1281
      %v1283 = vpop.f32.mrf.mxu0
      %1284 = vmatprep.mubr.f32.mxu0 0.0
      %1285 = vmatmul.mubr.f32.gmra.mxu0 %v1087
      %v1286 = vpop.f32.mrf.mxu0
      %v1287 = vadd.f32 %v966, %v1286
      %v1288 = vpop.f32.mrf.mxu0
      %1289 = vmatprep.mubr.f32.mxu0 0.0
      %1290 = vmatmul.mubr.f32.gmra.mxu0 %v1090
      %v1291 = vpop.f32.mrf.mxu0
      %v1292 = vadd.f32 %v971, %v1291
      %v1293 = vpop.f32.mrf.mxu0
      %1294 = vmatprep.mubr.f32.mxu0 0.0
      %1295 = vmatmul.mubr.f32.gmra.mxu0 %v1093
      %v1296 = vpop.f32.mrf.mxu0
      %v1297 = vadd.f32 %v976, %v1296
      %v1298 = vpop.f32.mrf.mxu0
      %1299 = vmatprep.mubr.f32.mxu0 0.0
      %1300 = vmatmul.mubr.f32.gmra.mxu0 %v1096
      %v1301 = vpop.f32.mrf.mxu0
      %v1302 = vadd.f32 %v981, %v1301
      %v1303 = vpop.f32.mrf.mxu0
      %1304 = vmatprep.mubr.f32.mxu0 0.0
      %1305 = vmatmul.mubr.f32.gmra.mxu0 %v1099
      %v1306 = vpop.f32.mrf.mxu0
      %v1307 = vadd.f32 %v986, %v1306
      %v1308 = vpop.f32.mrf.mxu0
      %1309 = vmatprep.mubr.f32.mxu0 0.0
      %1310 = vmatmul.mubr.f32.gmra.mxu0 %v1102
      %v1311 = vpop.f32.mrf.mxu0
      %v1312 = vadd.f32 %v991, %v1311
      %v1313 = vpop.f32.mrf.mxu0
      %1314 = vmatprep.mubr.f32.mxu0 0.0
      %1315 = vmatmul.mubr.f32.gmra.mxu0 %v1105
      %v1316 = vpop.f32.mrf.mxu0
      %v1317 = vadd.f32 %v996, %v1316
      %v1318 = vpop.f32.mrf.mxu0
      %1319 = vmatprep.mubr.f32.mxu0 0.0
      %1320 = vmatmul.mubr.f32.gmra.mxu0 %v1108
      %v1321 = vpop.f32.mrf.mxu0
      %v1322 = vadd.f32 %v1001, %v1321
      %v1323 = vpop.f32.mrf.mxu0
      %1324 = vmatprep.mubr.f32.mxu0 0.0
      %1325 = vmatmul.mubr.f32.gmra.mxu0 %v1111
      %v1326 = vpop.f32.mrf.mxu0
      %v1327 = vadd.f32 %v1006, %v1326
      %v1328 = vpop.f32.mrf.mxu0
      %1329 = vmatprep.mubr.f32.mxu0 0.0
      %1330 = vmatmul.mubr.f32.gmra.mxu0 %v1114
      %v1331 = vpop.f32.mrf.mxu0
      %v1332 = vadd.f32 %v1011, %v1331
      %v1333 = vpop.f32.mrf.mxu0
      %1334 = vmatprep.mubr.f32.mxu0 0.0
      %1335 = vmatmul.mubr.f32.gmra.mxu0 %v1117
      %v1336 = vpop.f32.mrf.mxu0
      %v1337 = vadd.f32 %v1016, %v1336
      %v1338 = vpop.f32.mrf.mxu0
      %1339 = vmatprep.mubr.f32.mxu0 0.0
      %1340 = vmatmul.mubr.f32.gmra.mxu0 %v1120
      %v1341 = vpop.f32.mrf.mxu0
      %v1342 = vadd.f32 %v1021, %v1341
      %v1343 = vpop.f32.mrf.mxu0
      %1344 = vmatprep.mubr.f32.mxu0 0.0
      %1345 = vmatmul.mubr.f32.gmra.mxu0 %v1123
      %v1346 = vpop.f32.mrf.mxu0
      %v1347 = vadd.f32 %v1026, %v1346
      %v1348 = vpop.f32.mrf.mxu0
      %1349 = vdwg.mxu0
      %v1350 = vld [vmem:[#allocation2 + $0x2] sm:$0xff]
      %v1351 = vld [vmem:[#allocation2 + $0xa] sm:$0xff]
      %v1352 = vld [vmem:[#allocation2 + $0x1a] sm:$0xff]
      %v1353 = vld [vmem:[#allocation2 + $0x22] sm:$0xff]
      %v1354 = vld [vmem:[#allocation2 + $0x32] sm:$0xff]
      %v1355 = vld [vmem:[#allocation2 + $0x3a] sm:$0xff]
      %v1356 = vld [vmem:[#allocation2 + $0x4a] sm:$0xff]
      %v1357 = vld [vmem:[#allocation2 + $0x52] sm:$0xff]
      %v1358 = vld [vmem:[#allocation2 + $0x62] sm:$0xff]
      %v1359 = vld [vmem:[#allocation2 + $0x6a] sm:$0xff]
      %v1360 = vld [vmem:[#allocation2 + $0x7a] sm:$0xff]
      %v1361 = vld [vmem:[#allocation2 + $0x82] sm:$0xff]
      %v1362 = vld [vmem:[#allocation2 + $0x92] sm:$0xff]
      %v1363 = vld [vmem:[#allocation2 + $0x9a] sm:$0xff]
      %v1364 = vld [vmem:[#allocation2 + $0xaa] sm:$0xff]
      %v1365 = vld [vmem:[#allocation2 + $0xb2] sm:$0xff]
      %v1366 = vld [vmem:[#allocation2 + $0xc2] sm:$0xff]
      %v1367 = vld [vmem:[#allocation2 + $0xca] sm:$0xff]
      %v1368 = vld [vmem:[#allocation2 + $0xda] sm:$0xff]
      %v1369 = vld [vmem:[#allocation2 + $0xe2] sm:$0xff]
      %v1370 = vld [vmem:[#allocation2 + $0xf2] sm:$0xff]
      %v1371 = vld [vmem:[#allocation2 + $0xfa] sm:$0xff]
      %v1372 = vld [vmem:[#allocation2 + $0x10a] sm:$0xff]
      %v1373 = vld [vmem:[#allocation2 + $0x112] sm:$0xff]
      %v1374 = vld [vmem:[#allocation2 + $0x122] sm:$0xff]
      %v1375 = vld [vmem:[#allocation2 + $0x12a] sm:$0xff]
      %v1376 = vld [vmem:[#allocation2 + $0x13a] sm:$0xff]
      %v1377 = vld [vmem:[#allocation2 + $0x142] sm:$0xff]
      %v1378 = vld [vmem:[#allocation2 + $0x152] sm:$0xff]
      %v1379 = vld [vmem:[#allocation2 + $0x15a] sm:$0xff]
      %v1380 = vld [vmem:[#allocation2 + $0x16a] sm:$0xff]
      %v1381 = vld [vmem:[#allocation2 + $0x172] sm:$0xff]
      %s1382 = scalar_lea.vmem %s2, 16
      %v1383 = vld [vmem:[%s1382] sm:$0xff]
      %v1385 = vsel %vm326, %v1350, 0
      %v1388 = vsel %vm326, %v1351, 0
      %v1391 = vsel %vm326, %v1352, 0
      %v1394 = vsel %vm326, %v1353, 0
      %v1397 = vsel %vm326, %v1354, 0
      %v1400 = vsel %vm326, %v1355, 0
      %v1403 = vsel %vm326, %v1356, 0
      %v1406 = vsel %vm326, %v1357, 0
      %v1409 = vsel %vm326, %v1358, 0
      %v1412 = vsel %vm326, %v1359, 0
      %v1415 = vsel %vm326, %v1360, 0
      %v1418 = vsel %vm326, %v1361, 0
      %v1421 = vsel %vm326, %v1362, 0
      %v1424 = vsel %vm326, %v1363, 0
      %v1427 = vsel %vm326, %v1364, 0
      %v1430 = vsel %vm326, %v1365, 0
      %v1433 = vsel %vm326, %v1366, 0
      %v1436 = vsel %vm326, %v1367, 0
      %v1439 = vsel %vm326, %v1368, 0
      %v1442 = vsel %vm326, %v1369, 0
      %v1445 = vsel %vm326, %v1370, 0
      %v1448 = vsel %vm326, %v1371, 0
      %v1451 = vsel %vm326, %v1372, 0
      %v1454 = vsel %vm326, %v1373, 0
      %v1457 = vsel %vm326, %v1374, 0
      %v1460 = vsel %vm326, %v1375, 0
      %v1463 = vsel %vm326, %v1376, 0
      %v1466 = vsel %vm326, %v1377, 0
      %v1469 = vsel %vm326, %v1378, 0
      %v1472 = vsel %vm326, %v1379, 0
      %v1475 = vsel %vm326, %v1380, 0
      %v1478 = vsel %vm326, %v1381, 0
      %1480 = vmatprep.subr.mxu0 0.0
      %1481 = vmatpush1.msra.mxu0 0.0
      %1482 = vmatprep.subr.mxu0 0.0
      %1483 = vmatpush1.msra.mxu0 0.0
      %1484 = vmatprep.subr.mxu0 0.0
      %1485 = vmatpush1.msra.mxu0 0.0
      %1486 = vmatprep.subr.mxu0 0.0
      %1487 = vmatpush1.msra.mxu0 0.0
      %1488 = vmatprep.subr.mxu0 0.0
      %1489 = vmatpush1.msra.mxu0 0.0
      %1490 = vmatprep.subr.mxu0 0.0
      %1491 = vmatpush1.msra.mxu0 0.0
      %1492 = vmatprep.subr.mxu0 0.0
      %1493 = vmatpush1.msra.mxu0 0.0
      %1494 = vmatprep.subr.mxu0 0.0
      %1495 = vmatpush1.msra.mxu0 0.0
      %1496 = vmatprep.subr.mxu0 0.0
      %1497 = vmatpush1.msra.mxu0 0.0
      %1498 = vmatprep.subr.mxu0 0.0
      %1499 = vmatpush1.msra.mxu0 0.0
      %1500 = vmatprep.subr.mxu0 0.0
      %1501 = vmatpush1.msra.mxu0 0.0
      %1502 = vmatprep.subr.mxu0 0.0
      %1503 = vmatpush1.msra.mxu0 0.0
      %1504 = vmatprep.subr.mxu0 0.0
      %1505 = vmatpush1.msra.mxu0 0.0
      %1506 = vmatprep.subr.mxu0 0.0
      %1507 = vmatpush1.msra.mxu0 0.0
      %1508 = vmatprep.subr.mxu0 0.0
      %1509 = vmatpush1.msra.mxu0 0.0
      %1510 = vmatprep.subr.mxu0 0.0
      %1511 = vmatpush1.msra.mxu0 %v1383
      %1512 = vmatprep.subr.mxu0 0.0
      %1513 = vmatpush2.msra.mxu0 0.0
      %1514 = vmatprep.subr.mxu0 0.0
      %1515 = vmatpush2.msra.mxu0 0.0
      %1516 = vmatprep.subr.mxu0 0.0
      %1517 = vmatpush2.msra.mxu0 0.0
      %1518 = vmatprep.subr.mxu0 0.0
      %1519 = vmatpush2.msra.mxu0 0.0
      %1520 = vmatprep.subr.mxu0 0.0
      %1521 = vmatpush2.msra.mxu0 0.0
      %1522 = vmatprep.subr.mxu0 0.0
      %1523 = vmatpush2.msra.mxu0 0.0
      %1524 = vmatprep.subr.mxu0 0.0
      %1525 = vmatpush2.msra.mxu0 0.0
      %1526 = vmatprep.subr.mxu0 0.0
      %1527 = vmatpush2.msra.mxu0 0.0
      %1528 = vmatprep.subr.mxu0 0.0
      %1529 = vmatpush2.msra.mxu0 0.0
      %1530 = vmatprep.subr.mxu0 0.0
      %1531 = vmatpush2.msra.mxu0 0.0
      %1532 = vmatprep.subr.mxu0 0.0
      %1533 = vmatpush2.msra.mxu0 0.0
      %1534 = vmatprep.subr.mxu0 0.0
      %1535 = vmatpush2.msra.mxu0 0.0
      %1536 = vmatprep.subr.mxu0 0.0
      %1537 = vmatpush2.msra.mxu0 0.0
      %1538 = vmatprep.subr.mxu0 0.0
      %1539 = vmatpush2.msra.mxu0 0.0
      %1540 = vmatprep.subr.mxu0 0.0
      %1541 = vmatpush2.msra.mxu0 0.0
      %1542 = vmatprep.subr.mxu0 0.0
      %1543 = vmatpush2.msra.mxu0 0.0
      %1544 = vmatprep.mubr.f32.mxu0 0.0
      %1545 = vmatmul.mubr.f32.gmra.mxu0 %v1385
      %v1546 = vpop.f32.mrf.mxu0
      %v1547 = vadd.f32 0.0, %v1546
      %v1548 = vpop.f32.mrf.mxu0
      %1549 = vmatprep.mubr.f32.mxu0 0.0
      %1550 = vmatmul.mubr.f32.gmra.mxu0 %v1388
      %v1551 = vpop.f32.mrf.mxu0
      %v1552 = vadd.f32 0.0, %v1551
      %v1553 = vpop.f32.mrf.mxu0
      %1554 = vmatprep.mubr.f32.mxu0 0.0
      %1555 = vmatmul.mubr.f32.gmra.mxu0 %v1391
      %v1556 = vpop.f32.mrf.mxu0
      %v1557 = vadd.f32 0.0, %v1556
      %v1558 = vpop.f32.mrf.mxu0
      %1559 = vmatprep.mubr.f32.mxu0 0.0
      %1560 = vmatmul.mubr.f32.gmra.mxu0 %v1394
      %v1561 = vpop.f32.mrf.mxu0
      %v1562 = vadd.f32 0.0, %v1561
      %v1563 = vpop.f32.mrf.mxu0
      %1564 = vmatprep.mubr.f32.mxu0 0.0
      %1565 = vmatmul.mubr.f32.gmra.mxu0 %v1397
      %v1566 = vpop.f32.mrf.mxu0
      %v1567 = vadd.f32 0.0, %v1566
      %v1568 = vpop.f32.mrf.mxu0
      %1569 = vmatprep.mubr.f32.mxu0 0.0
      %1570 = vmatmul.mubr.f32.gmra.mxu0 %v1400
      %v1571 = vpop.f32.mrf.mxu0
      %v1572 = vadd.f32 0.0, %v1571
      %v1573 = vpop.f32.mrf.mxu0
      %1574 = vmatprep.mubr.f32.mxu0 0.0
      %1575 = vmatmul.mubr.f32.gmra.mxu0 %v1403
      %v1576 = vpop.f32.mrf.mxu0
      %v1577 = vadd.f32 0.0, %v1576
      %v1578 = vpop.f32.mrf.mxu0
      %1579 = vmatprep.mubr.f32.mxu0 0.0
      %1580 = vmatmul.mubr.f32.gmra.mxu0 %v1406
      %v1581 = vpop.f32.mrf.mxu0
      %v1582 = vadd.f32 0.0, %v1581
      %v1583 = vpop.f32.mrf.mxu0
      %1584 = vmatprep.mubr.f32.mxu0 0.0
      %1585 = vmatmul.mubr.f32.gmra.mxu0 %v1409
      %v1586 = vpop.f32.mrf.mxu0
      %v1587 = vadd.f32 0.0, %v1586
      %v1588 = vpop.f32.mrf.mxu0
      %1589 = vmatprep.mubr.f32.mxu0 0.0
      %1590 = vmatmul.mubr.f32.gmra.mxu0 %v1412
      %v1591 = vpop.f32.mrf.mxu0
      %v1592 = vadd.f32 0.0, %v1591
      %v1593 = vpop.f32.mrf.mxu0
      %1594 = vmatprep.mubr.f32.mxu0 0.0
      %1595 = vmatmul.mubr.f32.gmra.mxu0 %v1415
      %v1596 = vpop.f32.mrf.mxu0
      %v1597 = vadd.f32 0.0, %v1596
      %v1598 = vpop.f32.mrf.mxu0
      %1599 = vmatprep.mubr.f32.mxu0 0.0
      %1600 = vmatmul.mubr.f32.gmra.mxu0 %v1418
      %v1601 = vpop.f32.mrf.mxu0
      %v1602 = vadd.f32 0.0, %v1601
      %v1603 = vpop.f32.mrf.mxu0
      %1604 = vmatprep.mubr.f32.mxu0 0.0
      %1605 = vmatmul.mubr.f32.gmra.mxu0 %v1421
      %v1606 = vpop.f32.mrf.mxu0
      %v1607 = vadd.f32 0.0, %v1606
      %v1608 = vpop.f32.mrf.mxu0
      %1609 = vmatprep.mubr.f32.mxu0 0.0
      %1610 = vmatmul.mubr.f32.gmra.mxu0 %v1424
      %v1611 = vpop.f32.mrf.mxu0
      %v1612 = vadd.f32 0.0, %v1611
      %v1613 = vpop.f32.mrf.mxu0
      %1614 = vmatprep.mubr.f32.mxu0 0.0
      %1615 = vmatmul.mubr.f32.gmra.mxu0 %v1427
      %v1616 = vpop.f32.mrf.mxu0
      %v1617 = vadd.f32 0.0, %v1616
      %v1618 = vpop.f32.mrf.mxu0
      %1619 = vmatprep.mubr.f32.mxu0 0.0
      %1620 = vmatmul.mubr.f32.gmra.mxu0 %v1430
      %v1621 = vpop.f32.mrf.mxu0
      %v1622 = vadd.f32 0.0, %v1621
      %v1623 = vpop.f32.mrf.mxu0
      %1624 = vmatprep.mubr.f32.mxu0 0.0
      %1625 = vmatmul.mubr.f32.gmra.mxu0 %v1433
      %v1626 = vpop.f32.mrf.mxu0
      %v1627 = vadd.f32 0.0, %v1626
      %v1628 = vpop.f32.mrf.mxu0
      %1629 = vmatprep.mubr.f32.mxu0 0.0
      %1630 = vmatmul.mubr.f32.gmra.mxu0 %v1436
      %v1631 = vpop.f32.mrf.mxu0
      %v1632 = vadd.f32 0.0, %v1631
      %v1633 = vpop.f32.mrf.mxu0
      %1634 = vmatprep.mubr.f32.mxu0 0.0
      %1635 = vmatmul.mubr.f32.gmra.mxu0 %v1439
      %v1636 = vpop.f32.mrf.mxu0
      %v1637 = vadd.f32 0.0, %v1636
      %v1638 = vpop.f32.mrf.mxu0
      %1639 = vmatprep.mubr.f32.mxu0 0.0
      %1640 = vmatmul.mubr.f32.gmra.mxu0 %v1442
      %v1641 = vpop.f32.mrf.mxu0
      %v1642 = vadd.f32 0.0, %v1641
      %v1643 = vpop.f32.mrf.mxu0
      %1644 = vmatprep.mubr.f32.mxu0 0.0
      %1645 = vmatmul.mubr.f32.gmra.mxu0 %v1445
      %v1646 = vpop.f32.mrf.mxu0
      %v1647 = vadd.f32 0.0, %v1646
      %v1648 = vpop.f32.mrf.mxu0
      %1649 = vmatprep.mubr.f32.mxu0 0.0
      %1650 = vmatmul.mubr.f32.gmra.mxu0 %v1448
      %v1651 = vpop.f32.mrf.mxu0
      %v1652 = vadd.f32 0.0, %v1651
      %v1653 = vpop.f32.mrf.mxu0
      %1654 = vmatprep.mubr.f32.mxu0 0.0
      %1655 = vmatmul.mubr.f32.gmra.mxu0 %v1451
      %v1656 = vpop.f32.mrf.mxu0
      %v1657 = vadd.f32 0.0, %v1656
      %v1658 = vpop.f32.mrf.mxu0
      %1659 = vmatprep.mubr.f32.mxu0 0.0
      %1660 = vmatmul.mubr.f32.gmra.mxu0 %v1454
      %v1661 = vpop.f32.mrf.mxu0
      %v1662 = vadd.f32 0.0, %v1661
      %v1663 = vpop.f32.mrf.mxu0
      %1664 = vmatprep.mubr.f32.mxu0 0.0
      %1665 = vmatmul.mubr.f32.gmra.mxu0 %v1457
      %v1666 = vpop.f32.mrf.mxu0
      %v1667 = vadd.f32 0.0, %v1666
      %v1668 = vpop.f32.mrf.mxu0
      %1669 = vmatprep.mubr.f32.mxu0 0.0
      %1670 = vmatmul.mubr.f32.gmra.mxu0 %v1460
      %v1671 = vpop.f32.mrf.mxu0
      %v1672 = vadd.f32 0.0, %v1671
      %v1673 = vpop.f32.mrf.mxu0
      %1674 = vmatprep.mubr.f32.mxu0 0.0
      %1675 = vmatmul.mubr.f32.gmra.mxu0 %v1463
      %v1676 = vpop.f32.mrf.mxu0
      %v1677 = vadd.f32 0.0, %v1676
      %v1678 = vpop.f32.mrf.mxu0
      %1679 = vmatprep.mubr.f32.mxu0 0.0
      %1680 = vmatmul.mubr.f32.gmra.mxu0 %v1466
      %v1681 = vpop.f32.mrf.mxu0
      %v1682 = vadd.f32 0.0, %v1681
      %v1683 = vpop.f32.mrf.mxu0
      %1684 = vmatprep.mubr.f32.mxu0 0.0
      %1685 = vmatmul.mubr.f32.gmra.mxu0 %v1469
      %v1686 = vpop.f32.mrf.mxu0
      %v1687 = vadd.f32 0.0, %v1686
      %v1688 = vpop.f32.mrf.mxu0
      %1689 = vmatprep.mubr.f32.mxu0 0.0
      %1690 = vmatmul.mubr.f32.gmra.mxu0 %v1472
      %v1691 = vpop.f32.mrf.mxu0
      %v1692 = vadd.f32 0.0, %v1691
      %v1693 = vpop.f32.mrf.mxu0
      %1694 = vmatprep.mubr.f32.mxu0 0.0
      %1695 = vmatmul.mubr.f32.gmra.mxu0 %v1475
      %v1696 = vpop.f32.mrf.mxu0
      %v1697 = vadd.f32 0.0, %v1696
      %v1698 = vpop.f32.mrf.mxu0
      %1699 = vmatprep.mubr.f32.mxu0 0.0
      %1700 = vmatmul.mubr.f32.gmra.mxu0 %v1478
      %v1701 = vpop.f32.mrf.mxu0
      %v1702 = vadd.f32 0.0, %v1701
      %v1703 = vpop.f32.mrf.mxu0
      %1704 = vdwg.mxu0
      %v1705 = vadd.f32 %v1192, %v1547
      %v1706 = vadd.f32 %v1197, %v1552
      %v1707 = vadd.f32 %v1202, %v1557
      %v1708 = vadd.f32 %v1207, %v1562
      %v1709 = vadd.f32 %v1212, %v1567
      %v1710 = vadd.f32 %v1217, %v1572
      %v1711 = vadd.f32 %v1222, %v1577
      %v1712 = vadd.f32 %v1227, %v1582
      %v1713 = vadd.f32 %v1232, %v1587
      %v1714 = vadd.f32 %v1237, %v1592
      %v1715 = vadd.f32 %v1242, %v1597
      %v1716 = vadd.f32 %v1247, %v1602
      %v1717 = vadd.f32 %v1252, %v1607
      %v1718 = vadd.f32 %v1257, %v1612
      %v1719 = vadd.f32 %v1262, %v1617
      %v1720 = vadd.f32 %v1267, %v1622
      %v1721 = vadd.f32 %v1272, %v1627
      %v1722 = vadd.f32 %v1277, %v1632
      %v1723 = vadd.f32 %v1282, %v1637
      %v1724 = vadd.f32 %v1287, %v1642
      %v1725 = vadd.f32 %v1292, %v1647
      %v1726 = vadd.f32 %v1297, %v1652
      %v1727 = vadd.f32 %v1302, %v1657
      %v1728 = vadd.f32 %v1307, %v1662
      %v1729 = vadd.f32 %v1312, %v1667
      %v1730 = vadd.f32 %v1317, %v1672
      %v1731 = vadd.f32 %v1322, %v1677
      %v1732 = vadd.f32 %v1327, %v1682
      %v1733 = vadd.f32 %v1332, %v1687
      %v1734 = vadd.f32 %v1337, %v1692
      %v1735 = vadd.f32 %v1342, %v1697
      %v1736 = vadd.f32 %v1347, %v1702
      %v1737 = vld [vmem:[%s414] sm:$0xff]
      %v1738 = vld [vmem:[%s414 + $0x8] sm:$0xff]
      %v1739 = vld [vmem:[%s414 + $0x18] sm:$0xff]
      %v1740 = vld [vmem:[%s414 + $0x20] sm:$0xff]
      %v1741 = vld [vmem:[%s414 + $0x30] sm:$0xff]
      %v1742 = vld [vmem:[%s414 + $0x38] sm:$0xff]
      %v1743 = vld [vmem:[%s414 + $0x48] sm:$0xff]
      %v1744 = vld [vmem:[%s414 + $0x50] sm:$0xff]
      %v1745 = vld [vmem:[%s414 + $0x60] sm:$0xff]
      %v1746 = vld [vmem:[%s414 + $0x68] sm:$0xff]
      %v1747 = vld [vmem:[%s414 + $0x78] sm:$0xff]
      %v1748 = vld [vmem:[%s414 + $0x80] sm:$0xff]
      %v1749 = vld [vmem:[%s414 + $0x90] sm:$0xff]
      %v1750 = vld [vmem:[%s414 + $0x98] sm:$0xff]
      %v1751 = vld [vmem:[%s414 + $0xa8] sm:$0xff]
      %v1752 = vld [vmem:[%s414 + $0xb0] sm:$0xff]
      %v1753 = vld [vmem:[%s414 + $0xc0] sm:$0xff]
      %v1754 = vld [vmem:[%s414 + $0xc8] sm:$0xff]
      %v1755 = vld [vmem:[%s414 + $0xd8] sm:$0xff]
      %v1756 = vld [vmem:[%s414 + $0xe0] sm:$0xff]
      %v1757 = vld [vmem:[%s414 + $0xf0] sm:$0xff]
      %v1758 = vld [vmem:[%s414 + $0xf8] sm:$0xff]
      %v1759 = vld [vmem:[%s414 + $0x108] sm:$0xff]
      %v1760 = vld [vmem:[%s414 + $0x110] sm:$0xff]
      %v1761 = vld [vmem:[%s414 + $0x120] sm:$0xff]
      %v1762 = vld [vmem:[%s414 + $0x128] sm:$0xff]
      %v1763 = vld [vmem:[%s414 + $0x138] sm:$0xff]
      %v1764 = vld [vmem:[%s414 + $0x140] sm:$0xff]
      %v1765 = vld [vmem:[%s414 + $0x150] sm:$0xff]
      %v1766 = vld [vmem:[%s414 + $0x158] sm:$0xff]
      %v1767 = vld [vmem:[%s414 + $0x168] sm:$0xff]
      %v1768 = vld [vmem:[%s414 + $0x170] sm:$0xff]
      %s1769 = scalar_lea.vmem %s2, 24
      %v1770 = vld [vmem:[%s1769] sm:$0xff]
      %v1772 = vsel %vm326, %v1737, 0
      %v1775 = vsel %vm326, %v1738, 0
      %v1778 = vsel %vm326, %v1739, 0
      %v1781 = vsel %vm326, %v1740, 0
      %v1784 = vsel %vm326, %v1741, 0
      %v1787 = vsel %vm326, %v1742, 0
      %v1790 = vsel %vm326, %v1743, 0
      %v1793 = vsel %vm326, %v1744, 0
      %v1796 = vsel %vm326, %v1745, 0
      %v1799 = vsel %vm326, %v1746, 0
      %v1802 = vsel %vm326, %v1747, 0
      %v1805 = vsel %vm326, %v1748, 0
      %v1808 = vsel %vm326, %v1749, 0
      %v1811 = vsel %vm326, %v1750, 0
      %v1814 = vsel %vm326, %v1751, 0
      %v1817 = vsel %vm326, %v1752, 0
      %v1820 = vsel %vm326, %v1753, 0
      %v1823 = vsel %vm326, %v1754, 0
      %v1826 = vsel %vm326, %v1755, 0
      %v1829 = vsel %vm326, %v1756, 0
      %v1832 = vsel %vm326, %v1757, 0
      %v1835 = vsel %vm326, %v1758, 0
      %v1838 = vsel %vm326, %v1759, 0
      %v1841 = vsel %vm326, %v1760, 0
      %v1844 = vsel %vm326, %v1761, 0
      %v1847 = vsel %vm326, %v1762, 0
      %v1850 = vsel %vm326, %v1763, 0
      %v1853 = vsel %vm326, %v1764, 0
      %v1856 = vsel %vm326, %v1765, 0
      %v1859 = vsel %vm326, %v1766, 0
      %v1862 = vsel %vm326, %v1767, 0
      %v1865 = vsel %vm326, %v1768, 0
      %1867 = vmatprep.subr.mxu0 0.0
      %1868 = vmatpush1.msra.mxu0 0.0
      %1869 = vmatprep.subr.mxu0 0.0
      %1870 = vmatpush1.msra.mxu0 0.0
      %1871 = vmatprep.subr.mxu0 0.0
      %1872 = vmatpush1.msra.mxu0 0.0
      %1873 = vmatprep.subr.mxu0 0.0
      %1874 = vmatpush1.msra.mxu0 0.0
      %1875 = vmatprep.subr.mxu0 0.0
      %1876 = vmatpush1.msra.mxu0 0.0
      %1877 = vmatprep.subr.mxu0 0.0
      %1878 = vmatpush1.msra.mxu0 0.0
      %1879 = vmatprep.subr.mxu0 0.0
      %1880 = vmatpush1.msra.mxu0 0.0
      %1881 = vmatprep.subr.mxu0 0.0
      %1882 = vmatpush1.msra.mxu0 0.0
      %1883 = vmatprep.subr.mxu0 0.0
      %1884 = vmatpush1.msra.mxu0 0.0
      %1885 = vmatprep.subr.mxu0 0.0
      %1886 = vmatpush1.msra.mxu0 0.0
      %1887 = vmatprep.subr.mxu0 0.0
      %1888 = vmatpush1.msra.mxu0 0.0
      %1889 = vmatprep.subr.mxu0 0.0
      %1890 = vmatpush1.msra.mxu0 0.0
      %1891 = vmatprep.subr.mxu0 0.0
      %1892 = vmatpush1.msra.mxu0 0.0
      %1893 = vmatprep.subr.mxu0 0.0
      %1894 = vmatpush1.msra.mxu0 0.0
      %1895 = vmatprep.subr.mxu0 0.0
      %1896 = vmatpush1.msra.mxu0 0.0
      %1897 = vmatprep.subr.mxu0 0.0
      %1898 = vmatpush1.msra.mxu0 %v1770
      %1899 = vmatprep.subr.mxu0 0.0
      %1900 = vmatpush2.msra.mxu0 0.0
      %1901 = vmatprep.subr.mxu0 0.0
      %1902 = vmatpush2.msra.mxu0 0.0
      %1903 = vmatprep.subr.mxu0 0.0
      %1904 = vmatpush2.msra.mxu0 0.0
      %1905 = vmatprep.subr.mxu0 0.0
      %1906 = vmatpush2.msra.mxu0 0.0
      %1907 = vmatprep.subr.mxu0 0.0
      %1908 = vmatpush2.msra.mxu0 0.0
      %1909 = vmatprep.subr.mxu0 0.0
      %1910 = vmatpush2.msra.mxu0 0.0
      %1911 = vmatprep.subr.mxu0 0.0
      %1912 = vmatpush2.msra.mxu0 0.0
      %1913 = vmatprep.subr.mxu0 0.0
      %1914 = vmatpush2.msra.mxu0 0.0
      %1915 = vmatprep.subr.mxu0 0.0
      %1916 = vmatpush2.msra.mxu0 0.0
      %1917 = vmatprep.subr.mxu0 0.0
      %1918 = vmatpush2.msra.mxu0 0.0
      %1919 = vmatprep.subr.mxu0 0.0
      %1920 = vmatpush2.msra.mxu0 0.0
      %1921 = vmatprep.subr.mxu0 0.0
      %1922 = vmatpush2.msra.mxu0 0.0
      %1923 = vmatprep.subr.mxu0 0.0
      %1924 = vmatpush2.msra.mxu0 0.0
      %1925 = vmatprep.subr.mxu0 0.0
      %1926 = vmatpush2.msra.mxu0 0.0
      %1927 = vmatprep.subr.mxu0 0.0
      %1928 = vmatpush2.msra.mxu0 0.0
      %1929 = vmatprep.subr.mxu0 0.0
      %1930 = vmatpush2.msra.mxu0 0.0
      %1931 = vmatprep.mubr.f32.mxu0 0.0
      %1932 = vmatmul.mubr.f32.gmra.mxu0 %v1772
      %v1933 = vpop.f32.mrf.mxu0
      %v1934 = vadd.f32 0.0, %v1933
      %v1935 = vpop.f32.mrf.mxu0
      %1936 = vmatprep.mubr.f32.mxu0 0.0
      %1937 = vmatmul.mubr.f32.gmra.mxu0 %v1775
      %v1938 = vpop.f32.mrf.mxu0
      %v1939 = vadd.f32 0.0, %v1938
      %v1940 = vpop.f32.mrf.mxu0
      %1941 = vmatprep.mubr.f32.mxu0 0.0
      %1942 = vmatmul.mubr.f32.gmra.mxu0 %v1778
      %v1943 = vpop.f32.mrf.mxu0
      %v1944 = vadd.f32 0.0, %v1943
      %v1945 = vpop.f32.mrf.mxu0
      %1946 = vmatprep.mubr.f32.mxu0 0.0
      %1947 = vmatmul.mubr.f32.gmra.mxu0 %v1781
      %v1948 = vpop.f32.mrf.mxu0
      %v1949 = vadd.f32 0.0, %v1948
      %v1950 = vpop.f32.mrf.mxu0
      %1951 = vmatprep.mubr.f32.mxu0 0.0
      %1952 = vmatmul.mubr.f32.gmra.mxu0 %v1784
      %v1953 = vpop.f32.mrf.mxu0
      %v1954 = vadd.f32 0.0, %v1953
      %v1955 = vpop.f32.mrf.mxu0
      %1956 = vmatprep.mubr.f32.mxu0 0.0
      %1957 = vmatmul.mubr.f32.gmra.mxu0 %v1787
      %v1958 = vpop.f32.mrf.mxu0
      %v1959 = vadd.f32 0.0, %v1958
      %v1960 = vpop.f32.mrf.mxu0
      %1961 = vmatprep.mubr.f32.mxu0 0.0
      %1962 = vmatmul.mubr.f32.gmra.mxu0 %v1790
      %v1963 = vpop.f32.mrf.mxu0
      %v1964 = vadd.f32 0.0, %v1963
      %v1965 = vpop.f32.mrf.mxu0
      %1966 = vmatprep.mubr.f32.mxu0 0.0
      %1967 = vmatmul.mubr.f32.gmra.mxu0 %v1793
      %v1968 = vpop.f32.mrf.mxu0
      %v1969 = vadd.f32 0.0, %v1968
      %v1970 = vpop.f32.mrf.mxu0
      %1971 = vmatprep.mubr.f32.mxu0 0.0
      %1972 = vmatmul.mubr.f32.gmra.mxu0 %v1796
      %v1973 = vpop.f32.mrf.mxu0
      %v1974 = vadd.f32 0.0, %v1973
      %v1975 = vpop.f32.mrf.mxu0
      %1976 = vmatprep.mubr.f32.mxu0 0.0
      %1977 = vmatmul.mubr.f32.gmra.mxu0 %v1799
      %v1978 = vpop.f32.mrf.mxu0
      %v1979 = vadd.f32 0.0, %v1978
      %v1980 = vpop.f32.mrf.mxu0
      %1981 = vmatprep.mubr.f32.mxu0 0.0
      %1982 = vmatmul.mubr.f32.gmra.mxu0 %v1802
      %v1983 = vpop.f32.mrf.mxu0
      %v1984 = vadd.f32 0.0, %v1983
      %v1985 = vpop.f32.mrf.mxu0
      %1986 = vmatprep.mubr.f32.mxu0 0.0
      %1987 = vmatmul.mubr.f32.gmra.mxu0 %v1805
      %v1988 = vpop.f32.mrf.mxu0
      %v1989 = vadd.f32 0.0, %v1988
      %v1990 = vpop.f32.mrf.mxu0
      %1991 = vmatprep.mubr.f32.mxu0 0.0
      %1992 = vmatmul.mubr.f32.gmra.mxu0 %v1808
      %v1993 = vpop.f32.mrf.mxu0
      %v1994 = vadd.f32 0.0, %v1993
      %v1995 = vpop.f32.mrf.mxu0
      %1996 = vmatprep.mubr.f32.mxu0 0.0
      %1997 = vmatmul.mubr.f32.gmra.mxu0 %v1811
      %v1998 = vpop.f32.mrf.mxu0
      %v1999 = vadd.f32 0.0, %v1998
      %v2000 = vpop.f32.mrf.mxu0
      %2001 = vmatprep.mubr.f32.mxu0 0.0
      %2002 = vmatmul.mubr.f32.gmra.mxu0 %v1814
      %v2003 = vpop.f32.mrf.mxu0
      %v2004 = vadd.f32 0.0, %v2003
      %v2005 = vpop.f32.mrf.mxu0
      %2006 = vmatprep.mubr.f32.mxu0 0.0
      %2007 = vmatmul.mubr.f32.gmra.mxu0 %v1817
      %v2008 = vpop.f32.mrf.mxu0
      %v2009 = vadd.f32 0.0, %v2008
      %v2010 = vpop.f32.mrf.mxu0
      %2011 = vmatprep.mubr.f32.mxu0 0.0
      %2012 = vmatmul.mubr.f32.gmra.mxu0 %v1820
      %v2013 = vpop.f32.mrf.mxu0
      %v2014 = vadd.f32 0.0, %v2013
      %v2015 = vpop.f32.mrf.mxu0
      %2016 = vmatprep.mubr.f32.mxu0 0.0
      %2017 = vmatmul.mubr.f32.gmra.mxu0 %v1823
      %v2018 = vpop.f32.mrf.mxu0
      %v2019 = vadd.f32 0.0, %v2018
      %v2020 = vpop.f32.mrf.mxu0
      %2021 = vmatprep.mubr.f32.mxu0 0.0
      %2022 = vmatmul.mubr.f32.gmra.mxu0 %v1826
      %v2023 = vpop.f32.mrf.mxu0
      %v2024 = vadd.f32 0.0, %v2023
      %v2025 = vpop.f32.mrf.mxu0
      %2026 = vmatprep.mubr.f32.mxu0 0.0
      %2027 = vmatmul.mubr.f32.gmra.mxu0 %v1829
      %v2028 = vpop.f32.mrf.mxu0
      %v2029 = vadd.f32 0.0, %v2028
      %v2030 = vpop.f32.mrf.mxu0
      %2031 = vmatprep.mubr.f32.mxu0 0.0
      %2032 = vmatmul.mubr.f32.gmra.mxu0 %v1832
      %v2033 = vpop.f32.mrf.mxu0
      %v2034 = vadd.f32 0.0, %v2033
      %v2035 = vpop.f32.mrf.mxu0
      %2036 = vmatprep.mubr.f32.mxu0 0.0
      %2037 = vmatmul.mubr.f32.gmra.mxu0 %v1835
      %v2038 = vpop.f32.mrf.mxu0
      %v2039 = vadd.f32 0.0, %v2038
      %v2040 = vpop.f32.mrf.mxu0
      %2041 = vmatprep.mubr.f32.mxu0 0.0
      %2042 = vmatmul.mubr.f32.gmra.mxu0 %v1838
      %v2043 = vpop.f32.mrf.mxu0
      %v2044 = vadd.f32 0.0, %v2043
      %v2045 = vpop.f32.mrf.mxu0
      %2046 = vmatprep.mubr.f32.mxu0 0.0
      %2047 = vmatmul.mubr.f32.gmra.mxu0 %v1841
      %v2048 = vpop.f32.mrf.mxu0
      %v2049 = vadd.f32 0.0, %v2048
      %v2050 = vpop.f32.mrf.mxu0
      %2051 = vmatprep.mubr.f32.mxu0 0.0
      %2052 = vmatmul.mubr.f32.gmra.mxu0 %v1844
      %v2053 = vpop.f32.mrf.mxu0
      %v2054 = vadd.f32 0.0, %v2053
      %v2055 = vpop.f32.mrf.mxu0
      %2056 = vmatprep.mubr.f32.mxu0 0.0
      %2057 = vmatmul.mubr.f32.gmra.mxu0 %v1847
      %v2058 = vpop.f32.mrf.mxu0
      %v2059 = vadd.f32 0.0, %v2058
      %v2060 = vpop.f32.mrf.mxu0
      %2061 = vmatprep.mubr.f32.mxu0 0.0
      %2062 = vmatmul.mubr.f32.gmra.mxu0 %v1850
      %v2063 = vpop.f32.mrf.mxu0
      %v2064 = vadd.f32 0.0, %v2063
      %v2065 = vpop.f32.mrf.mxu0
      %2066 = vmatprep.mubr.f32.mxu0 0.0
      %2067 = vmatmul.mubr.f32.gmra.mxu0 %v1853
      %v2068 = vpop.f32.mrf.mxu0
      %v2069 = vadd.f32 0.0, %v2068
      %v2070 = vpop.f32.mrf.mxu0
      %2071 = vmatprep.mubr.f32.mxu0 0.0
      %2072 = vmatmul.mubr.f32.gmra.mxu0 %v1856
      %v2073 = vpop.f32.mrf.mxu0
      %v2074 = vadd.f32 0.0, %v2073
      %v2075 = vpop.f32.mrf.mxu0
      %2076 = vmatprep.mubr.f32.mxu0 0.0
      %2077 = vmatmul.mubr.f32.gmra.mxu0 %v1859
      %v2078 = vpop.f32.mrf.mxu0
      %v2079 = vadd.f32 0.0, %v2078
      %v2080 = vpop.f32.mrf.mxu0
      %2081 = vmatprep.mubr.f32.mxu0 0.0
      %2082 = vmatmul.mubr.f32.gmra.mxu0 %v1862
      %v2083 = vpop.f32.mrf.mxu0
      %v2084 = vadd.f32 0.0, %v2083
      %v2085 = vpop.f32.mrf.mxu0
      %2086 = vmatprep.mubr.f32.mxu0 0.0
      %2087 = vmatmul.mubr.f32.gmra.mxu0 %v1865
      %v2088 = vpop.f32.mrf.mxu0
      %v2089 = vadd.f32 0.0, %v2088
      %v2090 = vpop.f32.mrf.mxu0
      %2091 = vdwg.mxu0
      %v2092 = vadd.f32 %v1705, %v1934
      %v2093 = vadd.f32 %v1706, %v1939
      %v2094 = vadd.f32 %v1707, %v1944
      %v2095 = vadd.f32 %v1708, %v1949
      %v2096 = vadd.f32 %v1709, %v1954
      %v2097 = vadd.f32 %v1710, %v1959
      %v2098 = vadd.f32 %v1711, %v1964
      %v2099 = vadd.f32 %v1712, %v1969
      %v2100 = vadd.f32 %v1713, %v1974
      %v2101 = vadd.f32 %v1714, %v1979
      %v2102 = vadd.f32 %v1715, %v1984
      %v2103 = vadd.f32 %v1716, %v1989
      %v2104 = vadd.f32 %v1717, %v1994
      %v2105 = vadd.f32 %v1718, %v1999
      %v2106 = vadd.f32 %v1719, %v2004
      %v2107 = vadd.f32 %v1720, %v2009
      %v2108 = vadd.f32 %v1721, %v2014
      %v2109 = vadd.f32 %v1722, %v2019
      %v2110 = vadd.f32 %v1723, %v2024
      %v2111 = vadd.f32 %v1724, %v2029
      %v2112 = vadd.f32 %v1725, %v2034
      %v2113 = vadd.f32 %v1726, %v2039
      %v2114 = vadd.f32 %v1727, %v2044
      %v2115 = vadd.f32 %v1728, %v2049
      %v2116 = vadd.f32 %v1729, %v2054
      %v2117 = vadd.f32 %v1730, %v2059
      %v2118 = vadd.f32 %v1731, %v2064
      %v2119 = vadd.f32 %v1732, %v2069
      %v2120 = vadd.f32 %v1733, %v2074
      %v2121 = vadd.f32 %v1734, %v2079
      %v2122 = vadd.f32 %v1735, %v2084
      %v2123 = vadd.f32 %v1736, %v2089
      %v2124 = vld [vmem:[%s414 + $0x1] sm:$0xff]
      %v2125 = vld [vmem:[%s414 + $0x9] sm:$0xff]
      %v2126 = vld [vmem:[%s414 + $0x19] sm:$0xff]
      %v2127 = vld [vmem:[%s414 + $0x21] sm:$0xff]
      %v2128 = vld [vmem:[%s414 + $0x31] sm:$0xff]
      %v2129 = vld [vmem:[%s414 + $0x39] sm:$0xff]
      %v2130 = vld [vmem:[%s414 + $0x49] sm:$0xff]
      %v2131 = vld [vmem:[%s414 + $0x51] sm:$0xff]
      %v2132 = vld [vmem:[%s414 + $0x61] sm:$0xff]
      %v2133 = vld [vmem:[%s414 + $0x69] sm:$0xff]
      %v2134 = vld [vmem:[%s414 + $0x79] sm:$0xff]
      %v2135 = vld [vmem:[%s414 + $0x81] sm:$0xff]
      %v2136 = vld [vmem:[%s414 + $0x91] sm:$0xff]
      %v2137 = vld [vmem:[%s414 + $0x99] sm:$0xff]
      %v2138 = vld [vmem:[%s414 + $0xa9] sm:$0xff]
      %v2139 = vld [vmem:[%s414 + $0xb1] sm:$0xff]
      %v2140 = vld [vmem:[%s414 + $0xc1] sm:$0xff]
      %v2141 = vld [vmem:[%s414 + $0xc9] sm:$0xff]
      %v2142 = vld [vmem:[%s414 + $0xd9] sm:$0xff]
      %v2143 = vld [vmem:[%s414 + $0xe1] sm:$0xff]
      %v2144 = vld [vmem:[%s414 + $0xf1] sm:$0xff]
      %v2145 = vld [vmem:[%s414 + $0xf9] sm:$0xff]
      %v2146 = vld [vmem:[%s414 + $0x109] sm:$0xff]
      %v2147 = vld [vmem:[%s414 + $0x111] sm:$0xff]
      %v2148 = vld [vmem:[%s414 + $0x121] sm:$0xff]
      %v2149 = vld [vmem:[%s414 + $0x129] sm:$0xff]
      %v2150 = vld [vmem:[%s414 + $0x139] sm:$0xff]
      %v2151 = vld [vmem:[%s414 + $0x141] sm:$0xff]
      %v2152 = vld [vmem:[%s414 + $0x151] sm:$0xff]
      %v2153 = vld [vmem:[%s414 + $0x159] sm:$0xff]
      %v2154 = vld [vmem:[%s414 + $0x169] sm:$0xff]
      %v2155 = vld [vmem:[%s414 + $0x171] sm:$0xff]
      %s2156 = scalar_lea.vmem %s2, 32
      %v2157 = vld [vmem:[%s2156] sm:$0xff]
      %v2159 = vsel %vm326, %v2124, 0
      %v2162 = vsel %vm326, %v2125, 0
      %v2165 = vsel %vm326, %v2126, 0
      %v2168 = vsel %vm326, %v2127, 0
      %v2171 = vsel %vm326, %v2128, 0
      %v2174 = vsel %vm326, %v2129, 0
      %v2177 = vsel %vm326, %v2130, 0
      %v2180 = vsel %vm326, %v2131, 0
      %v2183 = vsel %vm326, %v2132, 0
      %v2186 = vsel %vm326, %v2133, 0
      %v2189 = vsel %vm326, %v2134, 0
      %v2192 = vsel %vm326, %v2135, 0
      %v2195 = vsel %vm326, %v2136, 0
      %v2198 = vsel %vm326, %v2137, 0
      %v2201 = vsel %vm326, %v2138, 0
      %v2204 = vsel %vm326, %v2139, 0
      %v2207 = vsel %vm326, %v2140, 0
      %v2210 = vsel %vm326, %v2141, 0
      %v2213 = vsel %vm326, %v2142, 0
      %v2216 = vsel %vm326, %v2143, 0
      %v2219 = vsel %vm326, %v2144, 0
      %v2222 = vsel %vm326, %v2145, 0
      %v2225 = vsel %vm326, %v2146, 0
      %v2228 = vsel %vm326, %v2147, 0
      %v2231 = vsel %vm326, %v2148, 0
      %v2234 = vsel %vm326, %v2149, 0
      %v2237 = vsel %vm326, %v2150, 0
      %v2240 = vsel %vm326, %v2151, 0
      %v2243 = vsel %vm326, %v2152, 0
      %v2246 = vsel %vm326, %v2153, 0
      %v2249 = vsel %vm326, %v2154, 0
      %v2252 = vsel %vm326, %v2155, 0
      %2254 = vmatprep.subr.mxu0 0.0
      %2255 = vmatpush1.msra.mxu0 0.0
      %2256 = vmatprep.subr.mxu0 0.0
      %2257 = vmatpush1.msra.mxu0 0.0
      %2258 = vmatprep.subr.mxu0 0.0
      %2259 = vmatpush1.msra.mxu0 0.0
      %2260 = vmatprep.subr.mxu0 0.0
      %2261 = vmatpush1.msra.mxu0 0.0
      %2262 = vmatprep.subr.mxu0 0.0
      %2263 = vmatpush1.msra.mxu0 0.0
      %2264 = vmatprep.subr.mxu0 0.0
      %2265 = vmatpush1.msra.mxu0 0.0
      %2266 = vmatprep.subr.mxu0 0.0
      %2267 = vmatpush1.msra.mxu0 0.0
      %2268 = vmatprep.subr.mxu0 0.0
      %2269 = vmatpush1.msra.mxu0 0.0
      %2270 = vmatprep.subr.mxu0 0.0
      %2271 = vmatpush1.msra.mxu0 0.0
      %2272 = vmatprep.subr.mxu0 0.0
      %2273 = vmatpush1.msra.mxu0 0.0
      %2274 = vmatprep.subr.mxu0 0.0
      %2275 = vmatpush1.msra.mxu0 0.0
      %2276 = vmatprep.subr.mxu0 0.0
      %2277 = vmatpush1.msra.mxu0 0.0
      %2278 = vmatprep.subr.mxu0 0.0
      %2279 = vmatpush1.msra.mxu0 0.0
      %2280 = vmatprep.subr.mxu0 0.0
      %2281 = vmatpush1.msra.mxu0 0.0
      %2282 = vmatprep.subr.mxu0 0.0
      %2283 = vmatpush1.msra.mxu0 0.0
      %2284 = vmatprep.subr.mxu0 0.0
      %2285 = vmatpush1.msra.mxu0 %v2157
      %2286 = vmatprep.subr.mxu0 0.0
      %2287 = vmatpush2.msra.mxu0 0.0
      %2288 = vmatprep.subr.mxu0 0.0
      %2289 = vmatpush2.msra.mxu0 0.0
      %2290 = vmatprep.subr.mxu0 0.0
      %2291 = vmatpush2.msra.mxu0 0.0
      %2292 = vmatprep.subr.mxu0 0.0
      %2293 = vmatpush2.msra.mxu0 0.0
      %2294 = vmatprep.subr.mxu0 0.0
      %2295 = vmatpush2.msra.mxu0 0.0
      %2296 = vmatprep.subr.mxu0 0.0
      %2297 = vmatpush2.msra.mxu0 0.0
      %2298 = vmatprep.subr.mxu0 0.0
      %2299 = vmatpush2.msra.mxu0 0.0
      %2300 = vmatprep.subr.mxu0 0.0
      %2301 = vmatpush2.msra.mxu0 0.0
      %2302 = vmatprep.subr.mxu0 0.0
      %2303 = vmatpush2.msra.mxu0 0.0
      %2304 = vmatprep.subr.mxu0 0.0
      %2305 = vmatpush2.msra.mxu0 0.0
      %2306 = vmatprep.subr.mxu0 0.0
      %2307 = vmatpush2.msra.mxu0 0.0
      %2308 = vmatprep.subr.mxu0 0.0
      %2309 = vmatpush2.msra.mxu0 0.0
      %2310 = vmatprep.subr.mxu0 0.0
      %2311 = vmatpush2.msra.mxu0 0.0
      %2312 = vmatprep.subr.mxu0 0.0
      %2313 = vmatpush2.msra.mxu0 0.0
      %2314 = vmatprep.subr.mxu0 0.0
      %2315 = vmatpush2.msra.mxu0 0.0
      %2316 = vmatprep.subr.mxu0 0.0
      %2317 = vmatpush2.msra.mxu0 0.0
      %2318 = vmatprep.mubr.f32.mxu0 0.0
      %2319 = vmatmul.mubr.f32.gmra.mxu0 %v2159
      %v2320 = vpop.f32.mrf.mxu0
      %v2321 = vadd.f32 0.0, %v2320
      %v2322 = vpop.f32.mrf.mxu0
      %2323 = vmatprep.mubr.f32.mxu0 0.0
      %2324 = vmatmul.mubr.f32.gmra.mxu0 %v2162
      %v2325 = vpop.f32.mrf.mxu0
      %v2326 = vadd.f32 0.0, %v2325
      %v2327 = vpop.f32.mrf.mxu0
      %2328 = vmatprep.mubr.f32.mxu0 0.0
      %2329 = vmatmul.mubr.f32.gmra.mxu0 %v2165
      %v2330 = vpop.f32.mrf.mxu0
      %v2331 = vadd.f32 0.0, %v2330
      %v2332 = vpop.f32.mrf.mxu0
      %2333 = vmatprep.mubr.f32.mxu0 0.0
      %2334 = vmatmul.mubr.f32.gmra.mxu0 %v2168
      %v2335 = vpop.f32.mrf.mxu0
      %v2336 = vadd.f32 0.0, %v2335
      %v2337 = vpop.f32.mrf.mxu0
      %2338 = vmatprep.mubr.f32.mxu0 0.0
      %2339 = vmatmul.mubr.f32.gmra.mxu0 %v2171
      %v2340 = vpop.f32.mrf.mxu0
      %v2341 = vadd.f32 0.0, %v2340
      %v2342 = vpop.f32.mrf.mxu0
      %2343 = vmatprep.mubr.f32.mxu0 0.0
      %2344 = vmatmul.mubr.f32.gmra.mxu0 %v2174
      %v2345 = vpop.f32.mrf.mxu0
      %v2346 = vadd.f32 0.0, %v2345
      %v2347 = vpop.f32.mrf.mxu0
      %2348 = vmatprep.mubr.f32.mxu0 0.0
      %2349 = vmatmul.mubr.f32.gmra.mxu0 %v2177
      %v2350 = vpop.f32.mrf.mxu0
      %v2351 = vadd.f32 0.0, %v2350
      %v2352 = vpop.f32.mrf.mxu0
      %2353 = vmatprep.mubr.f32.mxu0 0.0
      %2354 = vmatmul.mubr.f32.gmra.mxu0 %v2180
      %v2355 = vpop.f32.mrf.mxu0
      %v2356 = vadd.f32 0.0, %v2355
      %v2357 = vpop.f32.mrf.mxu0
      %2358 = vmatprep.mubr.f32.mxu0 0.0
      %2359 = vmatmul.mubr.f32.gmra.mxu0 %v2183
      %v2360 = vpop.f32.mrf.mxu0
      %v2361 = vadd.f32 0.0, %v2360
      %v2362 = vpop.f32.mrf.mxu0
      %2363 = vmatprep.mubr.f32.mxu0 0.0
      %2364 = vmatmul.mubr.f32.gmra.mxu0 %v2186
      %v2365 = vpop.f32.mrf.mxu0
      %v2366 = vadd.f32 0.0, %v2365
      %v2367 = vpop.f32.mrf.mxu0
      %2368 = vmatprep.mubr.f32.mxu0 0.0
      %2369 = vmatmul.mubr.f32.gmra.mxu0 %v2189
      %v2370 = vpop.f32.mrf.mxu0
      %v2371 = vadd.f32 0.0, %v2370
      %v2372 = vpop.f32.mrf.mxu0
      %2373 = vmatprep.mubr.f32.mxu0 0.0
      %2374 = vmatmul.mubr.f32.gmra.mxu0 %v2192
      %v2375 = vpop.f32.mrf.mxu0
      %v2376 = vadd.f32 0.0, %v2375
      %v2377 = vpop.f32.mrf.mxu0
      %2378 = vmatprep.mubr.f32.mxu0 0.0
      %2379 = vmatmul.mubr.f32.gmra.mxu0 %v2195
      %v2380 = vpop.f32.mrf.mxu0
      %v2381 = vadd.f32 0.0, %v2380
      %v2382 = vpop.f32.mrf.mxu0
      %2383 = vmatprep.mubr.f32.mxu0 0.0
      %2384 = vmatmul.mubr.f32.gmra.mxu0 %v2198
      %v2385 = vpop.f32.mrf.mxu0
      %v2386 = vadd.f32 0.0, %v2385
      %v2387 = vpop.f32.mrf.mxu0
      %2388 = vmatprep.mubr.f32.mxu0 0.0
      %2389 = vmatmul.mubr.f32.gmra.mxu0 %v2201
      %v2390 = vpop.f32.mrf.mxu0
      %v2391 = vadd.f32 0.0, %v2390
      %v2392 = vpop.f32.mrf.mxu0
      %2393 = vmatprep.mubr.f32.mxu0 0.0
      %2394 = vmatmul.mubr.f32.gmra.mxu0 %v2204
      %v2395 = vpop.f32.mrf.mxu0
      %v2396 = vadd.f32 0.0, %v2395
      %v2397 = vpop.f32.mrf.mxu0
      %2398 = vmatprep.mubr.f32.mxu0 0.0
      %2399 = vmatmul.mubr.f32.gmra.mxu0 %v2207
      %v2400 = vpop.f32.mrf.mxu0
      %v2401 = vadd.f32 0.0, %v2400
      %v2402 = vpop.f32.mrf.mxu0
      %2403 = vmatprep.mubr.f32.mxu0 0.0
      %2404 = vmatmul.mubr.f32.gmra.mxu0 %v2210
      %v2405 = vpop.f32.mrf.mxu0
      %v2406 = vadd.f32 0.0, %v2405
      %v2407 = vpop.f32.mrf.mxu0
      %2408 = vmatprep.mubr.f32.mxu0 0.0
      %2409 = vmatmul.mubr.f32.gmra.mxu0 %v2213
      %v2410 = vpop.f32.mrf.mxu0
      %v2411 = vadd.f32 0.0, %v2410
      %v2412 = vpop.f32.mrf.mxu0
      %2413 = vmatprep.mubr.f32.mxu0 0.0
      %2414 = vmatmul.mubr.f32.gmra.mxu0 %v2216
      %v2415 = vpop.f32.mrf.mxu0
      %v2416 = vadd.f32 0.0, %v2415
      %v2417 = vpop.f32.mrf.mxu0
      %2418 = vmatprep.mubr.f32.mxu0 0.0
      %2419 = vmatmul.mubr.f32.gmra.mxu0 %v2219
      %v2420 = vpop.f32.mrf.mxu0
      %v2421 = vadd.f32 0.0, %v2420
      %v2422 = vpop.f32.mrf.mxu0
      %2423 = vmatprep.mubr.f32.mxu0 0.0
      %2424 = vmatmul.mubr.f32.gmra.mxu0 %v2222
      %v2425 = vpop.f32.mrf.mxu0
      %v2426 = vadd.f32 0.0, %v2425
      %v2427 = vpop.f32.mrf.mxu0
      %2428 = vmatprep.mubr.f32.mxu0 0.0
      %2429 = vmatmul.mubr.f32.gmra.mxu0 %v2225
      %v2430 = vpop.f32.mrf.mxu0
      %v2431 = vadd.f32 0.0, %v2430
      %v2432 = vpop.f32.mrf.mxu0
      %2433 = vmatprep.mubr.f32.mxu0 0.0
      %2434 = vmatmul.mubr.f32.gmra.mxu0 %v2228
      %v2435 = vpop.f32.mrf.mxu0
      %v2436 = vadd.f32 0.0, %v2435
      %v2437 = vpop.f32.mrf.mxu0
      %2438 = vmatprep.mubr.f32.mxu0 0.0
      %2439 = vmatmul.mubr.f32.gmra.mxu0 %v2231
      %v2440 = vpop.f32.mrf.mxu0
      %v2441 = vadd.f32 0.0, %v2440
      %v2442 = vpop.f32.mrf.mxu0
      %2443 = vmatprep.mubr.f32.mxu0 0.0
      %2444 = vmatmul.mubr.f32.gmra.mxu0 %v2234
      %v2445 = vpop.f32.mrf.mxu0
      %v2446 = vadd.f32 0.0, %v2445
      %v2447 = vpop.f32.mrf.mxu0
      %2448 = vmatprep.mubr.f32.mxu0 0.0
      %2449 = vmatmul.mubr.f32.gmra.mxu0 %v2237
      %v2450 = vpop.f32.mrf.mxu0
      %v2451 = vadd.f32 0.0, %v2450
      %v2452 = vpop.f32.mrf.mxu0
      %2453 = vmatprep.mubr.f32.mxu0 0.0
      %2454 = vmatmul.mubr.f32.gmra.mxu0 %v2240
      %v2455 = vpop.f32.mrf.mxu0
      %v2456 = vadd.f32 0.0, %v2455
      %v2457 = vpop.f32.mrf.mxu0
      %2458 = vmatprep.mubr.f32.mxu0 0.0
      %2459 = vmatmul.mubr.f32.gmra.mxu0 %v2243
      %v2460 = vpop.f32.mrf.mxu0
      %v2461 = vadd.f32 0.0, %v2460
      %v2462 = vpop.f32.mrf.mxu0
      %2463 = vmatprep.mubr.f32.mxu0 0.0
      %2464 = vmatmul.mubr.f32.gmra.mxu0 %v2246
      %v2465 = vpop.f32.mrf.mxu0
      %v2466 = vadd.f32 0.0, %v2465
      %v2467 = vpop.f32.mrf.mxu0
      %2468 = vmatprep.mubr.f32.mxu0 0.0
      %2469 = vmatmul.mubr.f32.gmra.mxu0 %v2249
      %v2470 = vpop.f32.mrf.mxu0
      %v2471 = vadd.f32 0.0, %v2470
      %v2472 = vpop.f32.mrf.mxu0
      %2473 = vmatprep.mubr.f32.mxu0 0.0
      %2474 = vmatmul.mubr.f32.gmra.mxu0 %v2252
      %v2475 = vpop.f32.mrf.mxu0
      %v2476 = vadd.f32 0.0, %v2475
      %v2477 = vpop.f32.mrf.mxu0
      %2478 = vdwg.mxu0
      %v2479 = vadd.f32 %v2092, %v2321
      %v2480 = vadd.f32 %v2093, %v2326
      %v2481 = vadd.f32 %v2094, %v2331
      %v2482 = vadd.f32 %v2095, %v2336
      %v2483 = vadd.f32 %v2096, %v2341
      %v2484 = vadd.f32 %v2097, %v2346
      %v2485 = vadd.f32 %v2098, %v2351
      %v2486 = vadd.f32 %v2099, %v2356
      %v2487 = vadd.f32 %v2100, %v2361
      %v2488 = vadd.f32 %v2101, %v2366
      %v2489 = vadd.f32 %v2102, %v2371
      %v2490 = vadd.f32 %v2103, %v2376
      %v2491 = vadd.f32 %v2104, %v2381
      %v2492 = vadd.f32 %v2105, %v2386
      %v2493 = vadd.f32 %v2106, %v2391
      %v2494 = vadd.f32 %v2107, %v2396
      %v2495 = vadd.f32 %v2108, %v2401
      %v2496 = vadd.f32 %v2109, %v2406
      %v2497 = vadd.f32 %v2110, %v2411
      %v2498 = vadd.f32 %v2111, %v2416
      %v2499 = vadd.f32 %v2112, %v2421
      %v2500 = vadd.f32 %v2113, %v2426
      %v2501 = vadd.f32 %v2114, %v2431
      %v2502 = vadd.f32 %v2115, %v2436
      %v2503 = vadd.f32 %v2116, %v2441
      %v2504 = vadd.f32 %v2117, %v2446
      %v2505 = vadd.f32 %v2118, %v2451
      %v2506 = vadd.f32 %v2119, %v2456
      %v2507 = vadd.f32 %v2120, %v2461
      %v2508 = vadd.f32 %v2121, %v2466
      %v2509 = vadd.f32 %v2122, %v2471
      %v2510 = vadd.f32 %v2123, %v2476
      %v2511 = vld [vmem:[%s414 + $0x2] sm:$0xff]
      %v2512 = vld [vmem:[%s414 + $0xa] sm:$0xff]
      %v2513 = vld [vmem:[%s414 + $0x1a] sm:$0xff]
      %v2514 = vld [vmem:[%s414 + $0x22] sm:$0xff]
      %v2515 = vld [vmem:[%s414 + $0x32] sm:$0xff]
      %v2516 = vld [vmem:[%s414 + $0x3a] sm:$0xff]
      %v2517 = vld [vmem:[%s414 + $0x4a] sm:$0xff]
      %v2518 = vld [vmem:[%s414 + $0x52] sm:$0xff]
      %v2519 = vld [vmem:[%s414 + $0x62] sm:$0xff]
      %v2520 = vld [vmem:[%s414 + $0x6a] sm:$0xff]
      %v2521 = vld [vmem:[%s414 + $0x7a] sm:$0xff]
      %v2522 = vld [vmem:[%s414 + $0x82] sm:$0xff]
      %v2523 = vld [vmem:[%s414 + $0x92] sm:$0xff]
      %v2524 = vld [vmem:[%s414 + $0x9a] sm:$0xff]
      %v2525 = vld [vmem:[%s414 + $0xaa] sm:$0xff]
      %v2526 = vld [vmem:[%s414 + $0xb2] sm:$0xff]
      %v2527 = vld [vmem:[%s414 + $0xc2] sm:$0xff]
      %v2528 = vld [vmem:[%s414 + $0xca] sm:$0xff]
      %v2529 = vld [vmem:[%s414 + $0xda] sm:$0xff]
      %v2530 = vld [vmem:[%s414 + $0xe2] sm:$0xff]
      %v2531 = vld [vmem:[%s414 + $0xf2] sm:$0xff]
      %v2532 = vld [vmem:[%s414 + $0xfa] sm:$0xff]
      %v2533 = vld [vmem:[%s414 + $0x10a] sm:$0xff]
      %v2534 = vld [vmem:[%s414 + $0x112] sm:$0xff]
      %v2535 = vld [vmem:[%s414 + $0x122] sm:$0xff]
      %v2536 = vld [vmem:[%s414 + $0x12a] sm:$0xff]
      %v2537 = vld [vmem:[%s414 + $0x13a] sm:$0xff]
      %v2538 = vld [vmem:[%s414 + $0x142] sm:$0xff]
      %v2539 = vld [vmem:[%s414 + $0x152] sm:$0xff]
      %v2540 = vld [vmem:[%s414 + $0x15a] sm:$0xff]
      %v2541 = vld [vmem:[%s414 + $0x16a] sm:$0xff]
      %v2542 = vld [vmem:[%s414 + $0x172] sm:$0xff]
      %s2543 = scalar_lea.vmem %s2, 40
      %v2544 = vld [vmem:[%s2543] sm:$0xff]
      %v2546 = vsel %vm326, %v2511, 0
      %v2549 = vsel %vm326, %v2512, 0
      %v2552 = vsel %vm326, %v2513, 0
      %v2555 = vsel %vm326, %v2514, 0
      %v2558 = vsel %vm326, %v2515, 0
      %v2561 = vsel %vm326, %v2516, 0
      %v2564 = vsel %vm326, %v2517, 0
      %v2567 = vsel %vm326, %v2518, 0
      %v2570 = vsel %vm326, %v2519, 0
      %v2573 = vsel %vm326, %v2520, 0
      %v2576 = vsel %vm326, %v2521, 0
      %v2579 = vsel %vm326, %v2522, 0
      %v2582 = vsel %vm326, %v2523, 0
      %v2585 = vsel %vm326, %v2524, 0
      %v2588 = vsel %vm326, %v2525, 0
      %v2591 = vsel %vm326, %v2526, 0
      %v2594 = vsel %vm326, %v2527, 0
      %v2597 = vsel %vm326, %v2528, 0
      %v2600 = vsel %vm326, %v2529, 0
      %v2603 = vsel %vm326, %v2530, 0
      %v2606 = vsel %vm326, %v2531, 0
      %v2609 = vsel %vm326, %v2532, 0
      %v2612 = vsel %vm326, %v2533, 0
      %v2615 = vsel %vm326, %v2534, 0
      %v2618 = vsel %vm326, %v2535, 0
      %v2621 = vsel %vm326, %v2536, 0
      %v2624 = vsel %vm326, %v2537, 0
      %v2627 = vsel %vm326, %v2538, 0
      %v2630 = vsel %vm326, %v2539, 0
      %v2633 = vsel %vm326, %v2540, 0
      %v2636 = vsel %vm326, %v2541, 0
      %v2639 = vsel %vm326, %v2542, 0
      %2641 = vmatprep.subr.mxu0 0.0
      %2642 = vmatpush1.msra.mxu0 0.0
      %2643 = vmatprep.subr.mxu0 0.0
      %2644 = vmatpush1.msra.mxu0 0.0
      %2645 = vmatprep.subr.mxu0 0.0
      %2646 = vmatpush1.msra.mxu0 0.0
      %2647 = vmatprep.subr.mxu0 0.0
      %2648 = vmatpush1.msra.mxu0 0.0
      %2649 = vmatprep.subr.mxu0 0.0
      %2650 = vmatpush1.msra.mxu0 0.0
      %2651 = vmatprep.subr.mxu0 0.0
      %2652 = vmatpush1.msra.mxu0 0.0
      %2653 = vmatprep.subr.mxu0 0.0
      %2654 = vmatpush1.msra.mxu0 0.0
      %2655 = vmatprep.subr.mxu0 0.0
      %2656 = vmatpush1.msra.mxu0 0.0
      %2657 = vmatprep.subr.mxu0 0.0
      %2658 = vmatpush1.msra.mxu0 0.0
      %2659 = vmatprep.subr.mxu0 0.0
      %2660 = vmatpush1.msra.mxu0 0.0
      %2661 = vmatprep.subr.mxu0 0.0
      %2662 = vmatpush1.msra.mxu0 0.0
      %2663 = vmatprep.subr.mxu0 0.0
      %2664 = vmatpush1.msra.mxu0 0.0
      %2665 = vmatprep.subr.mxu0 0.0
      %2666 = vmatpush1.msra.mxu0 0.0
      %2667 = vmatprep.subr.mxu0 0.0
      %2668 = vmatpush1.msra.mxu0 0.0
      %2669 = vmatprep.subr.mxu0 0.0
      %2670 = vmatpush1.msra.mxu0 0.0
      %2671 = vmatprep.subr.mxu0 0.0
      %2672 = vmatpush1.msra.mxu0 %v2544
      %2673 = vmatprep.subr.mxu0 0.0
      %2674 = vmatpush2.msra.mxu0 0.0
      %2675 = vmatprep.subr.mxu0 0.0
      %2676 = vmatpush2.msra.mxu0 0.0
      %2677 = vmatprep.subr.mxu0 0.0
      %2678 = vmatpush2.msra.mxu0 0.0
      %2679 = vmatprep.subr.mxu0 0.0
      %2680 = vmatpush2.msra.mxu0 0.0
      %2681 = vmatprep.subr.mxu0 0.0
      %2682 = vmatpush2.msra.mxu0 0.0
      %2683 = vmatprep.subr.mxu0 0.0
      %2684 = vmatpush2.msra.mxu0 0.0
      %2685 = vmatprep.subr.mxu0 0.0
      %2686 = vmatpush2.msra.mxu0 0.0
      %2687 = vmatprep.subr.mxu0 0.0
      %2688 = vmatpush2.msra.mxu0 0.0
      %2689 = vmatprep.subr.mxu0 0.0
      %2690 = vmatpush2.msra.mxu0 0.0
      %2691 = vmatprep.subr.mxu0 0.0
      %2692 = vmatpush2.msra.mxu0 0.0
      %2693 = vmatprep.subr.mxu0 0.0
      %2694 = vmatpush2.msra.mxu0 0.0
      %2695 = vmatprep.subr.mxu0 0.0
      %2696 = vmatpush2.msra.mxu0 0.0
      %2697 = vmatprep.subr.mxu0 0.0
      %2698 = vmatpush2.msra.mxu0 0.0
      %2699 = vmatprep.subr.mxu0 0.0
      %2700 = vmatpush2.msra.mxu0 0.0
      %2701 = vmatprep.subr.mxu0 0.0
      %2702 = vmatpush2.msra.mxu0 0.0
      %2703 = vmatprep.subr.mxu0 0.0
      %2704 = vmatpush2.msra.mxu0 0.0
      %2705 = vmatprep.mubr.f32.mxu0 0.0
      %2706 = vmatmul.mubr.f32.gmra.mxu0 %v2546
      %v2707 = vpop.f32.mrf.mxu0
      %v2708 = vadd.f32 0.0, %v2707
      %v2709 = vpop.f32.mrf.mxu0
      %2710 = vmatprep.mubr.f32.mxu0 0.0
      %2711 = vmatmul.mubr.f32.gmra.mxu0 %v2549
      %v2712 = vpop.f32.mrf.mxu0
      %v2713 = vadd.f32 0.0, %v2712
      %v2714 = vpop.f32.mrf.mxu0
      %2715 = vmatprep.mubr.f32.mxu0 0.0
      %2716 = vmatmul.mubr.f32.gmra.mxu0 %v2552
      %v2717 = vpop.f32.mrf.mxu0
      %v2718 = vadd.f32 0.0, %v2717
      %v2719 = vpop.f32.mrf.mxu0
      %2720 = vmatprep.mubr.f32.mxu0 0.0
      %2721 = vmatmul.mubr.f32.gmra.mxu0 %v2555
      %v2722 = vpop.f32.mrf.mxu0
      %v2723 = vadd.f32 0.0, %v2722
      %v2724 = vpop.f32.mrf.mxu0
      %2725 = vmatprep.mubr.f32.mxu0 0.0
      %2726 = vmatmul.mubr.f32.gmra.mxu0 %v2558
      %v2727 = vpop.f32.mrf.mxu0
      %v2728 = vadd.f32 0.0, %v2727
      %v2729 = vpop.f32.mrf.mxu0
      %2730 = vmatprep.mubr.f32.mxu0 0.0
      %2731 = vmatmul.mubr.f32.gmra.mxu0 %v2561
      %v2732 = vpop.f32.mrf.mxu0
      %v2733 = vadd.f32 0.0, %v2732
      %v2734 = vpop.f32.mrf.mxu0
      %2735 = vmatprep.mubr.f32.mxu0 0.0
      %2736 = vmatmul.mubr.f32.gmra.mxu0 %v2564
      %v2737 = vpop.f32.mrf.mxu0
      %v2738 = vadd.f32 0.0, %v2737
      %v2739 = vpop.f32.mrf.mxu0
      %2740 = vmatprep.mubr.f32.mxu0 0.0
      %2741 = vmatmul.mubr.f32.gmra.mxu0 %v2567
      %v2742 = vpop.f32.mrf.mxu0
      %v2743 = vadd.f32 0.0, %v2742
      %v2744 = vpop.f32.mrf.mxu0
      %2745 = vmatprep.mubr.f32.mxu0 0.0
      %2746 = vmatmul.mubr.f32.gmra.mxu0 %v2570
      %v2747 = vpop.f32.mrf.mxu0
      %v2748 = vadd.f32 0.0, %v2747
      %v2749 = vpop.f32.mrf.mxu0
      %2750 = vmatprep.mubr.f32.mxu0 0.0
      %2751 = vmatmul.mubr.f32.gmra.mxu0 %v2573
      %v2752 = vpop.f32.mrf.mxu0
      %v2753 = vadd.f32 0.0, %v2752
      %v2754 = vpop.f32.mrf.mxu0
      %2755 = vmatprep.mubr.f32.mxu0 0.0
      %2756 = vmatmul.mubr.f32.gmra.mxu0 %v2576
      %v2757 = vpop.f32.mrf.mxu0
      %v2758 = vadd.f32 0.0, %v2757
      %v2759 = vpop.f32.mrf.mxu0
      %2760 = vmatprep.mubr.f32.mxu0 0.0
      %2761 = vmatmul.mubr.f32.gmra.mxu0 %v2579
      %v2762 = vpop.f32.mrf.mxu0
      %v2763 = vadd.f32 0.0, %v2762
      %v2764 = vpop.f32.mrf.mxu0
      %2765 = vmatprep.mubr.f32.mxu0 0.0
      %2766 = vmatmul.mubr.f32.gmra.mxu0 %v2582
      %v2767 = vpop.f32.mrf.mxu0
      %v2768 = vadd.f32 0.0, %v2767
      %v2769 = vpop.f32.mrf.mxu0
      %2770 = vmatprep.mubr.f32.mxu0 0.0
      %2771 = vmatmul.mubr.f32.gmra.mxu0 %v2585
      %v2772 = vpop.f32.mrf.mxu0
      %v2773 = vadd.f32 0.0, %v2772
      %v2774 = vpop.f32.mrf.mxu0
      %2775 = vmatprep.mubr.f32.mxu0 0.0
      %2776 = vmatmul.mubr.f32.gmra.mxu0 %v2588
      %v2777 = vpop.f32.mrf.mxu0
      %v2778 = vadd.f32 0.0, %v2777
      %v2779 = vpop.f32.mrf.mxu0
      %2780 = vmatprep.mubr.f32.mxu0 0.0
      %2781 = vmatmul.mubr.f32.gmra.mxu0 %v2591
      %v2782 = vpop.f32.mrf.mxu0
      %v2783 = vadd.f32 0.0, %v2782
      %v2784 = vpop.f32.mrf.mxu0
      %2785 = vmatprep.mubr.f32.mxu0 0.0
      %2786 = vmatmul.mubr.f32.gmra.mxu0 %v2594
      %v2787 = vpop.f32.mrf.mxu0
      %v2788 = vadd.f32 0.0, %v2787
      %v2789 = vpop.f32.mrf.mxu0
      %2790 = vmatprep.mubr.f32.mxu0 0.0
      %2791 = vmatmul.mubr.f32.gmra.mxu0 %v2597
      %v2792 = vpop.f32.mrf.mxu0
      %v2793 = vadd.f32 0.0, %v2792
      %v2794 = vpop.f32.mrf.mxu0
      %2795 = vmatprep.mubr.f32.mxu0 0.0
      %2796 = vmatmul.mubr.f32.gmra.mxu0 %v2600
      %v2797 = vpop.f32.mrf.mxu0
      %v2798 = vadd.f32 0.0, %v2797
      %v2799 = vpop.f32.mrf.mxu0
      %2800 = vmatprep.mubr.f32.mxu0 0.0
      %2801 = vmatmul.mubr.f32.gmra.mxu0 %v2603
      %v2802 = vpop.f32.mrf.mxu0
      %v2803 = vadd.f32 0.0, %v2802
      %v2804 = vpop.f32.mrf.mxu0
      %2805 = vmatprep.mubr.f32.mxu0 0.0
      %2806 = vmatmul.mubr.f32.gmra.mxu0 %v2606
      %v2807 = vpop.f32.mrf.mxu0
      %v2808 = vadd.f32 0.0, %v2807
      %v2809 = vpop.f32.mrf.mxu0
      %2810 = vmatprep.mubr.f32.mxu0 0.0
      %2811 = vmatmul.mubr.f32.gmra.mxu0 %v2609
      %v2812 = vpop.f32.mrf.mxu0
      %v2813 = vadd.f32 0.0, %v2812
      %v2814 = vpop.f32.mrf.mxu0
      %2815 = vmatprep.mubr.f32.mxu0 0.0
      %2816 = vmatmul.mubr.f32.gmra.mxu0 %v2612
      %v2817 = vpop.f32.mrf.mxu0
      %v2818 = vadd.f32 0.0, %v2817
      %v2819 = vpop.f32.mrf.mxu0
      %2820 = vmatprep.mubr.f32.mxu0 0.0
      %2821 = vmatmul.mubr.f32.gmra.mxu0 %v2615
      %v2822 = vpop.f32.mrf.mxu0
      %v2823 = vadd.f32 0.0, %v2822
      %v2824 = vpop.f32.mrf.mxu0
      %2825 = vmatprep.mubr.f32.mxu0 0.0
      %2826 = vmatmul.mubr.f32.gmra.mxu0 %v2618
      %v2827 = vpop.f32.mrf.mxu0
      %v2828 = vadd.f32 0.0, %v2827
      %v2829 = vpop.f32.mrf.mxu0
      %2830 = vmatprep.mubr.f32.mxu0 0.0
      %2831 = vmatmul.mubr.f32.gmra.mxu0 %v2621
      %v2832 = vpop.f32.mrf.mxu0
      %v2833 = vadd.f32 0.0, %v2832
      %v2834 = vpop.f32.mrf.mxu0
      %2835 = vmatprep.mubr.f32.mxu0 0.0
      %2836 = vmatmul.mubr.f32.gmra.mxu0 %v2624
      %v2837 = vpop.f32.mrf.mxu0
      %v2838 = vadd.f32 0.0, %v2837
      %v2839 = vpop.f32.mrf.mxu0
      %2840 = vmatprep.mubr.f32.mxu0 0.0
      %2841 = vmatmul.mubr.f32.gmra.mxu0 %v2627
      %v2842 = vpop.f32.mrf.mxu0
      %v2843 = vadd.f32 0.0, %v2842
      %v2844 = vpop.f32.mrf.mxu0
      %2845 = vmatprep.mubr.f32.mxu0 0.0
      %2846 = vmatmul.mubr.f32.gmra.mxu0 %v2630
      %v2847 = vpop.f32.mrf.mxu0
      %v2848 = vadd.f32 0.0, %v2847
      %v2849 = vpop.f32.mrf.mxu0
      %2850 = vmatprep.mubr.f32.mxu0 0.0
      %2851 = vmatmul.mubr.f32.gmra.mxu0 %v2633
      %v2852 = vpop.f32.mrf.mxu0
      %v2853 = vadd.f32 0.0, %v2852
      %v2854 = vpop.f32.mrf.mxu0
      %2855 = vmatprep.mubr.f32.mxu0 0.0
      %2856 = vmatmul.mubr.f32.gmra.mxu0 %v2636
      %v2857 = vpop.f32.mrf.mxu0
      %v2858 = vadd.f32 0.0, %v2857
      %v2859 = vpop.f32.mrf.mxu0
      %2860 = vmatprep.mubr.f32.mxu0 0.0
      %2861 = vmatmul.mubr.f32.gmra.mxu0 %v2639
      %v2862 = vpop.f32.mrf.mxu0
      %v2863 = vadd.f32 0.0, %v2862
      %v2864 = vpop.f32.mrf.mxu0
      %2865 = vdwg.mxu0
      %v2866 = vadd.f32 %v2479, %v2708
      %v2867 = vadd.f32 %v2480, %v2713
      %v2868 = vadd.f32 %v2481, %v2718
      %v2869 = vadd.f32 %v2482, %v2723
      %v2870 = vadd.f32 %v2483, %v2728
      %v2871 = vadd.f32 %v2484, %v2733
      %v2872 = vadd.f32 %v2485, %v2738
      %v2873 = vadd.f32 %v2486, %v2743
      %v2874 = vadd.f32 %v2487, %v2748
      %v2875 = vadd.f32 %v2488, %v2753
      %v2876 = vadd.f32 %v2489, %v2758
      %v2877 = vadd.f32 %v2490, %v2763
      %v2878 = vadd.f32 %v2491, %v2768
      %v2879 = vadd.f32 %v2492, %v2773
      %v2880 = vadd.f32 %v2493, %v2778
      %v2881 = vadd.f32 %v2494, %v2783
      %v2882 = vadd.f32 %v2495, %v2788
      %v2883 = vadd.f32 %v2496, %v2793
      %v2884 = vadd.f32 %v2497, %v2798
      %v2885 = vadd.f32 %v2498, %v2803
      %v2886 = vadd.f32 %v2499, %v2808
      %v2887 = vadd.f32 %v2500, %v2813
      %v2888 = vadd.f32 %v2501, %v2818
      %v2889 = vadd.f32 %v2502, %v2823
      %v2890 = vadd.f32 %v2503, %v2828
      %v2891 = vadd.f32 %v2504, %v2833
      %v2892 = vadd.f32 %v2505, %v2838
      %v2893 = vadd.f32 %v2506, %v2843
      %v2894 = vadd.f32 %v2507, %v2848
      %v2895 = vadd.f32 %v2508, %v2853
      %v2896 = vadd.f32 %v2509, %v2858
      %v2897 = vadd.f32 %v2510, %v2863
      %s2898 = scalar_lea.vmem [#allocation2], 48
      %v2899 = vld [vmem:[%s2898] sm:$0xff]
      %v2900 = vld [vmem:[%s2898 + $0x8] sm:$0xff]
      %v2901 = vld [vmem:[%s2898 + $0x18] sm:$0xff]
      %v2902 = vld [vmem:[%s2898 + $0x20] sm:$0xff]
      %v2903 = vld [vmem:[%s2898 + $0x30] sm:$0xff]
      %v2904 = vld [vmem:[%s2898 + $0x38] sm:$0xff]
      %v2905 = vld [vmem:[%s2898 + $0x48] sm:$0xff]
      %v2906 = vld [vmem:[%s2898 + $0x50] sm:$0xff]
      %v2907 = vld [vmem:[%s2898 + $0x60] sm:$0xff]
      %v2908 = vld [vmem:[%s2898 + $0x68] sm:$0xff]
      %v2909 = vld [vmem:[%s2898 + $0x78] sm:$0xff]
      %v2910 = vld [vmem:[%s2898 + $0x80] sm:$0xff]
      %v2911 = vld [vmem:[%s2898 + $0x90] sm:$0xff]
      %v2912 = vld [vmem:[%s2898 + $0x98] sm:$0xff]
      %v2913 = vld [vmem:[%s2898 + $0xa8] sm:$0xff]
      %v2914 = vld [vmem:[%s2898 + $0xb0] sm:$0xff]
      %v2915 = vld [vmem:[%s2898 + $0xc0] sm:$0xff]
      %v2916 = vld [vmem:[%s2898 + $0xc8] sm:$0xff]
      %v2917 = vld [vmem:[%s2898 + $0xd8] sm:$0xff]
      %v2918 = vld [vmem:[%s2898 + $0xe0] sm:$0xff]
      %v2919 = vld [vmem:[%s2898 + $0xf0] sm:$0xff]
      %v2920 = vld [vmem:[%s2898 + $0xf8] sm:$0xff]
      %v2921 = vld [vmem:[%s2898 + $0x108] sm:$0xff]
      %v2922 = vld [vmem:[%s2898 + $0x110] sm:$0xff]
      %v2923 = vld [vmem:[%s2898 + $0x120] sm:$0xff]
      %v2924 = vld [vmem:[%s2898 + $0x128] sm:$0xff]
      %v2925 = vld [vmem:[%s2898 + $0x138] sm:$0xff]
      %v2926 = vld [vmem:[%s2898 + $0x140] sm:$0xff]
      %v2927 = vld [vmem:[%s2898 + $0x150] sm:$0xff]
      %v2928 = vld [vmem:[%s2898 + $0x158] sm:$0xff]
      %v2929 = vld [vmem:[%s2898 + $0x168] sm:$0xff]
      %v2930 = vld [vmem:[%s2898 + $0x170] sm:$0xff]
      %s2931 = scalar_lea.vmem %s2, 48
      %v2932 = vld [vmem:[%s2931] sm:$0xff]
      %v2934 = vsel %vm326, %v2899, 0
      %v2937 = vsel %vm326, %v2900, 0
      %v2940 = vsel %vm326, %v2901, 0
      %v2943 = vsel %vm326, %v2902, 0
      %v2946 = vsel %vm326, %v2903, 0
      %v2949 = vsel %vm326, %v2904, 0
      %v2952 = vsel %vm326, %v2905, 0
      %v2955 = vsel %vm326, %v2906, 0
      %v2958 = vsel %vm326, %v2907, 0
      %v2961 = vsel %vm326, %v2908, 0
      %v2964 = vsel %vm326, %v2909, 0
      %v2967 = vsel %vm326, %v2910, 0
      %v2970 = vsel %vm326, %v2911, 0
      %v2973 = vsel %vm326, %v2912, 0
      %v2976 = vsel %vm326, %v2913, 0
      %v2979 = vsel %vm326, %v2914, 0
      %v2982 = vsel %vm326, %v2915, 0
      %v2985 = vsel %vm326, %v2916, 0
      %v2988 = vsel %vm326, %v2917, 0
      %v2991 = vsel %vm326, %v2918, 0
      %v2994 = vsel %vm326, %v2919, 0
      %v2997 = vsel %vm326, %v2920, 0
      %v3000 = vsel %vm326, %v2921, 0
      %v3003 = vsel %vm326, %v2922, 0
      %v3006 = vsel %vm326, %v2923, 0
      %v3009 = vsel %vm326, %v2924, 0
      %v3012 = vsel %vm326, %v2925, 0
      %v3015 = vsel %vm326, %v2926, 0
      %v3018 = vsel %vm326, %v2927, 0
      %v3021 = vsel %vm326, %v2928, 0
      %v3024 = vsel %vm326, %v2929, 0
      %v3027 = vsel %vm326, %v2930, 0
      %3029 = vmatprep.subr.mxu0 0.0
      %3030 = vmatpush1.msra.mxu0 0.0
      %3031 = vmatprep.subr.mxu0 0.0
      %3032 = vmatpush1.msra.mxu0 0.0
      %3033 = vmatprep.subr.mxu0 0.0
      %3034 = vmatpush1.msra.mxu0 0.0
      %3035 = vmatprep.subr.mxu0 0.0
      %3036 = vmatpush1.msra.mxu0 0.0
      %3037 = vmatprep.subr.mxu0 0.0
      %3038 = vmatpush1.msra.mxu0 0.0
      %3039 = vmatprep.subr.mxu0 0.0
      %3040 = vmatpush1.msra.mxu0 0.0
      %3041 = vmatprep.subr.mxu0 0.0
      %3042 = vmatpush1.msra.mxu0 0.0
      %3043 = vmatprep.subr.mxu0 0.0
      %3044 = vmatpush1.msra.mxu0 0.0
      %3045 = vmatprep.subr.mxu0 0.0
      %3046 = vmatpush1.msra.mxu0 0.0
      %3047 = vmatprep.subr.mxu0 0.0
      %3048 = vmatpush1.msra.mxu0 0.0
      %3049 = vmatprep.subr.mxu0 0.0
      %3050 = vmatpush1.msra.mxu0 0.0
      %3051 = vmatprep.subr.mxu0 0.0
      %3052 = vmatpush1.msra.mxu0 0.0
      %3053 = vmatprep.subr.mxu0 0.0
      %3054 = vmatpush1.msra.mxu0 0.0
      %3055 = vmatprep.subr.mxu0 0.0
      %3056 = vmatpush1.msra.mxu0 0.0
      %3057 = vmatprep.subr.mxu0 0.0
      %3058 = vmatpush1.msra.mxu0 0.0
      %3059 = vmatprep.subr.mxu0 0.0
      %3060 = vmatpush1.msra.mxu0 %v2932
      %3061 = vmatprep.subr.mxu0 0.0
      %3062 = vmatpush2.msra.mxu0 0.0
      %3063 = vmatprep.subr.mxu0 0.0
      %3064 = vmatpush2.msra.mxu0 0.0
      %3065 = vmatprep.subr.mxu0 0.0
      %3066 = vmatpush2.msra.mxu0 0.0
      %3067 = vmatprep.subr.mxu0 0.0
      %3068 = vmatpush2.msra.mxu0 0.0
      %3069 = vmatprep.subr.mxu0 0.0
      %3070 = vmatpush2.msra.mxu0 0.0
      %3071 = vmatprep.subr.mxu0 0.0
      %3072 = vmatpush2.msra.mxu0 0.0
      %3073 = vmatprep.subr.mxu0 0.0
      %3074 = vmatpush2.msra.mxu0 0.0
      %3075 = vmatprep.subr.mxu0 0.0
      %3076 = vmatpush2.msra.mxu0 0.0
      %3077 = vmatprep.subr.mxu0 0.0
      %3078 = vmatpush2.msra.mxu0 0.0
      %3079 = vmatprep.subr.mxu0 0.0
      %3080 = vmatpush2.msra.mxu0 0.0
      %3081 = vmatprep.subr.mxu0 0.0
      %3082 = vmatpush2.msra.mxu0 0.0
      %3083 = vmatprep.subr.mxu0 0.0
      %3084 = vmatpush2.msra.mxu0 0.0
      %3085 = vmatprep.subr.mxu0 0.0
      %3086 = vmatpush2.msra.mxu0 0.0
      %3087 = vmatprep.subr.mxu0 0.0
      %3088 = vmatpush2.msra.mxu0 0.0
      %3089 = vmatprep.subr.mxu0 0.0
      %3090 = vmatpush2.msra.mxu0 0.0
      %3091 = vmatprep.subr.mxu0 0.0
      %3092 = vmatpush2.msra.mxu0 0.0
      %3093 = vmatprep.mubr.f32.mxu0 0.0
      %3094 = vmatmul.mubr.f32.gmra.mxu0 %v2934
      %v3095 = vpop.f32.mrf.mxu0
      %v3096 = vadd.f32 0.0, %v3095
      %v3097 = vpop.f32.mrf.mxu0
      %3098 = vmatprep.mubr.f32.mxu0 0.0
      %3099 = vmatmul.mubr.f32.gmra.mxu0 %v2937
      %v3100 = vpop.f32.mrf.mxu0
      %v3101 = vadd.f32 0.0, %v3100
      %v3102 = vpop.f32.mrf.mxu0
      %3103 = vmatprep.mubr.f32.mxu0 0.0
      %3104 = vmatmul.mubr.f32.gmra.mxu0 %v2940
      %v3105 = vpop.f32.mrf.mxu0
      %v3106 = vadd.f32 0.0, %v3105
      %v3107 = vpop.f32.mrf.mxu0
      %3108 = vmatprep.mubr.f32.mxu0 0.0
      %3109 = vmatmul.mubr.f32.gmra.mxu0 %v2943
      %v3110 = vpop.f32.mrf.mxu0
      %v3111 = vadd.f32 0.0, %v3110
      %v3112 = vpop.f32.mrf.mxu0
      %3113 = vmatprep.mubr.f32.mxu0 0.0
      %3114 = vmatmul.mubr.f32.gmra.mxu0 %v2946
      %v3115 = vpop.f32.mrf.mxu0
      %v3116 = vadd.f32 0.0, %v3115
      %v3117 = vpop.f32.mrf.mxu0
      %3118 = vmatprep.mubr.f32.mxu0 0.0
      %3119 = vmatmul.mubr.f32.gmra.mxu0 %v2949
      %v3120 = vpop.f32.mrf.mxu0
      %v3121 = vadd.f32 0.0, %v3120
      %v3122 = vpop.f32.mrf.mxu0
      %3123 = vmatprep.mubr.f32.mxu0 0.0
      %3124 = vmatmul.mubr.f32.gmra.mxu0 %v2952
      %v3125 = vpop.f32.mrf.mxu0
      %v3126 = vadd.f32 0.0, %v3125
      %v3127 = vpop.f32.mrf.mxu0
      %3128 = vmatprep.mubr.f32.mxu0 0.0
      %3129 = vmatmul.mubr.f32.gmra.mxu0 %v2955
      %v3130 = vpop.f32.mrf.mxu0
      %v3131 = vadd.f32 0.0, %v3130
      %v3132 = vpop.f32.mrf.mxu0
      %3133 = vmatprep.mubr.f32.mxu0 0.0
      %3134 = vmatmul.mubr.f32.gmra.mxu0 %v2958
      %v3135 = vpop.f32.mrf.mxu0
      %v3136 = vadd.f32 0.0, %v3135
      %v3137 = vpop.f32.mrf.mxu0
      %3138 = vmatprep.mubr.f32.mxu0 0.0
      %3139 = vmatmul.mubr.f32.gmra.mxu0 %v2961
      %v3140 = vpop.f32.mrf.mxu0
      %v3141 = vadd.f32 0.0, %v3140
      %v3142 = vpop.f32.mrf.mxu0
      %3143 = vmatprep.mubr.f32.mxu0 0.0
      %3144 = vmatmul.mubr.f32.gmra.mxu0 %v2964
      %v3145 = vpop.f32.mrf.mxu0
      %v3146 = vadd.f32 0.0, %v3145
      %v3147 = vpop.f32.mrf.mxu0
      %3148 = vmatprep.mubr.f32.mxu0 0.0
      %3149 = vmatmul.mubr.f32.gmra.mxu0 %v2967
      %v3150 = vpop.f32.mrf.mxu0
      %v3151 = vadd.f32 0.0, %v3150
      %v3152 = vpop.f32.mrf.mxu0
      %3153 = vmatprep.mubr.f32.mxu0 0.0
      %3154 = vmatmul.mubr.f32.gmra.mxu0 %v2970
      %v3155 = vpop.f32.mrf.mxu0
      %v3156 = vadd.f32 0.0, %v3155
      %v3157 = vpop.f32.mrf.mxu0
      %3158 = vmatprep.mubr.f32.mxu0 0.0
      %3159 = vmatmul.mubr.f32.gmra.mxu0 %v2973
      %v3160 = vpop.f32.mrf.mxu0
      %v3161 = vadd.f32 0.0, %v3160
      %v3162 = vpop.f32.mrf.mxu0
      %3163 = vmatprep.mubr.f32.mxu0 0.0
      %3164 = vmatmul.mubr.f32.gmra.mxu0 %v2976
      %v3165 = vpop.f32.mrf.mxu0
      %v3166 = vadd.f32 0.0, %v3165
      %v3167 = vpop.f32.mrf.mxu0
      %3168 = vmatprep.mubr.f32.mxu0 0.0
      %3169 = vmatmul.mubr.f32.gmra.mxu0 %v2979
      %v3170 = vpop.f32.mrf.mxu0
      %v3171 = vadd.f32 0.0, %v3170
      %v3172 = vpop.f32.mrf.mxu0
      %3173 = vmatprep.mubr.f32.mxu0 0.0
      %3174 = vmatmul.mubr.f32.gmra.mxu0 %v2982
      %v3175 = vpop.f32.mrf.mxu0
      %v3176 = vadd.f32 0.0, %v3175
      %v3177 = vpop.f32.mrf.mxu0
      %3178 = vmatprep.mubr.f32.mxu0 0.0
      %3179 = vmatmul.mubr.f32.gmra.mxu0 %v2985
      %v3180 = vpop.f32.mrf.mxu0
      %v3181 = vadd.f32 0.0, %v3180
      %v3182 = vpop.f32.mrf.mxu0
      %3183 = vmatprep.mubr.f32.mxu0 0.0
      %3184 = vmatmul.mubr.f32.gmra.mxu0 %v2988
      %v3185 = vpop.f32.mrf.mxu0
      %v3186 = vadd.f32 0.0, %v3185
      %v3187 = vpop.f32.mrf.mxu0
      %3188 = vmatprep.mubr.f32.mxu0 0.0
      %3189 = vmatmul.mubr.f32.gmra.mxu0 %v2991
      %v3190 = vpop.f32.mrf.mxu0
      %v3191 = vadd.f32 0.0, %v3190
      %v3192 = vpop.f32.mrf.mxu0
      %3193 = vmatprep.mubr.f32.mxu0 0.0
      %3194 = vmatmul.mubr.f32.gmra.mxu0 %v2994
      %v3195 = vpop.f32.mrf.mxu0
      %v3196 = vadd.f32 0.0, %v3195
      %v3197 = vpop.f32.mrf.mxu0
      %3198 = vmatprep.mubr.f32.mxu0 0.0
      %3199 = vmatmul.mubr.f32.gmra.mxu0 %v2997
      %v3200 = vpop.f32.mrf.mxu0
      %v3201 = vadd.f32 0.0, %v3200
      %v3202 = vpop.f32.mrf.mxu0
      %3203 = vmatprep.mubr.f32.mxu0 0.0
      %3204 = vmatmul.mubr.f32.gmra.mxu0 %v3000
      %v3205 = vpop.f32.mrf.mxu0
      %v3206 = vadd.f32 0.0, %v3205
      %v3207 = vpop.f32.mrf.mxu0
      %3208 = vmatprep.mubr.f32.mxu0 0.0
      %3209 = vmatmul.mubr.f32.gmra.mxu0 %v3003
      %v3210 = vpop.f32.mrf.mxu0
      %v3211 = vadd.f32 0.0, %v3210
      %v3212 = vpop.f32.mrf.mxu0
      %3213 = vmatprep.mubr.f32.mxu0 0.0
      %3214 = vmatmul.mubr.f32.gmra.mxu0 %v3006
      %v3215 = vpop.f32.mrf.mxu0
      %v3216 = vadd.f32 0.0, %v3215
      %v3217 = vpop.f32.mrf.mxu0
      %3218 = vmatprep.mubr.f32.mxu0 0.0
      %3219 = vmatmul.mubr.f32.gmra.mxu0 %v3009
      %v3220 = vpop.f32.mrf.mxu0
      %v3221 = vadd.f32 0.0, %v3220
      %v3222 = vpop.f32.mrf.mxu0
      %3223 = vmatprep.mubr.f32.mxu0 0.0
      %3224 = vmatmul.mubr.f32.gmra.mxu0 %v3012
      %v3225 = vpop.f32.mrf.mxu0
      %v3226 = vadd.f32 0.0, %v3225
      %v3227 = vpop.f32.mrf.mxu0
      %3228 = vmatprep.mubr.f32.mxu0 0.0
      %3229 = vmatmul.mubr.f32.gmra.mxu0 %v3015
      %v3230 = vpop.f32.mrf.mxu0
      %v3231 = vadd.f32 0.0, %v3230
      %v3232 = vpop.f32.mrf.mxu0
      %3233 = vmatprep.mubr.f32.mxu0 0.0
      %3234 = vmatmul.mubr.f32.gmra.mxu0 %v3018
      %v3235 = vpop.f32.mrf.mxu0
      %v3236 = vadd.f32 0.0, %v3235
      %v3237 = vpop.f32.mrf.mxu0
      %3238 = vmatprep.mubr.f32.mxu0 0.0
      %3239 = vmatmul.mubr.f32.gmra.mxu0 %v3021
      %v3240 = vpop.f32.mrf.mxu0
      %v3241 = vadd.f32 0.0, %v3240
      %v3242 = vpop.f32.mrf.mxu0
      %3243 = vmatprep.mubr.f32.mxu0 0.0
      %3244 = vmatmul.mubr.f32.gmra.mxu0 %v3024
      %v3245 = vpop.f32.mrf.mxu0
      %v3246 = vadd.f32 0.0, %v3245
      %v3247 = vpop.f32.mrf.mxu0
      %3248 = vmatprep.mubr.f32.mxu0 0.0
      %3249 = vmatmul.mubr.f32.gmra.mxu0 %v3027
      %v3250 = vpop.f32.mrf.mxu0
      %v3251 = vadd.f32 0.0, %v3250
      %v3252 = vpop.f32.mrf.mxu0
      %3253 = vdwg.mxu0
      %v3254 = vadd.f32 %v2866, %v3096
      %v3255 = vadd.f32 %v2867, %v3101
      %v3256 = vadd.f32 %v2868, %v3106
      %v3257 = vadd.f32 %v2869, %v3111
      %v3258 = vadd.f32 %v2870, %v3116
      %v3259 = vadd.f32 %v2871, %v3121
      %v3260 = vadd.f32 %v2872, %v3126
      %v3261 = vadd.f32 %v2873, %v3131
      %v3262 = vadd.f32 %v2874, %v3136
      %v3263 = vadd.f32 %v2875, %v3141
      %v3264 = vadd.f32 %v2876, %v3146
      %v3265 = vadd.f32 %v2877, %v3151
      %v3266 = vadd.f32 %v2878, %v3156
      %v3267 = vadd.f32 %v2879, %v3161
      %v3268 = vadd.f32 %v2880, %v3166
      %v3269 = vadd.f32 %v2881, %v3171
      %v3270 = vadd.f32 %v2882, %v3176
      %v3271 = vadd.f32 %v2883, %v3181
      %v3272 = vadd.f32 %v2884, %v3186
      %v3273 = vadd.f32 %v2885, %v3191
      %v3274 = vadd.f32 %v2886, %v3196
      %v3275 = vadd.f32 %v2887, %v3201
      %v3276 = vadd.f32 %v2888, %v3206
      %v3277 = vadd.f32 %v2889, %v3211
      %v3278 = vadd.f32 %v2890, %v3216
      %v3279 = vadd.f32 %v2891, %v3221
      %v3280 = vadd.f32 %v2892, %v3226
      %v3281 = vadd.f32 %v2893, %v3231
      %v3282 = vadd.f32 %v2894, %v3236
      %v3283 = vadd.f32 %v2895, %v3241
      %v3284 = vadd.f32 %v2896, %v3246
      %v3285 = vadd.f32 %v2897, %v3251
      %v3286 = vld [vmem:[%s2898 + $0x1] sm:$0xff]
      %v3287 = vld [vmem:[%s2898 + $0x9] sm:$0xff]
      %v3288 = vld [vmem:[%s2898 + $0x19] sm:$0xff]
      %v3289 = vld [vmem:[%s2898 + $0x21] sm:$0xff]
      %v3290 = vld [vmem:[%s2898 + $0x31] sm:$0xff]
      %v3291 = vld [vmem:[%s2898 + $0x39] sm:$0xff]
      %v3292 = vld [vmem:[%s2898 + $0x49] sm:$0xff]
      %v3293 = vld [vmem:[%s2898 + $0x51] sm:$0xff]
      %v3294 = vld [vmem:[%s2898 + $0x61] sm:$0xff]
      %v3295 = vld [vmem:[%s2898 + $0x69] sm:$0xff]
      %v3296 = vld [vmem:[%s2898 + $0x79] sm:$0xff]
      %v3297 = vld [vmem:[%s2898 + $0x81] sm:$0xff]
      %v3298 = vld [vmem:[%s2898 + $0x91] sm:$0xff]
      %v3299 = vld [vmem:[%s2898 + $0x99] sm:$0xff]
      %v3300 = vld [vmem:[%s2898 + $0xa9] sm:$0xff]
      %v3301 = vld [vmem:[%s2898 + $0xb1] sm:$0xff]
      %v3302 = vld [vmem:[%s2898 + $0xc1] sm:$0xff]
      %v3303 = vld [vmem:[%s2898 + $0xc9] sm:$0xff]
      %v3304 = vld [vmem:[%s2898 + $0xd9] sm:$0xff]
      %v3305 = vld [vmem:[%s2898 + $0xe1] sm:$0xff]
      %v3306 = vld [vmem:[%s2898 + $0xf1] sm:$0xff]
      %v3307 = vld [vmem:[%s2898 + $0xf9] sm:$0xff]
      %v3308 = vld [vmem:[%s2898 + $0x109] sm:$0xff]
      %v3309 = vld [vmem:[%s2898 + $0x111] sm:$0xff]
      %v3310 = vld [vmem:[%s2898 + $0x121] sm:$0xff]
      %v3311 = vld [vmem:[%s2898 + $0x129] sm:$0xff]
      %v3312 = vld [vmem:[%s2898 + $0x139] sm:$0xff]
      %v3313 = vld [vmem:[%s2898 + $0x141] sm:$0xff]
      %v3314 = vld [vmem:[%s2898 + $0x151] sm:$0xff]
      %v3315 = vld [vmem:[%s2898 + $0x159] sm:$0xff]
      %v3316 = vld [vmem:[%s2898 + $0x169] sm:$0xff]
      %v3317 = vld [vmem:[%s2898 + $0x171] sm:$0xff]
      %s3318 = scalar_lea.vmem %s2, 56
      %v3319 = vld [vmem:[%s3318] sm:$0xff]
      %v3321 = vsel %vm326, %v3286, 0
      %v3324 = vsel %vm326, %v3287, 0
      %v3327 = vsel %vm326, %v3288, 0
      %v3330 = vsel %vm326, %v3289, 0
      %v3333 = vsel %vm326, %v3290, 0
      %v3336 = vsel %vm326, %v3291, 0
      %v3339 = vsel %vm326, %v3292, 0
      %v3342 = vsel %vm326, %v3293, 0
      %v3345 = vsel %vm326, %v3294, 0
      %v3348 = vsel %vm326, %v3295, 0
      %v3351 = vsel %vm326, %v3296, 0
      %v3354 = vsel %vm326, %v3297, 0
      %v3357 = vsel %vm326, %v3298, 0
      %v3360 = vsel %vm326, %v3299, 0
      %v3363 = vsel %vm326, %v3300, 0
      %v3366 = vsel %vm326, %v3301, 0
      %v3369 = vsel %vm326, %v3302, 0
      %v3372 = vsel %vm326, %v3303, 0
      %v3375 = vsel %vm326, %v3304, 0
      %v3378 = vsel %vm326, %v3305, 0
      %v3381 = vsel %vm326, %v3306, 0
      %v3384 = vsel %vm326, %v3307, 0
      %v3387 = vsel %vm326, %v3308, 0
      %v3390 = vsel %vm326, %v3309, 0
      %v3393 = vsel %vm326, %v3310, 0
      %v3396 = vsel %vm326, %v3311, 0
      %v3399 = vsel %vm326, %v3312, 0
      %v3402 = vsel %vm326, %v3313, 0
      %v3405 = vsel %vm326, %v3314, 0
      %v3408 = vsel %vm326, %v3315, 0
      %v3411 = vsel %vm326, %v3316, 0
      %v3414 = vsel %vm326, %v3317, 0
      %3416 = vmatprep.subr.mxu0 0.0
      %3417 = vmatpush1.msra.mxu0 0.0
      %3418 = vmatprep.subr.mxu0 0.0
      %3419 = vmatpush1.msra.mxu0 0.0
      %3420 = vmatprep.subr.mxu0 0.0
      %3421 = vmatpush1.msra.mxu0 0.0
      %3422 = vmatprep.subr.mxu0 0.0
      %3423 = vmatpush1.msra.mxu0 0.0
      %3424 = vmatprep.subr.mxu0 0.0
      %3425 = vmatpush1.msra.mxu0 0.0
      %3426 = vmatprep.subr.mxu0 0.0
      %3427 = vmatpush1.msra.mxu0 0.0
      %3428 = vmatprep.subr.mxu0 0.0
      %3429 = vmatpush1.msra.mxu0 0.0
      %3430 = vmatprep.subr.mxu0 0.0
      %3431 = vmatpush1.msra.mxu0 0.0
      %3432 = vmatprep.subr.mxu0 0.0
      %3433 = vmatpush1.msra.mxu0 0.0
      %3434 = vmatprep.subr.mxu0 0.0
      %3435 = vmatpush1.msra.mxu0 0.0
      %3436 = vmatprep.subr.mxu0 0.0
      %3437 = vmatpush1.msra.mxu0 0.0
      %3438 = vmatprep.subr.mxu0 0.0
      %3439 = vmatpush1.msra.mxu0 0.0
      %3440 = vmatprep.subr.mxu0 0.0
      %3441 = vmatpush1.msra.mxu0 0.0
      %3442 = vmatprep.subr.mxu0 0.0
      %3443 = vmatpush1.msra.mxu0 0.0
      %3444 = vmatprep.subr.mxu0 0.0
      %3445 = vmatpush1.msra.mxu0 0.0
      %3446 = vmatprep.subr.mxu0 0.0
      %3447 = vmatpush1.msra.mxu0 %v3319
      %3448 = vmatprep.subr.mxu0 0.0
      %3449 = vmatpush2.msra.mxu0 0.0
      %3450 = vmatprep.subr.mxu0 0.0
      %3451 = vmatpush2.msra.mxu0 0.0
      %3452 = vmatprep.subr.mxu0 0.0
      %3453 = vmatpush2.msra.mxu0 0.0
      %3454 = vmatprep.subr.mxu0 0.0
      %3455 = vmatpush2.msra.mxu0 0.0
      %3456 = vmatprep.subr.mxu0 0.0
      %3457 = vmatpush2.msra.mxu0 0.0
      %3458 = vmatprep.subr.mxu0 0.0
      %3459 = vmatpush2.msra.mxu0 0.0
      %3460 = vmatprep.subr.mxu0 0.0
      %3461 = vmatpush2.msra.mxu0 0.0
      %3462 = vmatprep.subr.mxu0 0.0
      %3463 = vmatpush2.msra.mxu0 0.0
      %3464 = vmatprep.subr.mxu0 0.0
      %3465 = vmatpush2.msra.mxu0 0.0
      %3466 = vmatprep.subr.mxu0 0.0
      %3467 = vmatpush2.msra.mxu0 0.0
      %3468 = vmatprep.subr.mxu0 0.0
      %3469 = vmatpush2.msra.mxu0 0.0
      %3470 = vmatprep.subr.mxu0 0.0
      %3471 = vmatpush2.msra.mxu0 0.0
      %3472 = vmatprep.subr.mxu0 0.0
      %3473 = vmatpush2.msra.mxu0 0.0
      %3474 = vmatprep.subr.mxu0 0.0
      %3475 = vmatpush2.msra.mxu0 0.0
      %3476 = vmatprep.subr.mxu0 0.0
      %3477 = vmatpush2.msra.mxu0 0.0
      %3478 = vmatprep.subr.mxu0 0.0
      %3479 = vmatpush2.msra.mxu0 0.0
      %3480 = vmatprep.mubr.f32.mxu0 0.0
      %3481 = vmatmul.mubr.f32.gmra.mxu0 %v3321
      %v3482 = vpop.f32.mrf.mxu0
      %v3483 = vadd.f32 0.0, %v3482
      %v3484 = vpop.f32.mrf.mxu0
      %3485 = vmatprep.mubr.f32.mxu0 0.0
      %3486 = vmatmul.mubr.f32.gmra.mxu0 %v3324
      %v3487 = vpop.f32.mrf.mxu0
      %v3488 = vadd.f32 0.0, %v3487
      %v3489 = vpop.f32.mrf.mxu0
      %3490 = vmatprep.mubr.f32.mxu0 0.0
      %3491 = vmatmul.mubr.f32.gmra.mxu0 %v3327
      %v3492 = vpop.f32.mrf.mxu0
      %v3493 = vadd.f32 0.0, %v3492
      %v3494 = vpop.f32.mrf.mxu0
      %3495 = vmatprep.mubr.f32.mxu0 0.0
      %3496 = vmatmul.mubr.f32.gmra.mxu0 %v3330
      %v3497 = vpop.f32.mrf.mxu0
      %v3498 = vadd.f32 0.0, %v3497
      %v3499 = vpop.f32.mrf.mxu0
      %3500 = vmatprep.mubr.f32.mxu0 0.0
      %3501 = vmatmul.mubr.f32.gmra.mxu0 %v3333
      %v3502 = vpop.f32.mrf.mxu0
      %v3503 = vadd.f32 0.0, %v3502
      %v3504 = vpop.f32.mrf.mxu0
      %3505 = vmatprep.mubr.f32.mxu0 0.0
      %3506 = vmatmul.mubr.f32.gmra.mxu0 %v3336
      %v3507 = vpop.f32.mrf.mxu0
      %v3508 = vadd.f32 0.0, %v3507
      %v3509 = vpop.f32.mrf.mxu0
      %3510 = vmatprep.mubr.f32.mxu0 0.0
      %3511 = vmatmul.mubr.f32.gmra.mxu0 %v3339
      %v3512 = vpop.f32.mrf.mxu0
      %v3513 = vadd.f32 0.0, %v3512
      %v3514 = vpop.f32.mrf.mxu0
      %3515 = vmatprep.mubr.f32.mxu0 0.0
      %3516 = vmatmul.mubr.f32.gmra.mxu0 %v3342
      %v3517 = vpop.f32.mrf.mxu0
      %v3518 = vadd.f32 0.0, %v3517
      %v3519 = vpop.f32.mrf.mxu0
      %3520 = vmatprep.mubr.f32.mxu0 0.0
      %3521 = vmatmul.mubr.f32.gmra.mxu0 %v3345
      %v3522 = vpop.f32.mrf.mxu0
      %v3523 = vadd.f32 0.0, %v3522
      %v3524 = vpop.f32.mrf.mxu0
      %3525 = vmatprep.mubr.f32.mxu0 0.0
      %3526 = vmatmul.mubr.f32.gmra.mxu0 %v3348
      %v3527 = vpop.f32.mrf.mxu0
      %v3528 = vadd.f32 0.0, %v3527
      %v3529 = vpop.f32.mrf.mxu0
      %3530 = vmatprep.mubr.f32.mxu0 0.0
      %3531 = vmatmul.mubr.f32.gmra.mxu0 %v3351
      %v3532 = vpop.f32.mrf.mxu0
      %v3533 = vadd.f32 0.0, %v3532
      %v3534 = vpop.f32.mrf.mxu0
      %3535 = vmatprep.mubr.f32.mxu0 0.0
      %3536 = vmatmul.mubr.f32.gmra.mxu0 %v3354
      %v3537 = vpop.f32.mrf.mxu0
      %v3538 = vadd.f32 0.0, %v3537
      %v3539 = vpop.f32.mrf.mxu0
      %3540 = vmatprep.mubr.f32.mxu0 0.0
      %3541 = vmatmul.mubr.f32.gmra.mxu0 %v3357
      %v3542 = vpop.f32.mrf.mxu0
      %v3543 = vadd.f32 0.0, %v3542
      %v3544 = vpop.f32.mrf.mxu0
      %3545 = vmatprep.mubr.f32.mxu0 0.0
      %3546 = vmatmul.mubr.f32.gmra.mxu0 %v3360
      %v3547 = vpop.f32.mrf.mxu0
      %v3548 = vadd.f32 0.0, %v3547
      %v3549 = vpop.f32.mrf.mxu0
      %3550 = vmatprep.mubr.f32.mxu0 0.0
      %3551 = vmatmul.mubr.f32.gmra.mxu0 %v3363
      %v3552 = vpop.f32.mrf.mxu0
      %v3553 = vadd.f32 0.0, %v3552
      %v3554 = vpop.f32.mrf.mxu0
      %3555 = vmatprep.mubr.f32.mxu0 0.0
      %3556 = vmatmul.mubr.f32.gmra.mxu0 %v3366
      %v3557 = vpop.f32.mrf.mxu0
      %v3558 = vadd.f32 0.0, %v3557
      %v3559 = vpop.f32.mrf.mxu0
      %3560 = vmatprep.mubr.f32.mxu0 0.0
      %3561 = vmatmul.mubr.f32.gmra.mxu0 %v3369
      %v3562 = vpop.f32.mrf.mxu0
      %v3563 = vadd.f32 0.0, %v3562
      %v3564 = vpop.f32.mrf.mxu0
      %3565 = vmatprep.mubr.f32.mxu0 0.0
      %3566 = vmatmul.mubr.f32.gmra.mxu0 %v3372
      %v3567 = vpop.f32.mrf.mxu0
      %v3568 = vadd.f32 0.0, %v3567
      %v3569 = vpop.f32.mrf.mxu0
      %3570 = vmatprep.mubr.f32.mxu0 0.0
      %3571 = vmatmul.mubr.f32.gmra.mxu0 %v3375
      %v3572 = vpop.f32.mrf.mxu0
      %v3573 = vadd.f32 0.0, %v3572
      %v3574 = vpop.f32.mrf.mxu0
      %3575 = vmatprep.mubr.f32.mxu0 0.0
      %3576 = vmatmul.mubr.f32.gmra.mxu0 %v3378
      %v3577 = vpop.f32.mrf.mxu0
      %v3578 = vadd.f32 0.0, %v3577
      %v3579 = vpop.f32.mrf.mxu0
      %3580 = vmatprep.mubr.f32.mxu0 0.0
      %3581 = vmatmul.mubr.f32.gmra.mxu0 %v3381
      %v3582 = vpop.f32.mrf.mxu0
      %v3583 = vadd.f32 0.0, %v3582
      %v3584 = vpop.f32.mrf.mxu0
      %3585 = vmatprep.mubr.f32.mxu0 0.0
      %3586 = vmatmul.mubr.f32.gmra.mxu0 %v3384
      %v3587 = vpop.f32.mrf.mxu0
      %v3588 = vadd.f32 0.0, %v3587
      %v3589 = vpop.f32.mrf.mxu0
      %3590 = vmatprep.mubr.f32.mxu0 0.0
      %3591 = vmatmul.mubr.f32.gmra.mxu0 %v3387
      %v3592 = vpop.f32.mrf.mxu0
      %v3593 = vadd.f32 0.0, %v3592
      %v3594 = vpop.f32.mrf.mxu0
      %3595 = vmatprep.mubr.f32.mxu0 0.0
      %3596 = vmatmul.mubr.f32.gmra.mxu0 %v3390
      %v3597 = vpop.f32.mrf.mxu0
      %v3598 = vadd.f32 0.0, %v3597
      %v3599 = vpop.f32.mrf.mxu0
      %3600 = vmatprep.mubr.f32.mxu0 0.0
      %3601 = vmatmul.mubr.f32.gmra.mxu0 %v3393
      %v3602 = vpop.f32.mrf.mxu0
      %v3603 = vadd.f32 0.0, %v3602
      %v3604 = vpop.f32.mrf.mxu0
      %3605 = vmatprep.mubr.f32.mxu0 0.0
      %3606 = vmatmul.mubr.f32.gmra.mxu0 %v3396
      %v3607 = vpop.f32.mrf.mxu0
      %v3608 = vadd.f32 0.0, %v3607
      %v3609 = vpop.f32.mrf.mxu0
      %3610 = vmatprep.mubr.f32.mxu0 0.0
      %3611 = vmatmul.mubr.f32.gmra.mxu0 %v3399
      %v3612 = vpop.f32.mrf.mxu0
      %v3613 = vadd.f32 0.0, %v3612
      %v3614 = vpop.f32.mrf.mxu0
      %3615 = vmatprep.mubr.f32.mxu0 0.0
      %3616 = vmatmul.mubr.f32.gmra.mxu0 %v3402
      %v3617 = vpop.f32.mrf.mxu0
      %v3618 = vadd.f32 0.0, %v3617
      %v3619 = vpop.f32.mrf.mxu0
      %3620 = vmatprep.mubr.f32.mxu0 0.0
      %3621 = vmatmul.mubr.f32.gmra.mxu0 %v3405
      %v3622 = vpop.f32.mrf.mxu0
      %v3623 = vadd.f32 0.0, %v3622
      %v3624 = vpop.f32.mrf.mxu0
      %3625 = vmatprep.mubr.f32.mxu0 0.0
      %3626 = vmatmul.mubr.f32.gmra.mxu0 %v3408
      %v3627 = vpop.f32.mrf.mxu0
      %v3628 = vadd.f32 0.0, %v3627
      %v3629 = vpop.f32.mrf.mxu0
      %3630 = vmatprep.mubr.f32.mxu0 0.0
      %3631 = vmatmul.mubr.f32.gmra.mxu0 %v3411
      %v3632 = vpop.f32.mrf.mxu0
      %v3633 = vadd.f32 0.0, %v3632
      %v3634 = vpop.f32.mrf.mxu0
      %3635 = vmatprep.mubr.f32.mxu0 0.0
      %3636 = vmatmul.mubr.f32.gmra.mxu0 %v3414
      %v3637 = vpop.f32.mrf.mxu0
      %v3638 = vadd.f32 0.0, %v3637
      %v3639 = vpop.f32.mrf.mxu0
      %3640 = vdwg.mxu0
      %v3641 = vadd.f32 %v3254, %v3483
      %v3642 = vadd.f32 %v3255, %v3488
      %v3643 = vadd.f32 %v3256, %v3493
      %v3644 = vadd.f32 %v3257, %v3498
      %v3645 = vadd.f32 %v3258, %v3503
      %v3646 = vadd.f32 %v3259, %v3508
      %v3647 = vadd.f32 %v3260, %v3513
      %v3648 = vadd.f32 %v3261, %v3518
      %v3649 = vadd.f32 %v3262, %v3523
      %v3650 = vadd.f32 %v3263, %v3528
      %v3651 = vadd.f32 %v3264, %v3533
      %v3652 = vadd.f32 %v3265, %v3538
      %v3653 = vadd.f32 %v3266, %v3543
      %v3654 = vadd.f32 %v3267, %v3548
      %v3655 = vadd.f32 %v3268, %v3553
      %v3656 = vadd.f32 %v3269, %v3558
      %v3657 = vadd.f32 %v3270, %v3563
      %v3658 = vadd.f32 %v3271, %v3568
      %v3659 = vadd.f32 %v3272, %v3573
      %v3660 = vadd.f32 %v3273, %v3578
      %v3661 = vadd.f32 %v3274, %v3583
      %v3662 = vadd.f32 %v3275, %v3588
      %v3663 = vadd.f32 %v3276, %v3593
      %v3664 = vadd.f32 %v3277, %v3598
      %v3665 = vadd.f32 %v3278, %v3603
      %v3666 = vadd.f32 %v3279, %v3608
      %v3667 = vadd.f32 %v3280, %v3613
      %v3668 = vadd.f32 %v3281, %v3618
      %v3669 = vadd.f32 %v3282, %v3623
      %v3670 = vadd.f32 %v3283, %v3628
      %v3671 = vadd.f32 %v3284, %v3633
      %v3672 = vadd.f32 %v3285, %v3638
      %v3673 = vld [vmem:[%s2898 + $0x2] sm:$0xff]
      %v3674 = vld [vmem:[%s2898 + $0xa] sm:$0xff]
      %v3675 = vld [vmem:[%s2898 + $0x1a] sm:$0xff]
      %v3676 = vld [vmem:[%s2898 + $0x22] sm:$0xff]
      %v3677 = vld [vmem:[%s2898 + $0x32] sm:$0xff]
      %v3678 = vld [vmem:[%s2898 + $0x3a] sm:$0xff]
      %v3679 = vld [vmem:[%s2898 + $0x4a] sm:$0xff]
      %v3680 = vld [vmem:[%s2898 + $0x52] sm:$0xff]
      %v3681 = vld [vmem:[%s2898 + $0x62] sm:$0xff]
      %v3682 = vld [vmem:[%s2898 + $0x6a] sm:$0xff]
      %v3683 = vld [vmem:[%s2898 + $0x7a] sm:$0xff]
      %v3684 = vld [vmem:[%s2898 + $0x82] sm:$0xff]
      %v3685 = vld [vmem:[%s2898 + $0x92] sm:$0xff]
      %v3686 = vld [vmem:[%s2898 + $0x9a] sm:$0xff]
      %v3687 = vld [vmem:[%s2898 + $0xaa] sm:$0xff]
      %v3688 = vld [vmem:[%s2898 + $0xb2] sm:$0xff]
      %v3689 = vld [vmem:[%s2898 + $0xc2] sm:$0xff]
      %v3690 = vld [vmem:[%s2898 + $0xca] sm:$0xff]
      %v3691 = vld [vmem:[%s2898 + $0xda] sm:$0xff]
      %v3692 = vld [vmem:[%s2898 + $0xe2] sm:$0xff]
      %v3693 = vld [vmem:[%s2898 + $0xf2] sm:$0xff]
      %v3694 = vld [vmem:[%s2898 + $0xfa] sm:$0xff]
      %v3695 = vld [vmem:[%s2898 + $0x10a] sm:$0xff]
      %v3696 = vld [vmem:[%s2898 + $0x112] sm:$0xff]
      %v3697 = vld [vmem:[%s2898 + $0x122] sm:$0xff]
      %v3698 = vld [vmem:[%s2898 + $0x12a] sm:$0xff]
      %v3699 = vld [vmem:[%s2898 + $0x13a] sm:$0xff]
      %v3700 = vld [vmem:[%s2898 + $0x142] sm:$0xff]
      %v3701 = vld [vmem:[%s2898 + $0x152] sm:$0xff]
      %v3702 = vld [vmem:[%s2898 + $0x15a] sm:$0xff]
      %v3703 = vld [vmem:[%s2898 + $0x16a] sm:$0xff]
      %v3704 = vld [vmem:[%s2898 + $0x172] sm:$0xff]
      %s3705 = scalar_lea.vmem %s2, 64
      %v3706 = vld [vmem:[%s3705] sm:$0xff]
      %v3708 = vsel %vm326, %v3673, 0
      %v3711 = vsel %vm326, %v3674, 0
      %v3714 = vsel %vm326, %v3675, 0
      %v3717 = vsel %vm326, %v3676, 0
      %v3720 = vsel %vm326, %v3677, 0
      %v3723 = vsel %vm326, %v3678, 0
      %v3726 = vsel %vm326, %v3679, 0
      %v3729 = vsel %vm326, %v3680, 0
      %v3732 = vsel %vm326, %v3681, 0
      %v3735 = vsel %vm326, %v3682, 0
      %v3738 = vsel %vm326, %v3683, 0
      %v3741 = vsel %vm326, %v3684, 0
      %v3744 = vsel %vm326, %v3685, 0
      %v3747 = vsel %vm326, %v3686, 0
      %v3750 = vsel %vm326, %v3687, 0
      %v3753 = vsel %vm326, %v3688, 0
      %v3756 = vsel %vm326, %v3689, 0
      %v3759 = vsel %vm326, %v3690, 0
      %v3762 = vsel %vm326, %v3691, 0
      %v3765 = vsel %vm326, %v3692, 0
      %v3768 = vsel %vm326, %v3693, 0
      %v3771 = vsel %vm326, %v3694, 0
      %v3774 = vsel %vm326, %v3695, 0
      %v3777 = vsel %vm326, %v3696, 0
      %v3780 = vsel %vm326, %v3697, 0
      %v3783 = vsel %vm326, %v3698, 0
      %v3786 = vsel %vm326, %v3699, 0
      %v3789 = vsel %vm326, %v3700, 0
      %v3792 = vsel %vm326, %v3701, 0
      %v3795 = vsel %vm326, %v3702, 0
      %v3798 = vsel %vm326, %v3703, 0
      %v3801 = vsel %vm326, %v3704, 0
      %3803 = vmatprep.subr.mxu0 0.0
      %3804 = vmatpush1.msra.mxu0 0.0
      %3805 = vmatprep.subr.mxu0 0.0
      %3806 = vmatpush1.msra.mxu0 0.0
      %3807 = vmatprep.subr.mxu0 0.0
      %3808 = vmatpush1.msra.mxu0 0.0
      %3809 = vmatprep.subr.mxu0 0.0
      %3810 = vmatpush1.msra.mxu0 0.0
      %3811 = vmatprep.subr.mxu0 0.0
      %3812 = vmatpush1.msra.mxu0 0.0
      %3813 = vmatprep.subr.mxu0 0.0
      %3814 = vmatpush1.msra.mxu0 0.0
      %3815 = vmatprep.subr.mxu0 0.0
      %3816 = vmatpush1.msra.mxu0 0.0
      %3817 = vmatprep.subr.mxu0 0.0
      %3818 = vmatpush1.msra.mxu0 0.0
      %3819 = vmatprep.subr.mxu0 0.0
      %3820 = vmatpush1.msra.mxu0 0.0
      %3821 = vmatprep.subr.mxu0 0.0
      %3822 = vmatpush1.msra.mxu0 0.0
      %3823 = vmatprep.subr.mxu0 0.0
      %3824 = vmatpush1.msra.mxu0 0.0
      %3825 = vmatprep.subr.mxu0 0.0
      %3826 = vmatpush1.msra.mxu0 0.0
      %3827 = vmatprep.subr.mxu0 0.0
      %3828 = vmatpush1.msra.mxu0 0.0
      %3829 = vmatprep.subr.mxu0 0.0
      %3830 = vmatpush1.msra.mxu0 0.0
      %3831 = vmatprep.subr.mxu0 0.0
      %3832 = vmatpush1.msra.mxu0 0.0
      %3833 = vmatprep.subr.mxu0 0.0
      %3834 = vmatpush1.msra.mxu0 %v3706
      %3835 = vmatprep.subr.mxu0 0.0
      %3836 = vmatpush2.msra.mxu0 0.0
      %3837 = vmatprep.subr.mxu0 0.0
      %3838 = vmatpush2.msra.mxu0 0.0
      %3839 = vmatprep.subr.mxu0 0.0
      %3840 = vmatpush2.msra.mxu0 0.0
      %3841 = vmatprep.subr.mxu0 0.0
      %3842 = vmatpush2.msra.mxu0 0.0
      %3843 = vmatprep.subr.mxu0 0.0
      %3844 = vmatpush2.msra.mxu0 0.0
      %3845 = vmatprep.subr.mxu0 0.0
      %3846 = vmatpush2.msra.mxu0 0.0
      %3847 = vmatprep.subr.mxu0 0.0
      %3848 = vmatpush2.msra.mxu0 0.0
      %3849 = vmatprep.subr.mxu0 0.0
      %3850 = vmatpush2.msra.mxu0 0.0
      %3851 = vmatprep.subr.mxu0 0.0
      %3852 = vmatpush2.msra.mxu0 0.0
      %3853 = vmatprep.subr.mxu0 0.0
      %3854 = vmatpush2.msra.mxu0 0.0
      %3855 = vmatprep.subr.mxu0 0.0
      %3856 = vmatpush2.msra.mxu0 0.0
      %3857 = vmatprep.subr.mxu0 0.0
      %3858 = vmatpush2.msra.mxu0 0.0
      %3859 = vmatprep.subr.mxu0 0.0
      %3860 = vmatpush2.msra.mxu0 0.0
      %3861 = vmatprep.subr.mxu0 0.0
      %3862 = vmatpush2.msra.mxu0 0.0
      %3863 = vmatprep.subr.mxu0 0.0
      %3864 = vmatpush2.msra.mxu0 0.0
      %3865 = vmatprep.subr.mxu0 0.0
      %3866 = vmatpush2.msra.mxu0 0.0
      %3867 = vmatprep.mubr.f32.mxu0 0.0
      %3868 = vmatmul.mubr.f32.gmra.mxu0 %v3708
      %v3869 = vpop.f32.mrf.mxu0
      %v3870 = vadd.f32 0.0, %v3869
      %v3871 = vpop.f32.mrf.mxu0
      %3872 = vmatprep.mubr.f32.mxu0 0.0
      %3873 = vmatmul.mubr.f32.gmra.mxu0 %v3711
      %v3874 = vpop.f32.mrf.mxu0
      %v3875 = vadd.f32 0.0, %v3874
      %v3876 = vpop.f32.mrf.mxu0
      %3877 = vmatprep.mubr.f32.mxu0 0.0
      %3878 = vmatmul.mubr.f32.gmra.mxu0 %v3714
      %v3879 = vpop.f32.mrf.mxu0
      %v3880 = vadd.f32 0.0, %v3879
      %v3881 = vpop.f32.mrf.mxu0
      %3882 = vmatprep.mubr.f32.mxu0 0.0
      %3883 = vmatmul.mubr.f32.gmra.mxu0 %v3717
      %v3884 = vpop.f32.mrf.mxu0
      %v3885 = vadd.f32 0.0, %v3884
      %v3886 = vpop.f32.mrf.mxu0
      %3887 = vmatprep.mubr.f32.mxu0 0.0
      %3888 = vmatmul.mubr.f32.gmra.mxu0 %v3720
      %v3889 = vpop.f32.mrf.mxu0
      %v3890 = vadd.f32 0.0, %v3889
      %v3891 = vpop.f32.mrf.mxu0
      %3892 = vmatprep.mubr.f32.mxu0 0.0
      %3893 = vmatmul.mubr.f32.gmra.mxu0 %v3723
      %v3894 = vpop.f32.mrf.mxu0
      %v3895 = vadd.f32 0.0, %v3894
      %v3896 = vpop.f32.mrf.mxu0
      %3897 = vmatprep.mubr.f32.mxu0 0.0
      %3898 = vmatmul.mubr.f32.gmra.mxu0 %v3726
      %v3899 = vpop.f32.mrf.mxu0
      %v3900 = vadd.f32 0.0, %v3899
      %v3901 = vpop.f32.mrf.mxu0
      %3902 = vmatprep.mubr.f32.mxu0 0.0
      %3903 = vmatmul.mubr.f32.gmra.mxu0 %v3729
      %v3904 = vpop.f32.mrf.mxu0
      %v3905 = vadd.f32 0.0, %v3904
      %v3906 = vpop.f32.mrf.mxu0
      %3907 = vmatprep.mubr.f32.mxu0 0.0
      %3908 = vmatmul.mubr.f32.gmra.mxu0 %v3732
      %v3909 = vpop.f32.mrf.mxu0
      %v3910 = vadd.f32 0.0, %v3909
      %v3911 = vpop.f32.mrf.mxu0
      %3912 = vmatprep.mubr.f32.mxu0 0.0
      %3913 = vmatmul.mubr.f32.gmra.mxu0 %v3735
      %v3914 = vpop.f32.mrf.mxu0
      %v3915 = vadd.f32 0.0, %v3914
      %v3916 = vpop.f32.mrf.mxu0
      %3917 = vmatprep.mubr.f32.mxu0 0.0
      %3918 = vmatmul.mubr.f32.gmra.mxu0 %v3738
      %v3919 = vpop.f32.mrf.mxu0
      %v3920 = vadd.f32 0.0, %v3919
      %v3921 = vpop.f32.mrf.mxu0
      %3922 = vmatprep.mubr.f32.mxu0 0.0
      %3923 = vmatmul.mubr.f32.gmra.mxu0 %v3741
      %v3924 = vpop.f32.mrf.mxu0
      %v3925 = vadd.f32 0.0, %v3924
      %v3926 = vpop.f32.mrf.mxu0
      %3927 = vmatprep.mubr.f32.mxu0 0.0
      %3928 = vmatmul.mubr.f32.gmra.mxu0 %v3744
      %v3929 = vpop.f32.mrf.mxu0
      %v3930 = vadd.f32 0.0, %v3929
      %v3931 = vpop.f32.mrf.mxu0
      %3932 = vmatprep.mubr.f32.mxu0 0.0
      %3933 = vmatmul.mubr.f32.gmra.mxu0 %v3747
      %v3934 = vpop.f32.mrf.mxu0
      %v3935 = vadd.f32 0.0, %v3934
      %v3936 = vpop.f32.mrf.mxu0
      %3937 = vmatprep.mubr.f32.mxu0 0.0
      %3938 = vmatmul.mubr.f32.gmra.mxu0 %v3750
      %v3939 = vpop.f32.mrf.mxu0
      %v3940 = vadd.f32 0.0, %v3939
      %v3941 = vpop.f32.mrf.mxu0
      %3942 = vmatprep.mubr.f32.mxu0 0.0
      %3943 = vmatmul.mubr.f32.gmra.mxu0 %v3753
      %v3944 = vpop.f32.mrf.mxu0
      %v3945 = vadd.f32 0.0, %v3944
      %v3946 = vpop.f32.mrf.mxu0
      %3947 = vmatprep.mubr.f32.mxu0 0.0
      %3948 = vmatmul.mubr.f32.gmra.mxu0 %v3756
      %v3949 = vpop.f32.mrf.mxu0
      %v3950 = vadd.f32 0.0, %v3949
      %v3951 = vpop.f32.mrf.mxu0
      %3952 = vmatprep.mubr.f32.mxu0 0.0
      %3953 = vmatmul.mubr.f32.gmra.mxu0 %v3759
      %v3954 = vpop.f32.mrf.mxu0
      %v3955 = vadd.f32 0.0, %v3954
      %v3956 = vpop.f32.mrf.mxu0
      %3957 = vmatprep.mubr.f32.mxu0 0.0
      %3958 = vmatmul.mubr.f32.gmra.mxu0 %v3762
      %v3959 = vpop.f32.mrf.mxu0
      %v3960 = vadd.f32 0.0, %v3959
      %v3961 = vpop.f32.mrf.mxu0
      %3962 = vmatprep.mubr.f32.mxu0 0.0
      %3963 = vmatmul.mubr.f32.gmra.mxu0 %v3765
      %v3964 = vpop.f32.mrf.mxu0
      %v3965 = vadd.f32 0.0, %v3964
      %v3966 = vpop.f32.mrf.mxu0
      %3967 = vmatprep.mubr.f32.mxu0 0.0
      %3968 = vmatmul.mubr.f32.gmra.mxu0 %v3768
      %v3969 = vpop.f32.mrf.mxu0
      %v3970 = vadd.f32 0.0, %v3969
      %v3971 = vpop.f32.mrf.mxu0
      %3972 = vmatprep.mubr.f32.mxu0 0.0
      %3973 = vmatmul.mubr.f32.gmra.mxu0 %v3771
      %v3974 = vpop.f32.mrf.mxu0
      %v3975 = vadd.f32 0.0, %v3974
      %v3976 = vpop.f32.mrf.mxu0
      %3977 = vmatprep.mubr.f32.mxu0 0.0
      %3978 = vmatmul.mubr.f32.gmra.mxu0 %v3774
      %v3979 = vpop.f32.mrf.mxu0
      %v3980 = vadd.f32 0.0, %v3979
      %v3981 = vpop.f32.mrf.mxu0
      %3982 = vmatprep.mubr.f32.mxu0 0.0
      %3983 = vmatmul.mubr.f32.gmra.mxu0 %v3777
      %v3984 = vpop.f32.mrf.mxu0
      %v3985 = vadd.f32 0.0, %v3984
      %v3986 = vpop.f32.mrf.mxu0
      %3987 = vmatprep.mubr.f32.mxu0 0.0
      %3988 = vmatmul.mubr.f32.gmra.mxu0 %v3780
      %v3989 = vpop.f32.mrf.mxu0
      %v3990 = vadd.f32 0.0, %v3989
      %v3991 = vpop.f32.mrf.mxu0
      %3992 = vmatprep.mubr.f32.mxu0 0.0
      %3993 = vmatmul.mubr.f32.gmra.mxu0 %v3783
      %v3994 = vpop.f32.mrf.mxu0
      %v3995 = vadd.f32 0.0, %v3994
      %v3996 = vpop.f32.mrf.mxu0
      %3997 = vmatprep.mubr.f32.mxu0 0.0
      %3998 = vmatmul.mubr.f32.gmra.mxu0 %v3786
      %v3999 = vpop.f32.mrf.mxu0
      %v4000 = vadd.f32 0.0, %v3999
      %v4001 = vpop.f32.mrf.mxu0
      %4002 = vmatprep.mubr.f32.mxu0 0.0
      %4003 = vmatmul.mubr.f32.gmra.mxu0 %v3789
      %v4004 = vpop.f32.mrf.mxu0
      %v4005 = vadd.f32 0.0, %v4004
      %v4006 = vpop.f32.mrf.mxu0
      %4007 = vmatprep.mubr.f32.mxu0 0.0
      %4008 = vmatmul.mubr.f32.gmra.mxu0 %v3792
      %v4009 = vpop.f32.mrf.mxu0
      %v4010 = vadd.f32 0.0, %v4009
      %v4011 = vpop.f32.mrf.mxu0
      %4012 = vmatprep.mubr.f32.mxu0 0.0
      %4013 = vmatmul.mubr.f32.gmra.mxu0 %v3795
      %v4014 = vpop.f32.mrf.mxu0
      %v4015 = vadd.f32 0.0, %v4014
      %v4016 = vpop.f32.mrf.mxu0
      %4017 = vmatprep.mubr.f32.mxu0 0.0
      %4018 = vmatmul.mubr.f32.gmra.mxu0 %v3798
      %v4019 = vpop.f32.mrf.mxu0
      %v4020 = vadd.f32 0.0, %v4019
      %v4021 = vpop.f32.mrf.mxu0
      %4022 = vmatprep.mubr.f32.mxu0 0.0
      %4023 = vmatmul.mubr.f32.gmra.mxu0 %v3801
      %v4024 = vpop.f32.mrf.mxu0
      %v4025 = vadd.f32 0.0, %v4024
      %v4026 = vpop.f32.mrf.mxu0
      %4027 = vdwg.mxu0
      %v4028 = vadd.f32 %v3641, %v3870
      %v4029 = vadd.f32 %v3642, %v3875
      %v4030 = vadd.f32 %v3643, %v3880
      %v4031 = vadd.f32 %v3644, %v3885
      %v4032 = vadd.f32 %v3645, %v3890
      %v4033 = vadd.f32 %v3646, %v3895
      %v4034 = vadd.f32 %v3647, %v3900
      %v4035 = vadd.f32 %v3648, %v3905
      %v4036 = vadd.f32 %v3649, %v3910
      %v4037 = vadd.f32 %v3650, %v3915
      %v4038 = vadd.f32 %v3651, %v3920
      %v4039 = vadd.f32 %v3652, %v3925
      %v4040 = vadd.f32 %v3653, %v3930
      %v4041 = vadd.f32 %v3654, %v3935
      %v4042 = vadd.f32 %v3655, %v3940
      %v4043 = vadd.f32 %v3656, %v3945
      %v4044 = vadd.f32 %v3657, %v3950
      %v4045 = vadd.f32 %v3658, %v3955
      %v4046 = vadd.f32 %v3659, %v3960
      %v4047 = vadd.f32 %v3660, %v3965
      %v4048 = vadd.f32 %v3661, %v3970
      %v4049 = vadd.f32 %v3662, %v3975
      %v4050 = vadd.f32 %v3663, %v3980
      %v4051 = vadd.f32 %v3664, %v3985
      %v4052 = vadd.f32 %v3665, %v3990
      %v4053 = vadd.f32 %v3666, %v3995
      %v4054 = vadd.f32 %v3667, %v4000
      %v4055 = vadd.f32 %v3668, %v4005
      %v4056 = vadd.f32 %v3669, %v4010
      %v4057 = vadd.f32 %v3670, %v4015
      %v4058 = vadd.f32 %v3671, %v4020
      %v4059 = vadd.f32 %v3672, %v4025
      %v4060 = vld [vmem:[%s3] sm:$0x1]
      %v4062 = vlaneseq
      %v4063 = vshrl.u32 %v4062, 7
      %v4064 = vsub.s32 0, %v4063
      %v4065 = vrot.slane %v4060, %v4064
      %v4067 = vmul.f32 %v4028, %v4065
      %v4068 = vmul.f32 %v4029, %v4065
      %v4069 = vmul.f32 %v4030, %v4065
      %v4070 = vmul.f32 %v4031, %v4065
      %v4071 = vmul.f32 %v4032, %v4065
      %v4072 = vmul.f32 %v4033, %v4065
      %v4073 = vmul.f32 %v4034, %v4065
      %v4074 = vmul.f32 %v4035, %v4065
      %v4075 = vmul.f32 %v4036, %v4065
      %v4076 = vmul.f32 %v4037, %v4065
      %v4077 = vmul.f32 %v4038, %v4065
      %v4078 = vmul.f32 %v4039, %v4065
      %v4079 = vmul.f32 %v4040, %v4065
      %v4080 = vmul.f32 %v4041, %v4065
      %v4081 = vmul.f32 %v4042, %v4065
      %v4082 = vmul.f32 %v4043, %v4065
      %v4083 = vmul.f32 %v4044, %v4065
      %v4084 = vmul.f32 %v4045, %v4065
      %v4085 = vmul.f32 %v4046, %v4065
      %v4086 = vmul.f32 %v4047, %v4065
      %v4087 = vmul.f32 %v4048, %v4065
      %v4088 = vmul.f32 %v4049, %v4065
      %v4089 = vmul.f32 %v4050, %v4065
      %v4090 = vmul.f32 %v4051, %v4065
      %v4091 = vmul.f32 %v4052, %v4065
      %v4092 = vmul.f32 %v4053, %v4065
      %v4093 = vmul.f32 %v4054, %v4065
      %v4094 = vmul.f32 %v4055, %v4065
      %v4095 = vmul.f32 %v4056, %v4065
      %v4096 = vmul.f32 %v4057, %v4065
      %v4097 = vmul.f32 %v4058, %v4065
      %v4098 = vmul.f32 %v4059, %v4065
      %v4099 = vld [vmem:[%s4] sm:$0x1]
      %v4101 = vlaneseq
      %v4102 = vshrl.u32 %v4101, 7
      %v4103 = vsub.s32 0, %v4102
      %v4104 = vrot.slane %v4099, %v4103
      %v4106 = vadd.f32 %v4067, %v4104
      %v4107 = vadd.f32 %v4068, %v4104
      %v4108 = vadd.f32 %v4069, %v4104
      %v4109 = vadd.f32 %v4070, %v4104
      %v4110 = vadd.f32 %v4071, %v4104
      %v4111 = vadd.f32 %v4072, %v4104
      %v4112 = vadd.f32 %v4073, %v4104
      %v4113 = vadd.f32 %v4074, %v4104
      %v4114 = vadd.f32 %v4075, %v4104
      %v4115 = vadd.f32 %v4076, %v4104
      %v4116 = vadd.f32 %v4077, %v4104
      %v4117 = vadd.f32 %v4078, %v4104
      %v4118 = vadd.f32 %v4079, %v4104
      %v4119 = vadd.f32 %v4080, %v4104
      %v4120 = vadd.f32 %v4081, %v4104
      %v4121 = vadd.f32 %v4082, %v4104
      %v4122 = vadd.f32 %v4083, %v4104
      %v4123 = vadd.f32 %v4084, %v4104
      %v4124 = vadd.f32 %v4085, %v4104
      %v4125 = vadd.f32 %v4086, %v4104
      %v4126 = vadd.f32 %v4087, %v4104
      %v4127 = vadd.f32 %v4088, %v4104
      %v4128 = vadd.f32 %v4089, %v4104
      %v4129 = vadd.f32 %v4090, %v4104
      %v4130 = vadd.f32 %v4091, %v4104
      %v4131 = vadd.f32 %v4092, %v4104
      %v4132 = vadd.f32 %v4093, %v4104
      %v4133 = vadd.f32 %v4094, %v4104
      %v4134 = vadd.f32 %v4095, %v4104
      %v4135 = vadd.f32 %v4096, %v4104
      %v4136 = vadd.f32 %v4097, %v4104
      %v4137 = vadd.f32 %v4098, %v4104
      %vm4138 = vcmp.ge.f32.partialorder %v4106, 0.0
      %vm4139 = vcmp.ge.f32.partialorder %v4107, 0.0
      %vm4140 = vcmp.ge.f32.partialorder %v4108, 0.0
      %vm4141 = vcmp.ge.f32.partialorder %v4109, 0.0
      %vm4142 = vcmp.ge.f32.partialorder %v4110, 0.0
      %vm4143 = vcmp.ge.f32.partialorder %v4111, 0.0
      %vm4144 = vcmp.ge.f32.partialorder %v4112, 0.0
      %vm4145 = vcmp.ge.f32.partialorder %v4113, 0.0
      %vm4146 = vcmp.ge.f32.partialorder %v4114, 0.0
      %vm4147 = vcmp.ge.f32.partialorder %v4115, 0.0
      %vm4148 = vcmp.ge.f32.partialorder %v4116, 0.0
      %vm4149 = vcmp.ge.f32.partialorder %v4117, 0.0
      %vm4150 = vcmp.ge.f32.partialorder %v4118, 0.0
      %vm4151 = vcmp.ge.f32.partialorder %v4119, 0.0
      %vm4152 = vcmp.ge.f32.partialorder %v4120, 0.0
      %vm4153 = vcmp.ge.f32.partialorder %v4121, 0.0
      %vm4154 = vcmp.ge.f32.partialorder %v4122, 0.0
      %vm4155 = vcmp.ge.f32.partialorder %v4123, 0.0
      %vm4156 = vcmp.ge.f32.partialorder %v4124, 0.0
      %vm4157 = vcmp.ge.f32.partialorder %v4125, 0.0
      %vm4158 = vcmp.ge.f32.partialorder %v4126, 0.0
      %vm4159 = vcmp.ge.f32.partialorder %v4127, 0.0
      %vm4160 = vcmp.ge.f32.partialorder %v4128, 0.0
      %vm4161 = vcmp.ge.f32.partialorder %v4129, 0.0
      %vm4162 = vcmp.ge.f32.partialorder %v4130, 0.0
      %vm4163 = vcmp.ge.f32.partialorder %v4131, 0.0
      %vm4164 = vcmp.ge.f32.partialorder %v4132, 0.0
      %vm4165 = vcmp.ge.f32.partialorder %v4133, 0.0
      %vm4166 = vcmp.ge.f32.partialorder %v4134, 0.0
      %vm4167 = vcmp.ge.f32.partialorder %v4135, 0.0
      %vm4168 = vcmp.ge.f32.partialorder %v4136, 0.0
      %vm4169 = vcmp.ge.f32.partialorder %v4137, 0.0
      %v4170 = vmul.f32 %v4106, 0.01
      %v4171 = vmul.f32 %v4107, 0.01
      %v4172 = vmul.f32 %v4108, 0.01
      %v4173 = vmul.f32 %v4109, 0.01
      %v4174 = vmul.f32 %v4110, 0.01
      %v4175 = vmul.f32 %v4111, 0.01
      %v4176 = vmul.f32 %v4112, 0.01
      %v4177 = vmul.f32 %v4113, 0.01
      %v4178 = vmul.f32 %v4114, 0.01
      %v4179 = vmul.f32 %v4115, 0.01
      %v4180 = vmul.f32 %v4116, 0.01
      %v4181 = vmul.f32 %v4117, 0.01
      %v4182 = vmul.f32 %v4118, 0.01
      %v4183 = vmul.f32 %v4119, 0.01
      %v4184 = vmul.f32 %v4120, 0.01
      %v4185 = vmul.f32 %v4121, 0.01
      %v4186 = vmul.f32 %v4122, 0.01
      %v4187 = vmul.f32 %v4123, 0.01
      %v4188 = vmul.f32 %v4124, 0.01
      %v4189 = vmul.f32 %v4125, 0.01
      %v4190 = vmul.f32 %v4126, 0.01
      %v4191 = vmul.f32 %v4127, 0.01
      %v4192 = vmul.f32 %v4128, 0.01
      %v4193 = vmul.f32 %v4129, 0.01
      %v4194 = vmul.f32 %v4130, 0.01
      %v4195 = vmul.f32 %v4131, 0.01
      %v4196 = vmul.f32 %v4132, 0.01
      %v4197 = vmul.f32 %v4133, 0.01
      %v4198 = vmul.f32 %v4134, 0.01
      %v4199 = vmul.f32 %v4135, 0.01
      %v4200 = vmul.f32 %v4136, 0.01
      %v4201 = vmul.f32 %v4137, 0.01
      %v4202 = vsel %vm4138, %v4106, %v4170
      %v4203 = vsel %vm4139, %v4107, %v4171
      %v4204 = vsel %vm4140, %v4108, %v4172
      %v4205 = vsel %vm4141, %v4109, %v4173
      %v4206 = vsel %vm4142, %v4110, %v4174
      %v4207 = vsel %vm4143, %v4111, %v4175
      %v4208 = vsel %vm4144, %v4112, %v4176
      %v4209 = vsel %vm4145, %v4113, %v4177
      %v4210 = vsel %vm4146, %v4114, %v4178
      %v4211 = vsel %vm4147, %v4115, %v4179
      %v4212 = vsel %vm4148, %v4116, %v4180
      %v4213 = vsel %vm4149, %v4117, %v4181
      %v4214 = vsel %vm4150, %v4118, %v4182
      %v4215 = vsel %vm4151, %v4119, %v4183
      %v4216 = vsel %vm4152, %v4120, %v4184
      %v4217 = vsel %vm4153, %v4121, %v4185
      %v4218 = vsel %vm4154, %v4122, %v4186
      %v4219 = vsel %vm4155, %v4123, %v4187
      %v4220 = vsel %vm4156, %v4124, %v4188
      %v4221 = vsel %vm4157, %v4125, %v4189
      %v4222 = vsel %vm4158, %v4126, %v4190
      %v4223 = vsel %vm4159, %v4127, %v4191
      %v4224 = vsel %vm4160, %v4128, %v4192
      %v4225 = vsel %vm4161, %v4129, %v4193
      %v4226 = vsel %vm4162, %v4130, %v4194
      %v4227 = vsel %vm4163, %v4131, %v4195
      %v4228 = vsel %vm4164, %v4132, %v4196
      %v4229 = vsel %vm4165, %v4133, %v4197
      %v4230 = vsel %vm4166, %v4134, %v4198
      %v4231 = vsel %vm4167, %v4135, %v4199
      %v4232 = vsel %vm4168, %v4136, %v4200
      %v4233 = vsel %vm4169, %v4137, %v4201
      %4234 = vst.msk [vmem:[#allocation3] sm:$0xff] %vm415, 0.0
      %4235 = vst.msk [vmem:[#allocation3 + $0x8] sm:$0xff] %vm415, 0.0
      %vm4236 = vcmask 25600
      %4237 = vst.msk [vmem:[#allocation3 + $0x10] sm:$0x3] %vm4236, 0.0
      %4238 = vst.msk [vmem:[#allocation3 + $0x18] sm:$0xff] %vm415, 0.0
      %4239 = vst.msk [vmem:[#allocation3 + $0x20] sm:$0xff] %vm415, 0.0
      %4240 = vst.msk [vmem:[#allocation3 + $0x28] sm:$0x3] %vm4236, 0.0
      %4241 = vst.msk [vmem:[#allocation3 + $0x30] sm:$0xff] %vm415, 0.0
      %4242 = vst.msk [vmem:[#allocation3 + $0x38] sm:$0xff] %vm415, 0.0
      %4243 = vst.msk [vmem:[#allocation3 + $0x40] sm:$0x3] %vm4236, 0.0
      %4244 = vst.msk [vmem:[#allocation3 + $0x48] sm:$0xff] %vm415, 0.0
      %4245 = vst.msk [vmem:[#allocation3 + $0x50] sm:$0xff] %vm415, 0.0
      %4246 = vst.msk [vmem:[#allocation3 + $0x58] sm:$0x3] %vm4236, 0.0
      %4247 = vst.msk [vmem:[#allocation3 + $0x60] sm:$0xff] %vm415, 0.0
      %4248 = vst.msk [vmem:[#allocation3 + $0x68] sm:$0xff] %vm415, 0.0
      %4249 = vst.msk [vmem:[#allocation3 + $0x70] sm:$0x3] %vm4236, 0.0
      %4250 = vst.msk [vmem:[#allocation3 + $0x78] sm:$0xff] %vm415, 0.0
      %4251 = vst.msk [vmem:[#allocation3 + $0x80] sm:$0xff] %vm415, 0.0
      %4252 = vst.msk [vmem:[#allocation3 + $0x88] sm:$0x3] %vm4236, 0.0
      %4253 = vst.msk [vmem:[#allocation3 + $0x90] sm:$0xff] %vm415, 0.0
      %4254 = vst.msk [vmem:[#allocation3 + $0x98] sm:$0xff] %vm415, 0.0
      %4255 = vst.msk [vmem:[#allocation3 + $0xa0] sm:$0x3] %vm4236, 0.0
      %4256 = vst.msk [vmem:[#allocation3 + $0xa8] sm:$0xff] %vm415, 0.0
      %4257 = vst.msk [vmem:[#allocation3 + $0xb0] sm:$0xff] %vm415, 0.0
      %4258 = vst.msk [vmem:[#allocation3 + $0xb8] sm:$0x3] %vm4236, 0.0
      %4259 = vst.msk [vmem:[#allocation3 + $0xc0] sm:$0xff] %vm415, 0.0
      %4260 = vst.msk [vmem:[#allocation3 + $0xc8] sm:$0xff] %vm415, 0.0
      %4261 = vst.msk [vmem:[#allocation3 + $0xd0] sm:$0x3] %vm4236, 0.0
      %4262 = vst.msk [vmem:[#allocation3 + $0xd8] sm:$0xff] %vm415, 0.0
      %4263 = vst.msk [vmem:[#allocation3 + $0xe0] sm:$0xff] %vm415, 0.0
      %4264 = vst.msk [vmem:[#allocation3 + $0xe8] sm:$0x3] %vm4236, 0.0
      %4265 = vst.msk [vmem:[#allocation3 + $0xf0] sm:$0xff] %vm415, 0.0
      %4266 = vst.msk [vmem:[#allocation3 + $0xf8] sm:$0xff] %vm415, 0.0
      %4267 = vst.msk [vmem:[#allocation3 + $0x100] sm:$0x3] %vm4236, 0.0
      %4268 = vst.msk [vmem:[#allocation3 + $0x108] sm:$0xff] %vm415, 0.0
      %4269 = vst.msk [vmem:[#allocation3 + $0x110] sm:$0xff] %vm415, 0.0
      %4270 = vst.msk [vmem:[#allocation3 + $0x118] sm:$0x3] %vm4236, 0.0
      %4271 = vst.msk [vmem:[#allocation3 + $0x120] sm:$0xff] %vm415, 0.0
      %4272 = vst.msk [vmem:[#allocation3 + $0x128] sm:$0xff] %vm415, 0.0
      %4273 = vst.msk [vmem:[#allocation3 + $0x130] sm:$0x3] %vm4236, 0.0
      %4274 = vst.msk [vmem:[#allocation3 + $0x138] sm:$0xff] %vm415, 0.0
      %4275 = vst.msk [vmem:[#allocation3 + $0x140] sm:$0xff] %vm415, 0.0
      %4276 = vst.msk [vmem:[#allocation3 + $0x148] sm:$0x3] %vm4236, 0.0
      %4277 = vst.msk [vmem:[#allocation3 + $0x150] sm:$0xff] %vm415, 0.0
      %4278 = vst.msk [vmem:[#allocation3 + $0x158] sm:$0xff] %vm415, 0.0
      %4279 = vst.msk [vmem:[#allocation3 + $0x160] sm:$0x3] %vm4236, 0.0
      %4280 = vst.msk [vmem:[#allocation3 + $0x168] sm:$0xff] %vm415, 0.0
      %4281 = vst.msk [vmem:[#allocation3 + $0x170] sm:$0xff] %vm415, 0.0
      %4282 = vst.msk [vmem:[#allocation3 + $0x178] sm:$0x3] %vm4236, 0.0
      %4283 = vst.msk [vmem:[#allocation3 + $0x180] sm:$0xff] %vm415, 0.0
      %4284 = vst.msk [vmem:[#allocation3 + $0x188] sm:$0xff] %vm415, 0.0
      %4285 = vst.msk [vmem:[#allocation3 + $0x190] sm:$0x3] %vm4236, 0.0
      %4286 = vst.msk [vmem:[#allocation3 + $0x198] sm:$0xff] %vm415, 0.0
      %4287 = vst.msk [vmem:[#allocation3 + $0x1a0] sm:$0xff] %vm415, 0.0
      %4288 = vst.msk [vmem:[#allocation3 + $0x1a8] sm:$0x3] %vm4236, 0.0
      %s4289 = scalar_lea.vmem [#allocation3], 24
      %4290 = vst.msk [vmem:[%s4289 + $0x1] sm:$0xff] %vm415, %v4202
      %4291 = vst.msk [vmem:[%s4289 + $0x9] sm:$0xff] %vm415, %v4203
      %4292 = vst.msk [vmem:[%s4289 + $0x19] sm:$0xff] %vm415, %v4204
      %4293 = vst.msk [vmem:[%s4289 + $0x21] sm:$0xff] %vm415, %v4205
      %4294 = vst.msk [vmem:[%s4289 + $0x31] sm:$0xff] %vm415, %v4206
      %4295 = vst.msk [vmem:[%s4289 + $0x39] sm:$0xff] %vm415, %v4207
      %4296 = vst.msk [vmem:[%s4289 + $0x49] sm:$0xff] %vm415, %v4208
      %4297 = vst.msk [vmem:[%s4289 + $0x51] sm:$0xff] %vm415, %v4209
      %4298 = vst.msk [vmem:[%s4289 + $0x61] sm:$0xff] %vm415, %v4210
      %4299 = vst.msk [vmem:[%s4289 + $0x69] sm:$0xff] %vm415, %v4211
      %4300 = vst.msk [vmem:[%s4289 + $0x79] sm:$0xff] %vm415, %v4212
      %4301 = vst.msk [vmem:[%s4289 + $0x81] sm:$0xff] %vm415, %v4213
      %4302 = vst.msk [vmem:[%s4289 + $0x91] sm:$0xff] %vm415, %v4214
      %4303 = vst.msk [vmem:[%s4289 + $0x99] sm:$0xff] %vm415, %v4215
      %4304 = vst.msk [vmem:[%s4289 + $0xa9] sm:$0xff] %vm415, %v4216
      %4305 = vst.msk [vmem:[%s4289 + $0xb1] sm:$0xff] %vm415, %v4217
      %4306 = vst.msk [vmem:[%s4289 + $0xc1] sm:$0xff] %vm415, %v4218
      %4307 = vst.msk [vmem:[%s4289 + $0xc9] sm:$0xff] %vm415, %v4219
      %4308 = vst.msk [vmem:[%s4289 + $0xd9] sm:$0xff] %vm415, %v4220
      %4309 = vst.msk [vmem:[%s4289 + $0xe1] sm:$0xff] %vm415, %v4221
      %4310 = vst.msk [vmem:[%s4289 + $0xf1] sm:$0xff] %vm415, %v4222
      %4311 = vst.msk [vmem:[%s4289 + $0xf9] sm:$0xff] %vm415, %v4223
      %4312 = vst.msk [vmem:[%s4289 + $0x109] sm:$0xff] %vm415, %v4224
      %4313 = vst.msk [vmem:[%s4289 + $0x111] sm:$0xff] %vm415, %v4225
      %4314 = vst.msk [vmem:[%s4289 + $0x121] sm:$0xff] %vm415, %v4226
      %4315 = vst.msk [vmem:[%s4289 + $0x129] sm:$0xff] %vm415, %v4227
      %4316 = vst.msk [vmem:[%s4289 + $0x139] sm:$0xff] %vm415, %v4228
      %4317 = vst.msk [vmem:[%s4289 + $0x141] sm:$0xff] %vm415, %v4229
      %4318 = vst.msk [vmem:[%s4289 + $0x151] sm:$0xff] %vm415, %v4230
      %4319 = vst.msk [vmem:[%s4289 + $0x159] sm:$0xff] %vm415, %v4231
      %4320 = vst.msk [vmem:[%s4289 + $0x169] sm:$0xff] %vm415, %v4232
      %4321 = vst.msk [vmem:[%s4289 + $0x171] sm:$0xff] %vm415, %v4233
      %v4322 = vld [vmem:[#allocation3] sm:$0xff]
      %v4323 = vld [vmem:[#allocation3 + $0x8] sm:$0xff]
      %v4324 = vld [vmem:[#allocation3 + $0x18] sm:$0xff]
      %v4325 = vld [vmem:[#allocation3 + $0x20] sm:$0xff]
      %v4326 = vld [vmem:[#allocation3 + $0x30] sm:$0xff]
      %v4327 = vld [vmem:[#allocation3 + $0x38] sm:$0xff]
      %v4328 = vld [vmem:[#allocation3 + $0x48] sm:$0xff]
      %v4329 = vld [vmem:[#allocation3 + $0x50] sm:$0xff]
      %v4330 = vld [vmem:[#allocation3 + $0x60] sm:$0xff]
      %v4331 = vld [vmem:[#allocation3 + $0x68] sm:$0xff]
      %v4332 = vld [vmem:[#allocation3 + $0x78] sm:$0xff]
      %v4333 = vld [vmem:[#allocation3 + $0x80] sm:$0xff]
      %v4334 = vld [vmem:[#allocation3 + $0x90] sm:$0xff]
      %v4335 = vld [vmem:[#allocation3 + $0x98] sm:$0xff]
      %v4336 = vld [vmem:[#allocation3 + $0xa8] sm:$0xff]
      %v4337 = vld [vmem:[#allocation3 + $0xb0] sm:$0xff]
      %v4338 = vld [vmem:[#allocation3 + $0xc0] sm:$0xff]
      %v4339 = vld [vmem:[#allocation3 + $0xc8] sm:$0xff]
      %v4340 = vld [vmem:[#allocation3 + $0xd8] sm:$0xff]
      %v4341 = vld [vmem:[#allocation3 + $0xe0] sm:$0xff]
      %v4342 = vld [vmem:[#allocation3 + $0xf0] sm:$0xff]
      %v4343 = vld [vmem:[#allocation3 + $0xf8] sm:$0xff]
      %v4344 = vld [vmem:[#allocation3 + $0x108] sm:$0xff]
      %v4345 = vld [vmem:[#allocation3 + $0x110] sm:$0xff]
      %v4346 = vld [vmem:[#allocation3 + $0x120] sm:$0xff]
      %v4347 = vld [vmem:[#allocation3 + $0x128] sm:$0xff]
      %v4348 = vld [vmem:[#allocation3 + $0x138] sm:$0xff]
      %v4349 = vld [vmem:[#allocation3 + $0x140] sm:$0xff]
      %v4350 = vld [vmem:[#allocation3 + $0x150] sm:$0xff]
      %v4351 = vld [vmem:[#allocation3 + $0x158] sm:$0xff]
      %v4352 = vld [vmem:[#allocation3 + $0x168] sm:$0xff]
      %v4353 = vld [vmem:[#allocation3 + $0x170] sm:$0xff]
      %v4354 = vld [vmem:[%s5] sm:$0xf]
      %v4355 = vld [vmem:[#allocation3 + $0x1] sm:$0xff]
      %v4356 = vld [vmem:[#allocation3 + $0x9] sm:$0xff]
      %v4357 = vld [vmem:[#allocation3 + $0x19] sm:$0xff]
      %v4358 = vld [vmem:[#allocation3 + $0x21] sm:$0xff]
      %v4359 = vld [vmem:[#allocation3 + $0x31] sm:$0xff]
      %v4360 = vld [vmem:[#allocation3 + $0x39] sm:$0xff]
      %v4361 = vld [vmem:[#allocation3 + $0x49] sm:$0xff]
      %v4362 = vld [vmem:[#allocation3 + $0x51] sm:$0xff]
      %v4363 = vld [vmem:[#allocation3 + $0x61] sm:$0xff]
      %v4364 = vld [vmem:[#allocation3 + $0x69] sm:$0xff]
      %v4365 = vld [vmem:[#allocation3 + $0x79] sm:$0xff]
      %v4366 = vld [vmem:[#allocation3 + $0x81] sm:$0xff]
      %v4367 = vld [vmem:[#allocation3 + $0x91] sm:$0xff]
      %v4368 = vld [vmem:[#allocation3 + $0x99] sm:$0xff]
      %v4369 = vld [vmem:[#allocation3 + $0xa9] sm:$0xff]
      %v4370 = vld [vmem:[#allocation3 + $0xb1] sm:$0xff]
      %v4371 = vld [vmem:[#allocation3 + $0xc1] sm:$0xff]
      %v4372 = vld [vmem:[#allocation3 + $0xc9] sm:$0xff]
      %v4373 = vld [vmem:[#allocation3 + $0xd9] sm:$0xff]
      %v4374 = vld [vmem:[#allocation3 + $0xe1] sm:$0xff]
      %v4375 = vld [vmem:[#allocation3 + $0xf1] sm:$0xff]
      %v4376 = vld [vmem:[#allocation3 + $0xf9] sm:$0xff]
      %v4377 = vld [vmem:[#allocation3 + $0x109] sm:$0xff]
      %v4378 = vld [vmem:[#allocation3 + $0x111] sm:$0xff]
      %v4379 = vld [vmem:[#allocation3 + $0x121] sm:$0xff]
      %v4380 = vld [vmem:[#allocation3 + $0x129] sm:$0xff]
      %v4381 = vld [vmem:[#allocation3 + $0x139] sm:$0xff]
      %v4382 = vld [vmem:[#allocation3 + $0x141] sm:$0xff]
      %v4383 = vld [vmem:[#allocation3 + $0x151] sm:$0xff]
      %v4384 = vld [vmem:[#allocation3 + $0x159] sm:$0xff]
      %v4385 = vld [vmem:[#allocation3 + $0x169] sm:$0xff]
      %v4386 = vld [vmem:[#allocation3 + $0x171] sm:$0xff]
      %s4387 = scalar_lea.vmem %s5, 4
      %v4388 = vld [vmem:[%s4387] sm:$0xf]
      %v4390 = vsel %vm415, %v4355, 0
      %v4393 = vsel %vm415, %v4356, 0
      %v4396 = vsel %vm415, %v4357, 0
      %v4399 = vsel %vm415, %v4358, 0
      %v4402 = vsel %vm415, %v4359, 0
      %v4405 = vsel %vm415, %v4360, 0
      %v4408 = vsel %vm415, %v4361, 0
      %v4411 = vsel %vm415, %v4362, 0
      %v4414 = vsel %vm415, %v4363, 0
      %v4417 = vsel %vm415, %v4364, 0
      %v4420 = vsel %vm415, %v4365, 0
      %v4423 = vsel %vm415, %v4366, 0
      %v4426 = vsel %vm415, %v4367, 0
      %v4429 = vsel %vm415, %v4368, 0
      %v4432 = vsel %vm415, %v4369, 0
      %v4435 = vsel %vm415, %v4370, 0
      %v4438 = vsel %vm415, %v4371, 0
      %v4441 = vsel %vm415, %v4372, 0
      %v4444 = vsel %vm415, %v4373, 0
      %v4447 = vsel %vm415, %v4374, 0
      %v4450 = vsel %vm415, %v4375, 0
      %v4453 = vsel %vm415, %v4376, 0
      %v4456 = vsel %vm415, %v4377, 0
      %v4459 = vsel %vm415, %v4378, 0
      %v4462 = vsel %vm415, %v4379, 0
      %v4465 = vsel %vm415, %v4380, 0
      %v4468 = vsel %vm415, %v4381, 0
      %v4471 = vsel %vm415, %v4382, 0
      %v4474 = vsel %vm415, %v4383, 0
      %v4477 = vsel %vm415, %v4384, 0
      %v4480 = vsel %vm415, %v4385, 0
      %v4483 = vsel %vm415, %v4386, 0
      %vm4485 = vcmask 1043456
      %v4487 = vsel %vm4485, %v4388, 0
      %4489 = vmatprep.subr.mxu0 0.0
      %4490 = vmatpush1.msra.mxu0 0.0
      %4491 = vmatprep.subr.mxu0 0.0
      %4492 = vmatpush1.msra.mxu0 0.0
      %4493 = vmatprep.subr.mxu0 0.0
      %4494 = vmatpush1.msra.mxu0 0.0
      %4495 = vmatprep.subr.mxu0 0.0
      %4496 = vmatpush1.msra.mxu0 0.0
      %4497 = vmatprep.subr.mxu0 0.0
      %4498 = vmatpush1.msra.mxu0 0.0
      %4499 = vmatprep.subr.mxu0 0.0
      %4500 = vmatpush1.msra.mxu0 0.0
      %4501 = vmatprep.subr.mxu0 0.0
      %4502 = vmatpush1.msra.mxu0 0.0
      %4503 = vmatprep.subr.mxu0 0.0
      %4504 = vmatpush1.msra.mxu0 0.0
      %4505 = vmatprep.subr.mxu0 0.0
      %4506 = vmatpush1.msra.mxu0 0.0
      %4507 = vmatprep.subr.mxu0 0.0
      %4508 = vmatpush1.msra.mxu0 0.0
      %4509 = vmatprep.subr.mxu0 0.0
      %4510 = vmatpush1.msra.mxu0 0.0
      %4511 = vmatprep.subr.mxu0 0.0
      %4512 = vmatpush1.msra.mxu0 0.0
      %4513 = vmatprep.subr.mxu0 0.0
      %4514 = vmatpush1.msra.mxu0 0.0
      %4515 = vmatprep.subr.mxu0 0.0
      %4516 = vmatpush1.msra.mxu0 0.0
      %4517 = vmatprep.subr.mxu0 0.0
      %4518 = vmatpush1.msra.mxu0 0.0
      %4519 = vmatprep.subr.mxu0 0.0
      %4520 = vmatpush1.msra.mxu0 %v4487
      %4521 = vmatprep.subr.mxu0 0.0
      %4522 = vmatpush2.msra.mxu0 0.0
      %4523 = vmatprep.subr.mxu0 0.0
      %4524 = vmatpush2.msra.mxu0 0.0
      %4525 = vmatprep.subr.mxu0 0.0
      %4526 = vmatpush2.msra.mxu0 0.0
      %4527 = vmatprep.subr.mxu0 0.0
      %4528 = vmatpush2.msra.mxu0 0.0
      %4529 = vmatprep.subr.mxu0 0.0
      %4530 = vmatpush2.msra.mxu0 0.0
      %4531 = vmatprep.subr.mxu0 0.0
      %4532 = vmatpush2.msra.mxu0 0.0
      %4533 = vmatprep.subr.mxu0 0.0
      %4534 = vmatpush2.msra.mxu0 0.0
      %4535 = vmatprep.subr.mxu0 0.0
      %4536 = vmatpush2.msra.mxu0 0.0
      %4537 = vmatprep.subr.mxu0 0.0
      %4538 = vmatpush2.msra.mxu0 0.0
      %4539 = vmatprep.subr.mxu0 0.0
      %4540 = vmatpush2.msra.mxu0 0.0
      %4541 = vmatprep.subr.mxu0 0.0
      %4542 = vmatpush2.msra.mxu0 0.0
      %4543 = vmatprep.subr.mxu0 0.0
      %4544 = vmatpush2.msra.mxu0 0.0
      %4545 = vmatprep.subr.mxu0 0.0
      %4546 = vmatpush2.msra.mxu0 0.0
      %4547 = vmatprep.subr.mxu0 0.0
      %4548 = vmatpush2.msra.mxu0 0.0
      %4549 = vmatprep.subr.mxu0 0.0
      %4550 = vmatpush2.msra.mxu0 0.0
      %4551 = vmatprep.subr.mxu0 0.0
      %4552 = vmatpush2.msra.mxu0 0.0
      %4553 = vmatprep.mubr.f32.mxu0 0.0
      %4554 = vmatmul.mubr.f32.gmra.mxu0 %v4390
      %v4555 = vpop.f32.mrf.mxu0
      %v4556 = vadd.f32 0.0, %v4555
      %v4557 = vpop.f32.mrf.mxu0
      %4558 = vmatprep.mubr.f32.mxu0 0.0
      %4559 = vmatmul.mubr.f32.gmra.mxu0 %v4393
      %v4560 = vpop.f32.mrf.mxu0
      %v4561 = vadd.f32 0.0, %v4560
      %v4562 = vpop.f32.mrf.mxu0
      %4563 = vmatprep.mubr.f32.mxu0 0.0
      %4564 = vmatmul.mubr.f32.gmra.mxu0 %v4396
      %v4565 = vpop.f32.mrf.mxu0
      %v4566 = vadd.f32 0.0, %v4565
      %v4567 = vpop.f32.mrf.mxu0
      %4568 = vmatprep.mubr.f32.mxu0 0.0
      %4569 = vmatmul.mubr.f32.gmra.mxu0 %v4399
      %v4570 = vpop.f32.mrf.mxu0
      %v4571 = vadd.f32 0.0, %v4570
      %v4572 = vpop.f32.mrf.mxu0
      %4573 = vmatprep.mubr.f32.mxu0 0.0
      %4574 = vmatmul.mubr.f32.gmra.mxu0 %v4402
      %v4575 = vpop.f32.mrf.mxu0
      %v4576 = vadd.f32 0.0, %v4575
      %v4577 = vpop.f32.mrf.mxu0
      %4578 = vmatprep.mubr.f32.mxu0 0.0
      %4579 = vmatmul.mubr.f32.gmra.mxu0 %v4405
      %v4580 = vpop.f32.mrf.mxu0
      %v4581 = vadd.f32 0.0, %v4580
      %v4582 = vpop.f32.mrf.mxu0
      %4583 = vmatprep.mubr.f32.mxu0 0.0
      %4584 = vmatmul.mubr.f32.gmra.mxu0 %v4408
      %v4585 = vpop.f32.mrf.mxu0
      %v4586 = vadd.f32 0.0, %v4585
      %v4587 = vpop.f32.mrf.mxu0
      %4588 = vmatprep.mubr.f32.mxu0 0.0
      %4589 = vmatmul.mubr.f32.gmra.mxu0 %v4411
      %v4590 = vpop.f32.mrf.mxu0
      %v4591 = vadd.f32 0.0, %v4590
      %v4592 = vpop.f32.mrf.mxu0
      %4593 = vmatprep.mubr.f32.mxu0 0.0
      %4594 = vmatmul.mubr.f32.gmra.mxu0 %v4414
      %v4595 = vpop.f32.mrf.mxu0
      %v4596 = vadd.f32 0.0, %v4595
      %v4597 = vpop.f32.mrf.mxu0
      %4598 = vmatprep.mubr.f32.mxu0 0.0
      %4599 = vmatmul.mubr.f32.gmra.mxu0 %v4417
      %v4600 = vpop.f32.mrf.mxu0
      %v4601 = vadd.f32 0.0, %v4600
      %v4602 = vpop.f32.mrf.mxu0
      %4603 = vmatprep.mubr.f32.mxu0 0.0
      %4604 = vmatmul.mubr.f32.gmra.mxu0 %v4420
      %v4605 = vpop.f32.mrf.mxu0
      %v4606 = vadd.f32 0.0, %v4605
      %v4607 = vpop.f32.mrf.mxu0
      %4608 = vmatprep.mubr.f32.mxu0 0.0
      %4609 = vmatmul.mubr.f32.gmra.mxu0 %v4423
      %v4610 = vpop.f32.mrf.mxu0
      %v4611 = vadd.f32 0.0, %v4610
      %v4612 = vpop.f32.mrf.mxu0
      %4613 = vmatprep.mubr.f32.mxu0 0.0
      %4614 = vmatmul.mubr.f32.gmra.mxu0 %v4426
      %v4615 = vpop.f32.mrf.mxu0
      %v4616 = vadd.f32 0.0, %v4615
      %v4617 = vpop.f32.mrf.mxu0
      %4618 = vmatprep.mubr.f32.mxu0 0.0
      %4619 = vmatmul.mubr.f32.gmra.mxu0 %v4429
      %v4620 = vpop.f32.mrf.mxu0
      %v4621 = vadd.f32 0.0, %v4620
      %v4622 = vpop.f32.mrf.mxu0
      %4623 = vmatprep.mubr.f32.mxu0 0.0
      %4624 = vmatmul.mubr.f32.gmra.mxu0 %v4432
      %v4625 = vpop.f32.mrf.mxu0
      %v4626 = vadd.f32 0.0, %v4625
      %v4627 = vpop.f32.mrf.mxu0
      %4628 = vmatprep.mubr.f32.mxu0 0.0
      %4629 = vmatmul.mubr.f32.gmra.mxu0 %v4435
      %v4630 = vpop.f32.mrf.mxu0
      %v4631 = vadd.f32 0.0, %v4630
      %v4632 = vpop.f32.mrf.mxu0
      %4633 = vmatprep.mubr.f32.mxu0 0.0
      %4634 = vmatmul.mubr.f32.gmra.mxu0 %v4438
      %v4635 = vpop.f32.mrf.mxu0
      %v4636 = vadd.f32 0.0, %v4635
      %v4637 = vpop.f32.mrf.mxu0
      %4638 = vmatprep.mubr.f32.mxu0 0.0
      %4639 = vmatmul.mubr.f32.gmra.mxu0 %v4441
      %v4640 = vpop.f32.mrf.mxu0
      %v4641 = vadd.f32 0.0, %v4640
      %v4642 = vpop.f32.mrf.mxu0
      %4643 = vmatprep.mubr.f32.mxu0 0.0
      %4644 = vmatmul.mubr.f32.gmra.mxu0 %v4444
      %v4645 = vpop.f32.mrf.mxu0
      %v4646 = vadd.f32 0.0, %v4645
      %v4647 = vpop.f32.mrf.mxu0
      %4648 = vmatprep.mubr.f32.mxu0 0.0
      %4649 = vmatmul.mubr.f32.gmra.mxu0 %v4447
      %v4650 = vpop.f32.mrf.mxu0
      %v4651 = vadd.f32 0.0, %v4650
      %v4652 = vpop.f32.mrf.mxu0
      %4653 = vmatprep.mubr.f32.mxu0 0.0
      %4654 = vmatmul.mubr.f32.gmra.mxu0 %v4450
      %v4655 = vpop.f32.mrf.mxu0
      %v4656 = vadd.f32 0.0, %v4655
      %v4657 = vpop.f32.mrf.mxu0
      %4658 = vmatprep.mubr.f32.mxu0 0.0
      %4659 = vmatmul.mubr.f32.gmra.mxu0 %v4453
      %v4660 = vpop.f32.mrf.mxu0
      %v4661 = vadd.f32 0.0, %v4660
      %v4662 = vpop.f32.mrf.mxu0
      %4663 = vmatprep.mubr.f32.mxu0 0.0
      %4664 = vmatmul.mubr.f32.gmra.mxu0 %v4456
      %v4665 = vpop.f32.mrf.mxu0
      %v4666 = vadd.f32 0.0, %v4665
      %v4667 = vpop.f32.mrf.mxu0
      %4668 = vmatprep.mubr.f32.mxu0 0.0
      %4669 = vmatmul.mubr.f32.gmra.mxu0 %v4459
      %v4670 = vpop.f32.mrf.mxu0
      %v4671 = vadd.f32 0.0, %v4670
      %v4672 = vpop.f32.mrf.mxu0
      %4673 = vmatprep.mubr.f32.mxu0 0.0
      %4674 = vmatmul.mubr.f32.gmra.mxu0 %v4462
      %v4675 = vpop.f32.mrf.mxu0
      %v4676 = vadd.f32 0.0, %v4675
      %v4677 = vpop.f32.mrf.mxu0
      %4678 = vmatprep.mubr.f32.mxu0 0.0
      %4679 = vmatmul.mubr.f32.gmra.mxu0 %v4465
      %v4680 = vpop.f32.mrf.mxu0
      %v4681 = vadd.f32 0.0, %v4680
      %v4682 = vpop.f32.mrf.mxu0
      %4683 = vmatprep.mubr.f32.mxu0 0.0
      %4684 = vmatmul.mubr.f32.gmra.mxu0 %v4468
      %v4685 = vpop.f32.mrf.mxu0
      %v4686 = vadd.f32 0.0, %v4685
      %v4687 = vpop.f32.mrf.mxu0
      %4688 = vmatprep.mubr.f32.mxu0 0.0
      %4689 = vmatmul.mubr.f32.gmra.mxu0 %v4471
      %v4690 = vpop.f32.mrf.mxu0
      %v4691 = vadd.f32 0.0, %v4690
      %v4692 = vpop.f32.mrf.mxu0
      %4693 = vmatprep.mubr.f32.mxu0 0.0
      %4694 = vmatmul.mubr.f32.gmra.mxu0 %v4474
      %v4695 = vpop.f32.mrf.mxu0
      %v4696 = vadd.f32 0.0, %v4695
      %v4697 = vpop.f32.mrf.mxu0
      %4698 = vmatprep.mubr.f32.mxu0 0.0
      %4699 = vmatmul.mubr.f32.gmra.mxu0 %v4477
      %v4700 = vpop.f32.mrf.mxu0
      %v4701 = vadd.f32 0.0, %v4700
      %v4702 = vpop.f32.mrf.mxu0
      %4703 = vmatprep.mubr.f32.mxu0 0.0
      %4704 = vmatmul.mubr.f32.gmra.mxu0 %v4480
      %v4705 = vpop.f32.mrf.mxu0
      %v4706 = vadd.f32 0.0, %v4705
      %v4707 = vpop.f32.mrf.mxu0
      %4708 = vmatprep.mubr.f32.mxu0 0.0
      %4709 = vmatmul.mubr.f32.gmra.mxu0 %v4483
      %v4710 = vpop.f32.mrf.mxu0
      %v4711 = vadd.f32 0.0, %v4710
      %v4712 = vpop.f32.mrf.mxu0
      %4713 = vdwg.mxu0
      %v4715 = vsel %vm415, %v4322, 0
      %v4718 = vsel %vm415, %v4323, 0
      %v4721 = vsel %vm415, %v4324, 0
      %v4724 = vsel %vm415, %v4325, 0
      %v4727 = vsel %vm415, %v4326, 0
      %v4730 = vsel %vm415, %v4327, 0
      %v4733 = vsel %vm415, %v4328, 0
      %v4736 = vsel %vm415, %v4329, 0
      %v4739 = vsel %vm415, %v4330, 0
      %v4742 = vsel %vm415, %v4331, 0
      %v4745 = vsel %vm415, %v4332, 0
      %v4748 = vsel %vm415, %v4333, 0
      %v4751 = vsel %vm415, %v4334, 0
      %v4754 = vsel %vm415, %v4335, 0
      %v4757 = vsel %vm415, %v4336, 0
      %v4760 = vsel %vm415, %v4337, 0
      %v4763 = vsel %vm415, %v4338, 0
      %v4766 = vsel %vm415, %v4339, 0
      %v4769 = vsel %vm415, %v4340, 0
      %v4772 = vsel %vm415, %v4341, 0
      %v4775 = vsel %vm415, %v4342, 0
      %v4778 = vsel %vm415, %v4343, 0
      %v4781 = vsel %vm415, %v4344, 0
      %v4784 = vsel %vm415, %v4345, 0
      %v4787 = vsel %vm415, %v4346, 0
      %v4790 = vsel %vm415, %v4347, 0
      %v4793 = vsel %vm415, %v4348, 0
      %v4796 = vsel %vm415, %v4349, 0
      %v4799 = vsel %vm415, %v4350, 0
      %v4802 = vsel %vm415, %v4351, 0
      %v4805 = vsel %vm415, %v4352, 0
      %v4808 = vsel %vm415, %v4353, 0
      %v4811 = vsel %vm4485, %v4354, 0
      %4813 = vmatprep.subr.mxu0 0.0
      %4814 = vmatpush1.msra.mxu0 0.0
      %4815 = vmatprep.subr.mxu0 0.0
      %4816 = vmatpush1.msra.mxu0 0.0
      %4817 = vmatprep.subr.mxu0 0.0
      %4818 = vmatpush1.msra.mxu0 0.0
      %4819 = vmatprep.subr.mxu0 0.0
      %4820 = vmatpush1.msra.mxu0 0.0
      %4821 = vmatprep.subr.mxu0 0.0
      %4822 = vmatpush1.msra.mxu0 0.0
      %4823 = vmatprep.subr.mxu0 0.0
      %4824 = vmatpush1.msra.mxu0 0.0
      %4825 = vmatprep.subr.mxu0 0.0
      %4826 = vmatpush1.msra.mxu0 0.0
      %4827 = vmatprep.subr.mxu0 0.0
      %4828 = vmatpush1.msra.mxu0 0.0
      %4829 = vmatprep.subr.mxu0 0.0
      %4830 = vmatpush1.msra.mxu0 0.0
      %4831 = vmatprep.subr.mxu0 0.0
      %4832 = vmatpush1.msra.mxu0 0.0
      %4833 = vmatprep.subr.mxu0 0.0
      %4834 = vmatpush1.msra.mxu0 0.0
      %4835 = vmatprep.subr.mxu0 0.0
      %4836 = vmatpush1.msra.mxu0 0.0
      %4837 = vmatprep.subr.mxu0 0.0
      %4838 = vmatpush1.msra.mxu0 0.0
      %4839 = vmatprep.subr.mxu0 0.0
      %4840 = vmatpush1.msra.mxu0 0.0
      %4841 = vmatprep.subr.mxu0 0.0
      %4842 = vmatpush1.msra.mxu0 0.0
      %4843 = vmatprep.subr.mxu0 0.0
      %4844 = vmatpush1.msra.mxu0 %v4811
      %4845 = vmatprep.subr.mxu0 0.0
      %4846 = vmatpush2.msra.mxu0 0.0
      %4847 = vmatprep.subr.mxu0 0.0
      %4848 = vmatpush2.msra.mxu0 0.0
      %4849 = vmatprep.subr.mxu0 0.0
      %4850 = vmatpush2.msra.mxu0 0.0
      %4851 = vmatprep.subr.mxu0 0.0
      %4852 = vmatpush2.msra.mxu0 0.0
      %4853 = vmatprep.subr.mxu0 0.0
      %4854 = vmatpush2.msra.mxu0 0.0
      %4855 = vmatprep.subr.mxu0 0.0
      %4856 = vmatpush2.msra.mxu0 0.0
      %4857 = vmatprep.subr.mxu0 0.0
      %4858 = vmatpush2.msra.mxu0 0.0
      %4859 = vmatprep.subr.mxu0 0.0
      %4860 = vmatpush2.msra.mxu0 0.0
      %4861 = vmatprep.subr.mxu0 0.0
      %4862 = vmatpush2.msra.mxu0 0.0
      %4863 = vmatprep.subr.mxu0 0.0
      %4864 = vmatpush2.msra.mxu0 0.0
      %4865 = vmatprep.subr.mxu0 0.0
      %4866 = vmatpush2.msra.mxu0 0.0
      %4867 = vmatprep.subr.mxu0 0.0
      %4868 = vmatpush2.msra.mxu0 0.0
      %4869 = vmatprep.subr.mxu0 0.0
      %4870 = vmatpush2.msra.mxu0 0.0
      %4871 = vmatprep.subr.mxu0 0.0
      %4872 = vmatpush2.msra.mxu0 0.0
      %4873 = vmatprep.subr.mxu0 0.0
      %4874 = vmatpush2.msra.mxu0 0.0
      %4875 = vmatprep.subr.mxu0 0.0
      %4876 = vmatpush2.msra.mxu0 0.0
      %4877 = vmatprep.mubr.f32.mxu0 0.0
      %4878 = vmatmul.mubr.f32.gmra.mxu0 %v4715
      %v4879 = vpop.f32.mrf.mxu0
      %v4880 = vadd.f32 %v4556, %v4879
      %v4881 = vpop.f32.mrf.mxu0
      %4882 = vmatprep.mubr.f32.mxu0 0.0
      %4883 = vmatmul.mubr.f32.gmra.mxu0 %v4718
      %v4884 = vpop.f32.mrf.mxu0
      %v4885 = vadd.f32 %v4561, %v4884
      %v4886 = vpop.f32.mrf.mxu0
      %4887 = vmatprep.mubr.f32.mxu0 0.0
      %4888 = vmatmul.mubr.f32.gmra.mxu0 %v4721
      %v4889 = vpop.f32.mrf.mxu0
      %v4890 = vadd.f32 %v4566, %v4889
      %v4891 = vpop.f32.mrf.mxu0
      %4892 = vmatprep.mubr.f32.mxu0 0.0
      %4893 = vmatmul.mubr.f32.gmra.mxu0 %v4724
      %v4894 = vpop.f32.mrf.mxu0
      %v4895 = vadd.f32 %v4571, %v4894
      %v4896 = vpop.f32.mrf.mxu0
      %4897 = vmatprep.mubr.f32.mxu0 0.0
      %4898 = vmatmul.mubr.f32.gmra.mxu0 %v4727
      %v4899 = vpop.f32.mrf.mxu0
      %v4900 = vadd.f32 %v4576, %v4899
      %v4901 = vpop.f32.mrf.mxu0
      %4902 = vmatprep.mubr.f32.mxu0 0.0
      %4903 = vmatmul.mubr.f32.gmra.mxu0 %v4730
      %v4904 = vpop.f32.mrf.mxu0
      %v4905 = vadd.f32 %v4581, %v4904
      %v4906 = vpop.f32.mrf.mxu0
      %4907 = vmatprep.mubr.f32.mxu0 0.0
      %4908 = vmatmul.mubr.f32.gmra.mxu0 %v4733
      %v4909 = vpop.f32.mrf.mxu0
      %v4910 = vadd.f32 %v4586, %v4909
      %v4911 = vpop.f32.mrf.mxu0
      %4912 = vmatprep.mubr.f32.mxu0 0.0
      %4913 = vmatmul.mubr.f32.gmra.mxu0 %v4736
      %v4914 = vpop.f32.mrf.mxu0
      %v4915 = vadd.f32 %v4591, %v4914
      %v4916 = vpop.f32.mrf.mxu0
      %4917 = vmatprep.mubr.f32.mxu0 0.0
      %4918 = vmatmul.mubr.f32.gmra.mxu0 %v4739
      %v4919 = vpop.f32.mrf.mxu0
      %v4920 = vadd.f32 %v4596, %v4919
      %v4921 = vpop.f32.mrf.mxu0
      %4922 = vmatprep.mubr.f32.mxu0 0.0
      %4923 = vmatmul.mubr.f32.gmra.mxu0 %v4742
      %v4924 = vpop.f32.mrf.mxu0
      %v4925 = vadd.f32 %v4601, %v4924
      %v4926 = vpop.f32.mrf.mxu0
      %4927 = vmatprep.mubr.f32.mxu0 0.0
      %4928 = vmatmul.mubr.f32.gmra.mxu0 %v4745
      %v4929 = vpop.f32.mrf.mxu0
      %v4930 = vadd.f32 %v4606, %v4929
      %v4931 = vpop.f32.mrf.mxu0
      %4932 = vmatprep.mubr.f32.mxu0 0.0
      %4933 = vmatmul.mubr.f32.gmra.mxu0 %v4748
      %v4934 = vpop.f32.mrf.mxu0
      %v4935 = vadd.f32 %v4611, %v4934
      %v4936 = vpop.f32.mrf.mxu0
      %4937 = vmatprep.mubr.f32.mxu0 0.0
      %4938 = vmatmul.mubr.f32.gmra.mxu0 %v4751
      %v4939 = vpop.f32.mrf.mxu0
      %v4940 = vadd.f32 %v4616, %v4939
      %v4941 = vpop.f32.mrf.mxu0
      %4942 = vmatprep.mubr.f32.mxu0 0.0
      %4943 = vmatmul.mubr.f32.gmra.mxu0 %v4754
      %v4944 = vpop.f32.mrf.mxu0
      %v4945 = vadd.f32 %v4621, %v4944
      %v4946 = vpop.f32.mrf.mxu0
      %4947 = vmatprep.mubr.f32.mxu0 0.0
      %4948 = vmatmul.mubr.f32.gmra.mxu0 %v4757
      %v4949 = vpop.f32.mrf.mxu0
      %v4950 = vadd.f32 %v4626, %v4949
      %v4951 = vpop.f32.mrf.mxu0
      %4952 = vmatprep.mubr.f32.mxu0 0.0
      %4953 = vmatmul.mubr.f32.gmra.mxu0 %v4760
      %v4954 = vpop.f32.mrf.mxu0
      %v4955 = vadd.f32 %v4631, %v4954
      %v4956 = vpop.f32.mrf.mxu0
      %4957 = vmatprep.mubr.f32.mxu0 0.0
      %4958 = vmatmul.mubr.f32.gmra.mxu0 %v4763
      %v4959 = vpop.f32.mrf.mxu0
      %v4960 = vadd.f32 %v4636, %v4959
      %v4961 = vpop.f32.mrf.mxu0
      %4962 = vmatprep.mubr.f32.mxu0 0.0
      %4963 = vmatmul.mubr.f32.gmra.mxu0 %v4766
      %v4964 = vpop.f32.mrf.mxu0
      %v4965 = vadd.f32 %v4641, %v4964
      %v4966 = vpop.f32.mrf.mxu0
      %4967 = vmatprep.mubr.f32.mxu0 0.0
      %4968 = vmatmul.mubr.f32.gmra.mxu0 %v4769
      %v4969 = vpop.f32.mrf.mxu0
      %v4970 = vadd.f32 %v4646, %v4969
      %v4971 = vpop.f32.mrf.mxu0
      %4972 = vmatprep.mubr.f32.mxu0 0.0
      %4973 = vmatmul.mubr.f32.gmra.mxu0 %v4772
      %v4974 = vpop.f32.mrf.mxu0
      %v4975 = vadd.f32 %v4651, %v4974
      %v4976 = vpop.f32.mrf.mxu0
      %4977 = vmatprep.mubr.f32.mxu0 0.0
      %4978 = vmatmul.mubr.f32.gmra.mxu0 %v4775
      %v4979 = vpop.f32.mrf.mxu0
      %v4980 = vadd.f32 %v4656, %v4979
      %v4981 = vpop.f32.mrf.mxu0
      %4982 = vmatprep.mubr.f32.mxu0 0.0
      %4983 = vmatmul.mubr.f32.gmra.mxu0 %v4778
      %v4984 = vpop.f32.mrf.mxu0
      %v4985 = vadd.f32 %v4661, %v4984
      %v4986 = vpop.f32.mrf.mxu0
      %4987 = vmatprep.mubr.f32.mxu0 0.0
      %4988 = vmatmul.mubr.f32.gmra.mxu0 %v4781
      %v4989 = vpop.f32.mrf.mxu0
      %v4990 = vadd.f32 %v4666, %v4989
      %v4991 = vpop.f32.mrf.mxu0
      %4992 = vmatprep.mubr.f32.mxu0 0.0
      %4993 = vmatmul.mubr.f32.gmra.mxu0 %v4784
      %v4994 = vpop.f32.mrf.mxu0
      %v4995 = vadd.f32 %v4671, %v4994
      %v4996 = vpop.f32.mrf.mxu0
      %4997 = vmatprep.mubr.f32.mxu0 0.0
      %4998 = vmatmul.mubr.f32.gmra.mxu0 %v4787
      %v4999 = vpop.f32.mrf.mxu0
      %v5000 = vadd.f32 %v4676, %v4999
      %v5001 = vpop.f32.mrf.mxu0
      %5002 = vmatprep.mubr.f32.mxu0 0.0
      %5003 = vmatmul.mubr.f32.gmra.mxu0 %v4790
      %v5004 = vpop.f32.mrf.mxu0
      %v5005 = vadd.f32 %v4681, %v5004
      %v5006 = vpop.f32.mrf.mxu0
      %5007 = vmatprep.mubr.f32.mxu0 0.0
      %5008 = vmatmul.mubr.f32.gmra.mxu0 %v4793
      %v5009 = vpop.f32.mrf.mxu0
      %v5010 = vadd.f32 %v4686, %v5009
      %v5011 = vpop.f32.mrf.mxu0
      %5012 = vmatprep.mubr.f32.mxu0 0.0
      %5013 = vmatmul.mubr.f32.gmra.mxu0 %v4796
      %v5014 = vpop.f32.mrf.mxu0
      %v5015 = vadd.f32 %v4691, %v5014
      %v5016 = vpop.f32.mrf.mxu0
      %5017 = vmatprep.mubr.f32.mxu0 0.0
      %5018 = vmatmul.mubr.f32.gmra.mxu0 %v4799
      %v5019 = vpop.f32.mrf.mxu0
      %v5020 = vadd.f32 %v4696, %v5019
      %v5021 = vpop.f32.mrf.mxu0
      %5022 = vmatprep.mubr.f32.mxu0 0.0
      %5023 = vmatmul.mubr.f32.gmra.mxu0 %v4802
      %v5024 = vpop.f32.mrf.mxu0
      %v5025 = vadd.f32 %v4701, %v5024
      %v5026 = vpop.f32.mrf.mxu0
      %5027 = vmatprep.mubr.f32.mxu0 0.0
      %5028 = vmatmul.mubr.f32.gmra.mxu0 %v4805
      %v5029 = vpop.f32.mrf.mxu0
      %v5030 = vadd.f32 %v4706, %v5029
      %v5031 = vpop.f32.mrf.mxu0
      %5032 = vmatprep.mubr.f32.mxu0 0.0
      %5033 = vmatmul.mubr.f32.gmra.mxu0 %v4808
      %v5034 = vpop.f32.mrf.mxu0
      %v5035 = vadd.f32 %v4711, %v5034
      %v5036 = vpop.f32.mrf.mxu0
      %5037 = vdwg.mxu0
      %v5038 = vld [vmem:[#allocation3 + $0x2] sm:$0xff]
      %v5039 = vld [vmem:[#allocation3 + $0xa] sm:$0xff]
      %v5040 = vld [vmem:[#allocation3 + $0x1a] sm:$0xff]
      %v5041 = vld [vmem:[#allocation3 + $0x22] sm:$0xff]
      %v5042 = vld [vmem:[#allocation3 + $0x32] sm:$0xff]
      %v5043 = vld [vmem:[#allocation3 + $0x3a] sm:$0xff]
      %v5044 = vld [vmem:[#allocation3 + $0x4a] sm:$0xff]
      %v5045 = vld [vmem:[#allocation3 + $0x52] sm:$0xff]
      %v5046 = vld [vmem:[#allocation3 + $0x62] sm:$0xff]
      %v5047 = vld [vmem:[#allocation3 + $0x6a] sm:$0xff]
      %v5048 = vld [vmem:[#allocation3 + $0x7a] sm:$0xff]
      %v5049 = vld [vmem:[#allocation3 + $0x82] sm:$0xff]
      %v5050 = vld [vmem:[#allocation3 + $0x92] sm:$0xff]
      %v5051 = vld [vmem:[#allocation3 + $0x9a] sm:$0xff]
      %v5052 = vld [vmem:[#allocation3 + $0xaa] sm:$0xff]
      %v5053 = vld [vmem:[#allocation3 + $0xb2] sm:$0xff]
      %v5054 = vld [vmem:[#allocation3 + $0xc2] sm:$0xff]
      %v5055 = vld [vmem:[#allocation3 + $0xca] sm:$0xff]
      %v5056 = vld [vmem:[#allocation3 + $0xda] sm:$0xff]
      %v5057 = vld [vmem:[#allocation3 + $0xe2] sm:$0xff]
      %v5058 = vld [vmem:[#allocation3 + $0xf2] sm:$0xff]
      %v5059 = vld [vmem:[#allocation3 + $0xfa] sm:$0xff]
      %v5060 = vld [vmem:[#allocation3 + $0x10a] sm:$0xff]
      %v5061 = vld [vmem:[#allocation3 + $0x112] sm:$0xff]
      %v5062 = vld [vmem:[#allocation3 + $0x122] sm:$0xff]
      %v5063 = vld [vmem:[#allocation3 + $0x12a] sm:$0xff]
      %v5064 = vld [vmem:[#allocation3 + $0x13a] sm:$0xff]
      %v5065 = vld [vmem:[#allocation3 + $0x142] sm:$0xff]
      %v5066 = vld [vmem:[#allocation3 + $0x152] sm:$0xff]
      %v5067 = vld [vmem:[#allocation3 + $0x15a] sm:$0xff]
      %v5068 = vld [vmem:[#allocation3 + $0x16a] sm:$0xff]
      %v5069 = vld [vmem:[#allocation3 + $0x172] sm:$0xff]
      %s5070 = scalar_lea.vmem %s5, 8
      %v5071 = vld [vmem:[%s5070] sm:$0xf]
      %v5073 = vsel %vm415, %v5038, 0
      %v5076 = vsel %vm415, %v5039, 0
      %v5079 = vsel %vm415, %v5040, 0
      %v5082 = vsel %vm415, %v5041, 0
      %v5085 = vsel %vm415, %v5042, 0
      %v5088 = vsel %vm415, %v5043, 0
      %v5091 = vsel %vm415, %v5044, 0
      %v5094 = vsel %vm415, %v5045, 0
      %v5097 = vsel %vm415, %v5046, 0
      %v5100 = vsel %vm415, %v5047, 0
      %v5103 = vsel %vm415, %v5048, 0
      %v5106 = vsel %vm415, %v5049, 0
      %v5109 = vsel %vm415, %v5050, 0
      %v5112 = vsel %vm415, %v5051, 0
      %v5115 = vsel %vm415, %v5052, 0
      %v5118 = vsel %vm415, %v5053, 0
      %v5121 = vsel %vm415, %v5054, 0
      %v5124 = vsel %vm415, %v5055, 0
      %v5127 = vsel %vm415, %v5056, 0
      %v5130 = vsel %vm415, %v5057, 0
      %v5133 = vsel %vm415, %v5058, 0
      %v5136 = vsel %vm415, %v5059, 0
      %v5139 = vsel %vm415, %v5060, 0
      %v5142 = vsel %vm415, %v5061, 0
      %v5145 = vsel %vm415, %v5062, 0
      %v5148 = vsel %vm415, %v5063, 0
      %v5151 = vsel %vm415, %v5064, 0
      %v5154 = vsel %vm415, %v5065, 0
      %v5157 = vsel %vm415, %v5066, 0
      %v5160 = vsel %vm415, %v5067, 0
      %v5163 = vsel %vm415, %v5068, 0
      %v5166 = vsel %vm415, %v5069, 0
      %v5169 = vsel %vm4485, %v5071, 0
      %5171 = vmatprep.subr.mxu0 0.0
      %5172 = vmatpush1.msra.mxu0 0.0
      %5173 = vmatprep.subr.mxu0 0.0
      %5174 = vmatpush1.msra.mxu0 0.0
      %5175 = vmatprep.subr.mxu0 0.0
      %5176 = vmatpush1.msra.mxu0 0.0
      %5177 = vmatprep.subr.mxu0 0.0
      %5178 = vmatpush1.msra.mxu0 0.0
      %5179 = vmatprep.subr.mxu0 0.0
      %5180 = vmatpush1.msra.mxu0 0.0
      %5181 = vmatprep.subr.mxu0 0.0
      %5182 = vmatpush1.msra.mxu0 0.0
      %5183 = vmatprep.subr.mxu0 0.0
      %5184 = vmatpush1.msra.mxu0 0.0
      %5185 = vmatprep.subr.mxu0 0.0
      %5186 = vmatpush1.msra.mxu0 0.0
      %5187 = vmatprep.subr.mxu0 0.0
      %5188 = vmatpush1.msra.mxu0 0.0
      %5189 = vmatprep.subr.mxu0 0.0
      %5190 = vmatpush1.msra.mxu0 0.0
      %5191 = vmatprep.subr.mxu0 0.0
      %5192 = vmatpush1.msra.mxu0 0.0
      %5193 = vmatprep.subr.mxu0 0.0
      %5194 = vmatpush1.msra.mxu0 0.0
      %5195 = vmatprep.subr.mxu0 0.0
      %5196 = vmatpush1.msra.mxu0 0.0
      %5197 = vmatprep.subr.mxu0 0.0
      %5198 = vmatpush1.msra.mxu0 0.0
      %5199 = vmatprep.subr.mxu0 0.0
      %5200 = vmatpush1.msra.mxu0 0.0
      %5201 = vmatprep.subr.mxu0 0.0
      %5202 = vmatpush1.msra.mxu0 %v5169
      %5203 = vmatprep.subr.mxu0 0.0
      %5204 = vmatpush2.msra.mxu0 0.0
      %5205 = vmatprep.subr.mxu0 0.0
      %5206 = vmatpush2.msra.mxu0 0.0
      %5207 = vmatprep.subr.mxu0 0.0
      %5208 = vmatpush2.msra.mxu0 0.0
      %5209 = vmatprep.subr.mxu0 0.0
      %5210 = vmatpush2.msra.mxu0 0.0
      %5211 = vmatprep.subr.mxu0 0.0
      %5212 = vmatpush2.msra.mxu0 0.0
      %5213 = vmatprep.subr.mxu0 0.0
      %5214 = vmatpush2.msra.mxu0 0.0
      %5215 = vmatprep.subr.mxu0 0.0
      %5216 = vmatpush2.msra.mxu0 0.0
      %5217 = vmatprep.subr.mxu0 0.0
      %5218 = vmatpush2.msra.mxu0 0.0
      %5219 = vmatprep.subr.mxu0 0.0
      %5220 = vmatpush2.msra.mxu0 0.0
      %5221 = vmatprep.subr.mxu0 0.0
      %5222 = vmatpush2.msra.mxu0 0.0
      %5223 = vmatprep.subr.mxu0 0.0
      %5224 = vmatpush2.msra.mxu0 0.0
      %5225 = vmatprep.subr.mxu0 0.0
      %5226 = vmatpush2.msra.mxu0 0.0
      %5227 = vmatprep.subr.mxu0 0.0
      %5228 = vmatpush2.msra.mxu0 0.0
      %5229 = vmatprep.subr.mxu0 0.0
      %5230 = vmatpush2.msra.mxu0 0.0
      %5231 = vmatprep.subr.mxu0 0.0
      %5232 = vmatpush2.msra.mxu0 0.0
      %5233 = vmatprep.subr.mxu0 0.0
      %5234 = vmatpush2.msra.mxu0 0.0
      %5235 = vmatprep.mubr.f32.mxu0 0.0
      %5236 = vmatmul.mubr.f32.gmra.mxu0 %v5073
      %v5237 = vpop.f32.mrf.mxu0
      %v5238 = vadd.f32 0.0, %v5237
      %v5239 = vpop.f32.mrf.mxu0
      %5240 = vmatprep.mubr.f32.mxu0 0.0
      %5241 = vmatmul.mubr.f32.gmra.mxu0 %v5076
      %v5242 = vpop.f32.mrf.mxu0
      %v5243 = vadd.f32 0.0, %v5242
      %v5244 = vpop.f32.mrf.mxu0
      %5245 = vmatprep.mubr.f32.mxu0 0.0
      %5246 = vmatmul.mubr.f32.gmra.mxu0 %v5079
      %v5247 = vpop.f32.mrf.mxu0
      %v5248 = vadd.f32 0.0, %v5247
      %v5249 = vpop.f32.mrf.mxu0
      %5250 = vmatprep.mubr.f32.mxu0 0.0
      %5251 = vmatmul.mubr.f32.gmra.mxu0 %v5082
      %v5252 = vpop.f32.mrf.mxu0
      %v5253 = vadd.f32 0.0, %v5252
      %v5254 = vpop.f32.mrf.mxu0
      %5255 = vmatprep.mubr.f32.mxu0 0.0
      %5256 = vmatmul.mubr.f32.gmra.mxu0 %v5085
      %v5257 = vpop.f32.mrf.mxu0
      %v5258 = vadd.f32 0.0, %v5257
      %v5259 = vpop.f32.mrf.mxu0
      %5260 = vmatprep.mubr.f32.mxu0 0.0
      %5261 = vmatmul.mubr.f32.gmra.mxu0 %v5088
      %v5262 = vpop.f32.mrf.mxu0
      %v5263 = vadd.f32 0.0, %v5262
      %v5264 = vpop.f32.mrf.mxu0
      %5265 = vmatprep.mubr.f32.mxu0 0.0
      %5266 = vmatmul.mubr.f32.gmra.mxu0 %v5091
      %v5267 = vpop.f32.mrf.mxu0
      %v5268 = vadd.f32 0.0, %v5267
      %v5269 = vpop.f32.mrf.mxu0
      %5270 = vmatprep.mubr.f32.mxu0 0.0
      %5271 = vmatmul.mubr.f32.gmra.mxu0 %v5094
      %v5272 = vpop.f32.mrf.mxu0
      %v5273 = vadd.f32 0.0, %v5272
      %v5274 = vpop.f32.mrf.mxu0
      %5275 = vmatprep.mubr.f32.mxu0 0.0
      %5276 = vmatmul.mubr.f32.gmra.mxu0 %v5097
      %v5277 = vpop.f32.mrf.mxu0
      %v5278 = vadd.f32 0.0, %v5277
      %v5279 = vpop.f32.mrf.mxu0
      %5280 = vmatprep.mubr.f32.mxu0 0.0
      %5281 = vmatmul.mubr.f32.gmra.mxu0 %v5100
      %v5282 = vpop.f32.mrf.mxu0
      %v5283 = vadd.f32 0.0, %v5282
      %v5284 = vpop.f32.mrf.mxu0
      %5285 = vmatprep.mubr.f32.mxu0 0.0
      %5286 = vmatmul.mubr.f32.gmra.mxu0 %v5103
      %v5287 = vpop.f32.mrf.mxu0
      %v5288 = vadd.f32 0.0, %v5287
      %v5289 = vpop.f32.mrf.mxu0
      %5290 = vmatprep.mubr.f32.mxu0 0.0
      %5291 = vmatmul.mubr.f32.gmra.mxu0 %v5106
      %v5292 = vpop.f32.mrf.mxu0
      %v5293 = vadd.f32 0.0, %v5292
      %v5294 = vpop.f32.mrf.mxu0
      %5295 = vmatprep.mubr.f32.mxu0 0.0
      %5296 = vmatmul.mubr.f32.gmra.mxu0 %v5109
      %v5297 = vpop.f32.mrf.mxu0
      %v5298 = vadd.f32 0.0, %v5297
      %v5299 = vpop.f32.mrf.mxu0
      %5300 = vmatprep.mubr.f32.mxu0 0.0
      %5301 = vmatmul.mubr.f32.gmra.mxu0 %v5112
      %v5302 = vpop.f32.mrf.mxu0
      %v5303 = vadd.f32 0.0, %v5302
      %v5304 = vpop.f32.mrf.mxu0
      %5305 = vmatprep.mubr.f32.mxu0 0.0
      %5306 = vmatmul.mubr.f32.gmra.mxu0 %v5115
      %v5307 = vpop.f32.mrf.mxu0
      %v5308 = vadd.f32 0.0, %v5307
      %v5309 = vpop.f32.mrf.mxu0
      %5310 = vmatprep.mubr.f32.mxu0 0.0
      %5311 = vmatmul.mubr.f32.gmra.mxu0 %v5118
      %v5312 = vpop.f32.mrf.mxu0
      %v5313 = vadd.f32 0.0, %v5312
      %v5314 = vpop.f32.mrf.mxu0
      %5315 = vmatprep.mubr.f32.mxu0 0.0
      %5316 = vmatmul.mubr.f32.gmra.mxu0 %v5121
      %v5317 = vpop.f32.mrf.mxu0
      %v5318 = vadd.f32 0.0, %v5317
      %v5319 = vpop.f32.mrf.mxu0
      %5320 = vmatprep.mubr.f32.mxu0 0.0
      %5321 = vmatmul.mubr.f32.gmra.mxu0 %v5124
      %v5322 = vpop.f32.mrf.mxu0
      %v5323 = vadd.f32 0.0, %v5322
      %v5324 = vpop.f32.mrf.mxu0
      %5325 = vmatprep.mubr.f32.mxu0 0.0
      %5326 = vmatmul.mubr.f32.gmra.mxu0 %v5127
      %v5327 = vpop.f32.mrf.mxu0
      %v5328 = vadd.f32 0.0, %v5327
      %v5329 = vpop.f32.mrf.mxu0
      %5330 = vmatprep.mubr.f32.mxu0 0.0
      %5331 = vmatmul.mubr.f32.gmra.mxu0 %v5130
      %v5332 = vpop.f32.mrf.mxu0
      %v5333 = vadd.f32 0.0, %v5332
      %v5334 = vpop.f32.mrf.mxu0
      %5335 = vmatprep.mubr.f32.mxu0 0.0
      %5336 = vmatmul.mubr.f32.gmra.mxu0 %v5133
      %v5337 = vpop.f32.mrf.mxu0
      %v5338 = vadd.f32 0.0, %v5337
      %v5339 = vpop.f32.mrf.mxu0
      %5340 = vmatprep.mubr.f32.mxu0 0.0
      %5341 = vmatmul.mubr.f32.gmra.mxu0 %v5136
      %v5342 = vpop.f32.mrf.mxu0
      %v5343 = vadd.f32 0.0, %v5342
      %v5344 = vpop.f32.mrf.mxu0
      %5345 = vmatprep.mubr.f32.mxu0 0.0
      %5346 = vmatmul.mubr.f32.gmra.mxu0 %v5139
      %v5347 = vpop.f32.mrf.mxu0
      %v5348 = vadd.f32 0.0, %v5347
      %v5349 = vpop.f32.mrf.mxu0
      %5350 = vmatprep.mubr.f32.mxu0 0.0
      %5351 = vmatmul.mubr.f32.gmra.mxu0 %v5142
      %v5352 = vpop.f32.mrf.mxu0
      %v5353 = vadd.f32 0.0, %v5352
      %v5354 = vpop.f32.mrf.mxu0
      %5355 = vmatprep.mubr.f32.mxu0 0.0
      %5356 = vmatmul.mubr.f32.gmra.mxu0 %v5145
      %v5357 = vpop.f32.mrf.mxu0
      %v5358 = vadd.f32 0.0, %v5357
      %v5359 = vpop.f32.mrf.mxu0
      %5360 = vmatprep.mubr.f32.mxu0 0.0
      %5361 = vmatmul.mubr.f32.gmra.mxu0 %v5148
      %v5362 = vpop.f32.mrf.mxu0
      %v5363 = vadd.f32 0.0, %v5362
      %v5364 = vpop.f32.mrf.mxu0
      %5365 = vmatprep.mubr.f32.mxu0 0.0
      %5366 = vmatmul.mubr.f32.gmra.mxu0 %v5151
      %v5367 = vpop.f32.mrf.mxu0
      %v5368 = vadd.f32 0.0, %v5367
      %v5369 = vpop.f32.mrf.mxu0
      %5370 = vmatprep.mubr.f32.mxu0 0.0
      %5371 = vmatmul.mubr.f32.gmra.mxu0 %v5154
      %v5372 = vpop.f32.mrf.mxu0
      %v5373 = vadd.f32 0.0, %v5372
      %v5374 = vpop.f32.mrf.mxu0
      %5375 = vmatprep.mubr.f32.mxu0 0.0
      %5376 = vmatmul.mubr.f32.gmra.mxu0 %v5157
      %v5377 = vpop.f32.mrf.mxu0
      %v5378 = vadd.f32 0.0, %v5377
      %v5379 = vpop.f32.mrf.mxu0
      %5380 = vmatprep.mubr.f32.mxu0 0.0
      %5381 = vmatmul.mubr.f32.gmra.mxu0 %v5160
      %v5382 = vpop.f32.mrf.mxu0
      %v5383 = vadd.f32 0.0, %v5382
      %v5384 = vpop.f32.mrf.mxu0
      %5385 = vmatprep.mubr.f32.mxu0 0.0
      %5386 = vmatmul.mubr.f32.gmra.mxu0 %v5163
      %v5387 = vpop.f32.mrf.mxu0
      %v5388 = vadd.f32 0.0, %v5387
      %v5389 = vpop.f32.mrf.mxu0
      %5390 = vmatprep.mubr.f32.mxu0 0.0
      %5391 = vmatmul.mubr.f32.gmra.mxu0 %v5166
      %v5392 = vpop.f32.mrf.mxu0
      %v5393 = vadd.f32 0.0, %v5392
      %v5394 = vpop.f32.mrf.mxu0
      %5395 = vdwg.mxu0
      %v5396 = vadd.f32 %v4880, %v5238
      %v5397 = vadd.f32 %v4885, %v5243
      %v5398 = vadd.f32 %v4890, %v5248
      %v5399 = vadd.f32 %v4895, %v5253
      %v5400 = vadd.f32 %v4900, %v5258
      %v5401 = vadd.f32 %v4905, %v5263
      %v5402 = vadd.f32 %v4910, %v5268
      %v5403 = vadd.f32 %v4915, %v5273
      %v5404 = vadd.f32 %v4920, %v5278
      %v5405 = vadd.f32 %v4925, %v5283
      %v5406 = vadd.f32 %v4930, %v5288
      %v5407 = vadd.f32 %v4935, %v5293
      %v5408 = vadd.f32 %v4940, %v5298
      %v5409 = vadd.f32 %v4945, %v5303
      %v5410 = vadd.f32 %v4950, %v5308
      %v5411 = vadd.f32 %v4955, %v5313
      %v5412 = vadd.f32 %v4960, %v5318
      %v5413 = vadd.f32 %v4965, %v5323
      %v5414 = vadd.f32 %v4970, %v5328
      %v5415 = vadd.f32 %v4975, %v5333
      %v5416 = vadd.f32 %v4980, %v5338
      %v5417 = vadd.f32 %v4985, %v5343
      %v5418 = vadd.f32 %v4990, %v5348
      %v5419 = vadd.f32 %v4995, %v5353
      %v5420 = vadd.f32 %v5000, %v5358
      %v5421 = vadd.f32 %v5005, %v5363
      %v5422 = vadd.f32 %v5010, %v5368
      %v5423 = vadd.f32 %v5015, %v5373
      %v5424 = vadd.f32 %v5020, %v5378
      %v5425 = vadd.f32 %v5025, %v5383
      %v5426 = vadd.f32 %v5030, %v5388
      %v5427 = vadd.f32 %v5035, %v5393
      %v5428 = vld [vmem:[%s4289] sm:$0xff]
      %v5429 = vld [vmem:[%s4289 + $0x8] sm:$0xff]
      %v5430 = vld [vmem:[%s4289 + $0x18] sm:$0xff]
      %v5431 = vld [vmem:[%s4289 + $0x20] sm:$0xff]
      %v5432 = vld [vmem:[%s4289 + $0x30] sm:$0xff]
      %v5433 = vld [vmem:[%s4289 + $0x38] sm:$0xff]
      %v5434 = vld [vmem:[%s4289 + $0x48] sm:$0xff]
      %v5435 = vld [vmem:[%s4289 + $0x50] sm:$0xff]
      %v5436 = vld [vmem:[%s4289 + $0x60] sm:$0xff]
      %v5437 = vld [vmem:[%s4289 + $0x68] sm:$0xff]
      %v5438 = vld [vmem:[%s4289 + $0x78] sm:$0xff]
      %v5439 = vld [vmem:[%s4289 + $0x80] sm:$0xff]
      %v5440 = vld [vmem:[%s4289 + $0x90] sm:$0xff]
      %v5441 = vld [vmem:[%s4289 + $0x98] sm:$0xff]
      %v5442 = vld [vmem:[%s4289 + $0xa8] sm:$0xff]
      %v5443 = vld [vmem:[%s4289 + $0xb0] sm:$0xff]
      %v5444 = vld [vmem:[%s4289 + $0xc0] sm:$0xff]
      %v5445 = vld [vmem:[%s4289 + $0xc8] sm:$0xff]
      %v5446 = vld [vmem:[%s4289 + $0xd8] sm:$0xff]
      %v5447 = vld [vmem:[%s4289 + $0xe0] sm:$0xff]
      %v5448 = vld [vmem:[%s4289 + $0xf0] sm:$0xff]
      %v5449 = vld [vmem:[%s4289 + $0xf8] sm:$0xff]
      %v5450 = vld [vmem:[%s4289 + $0x108] sm:$0xff]
      %v5451 = vld [vmem:[%s4289 + $0x110] sm:$0xff]
      %v5452 = vld [vmem:[%s4289 + $0x120] sm:$0xff]
      %v5453 = vld [vmem:[%s4289 + $0x128] sm:$0xff]
      %v5454 = vld [vmem:[%s4289 + $0x138] sm:$0xff]
      %v5455 = vld [vmem:[%s4289 + $0x140] sm:$0xff]
      %v5456 = vld [vmem:[%s4289 + $0x150] sm:$0xff]
      %v5457 = vld [vmem:[%s4289 + $0x158] sm:$0xff]
      %v5458 = vld [vmem:[%s4289 + $0x168] sm:$0xff]
      %v5459 = vld [vmem:[%s4289 + $0x170] sm:$0xff]
      %s5460 = scalar_lea.vmem %s5, 12
      %v5461 = vld [vmem:[%s5460] sm:$0xf]
      %v5463 = vsel %vm415, %v5428, 0
      %v5466 = vsel %vm415, %v5429, 0
      %v5469 = vsel %vm415, %v5430, 0
      %v5472 = vsel %vm415, %v5431, 0
      %v5475 = vsel %vm415, %v5432, 0
      %v5478 = vsel %vm415, %v5433, 0
      %v5481 = vsel %vm415, %v5434, 0
      %v5484 = vsel %vm415, %v5435, 0
      %v5487 = vsel %vm415, %v5436, 0
      %v5490 = vsel %vm415, %v5437, 0
      %v5493 = vsel %vm415, %v5438, 0
      %v5496 = vsel %vm415, %v5439, 0
      %v5499 = vsel %vm415, %v5440, 0
      %v5502 = vsel %vm415, %v5441, 0
      %v5505 = vsel %vm415, %v5442, 0
      %v5508 = vsel %vm415, %v5443, 0
      %v5511 = vsel %vm415, %v5444, 0
      %v5514 = vsel %vm415, %v5445, 0
      %v5517 = vsel %vm415, %v5446, 0
      %v5520 = vsel %vm415, %v5447, 0
      %v5523 = vsel %vm415, %v5448, 0
      %v5526 = vsel %vm415, %v5449, 0
      %v5529 = vsel %vm415, %v5450, 0
      %v5532 = vsel %vm415, %v5451, 0
      %v5535 = vsel %vm415, %v5452, 0
      %v5538 = vsel %vm415, %v5453, 0
      %v5541 = vsel %vm415, %v5454, 0
      %v5544 = vsel %vm415, %v5455, 0
      %v5547 = vsel %vm415, %v5456, 0
      %v5550 = vsel %vm415, %v5457, 0
      %v5553 = vsel %vm415, %v5458, 0
      %v5556 = vsel %vm415, %v5459, 0
      %v5559 = vsel %vm4485, %v5461, 0
      %5561 = vmatprep.subr.mxu0 0.0
      %5562 = vmatpush1.msra.mxu0 0.0
      %5563 = vmatprep.subr.mxu0 0.0
      %5564 = vmatpush1.msra.mxu0 0.0
      %5565 = vmatprep.subr.mxu0 0.0
      %5566 = vmatpush1.msra.mxu0 0.0
      %5567 = vmatprep.subr.mxu0 0.0
      %5568 = vmatpush1.msra.mxu0 0.0
      %5569 = vmatprep.subr.mxu0 0.0
      %5570 = vmatpush1.msra.mxu0 0.0
      %5571 = vmatprep.subr.mxu0 0.0
      %5572 = vmatpush1.msra.mxu0 0.0
      %5573 = vmatprep.subr.mxu0 0.0
      %5574 = vmatpush1.msra.mxu0 0.0
      %5575 = vmatprep.subr.mxu0 0.0
      %5576 = vmatpush1.msra.mxu0 0.0
      %5577 = vmatprep.subr.mxu0 0.0
      %5578 = vmatpush1.msra.mxu0 0.0
      %5579 = vmatprep.subr.mxu0 0.0
      %5580 = vmatpush1.msra.mxu0 0.0
      %5581 = vmatprep.subr.mxu0 0.0
      %5582 = vmatpush1.msra.mxu0 0.0
      %5583 = vmatprep.subr.mxu0 0.0
      %5584 = vmatpush1.msra.mxu0 0.0
      %5585 = vmatprep.subr.mxu0 0.0
      %5586 = vmatpush1.msra.mxu0 0.0
      %5587 = vmatprep.subr.mxu0 0.0
      %5588 = vmatpush1.msra.mxu0 0.0
      %5589 = vmatprep.subr.mxu0 0.0
      %5590 = vmatpush1.msra.mxu0 0.0
      %5591 = vmatprep.subr.mxu0 0.0
      %5592 = vmatpush1.msra.mxu0 %v5559
      %5593 = vmatprep.subr.mxu0 0.0
      %5594 = vmatpush2.msra.mxu0 0.0
      %5595 = vmatprep.subr.mxu0 0.0
      %5596 = vmatpush2.msra.mxu0 0.0
      %5597 = vmatprep.subr.mxu0 0.0
      %5598 = vmatpush2.msra.mxu0 0.0
      %5599 = vmatprep.subr.mxu0 0.0
      %5600 = vmatpush2.msra.mxu0 0.0
      %5601 = vmatprep.subr.mxu0 0.0
      %5602 = vmatpush2.msra.mxu0 0.0
      %5603 = vmatprep.subr.mxu0 0.0
      %5604 = vmatpush2.msra.mxu0 0.0
      %5605 = vmatprep.subr.mxu0 0.0
      %5606 = vmatpush2.msra.mxu0 0.0
      %5607 = vmatprep.subr.mxu0 0.0
      %5608 = vmatpush2.msra.mxu0 0.0
      %5609 = vmatprep.subr.mxu0 0.0
      %5610 = vmatpush2.msra.mxu0 0.0
      %5611 = vmatprep.subr.mxu0 0.0
      %5612 = vmatpush2.msra.mxu0 0.0
      %5613 = vmatprep.subr.mxu0 0.0
      %5614 = vmatpush2.msra.mxu0 0.0
      %5615 = vmatprep.subr.mxu0 0.0
      %5616 = vmatpush2.msra.mxu0 0.0
      %5617 = vmatprep.subr.mxu0 0.0
      %5618 = vmatpush2.msra.mxu0 0.0
      %5619 = vmatprep.subr.mxu0 0.0
      %5620 = vmatpush2.msra.mxu0 0.0
      %5621 = vmatprep.subr.mxu0 0.0
      %5622 = vmatpush2.msra.mxu0 0.0
      %5623 = vmatprep.subr.mxu0 0.0
      %5624 = vmatpush2.msra.mxu0 0.0
      %5625 = vmatprep.mubr.f32.mxu0 0.0
      %5626 = vmatmul.mubr.f32.gmra.mxu0 %v5463
      %v5627 = vpop.f32.mrf.mxu0
      %v5628 = vadd.f32 0.0, %v5627
      %v5629 = vpop.f32.mrf.mxu0
      %5630 = vmatprep.mubr.f32.mxu0 0.0
      %5631 = vmatmul.mubr.f32.gmra.mxu0 %v5466
      %v5632 = vpop.f32.mrf.mxu0
      %v5633 = vadd.f32 0.0, %v5632
      %v5634 = vpop.f32.mrf.mxu0
      %5635 = vmatprep.mubr.f32.mxu0 0.0
      %5636 = vmatmul.mubr.f32.gmra.mxu0 %v5469
      %v5637 = vpop.f32.mrf.mxu0
      %v5638 = vadd.f32 0.0, %v5637
      %v5639 = vpop.f32.mrf.mxu0
      %5640 = vmatprep.mubr.f32.mxu0 0.0
      %5641 = vmatmul.mubr.f32.gmra.mxu0 %v5472
      %v5642 = vpop.f32.mrf.mxu0
      %v5643 = vadd.f32 0.0, %v5642
      %v5644 = vpop.f32.mrf.mxu0
      %5645 = vmatprep.mubr.f32.mxu0 0.0
      %5646 = vmatmul.mubr.f32.gmra.mxu0 %v5475
      %v5647 = vpop.f32.mrf.mxu0
      %v5648 = vadd.f32 0.0, %v5647
      %v5649 = vpop.f32.mrf.mxu0
      %5650 = vmatprep.mubr.f32.mxu0 0.0
      %5651 = vmatmul.mubr.f32.gmra.mxu0 %v5478
      %v5652 = vpop.f32.mrf.mxu0
      %v5653 = vadd.f32 0.0, %v5652
      %v5654 = vpop.f32.mrf.mxu0
      %5655 = vmatprep.mubr.f32.mxu0 0.0
      %5656 = vmatmul.mubr.f32.gmra.mxu0 %v5481
      %v5657 = vpop.f32.mrf.mxu0
      %v5658 = vadd.f32 0.0, %v5657
      %v5659 = vpop.f32.mrf.mxu0
      %5660 = vmatprep.mubr.f32.mxu0 0.0
      %5661 = vmatmul.mubr.f32.gmra.mxu0 %v5484
      %v5662 = vpop.f32.mrf.mxu0
      %v5663 = vadd.f32 0.0, %v5662
      %v5664 = vpop.f32.mrf.mxu0
      %5665 = vmatprep.mubr.f32.mxu0 0.0
      %5666 = vmatmul.mubr.f32.gmra.mxu0 %v5487
      %v5667 = vpop.f32.mrf.mxu0
      %v5668 = vadd.f32 0.0, %v5667
      %v5669 = vpop.f32.mrf.mxu0
      %5670 = vmatprep.mubr.f32.mxu0 0.0
      %5671 = vmatmul.mubr.f32.gmra.mxu0 %v5490
      %v5672 = vpop.f32.mrf.mxu0
      %v5673 = vadd.f32 0.0, %v5672
      %v5674 = vpop.f32.mrf.mxu0
      %5675 = vmatprep.mubr.f32.mxu0 0.0
      %5676 = vmatmul.mubr.f32.gmra.mxu0 %v5493
      %v5677 = vpop.f32.mrf.mxu0
      %v5678 = vadd.f32 0.0, %v5677
      %v5679 = vpop.f32.mrf.mxu0
      %5680 = vmatprep.mubr.f32.mxu0 0.0
      %5681 = vmatmul.mubr.f32.gmra.mxu0 %v5496
      %v5682 = vpop.f32.mrf.mxu0
      %v5683 = vadd.f32 0.0, %v5682
      %v5684 = vpop.f32.mrf.mxu0
      %5685 = vmatprep.mubr.f32.mxu0 0.0
      %5686 = vmatmul.mubr.f32.gmra.mxu0 %v5499
      %v5687 = vpop.f32.mrf.mxu0
      %v5688 = vadd.f32 0.0, %v5687
      %v5689 = vpop.f32.mrf.mxu0
      %5690 = vmatprep.mubr.f32.mxu0 0.0
      %5691 = vmatmul.mubr.f32.gmra.mxu0 %v5502
      %v5692 = vpop.f32.mrf.mxu0
      %v5693 = vadd.f32 0.0, %v5692
      %v5694 = vpop.f32.mrf.mxu0
      %5695 = vmatprep.mubr.f32.mxu0 0.0
      %5696 = vmatmul.mubr.f32.gmra.mxu0 %v5505
      %v5697 = vpop.f32.mrf.mxu0
      %v5698 = vadd.f32 0.0, %v5697
      %v5699 = vpop.f32.mrf.mxu0
      %5700 = vmatprep.mubr.f32.mxu0 0.0
      %5701 = vmatmul.mubr.f32.gmra.mxu0 %v5508
      %v5702 = vpop.f32.mrf.mxu0
      %v5703 = vadd.f32 0.0, %v5702
      %v5704 = vpop.f32.mrf.mxu0
      %5705 = vmatprep.mubr.f32.mxu0 0.0
      %5706 = vmatmul.mubr.f32.gmra.mxu0 %v5511
      %v5707 = vpop.f32.mrf.mxu0
      %v5708 = vadd.f32 0.0, %v5707
      %v5709 = vpop.f32.mrf.mxu0
      %5710 = vmatprep.mubr.f32.mxu0 0.0
      %5711 = vmatmul.mubr.f32.gmra.mxu0 %v5514
      %v5712 = vpop.f32.mrf.mxu0
      %v5713 = vadd.f32 0.0, %v5712
      %v5714 = vpop.f32.mrf.mxu0
      %5715 = vmatprep.mubr.f32.mxu0 0.0
      %5716 = vmatmul.mubr.f32.gmra.mxu0 %v5517
      %v5717 = vpop.f32.mrf.mxu0
      %v5718 = vadd.f32 0.0, %v5717
      %v5719 = vpop.f32.mrf.mxu0
      %5720 = vmatprep.mubr.f32.mxu0 0.0
      %5721 = vmatmul.mubr.f32.gmra.mxu0 %v5520
      %v5722 = vpop.f32.mrf.mxu0
      %v5723 = vadd.f32 0.0, %v5722
      %v5724 = vpop.f32.mrf.mxu0
      %5725 = vmatprep.mubr.f32.mxu0 0.0
      %5726 = vmatmul.mubr.f32.gmra.mxu0 %v5523
      %v5727 = vpop.f32.mrf.mxu0
      %v5728 = vadd.f32 0.0, %v5727
      %v5729 = vpop.f32.mrf.mxu0
      %5730 = vmatprep.mubr.f32.mxu0 0.0
      %5731 = vmatmul.mubr.f32.gmra.mxu0 %v5526
      %v5732 = vpop.f32.mrf.mxu0
      %v5733 = vadd.f32 0.0, %v5732
      %v5734 = vpop.f32.mrf.mxu0
      %5735 = vmatprep.mubr.f32.mxu0 0.0
      %5736 = vmatmul.mubr.f32.gmra.mxu0 %v5529
      %v5737 = vpop.f32.mrf.mxu0
      %v5738 = vadd.f32 0.0, %v5737
      %v5739 = vpop.f32.mrf.mxu0
      %5740 = vmatprep.mubr.f32.mxu0 0.0
      %5741 = vmatmul.mubr.f32.gmra.mxu0 %v5532
      %v5742 = vpop.f32.mrf.mxu0
      %v5743 = vadd.f32 0.0, %v5742
      %v5744 = vpop.f32.mrf.mxu0
      %5745 = vmatprep.mubr.f32.mxu0 0.0
      %5746 = vmatmul.mubr.f32.gmra.mxu0 %v5535
      %v5747 = vpop.f32.mrf.mxu0
      %v5748 = vadd.f32 0.0, %v5747
      %v5749 = vpop.f32.mrf.mxu0
      %5750 = vmatprep.mubr.f32.mxu0 0.0
      %5751 = vmatmul.mubr.f32.gmra.mxu0 %v5538
      %v5752 = vpop.f32.mrf.mxu0
      %v5753 = vadd.f32 0.0, %v5752
      %v5754 = vpop.f32.mrf.mxu0
      %5755 = vmatprep.mubr.f32.mxu0 0.0
      %5756 = vmatmul.mubr.f32.gmra.mxu0 %v5541
      %v5757 = vpop.f32.mrf.mxu0
      %v5758 = vadd.f32 0.0, %v5757
      %v5759 = vpop.f32.mrf.mxu0
      %5760 = vmatprep.mubr.f32.mxu0 0.0
      %5761 = vmatmul.mubr.f32.gmra.mxu0 %v5544
      %v5762 = vpop.f32.mrf.mxu0
      %v5763 = vadd.f32 0.0, %v5762
      %v5764 = vpop.f32.mrf.mxu0
      %5765 = vmatprep.mubr.f32.mxu0 0.0
      %5766 = vmatmul.mubr.f32.gmra.mxu0 %v5547
      %v5767 = vpop.f32.mrf.mxu0
      %v5768 = vadd.f32 0.0, %v5767
      %v5769 = vpop.f32.mrf.mxu0
      %5770 = vmatprep.mubr.f32.mxu0 0.0
      %5771 = vmatmul.mubr.f32.gmra.mxu0 %v5550
      %v5772 = vpop.f32.mrf.mxu0
      %v5773 = vadd.f32 0.0, %v5772
      %v5774 = vpop.f32.mrf.mxu0
      %5775 = vmatprep.mubr.f32.mxu0 0.0
      %5776 = vmatmul.mubr.f32.gmra.mxu0 %v5553
      %v5777 = vpop.f32.mrf.mxu0
      %v5778 = vadd.f32 0.0, %v5777
      %v5779 = vpop.f32.mrf.mxu0
      %5780 = vmatprep.mubr.f32.mxu0 0.0
      %5781 = vmatmul.mubr.f32.gmra.mxu0 %v5556
      %v5782 = vpop.f32.mrf.mxu0
      %v5783 = vadd.f32 0.0, %v5782
      %v5784 = vpop.f32.mrf.mxu0
      %5785 = vdwg.mxu0
      %v5786 = vadd.f32 %v5396, %v5628
      %v5787 = vadd.f32 %v5397, %v5633
      %v5788 = vadd.f32 %v5398, %v5638
      %v5789 = vadd.f32 %v5399, %v5643
      %v5790 = vadd.f32 %v5400, %v5648
      %v5791 = vadd.f32 %v5401, %v5653
      %v5792 = vadd.f32 %v5402, %v5658
      %v5793 = vadd.f32 %v5403, %v5663
      %v5794 = vadd.f32 %v5404, %v5668
      %v5795 = vadd.f32 %v5405, %v5673
      %v5796 = vadd.f32 %v5406, %v5678
      %v5797 = vadd.f32 %v5407, %v5683
      %v5798 = vadd.f32 %v5408, %v5688
      %v5799 = vadd.f32 %v5409, %v5693
      %v5800 = vadd.f32 %v5410, %v5698
      %v5801 = vadd.f32 %v5411, %v5703
      %v5802 = vadd.f32 %v5412, %v5708
      %v5803 = vadd.f32 %v5413, %v5713
      %v5804 = vadd.f32 %v5414, %v5718
      %v5805 = vadd.f32 %v5415, %v5723
      %v5806 = vadd.f32 %v5416, %v5728
      %v5807 = vadd.f32 %v5417, %v5733
      %v5808 = vadd.f32 %v5418, %v5738
      %v5809 = vadd.f32 %v5419, %v5743
      %v5810 = vadd.f32 %v5420, %v5748
      %v5811 = vadd.f32 %v5421, %v5753
      %v5812 = vadd.f32 %v5422, %v5758
      %v5813 = vadd.f32 %v5423, %v5763
      %v5814 = vadd.f32 %v5424, %v5768
      %v5815 = vadd.f32 %v5425, %v5773
      %v5816 = vadd.f32 %v5426, %v5778
      %v5817 = vadd.f32 %v5427, %v5783
      %v5818 = vld [vmem:[%s4289 + $0x1] sm:$0xff]
      %v5819 = vld [vmem:[%s4289 + $0x9] sm:$0xff]
      %v5820 = vld [vmem:[%s4289 + $0x19] sm:$0xff]
      %v5821 = vld [vmem:[%s4289 + $0x21] sm:$0xff]
      %v5822 = vld [vmem:[%s4289 + $0x31] sm:$0xff]
      %v5823 = vld [vmem:[%s4289 + $0x39] sm:$0xff]
      %v5824 = vld [vmem:[%s4289 + $0x49] sm:$0xff]
      %v5825 = vld [vmem:[%s4289 + $0x51] sm:$0xff]
      %v5826 = vld [vmem:[%s4289 + $0x61] sm:$0xff]
      %v5827 = vld [vmem:[%s4289 + $0x69] sm:$0xff]
      %v5828 = vld [vmem:[%s4289 + $0x79] sm:$0xff]
      %v5829 = vld [vmem:[%s4289 + $0x81] sm:$0xff]
      %v5830 = vld [vmem:[%s4289 + $0x91] sm:$0xff]
      %v5831 = vld [vmem:[%s4289 + $0x99] sm:$0xff]
      %v5832 = vld [vmem:[%s4289 + $0xa9] sm:$0xff]
      %v5833 = vld [vmem:[%s4289 + $0xb1] sm:$0xff]
      %v5834 = vld [vmem:[%s4289 + $0xc1] sm:$0xff]
      %v5835 = vld [vmem:[%s4289 + $0xc9] sm:$0xff]
      %v5836 = vld [vmem:[%s4289 + $0xd9] sm:$0xff]
      %v5837 = vld [vmem:[%s4289 + $0xe1] sm:$0xff]
      %v5838 = vld [vmem:[%s4289 + $0xf1] sm:$0xff]
      %v5839 = vld [vmem:[%s4289 + $0xf9] sm:$0xff]
      %v5840 = vld [vmem:[%s4289 + $0x109] sm:$0xff]
      %v5841 = vld [vmem:[%s4289 + $0x111] sm:$0xff]
      %v5842 = vld [vmem:[%s4289 + $0x121] sm:$0xff]
      %v5843 = vld [vmem:[%s4289 + $0x129] sm:$0xff]
      %v5844 = vld [vmem:[%s4289 + $0x139] sm:$0xff]
      %v5845 = vld [vmem:[%s4289 + $0x141] sm:$0xff]
      %v5846 = vld [vmem:[%s4289 + $0x151] sm:$0xff]
      %v5847 = vld [vmem:[%s4289 + $0x159] sm:$0xff]
      %v5848 = vld [vmem:[%s4289 + $0x169] sm:$0xff]
      %v5849 = vld [vmem:[%s4289 + $0x171] sm:$0xff]
      %s5850 = scalar_lea.vmem %s5, 16
      %v5851 = vld [vmem:[%s5850] sm:$0xf]
      %v5853 = vsel %vm415, %v5818, 0
      %v5856 = vsel %vm415, %v5819, 0
      %v5859 = vsel %vm415, %v5820, 0
      %v5862 = vsel %vm415, %v5821, 0
      %v5865 = vsel %vm415, %v5822, 0
      %v5868 = vsel %vm415, %v5823, 0
      %v5871 = vsel %vm415, %v5824, 0
      %v5874 = vsel %vm415, %v5825, 0
      %v5877 = vsel %vm415, %v5826, 0
      %v5880 = vsel %vm415, %v5827, 0
      %v5883 = vsel %vm415, %v5828, 0
      %v5886 = vsel %vm415, %v5829, 0
      %v5889 = vsel %vm415, %v5830, 0
      %v5892 = vsel %vm415, %v5831, 0
      %v5895 = vsel %vm415, %v5832, 0
      %v5898 = vsel %vm415, %v5833, 0
      %v5901 = vsel %vm415, %v5834, 0
      %v5904 = vsel %vm415, %v5835, 0
      %v5907 = vsel %vm415, %v5836, 0
      %v5910 = vsel %vm415, %v5837, 0
      %v5913 = vsel %vm415, %v5838, 0
      %v5916 = vsel %vm415, %v5839, 0
      %v5919 = vsel %vm415, %v5840, 0
      %v5922 = vsel %vm415, %v5841, 0
      %v5925 = vsel %vm415, %v5842, 0
      %v5928 = vsel %vm415, %v5843, 0
      %v5931 = vsel %vm415, %v5844, 0
      %v5934 = vsel %vm415, %v5845, 0
      %v5937 = vsel %vm415, %v5846, 0
      %v5940 = vsel %vm415, %v5847, 0
      %v5943 = vsel %vm415, %v5848, 0
      %v5946 = vsel %vm415, %v5849, 0
      %v5949 = vsel %vm4485, %v5851, 0
      %5951 = vmatprep.subr.mxu0 0.0
      %5952 = vmatpush1.msra.mxu0 0.0
      %5953 = vmatprep.subr.mxu0 0.0
      %5954 = vmatpush1.msra.mxu0 0.0
      %5955 = vmatprep.subr.mxu0 0.0
      %5956 = vmatpush1.msra.mxu0 0.0
      %5957 = vmatprep.subr.mxu0 0.0
      %5958 = vmatpush1.msra.mxu0 0.0
      %5959 = vmatprep.subr.mxu0 0.0
      %5960 = vmatpush1.msra.mxu0 0.0
      %5961 = vmatprep.subr.mxu0 0.0
      %5962 = vmatpush1.msra.mxu0 0.0
      %5963 = vmatprep.subr.mxu0 0.0
      %5964 = vmatpush1.msra.mxu0 0.0
      %5965 = vmatprep.subr.mxu0 0.0
      %5966 = vmatpush1.msra.mxu0 0.0
      %5967 = vmatprep.subr.mxu0 0.0
      %5968 = vmatpush1.msra.mxu0 0.0
      %5969 = vmatprep.subr.mxu0 0.0
      %5970 = vmatpush1.msra.mxu0 0.0
      %5971 = vmatprep.subr.mxu0 0.0
      %5972 = vmatpush1.msra.mxu0 0.0
      %5973 = vmatprep.subr.mxu0 0.0
      %5974 = vmatpush1.msra.mxu0 0.0
      %5975 = vmatprep.subr.mxu0 0.0
      %5976 = vmatpush1.msra.mxu0 0.0
      %5977 = vmatprep.subr.mxu0 0.0
      %5978 = vmatpush1.msra.mxu0 0.0
      %5979 = vmatprep.subr.mxu0 0.0
      %5980 = vmatpush1.msra.mxu0 0.0
      %5981 = vmatprep.subr.mxu0 0.0
      %5982 = vmatpush1.msra.mxu0 %v5949
      %5983 = vmatprep.subr.mxu0 0.0
      %5984 = vmatpush2.msra.mxu0 0.0
      %5985 = vmatprep.subr.mxu0 0.0
      %5986 = vmatpush2.msra.mxu0 0.0
      %5987 = vmatprep.subr.mxu0 0.0
      %5988 = vmatpush2.msra.mxu0 0.0
      %5989 = vmatprep.subr.mxu0 0.0
      %5990 = vmatpush2.msra.mxu0 0.0
      %5991 = vmatprep.subr.mxu0 0.0
      %5992 = vmatpush2.msra.mxu0 0.0
      %5993 = vmatprep.subr.mxu0 0.0
      %5994 = vmatpush2.msra.mxu0 0.0
      %5995 = vmatprep.subr.mxu0 0.0
      %5996 = vmatpush2.msra.mxu0 0.0
      %5997 = vmatprep.subr.mxu0 0.0
      %5998 = vmatpush2.msra.mxu0 0.0
      %5999 = vmatprep.subr.mxu0 0.0
      %6000 = vmatpush2.msra.mxu0 0.0
      %6001 = vmatprep.subr.mxu0 0.0
      %6002 = vmatpush2.msra.mxu0 0.0
      %6003 = vmatprep.subr.mxu0 0.0
      %6004 = vmatpush2.msra.mxu0 0.0
      %6005 = vmatprep.subr.mxu0 0.0
      %6006 = vmatpush2.msra.mxu0 0.0
      %6007 = vmatprep.subr.mxu0 0.0
      %6008 = vmatpush2.msra.mxu0 0.0
      %6009 = vmatprep.subr.mxu0 0.0
      %6010 = vmatpush2.msra.mxu0 0.0
      %6011 = vmatprep.subr.mxu0 0.0
      %6012 = vmatpush2.msra.mxu0 0.0
      %6013 = vmatprep.subr.mxu0 0.0
      %6014 = vmatpush2.msra.mxu0 0.0
      %6015 = vmatprep.mubr.f32.mxu0 0.0
      %6016 = vmatmul.mubr.f32.gmra.mxu0 %v5853
      %v6017 = vpop.f32.mrf.mxu0
      %v6018 = vadd.f32 0.0, %v6017
      %v6019 = vpop.f32.mrf.mxu0
      %6020 = vmatprep.mubr.f32.mxu0 0.0
      %6021 = vmatmul.mubr.f32.gmra.mxu0 %v5856
      %v6022 = vpop.f32.mrf.mxu0
      %v6023 = vadd.f32 0.0, %v6022
      %v6024 = vpop.f32.mrf.mxu0
      %6025 = vmatprep.mubr.f32.mxu0 0.0
      %6026 = vmatmul.mubr.f32.gmra.mxu0 %v5859
      %v6027 = vpop.f32.mrf.mxu0
      %v6028 = vadd.f32 0.0, %v6027
      %v6029 = vpop.f32.mrf.mxu0
      %6030 = vmatprep.mubr.f32.mxu0 0.0
      %6031 = vmatmul.mubr.f32.gmra.mxu0 %v5862
      %v6032 = vpop.f32.mrf.mxu0
      %v6033 = vadd.f32 0.0, %v6032
      %v6034 = vpop.f32.mrf.mxu0
      %6035 = vmatprep.mubr.f32.mxu0 0.0
      %6036 = vmatmul.mubr.f32.gmra.mxu0 %v5865
      %v6037 = vpop.f32.mrf.mxu0
      %v6038 = vadd.f32 0.0, %v6037
      %v6039 = vpop.f32.mrf.mxu0
      %6040 = vmatprep.mubr.f32.mxu0 0.0
      %6041 = vmatmul.mubr.f32.gmra.mxu0 %v5868
      %v6042 = vpop.f32.mrf.mxu0
      %v6043 = vadd.f32 0.0, %v6042
      %v6044 = vpop.f32.mrf.mxu0
      %6045 = vmatprep.mubr.f32.mxu0 0.0
      %6046 = vmatmul.mubr.f32.gmra.mxu0 %v5871
      %v6047 = vpop.f32.mrf.mxu0
      %v6048 = vadd.f32 0.0, %v6047
      %v6049 = vpop.f32.mrf.mxu0
      %6050 = vmatprep.mubr.f32.mxu0 0.0
      %6051 = vmatmul.mubr.f32.gmra.mxu0 %v5874
      %v6052 = vpop.f32.mrf.mxu0
      %v6053 = vadd.f32 0.0, %v6052
      %v6054 = vpop.f32.mrf.mxu0
      %6055 = vmatprep.mubr.f32.mxu0 0.0
      %6056 = vmatmul.mubr.f32.gmra.mxu0 %v5877
      %v6057 = vpop.f32.mrf.mxu0
      %v6058 = vadd.f32 0.0, %v6057
      %v6059 = vpop.f32.mrf.mxu0
      %6060 = vmatprep.mubr.f32.mxu0 0.0
      %6061 = vmatmul.mubr.f32.gmra.mxu0 %v5880
      %v6062 = vpop.f32.mrf.mxu0
      %v6063 = vadd.f32 0.0, %v6062
      %v6064 = vpop.f32.mrf.mxu0
      %6065 = vmatprep.mubr.f32.mxu0 0.0
      %6066 = vmatmul.mubr.f32.gmra.mxu0 %v5883
      %v6067 = vpop.f32.mrf.mxu0
      %v6068 = vadd.f32 0.0, %v6067
      %v6069 = vpop.f32.mrf.mxu0
      %6070 = vmatprep.mubr.f32.mxu0 0.0
      %6071 = vmatmul.mubr.f32.gmra.mxu0 %v5886
      %v6072 = vpop.f32.mrf.mxu0
      %v6073 = vadd.f32 0.0, %v6072
      %v6074 = vpop.f32.mrf.mxu0
      %6075 = vmatprep.mubr.f32.mxu0 0.0
      %6076 = vmatmul.mubr.f32.gmra.mxu0 %v5889
      %v6077 = vpop.f32.mrf.mxu0
      %v6078 = vadd.f32 0.0, %v6077
      %v6079 = vpop.f32.mrf.mxu0
      %6080 = vmatprep.mubr.f32.mxu0 0.0
      %6081 = vmatmul.mubr.f32.gmra.mxu0 %v5892
      %v6082 = vpop.f32.mrf.mxu0
      %v6083 = vadd.f32 0.0, %v6082
      %v6084 = vpop.f32.mrf.mxu0
      %6085 = vmatprep.mubr.f32.mxu0 0.0
      %6086 = vmatmul.mubr.f32.gmra.mxu0 %v5895
      %v6087 = vpop.f32.mrf.mxu0
      %v6088 = vadd.f32 0.0, %v6087
      %v6089 = vpop.f32.mrf.mxu0
      %6090 = vmatprep.mubr.f32.mxu0 0.0
      %6091 = vmatmul.mubr.f32.gmra.mxu0 %v5898
      %v6092 = vpop.f32.mrf.mxu0
      %v6093 = vadd.f32 0.0, %v6092
      %v6094 = vpop.f32.mrf.mxu0
      %6095 = vmatprep.mubr.f32.mxu0 0.0
      %6096 = vmatmul.mubr.f32.gmra.mxu0 %v5901
      %v6097 = vpop.f32.mrf.mxu0
      %v6098 = vadd.f32 0.0, %v6097
      %v6099 = vpop.f32.mrf.mxu0
      %6100 = vmatprep.mubr.f32.mxu0 0.0
      %6101 = vmatmul.mubr.f32.gmra.mxu0 %v5904
      %v6102 = vpop.f32.mrf.mxu0
      %v6103 = vadd.f32 0.0, %v6102
      %v6104 = vpop.f32.mrf.mxu0
      %6105 = vmatprep.mubr.f32.mxu0 0.0
      %6106 = vmatmul.mubr.f32.gmra.mxu0 %v5907
      %v6107 = vpop.f32.mrf.mxu0
      %v6108 = vadd.f32 0.0, %v6107
      %v6109 = vpop.f32.mrf.mxu0
      %6110 = vmatprep.mubr.f32.mxu0 0.0
      %6111 = vmatmul.mubr.f32.gmra.mxu0 %v5910
      %v6112 = vpop.f32.mrf.mxu0
      %v6113 = vadd.f32 0.0, %v6112
      %v6114 = vpop.f32.mrf.mxu0
      %6115 = vmatprep.mubr.f32.mxu0 0.0
      %6116 = vmatmul.mubr.f32.gmra.mxu0 %v5913
      %v6117 = vpop.f32.mrf.mxu0
      %v6118 = vadd.f32 0.0, %v6117
      %v6119 = vpop.f32.mrf.mxu0
      %6120 = vmatprep.mubr.f32.mxu0 0.0
      %6121 = vmatmul.mubr.f32.gmra.mxu0 %v5916
      %v6122 = vpop.f32.mrf.mxu0
      %v6123 = vadd.f32 0.0, %v6122
      %v6124 = vpop.f32.mrf.mxu0
      %6125 = vmatprep.mubr.f32.mxu0 0.0
      %6126 = vmatmul.mubr.f32.gmra.mxu0 %v5919
      %v6127 = vpop.f32.mrf.mxu0
      %v6128 = vadd.f32 0.0, %v6127
      %v6129 = vpop.f32.mrf.mxu0
      %6130 = vmatprep.mubr.f32.mxu0 0.0
      %6131 = vmatmul.mubr.f32.gmra.mxu0 %v5922
      %v6132 = vpop.f32.mrf.mxu0
      %v6133 = vadd.f32 0.0, %v6132
      %v6134 = vpop.f32.mrf.mxu0
      %6135 = vmatprep.mubr.f32.mxu0 0.0
      %6136 = vmatmul.mubr.f32.gmra.mxu0 %v5925
      %v6137 = vpop.f32.mrf.mxu0
      %v6138 = vadd.f32 0.0, %v6137
      %v6139 = vpop.f32.mrf.mxu0
      %6140 = vmatprep.mubr.f32.mxu0 0.0
      %6141 = vmatmul.mubr.f32.gmra.mxu0 %v5928
      %v6142 = vpop.f32.mrf.mxu0
      %v6143 = vadd.f32 0.0, %v6142
      %v6144 = vpop.f32.mrf.mxu0
      %6145 = vmatprep.mubr.f32.mxu0 0.0
      %6146 = vmatmul.mubr.f32.gmra.mxu0 %v5931
      %v6147 = vpop.f32.mrf.mxu0
      %v6148 = vadd.f32 0.0, %v6147
      %v6149 = vpop.f32.mrf.mxu0
      %6150 = vmatprep.mubr.f32.mxu0 0.0
      %6151 = vmatmul.mubr.f32.gmra.mxu0 %v5934
      %v6152 = vpop.f32.mrf.mxu0
      %v6153 = vadd.f32 0.0, %v6152
      %v6154 = vpop.f32.mrf.mxu0
      %6155 = vmatprep.mubr.f32.mxu0 0.0
      %6156 = vmatmul.mubr.f32.gmra.mxu0 %v5937
      %v6157 = vpop.f32.mrf.mxu0
      %v6158 = vadd.f32 0.0, %v6157
      %v6159 = vpop.f32.mrf.mxu0
      %6160 = vmatprep.mubr.f32.mxu0 0.0
      %6161 = vmatmul.mubr.f32.gmra.mxu0 %v5940
      %v6162 = vpop.f32.mrf.mxu0
      %v6163 = vadd.f32 0.0, %v6162
      %v6164 = vpop.f32.mrf.mxu0
      %6165 = vmatprep.mubr.f32.mxu0 0.0
      %6166 = vmatmul.mubr.f32.gmra.mxu0 %v5943
      %v6167 = vpop.f32.mrf.mxu0
      %v6168 = vadd.f32 0.0, %v6167
      %v6169 = vpop.f32.mrf.mxu0
      %6170 = vmatprep.mubr.f32.mxu0 0.0
      %6171 = vmatmul.mubr.f32.gmra.mxu0 %v5946
      %v6172 = vpop.f32.mrf.mxu0
      %v6173 = vadd.f32 0.0, %v6172
      %v6174 = vpop.f32.mrf.mxu0
      %6175 = vdwg.mxu0
      %v6176 = vadd.f32 %v5786, %v6018
      %v6177 = vadd.f32 %v5787, %v6023
      %v6178 = vadd.f32 %v5788, %v6028
      %v6179 = vadd.f32 %v5789, %v6033
      %v6180 = vadd.f32 %v5790, %v6038
      %v6181 = vadd.f32 %v5791, %v6043
      %v6182 = vadd.f32 %v5792, %v6048
      %v6183 = vadd.f32 %v5793, %v6053
      %v6184 = vadd.f32 %v5794, %v6058
      %v6185 = vadd.f32 %v5795, %v6063
      %v6186 = vadd.f32 %v5796, %v6068
      %v6187 = vadd.f32 %v5797, %v6073
      %v6188 = vadd.f32 %v5798, %v6078
      %v6189 = vadd.f32 %v5799, %v6083
      %v6190 = vadd.f32 %v5800, %v6088
      %v6191 = vadd.f32 %v5801, %v6093
      %v6192 = vadd.f32 %v5802, %v6098
      %v6193 = vadd.f32 %v5803, %v6103
      %v6194 = vadd.f32 %v5804, %v6108
      %v6195 = vadd.f32 %v5805, %v6113
      %v6196 = vadd.f32 %v5806, %v6118
      %v6197 = vadd.f32 %v5807, %v6123
      %v6198 = vadd.f32 %v5808, %v6128
      %v6199 = vadd.f32 %v5809, %v6133
      %v6200 = vadd.f32 %v5810, %v6138
      %v6201 = vadd.f32 %v5811, %v6143
      %v6202 = vadd.f32 %v5812, %v6148
      %v6203 = vadd.f32 %v5813, %v6153
      %v6204 = vadd.f32 %v5814, %v6158
      %v6205 = vadd.f32 %v5815, %v6163
      %v6206 = vadd.f32 %v5816, %v6168
      %v6207 = vadd.f32 %v5817, %v6173
      %v6208 = vld [vmem:[%s4289 + $0x2] sm:$0xff]
      %v6209 = vld [vmem:[%s4289 + $0xa] sm:$0xff]
      %v6210 = vld [vmem:[%s4289 + $0x1a] sm:$0xff]
      %v6211 = vld [vmem:[%s4289 + $0x22] sm:$0xff]
      %v6212 = vld [vmem:[%s4289 + $0x32] sm:$0xff]
      %v6213 = vld [vmem:[%s4289 + $0x3a] sm:$0xff]
      %v6214 = vld [vmem:[%s4289 + $0x4a] sm:$0xff]
      %v6215 = vld [vmem:[%s4289 + $0x52] sm:$0xff]
      %v6216 = vld [vmem:[%s4289 + $0x62] sm:$0xff]
      %v6217 = vld [vmem:[%s4289 + $0x6a] sm:$0xff]
      %v6218 = vld [vmem:[%s4289 + $0x7a] sm:$0xff]
      %v6219 = vld [vmem:[%s4289 + $0x82] sm:$0xff]
      %v6220 = vld [vmem:[%s4289 + $0x92] sm:$0xff]
      %v6221 = vld [vmem:[%s4289 + $0x9a] sm:$0xff]
      %v6222 = vld [vmem:[%s4289 + $0xaa] sm:$0xff]
      %v6223 = vld [vmem:[%s4289 + $0xb2] sm:$0xff]
      %v6224 = vld [vmem:[%s4289 + $0xc2] sm:$0xff]
      %v6225 = vld [vmem:[%s4289 + $0xca] sm:$0xff]
      %v6226 = vld [vmem:[%s4289 + $0xda] sm:$0xff]
      %v6227 = vld [vmem:[%s4289 + $0xe2] sm:$0xff]
      %v6228 = vld [vmem:[%s4289 + $0xf2] sm:$0xff]
      %v6229 = vld [vmem:[%s4289 + $0xfa] sm:$0xff]
      %v6230 = vld [vmem:[%s4289 + $0x10a] sm:$0xff]
      %v6231 = vld [vmem:[%s4289 + $0x112] sm:$0xff]
      %v6232 = vld [vmem:[%s4289 + $0x122] sm:$0xff]
      %v6233 = vld [vmem:[%s4289 + $0x12a] sm:$0xff]
      %v6234 = vld [vmem:[%s4289 + $0x13a] sm:$0xff]
      %v6235 = vld [vmem:[%s4289 + $0x142] sm:$0xff]
      %v6236 = vld [vmem:[%s4289 + $0x152] sm:$0xff]
      %v6237 = vld [vmem:[%s4289 + $0x15a] sm:$0xff]
      %v6238 = vld [vmem:[%s4289 + $0x16a] sm:$0xff]
      %v6239 = vld [vmem:[%s4289 + $0x172] sm:$0xff]
      %s6240 = scalar_lea.vmem %s5, 20
      %v6241 = vld [vmem:[%s6240] sm:$0xf]
      %v6243 = vsel %vm415, %v6208, 0
      %v6246 = vsel %vm415, %v6209, 0
      %v6249 = vsel %vm415, %v6210, 0
      %v6252 = vsel %vm415, %v6211, 0
      %v6255 = vsel %vm415, %v6212, 0
      %v6258 = vsel %vm415, %v6213, 0
      %v6261 = vsel %vm415, %v6214, 0
      %v6264 = vsel %vm415, %v6215, 0
      %v6267 = vsel %vm415, %v6216, 0
      %v6270 = vsel %vm415, %v6217, 0
      %v6273 = vsel %vm415, %v6218, 0
      %v6276 = vsel %vm415, %v6219, 0
      %v6279 = vsel %vm415, %v6220, 0
      %v6282 = vsel %vm415, %v6221, 0
      %v6285 = vsel %vm415, %v6222, 0
      %v6288 = vsel %vm415, %v6223, 0
      %v6291 = vsel %vm415, %v6224, 0
      %v6294 = vsel %vm415, %v6225, 0
      %v6297 = vsel %vm415, %v6226, 0
      %v6300 = vsel %vm415, %v6227, 0
      %v6303 = vsel %vm415, %v6228, 0
      %v6306 = vsel %vm415, %v6229, 0
      %v6309 = vsel %vm415, %v6230, 0
      %v6312 = vsel %vm415, %v6231, 0
      %v6315 = vsel %vm415, %v6232, 0
      %v6318 = vsel %vm415, %v6233, 0
      %v6321 = vsel %vm415, %v6234, 0
      %v6324 = vsel %vm415, %v6235, 0
      %v6327 = vsel %vm415, %v6236, 0
      %v6330 = vsel %vm415, %v6237, 0
      %v6333 = vsel %vm415, %v6238, 0
      %v6336 = vsel %vm415, %v6239, 0
      %v6339 = vsel %vm4485, %v6241, 0
      %6341 = vmatprep.subr.mxu0 0.0
      %6342 = vmatpush1.msra.mxu0 0.0
      %6343 = vmatprep.subr.mxu0 0.0
      %6344 = vmatpush1.msra.mxu0 0.0
      %6345 = vmatprep.subr.mxu0 0.0
      %6346 = vmatpush1.msra.mxu0 0.0
      %6347 = vmatprep.subr.mxu0 0.0
      %6348 = vmatpush1.msra.mxu0 0.0
      %6349 = vmatprep.subr.mxu0 0.0
      %6350 = vmatpush1.msra.mxu0 0.0
      %6351 = vmatprep.subr.mxu0 0.0
      %6352 = vmatpush1.msra.mxu0 0.0
      %6353 = vmatprep.subr.mxu0 0.0
      %6354 = vmatpush1.msra.mxu0 0.0
      %6355 = vmatprep.subr.mxu0 0.0
      %6356 = vmatpush1.msra.mxu0 0.0
      %6357 = vmatprep.subr.mxu0 0.0
      %6358 = vmatpush1.msra.mxu0 0.0
      %6359 = vmatprep.subr.mxu0 0.0
      %6360 = vmatpush1.msra.mxu0 0.0
      %6361 = vmatprep.subr.mxu0 0.0
      %6362 = vmatpush1.msra.mxu0 0.0
      %6363 = vmatprep.subr.mxu0 0.0
      %6364 = vmatpush1.msra.mxu0 0.0
      %6365 = vmatprep.subr.mxu0 0.0
      %6366 = vmatpush1.msra.mxu0 0.0
      %6367 = vmatprep.subr.mxu0 0.0
      %6368 = vmatpush1.msra.mxu0 0.0
      %6369 = vmatprep.subr.mxu0 0.0
      %6370 = vmatpush1.msra.mxu0 0.0
      %6371 = vmatprep.subr.mxu0 0.0
      %6372 = vmatpush1.msra.mxu0 %v6339
      %6373 = vmatprep.subr.mxu0 0.0
      %6374 = vmatpush2.msra.mxu0 0.0
      %6375 = vmatprep.subr.mxu0 0.0
      %6376 = vmatpush2.msra.mxu0 0.0
      %6377 = vmatprep.subr.mxu0 0.0
      %6378 = vmatpush2.msra.mxu0 0.0
      %6379 = vmatprep.subr.mxu0 0.0
      %6380 = vmatpush2.msra.mxu0 0.0
      %6381 = vmatprep.subr.mxu0 0.0
      %6382 = vmatpush2.msra.mxu0 0.0
      %6383 = vmatprep.subr.mxu0 0.0
      %6384 = vmatpush2.msra.mxu0 0.0
      %6385 = vmatprep.subr.mxu0 0.0
      %6386 = vmatpush2.msra.mxu0 0.0
      %6387 = vmatprep.subr.mxu0 0.0
      %6388 = vmatpush2.msra.mxu0 0.0
      %6389 = vmatprep.subr.mxu0 0.0
      %6390 = vmatpush2.msra.mxu0 0.0
      %6391 = vmatprep.subr.mxu0 0.0
      %6392 = vmatpush2.msra.mxu0 0.0
      %6393 = vmatprep.subr.mxu0 0.0
      %6394 = vmatpush2.msra.mxu0 0.0
      %6395 = vmatprep.subr.mxu0 0.0
      %6396 = vmatpush2.msra.mxu0 0.0
      %6397 = vmatprep.subr.mxu0 0.0
      %6398 = vmatpush2.msra.mxu0 0.0
      %6399 = vmatprep.subr.mxu0 0.0
      %6400 = vmatpush2.msra.mxu0 0.0
      %6401 = vmatprep.subr.mxu0 0.0
      %6402 = vmatpush2.msra.mxu0 0.0
      %6403 = vmatprep.subr.mxu0 0.0
      %6404 = vmatpush2.msra.mxu0 0.0
      %6405 = vmatprep.mubr.f32.mxu0 0.0
      %6406 = vmatmul.mubr.f32.gmra.mxu0 %v6243
      %v6407 = vpop.f32.mrf.mxu0
      %v6408 = vadd.f32 0.0, %v6407
      %v6409 = vpop.f32.mrf.mxu0
      %6410 = vmatprep.mubr.f32.mxu0 0.0
      %6411 = vmatmul.mubr.f32.gmra.mxu0 %v6246
      %v6412 = vpop.f32.mrf.mxu0
      %v6413 = vadd.f32 0.0, %v6412
      %v6414 = vpop.f32.mrf.mxu0
      %6415 = vmatprep.mubr.f32.mxu0 0.0
      %6416 = vmatmul.mubr.f32.gmra.mxu0 %v6249
      %v6417 = vpop.f32.mrf.mxu0
      %v6418 = vadd.f32 0.0, %v6417
      %v6419 = vpop.f32.mrf.mxu0
      %6420 = vmatprep.mubr.f32.mxu0 0.0
      %6421 = vmatmul.mubr.f32.gmra.mxu0 %v6252
      %v6422 = vpop.f32.mrf.mxu0
      %v6423 = vadd.f32 0.0, %v6422
      %v6424 = vpop.f32.mrf.mxu0
      %6425 = vmatprep.mubr.f32.mxu0 0.0
      %6426 = vmatmul.mubr.f32.gmra.mxu0 %v6255
      %v6427 = vpop.f32.mrf.mxu0
      %v6428 = vadd.f32 0.0, %v6427
      %v6429 = vpop.f32.mrf.mxu0
      %6430 = vmatprep.mubr.f32.mxu0 0.0
      %6431 = vmatmul.mubr.f32.gmra.mxu0 %v6258
      %v6432 = vpop.f32.mrf.mxu0
      %v6433 = vadd.f32 0.0, %v6432
      %v6434 = vpop.f32.mrf.mxu0
      %6435 = vmatprep.mubr.f32.mxu0 0.0
      %6436 = vmatmul.mubr.f32.gmra.mxu0 %v6261
      %v6437 = vpop.f32.mrf.mxu0
      %v6438 = vadd.f32 0.0, %v6437
      %v6439 = vpop.f32.mrf.mxu0
      %6440 = vmatprep.mubr.f32.mxu0 0.0
      %6441 = vmatmul.mubr.f32.gmra.mxu0 %v6264
      %v6442 = vpop.f32.mrf.mxu0
      %v6443 = vadd.f32 0.0, %v6442
      %v6444 = vpop.f32.mrf.mxu0
      %6445 = vmatprep.mubr.f32.mxu0 0.0
      %6446 = vmatmul.mubr.f32.gmra.mxu0 %v6267
      %v6447 = vpop.f32.mrf.mxu0
      %v6448 = vadd.f32 0.0, %v6447
      %v6449 = vpop.f32.mrf.mxu0
      %6450 = vmatprep.mubr.f32.mxu0 0.0
      %6451 = vmatmul.mubr.f32.gmra.mxu0 %v6270
      %v6452 = vpop.f32.mrf.mxu0
      %v6453 = vadd.f32 0.0, %v6452
      %v6454 = vpop.f32.mrf.mxu0
      %6455 = vmatprep.mubr.f32.mxu0 0.0
      %6456 = vmatmul.mubr.f32.gmra.mxu0 %v6273
      %v6457 = vpop.f32.mrf.mxu0
      %v6458 = vadd.f32 0.0, %v6457
      %v6459 = vpop.f32.mrf.mxu0
      %6460 = vmatprep.mubr.f32.mxu0 0.0
      %6461 = vmatmul.mubr.f32.gmra.mxu0 %v6276
      %v6462 = vpop.f32.mrf.mxu0
      %v6463 = vadd.f32 0.0, %v6462
      %v6464 = vpop.f32.mrf.mxu0
      %6465 = vmatprep.mubr.f32.mxu0 0.0
      %6466 = vmatmul.mubr.f32.gmra.mxu0 %v6279
      %v6467 = vpop.f32.mrf.mxu0
      %v6468 = vadd.f32 0.0, %v6467
      %v6469 = vpop.f32.mrf.mxu0
      %6470 = vmatprep.mubr.f32.mxu0 0.0
      %6471 = vmatmul.mubr.f32.gmra.mxu0 %v6282
      %v6472 = vpop.f32.mrf.mxu0
      %v6473 = vadd.f32 0.0, %v6472
      %v6474 = vpop.f32.mrf.mxu0
      %6475 = vmatprep.mubr.f32.mxu0 0.0
      %6476 = vmatmul.mubr.f32.gmra.mxu0 %v6285
      %v6477 = vpop.f32.mrf.mxu0
      %v6478 = vadd.f32 0.0, %v6477
      %v6479 = vpop.f32.mrf.mxu0
      %6480 = vmatprep.mubr.f32.mxu0 0.0
      %6481 = vmatmul.mubr.f32.gmra.mxu0 %v6288
      %v6482 = vpop.f32.mrf.mxu0
      %v6483 = vadd.f32 0.0, %v6482
      %v6484 = vpop.f32.mrf.mxu0
      %6485 = vmatprep.mubr.f32.mxu0 0.0
      %6486 = vmatmul.mubr.f32.gmra.mxu0 %v6291
      %v6487 = vpop.f32.mrf.mxu0
      %v6488 = vadd.f32 0.0, %v6487
      %v6489 = vpop.f32.mrf.mxu0
      %6490 = vmatprep.mubr.f32.mxu0 0.0
      %6491 = vmatmul.mubr.f32.gmra.mxu0 %v6294
      %v6492 = vpop.f32.mrf.mxu0
      %v6493 = vadd.f32 0.0, %v6492
      %v6494 = vpop.f32.mrf.mxu0
      %6495 = vmatprep.mubr.f32.mxu0 0.0
      %6496 = vmatmul.mubr.f32.gmra.mxu0 %v6297
      %v6497 = vpop.f32.mrf.mxu0
      %v6498 = vadd.f32 0.0, %v6497
      %v6499 = vpop.f32.mrf.mxu0
      %6500 = vmatprep.mubr.f32.mxu0 0.0
      %6501 = vmatmul.mubr.f32.gmra.mxu0 %v6300
      %v6502 = vpop.f32.mrf.mxu0
      %v6503 = vadd.f32 0.0, %v6502
      %v6504 = vpop.f32.mrf.mxu0
      %6505 = vmatprep.mubr.f32.mxu0 0.0
      %6506 = vmatmul.mubr.f32.gmra.mxu0 %v6303
      %v6507 = vpop.f32.mrf.mxu0
      %v6508 = vadd.f32 0.0, %v6507
      %v6509 = vpop.f32.mrf.mxu0
      %6510 = vmatprep.mubr.f32.mxu0 0.0
      %6511 = vmatmul.mubr.f32.gmra.mxu0 %v6306
      %v6512 = vpop.f32.mrf.mxu0
      %v6513 = vadd.f32 0.0, %v6512
      %v6514 = vpop.f32.mrf.mxu0
      %6515 = vmatprep.mubr.f32.mxu0 0.0
      %6516 = vmatmul.mubr.f32.gmra.mxu0 %v6309
      %v6517 = vpop.f32.mrf.mxu0
      %v6518 = vadd.f32 0.0, %v6517
      %v6519 = vpop.f32.mrf.mxu0
      %6520 = vmatprep.mubr.f32.mxu0 0.0
      %6521 = vmatmul.mubr.f32.gmra.mxu0 %v6312
      %v6522 = vpop.f32.mrf.mxu0
      %v6523 = vadd.f32 0.0, %v6522
      %v6524 = vpop.f32.mrf.mxu0
      %6525 = vmatprep.mubr.f32.mxu0 0.0
      %6526 = vmatmul.mubr.f32.gmra.mxu0 %v6315
      %v6527 = vpop.f32.mrf.mxu0
      %v6528 = vadd.f32 0.0, %v6527
      %v6529 = vpop.f32.mrf.mxu0
      %6530 = vmatprep.mubr.f32.mxu0 0.0
      %6531 = vmatmul.mubr.f32.gmra.mxu0 %v6318
      %v6532 = vpop.f32.mrf.mxu0
      %v6533 = vadd.f32 0.0, %v6532
      %v6534 = vpop.f32.mrf.mxu0
      %6535 = vmatprep.mubr.f32.mxu0 0.0
      %6536 = vmatmul.mubr.f32.gmra.mxu0 %v6321
      %v6537 = vpop.f32.mrf.mxu0
      %v6538 = vadd.f32 0.0, %v6537
      %v6539 = vpop.f32.mrf.mxu0
      %6540 = vmatprep.mubr.f32.mxu0 0.0
      %6541 = vmatmul.mubr.f32.gmra.mxu0 %v6324
      %v6542 = vpop.f32.mrf.mxu0
      %v6543 = vadd.f32 0.0, %v6542
      %v6544 = vpop.f32.mrf.mxu0
      %6545 = vmatprep.mubr.f32.mxu0 0.0
      %6546 = vmatmul.mubr.f32.gmra.mxu0 %v6327
      %v6547 = vpop.f32.mrf.mxu0
      %v6548 = vadd.f32 0.0, %v6547
      %v6549 = vpop.f32.mrf.mxu0
      %6550 = vmatprep.mubr.f32.mxu0 0.0
      %6551 = vmatmul.mubr.f32.gmra.mxu0 %v6330
      %v6552 = vpop.f32.mrf.mxu0
      %v6553 = vadd.f32 0.0, %v6552
      %v6554 = vpop.f32.mrf.mxu0
      %6555 = vmatprep.mubr.f32.mxu0 0.0
      %6556 = vmatmul.mubr.f32.gmra.mxu0 %v6333
      %v6557 = vpop.f32.mrf.mxu0
      %v6558 = vadd.f32 0.0, %v6557
      %v6559 = vpop.f32.mrf.mxu0
      %6560 = vmatprep.mubr.f32.mxu0 0.0
      %6561 = vmatmul.mubr.f32.gmra.mxu0 %v6336
      %v6562 = vpop.f32.mrf.mxu0
      %v6563 = vadd.f32 0.0, %v6562
      %v6564 = vpop.f32.mrf.mxu0
      %6565 = vdwg.mxu0
      %v6566 = vadd.f32 %v6176, %v6408
      %v6567 = vadd.f32 %v6177, %v6413
      %v6568 = vadd.f32 %v6178, %v6418
      %v6569 = vadd.f32 %v6179, %v6423
      %v6570 = vadd.f32 %v6180, %v6428
      %v6571 = vadd.f32 %v6181, %v6433
      %v6572 = vadd.f32 %v6182, %v6438
      %v6573 = vadd.f32 %v6183, %v6443
      %v6574 = vadd.f32 %v6184, %v6448
      %v6575 = vadd.f32 %v6185, %v6453
      %v6576 = vadd.f32 %v6186, %v6458
      %v6577 = vadd.f32 %v6187, %v6463
      %v6578 = vadd.f32 %v6188, %v6468
      %v6579 = vadd.f32 %v6189, %v6473
      %v6580 = vadd.f32 %v6190, %v6478
      %v6581 = vadd.f32 %v6191, %v6483
      %v6582 = vadd.f32 %v6192, %v6488
      %v6583 = vadd.f32 %v6193, %v6493
      %v6584 = vadd.f32 %v6194, %v6498
      %v6585 = vadd.f32 %v6195, %v6503
      %v6586 = vadd.f32 %v6196, %v6508
      %v6587 = vadd.f32 %v6197, %v6513
      %v6588 = vadd.f32 %v6198, %v6518
      %v6589 = vadd.f32 %v6199, %v6523
      %v6590 = vadd.f32 %v6200, %v6528
      %v6591 = vadd.f32 %v6201, %v6533
      %v6592 = vadd.f32 %v6202, %v6538
      %v6593 = vadd.f32 %v6203, %v6543
      %v6594 = vadd.f32 %v6204, %v6548
      %v6595 = vadd.f32 %v6205, %v6553
      %v6596 = vadd.f32 %v6206, %v6558
      %v6597 = vadd.f32 %v6207, %v6563
      %s6598 = scalar_lea.vmem [#allocation3], 48
      %v6599 = vld [vmem:[%s6598] sm:$0xff]
      %v6600 = vld [vmem:[%s6598 + $0x8] sm:$0xff]
      %v6601 = vld [vmem:[%s6598 + $0x18] sm:$0xff]
      %v6602 = vld [vmem:[%s6598 + $0x20] sm:$0xff]
      %v6603 = vld [vmem:[%s6598 + $0x30] sm:$0xff]
      %v6604 = vld [vmem:[%s6598 + $0x38] sm:$0xff]
      %v6605 = vld [vmem:[%s6598 + $0x48] sm:$0xff]
      %v6606 = vld [vmem:[%s6598 + $0x50] sm:$0xff]
      %v6607 = vld [vmem:[%s6598 + $0x60] sm:$0xff]
      %v6608 = vld [vmem:[%s6598 + $0x68] sm:$0xff]
      %v6609 = vld [vmem:[%s6598 + $0x78] sm:$0xff]
      %v6610 = vld [vmem:[%s6598 + $0x80] sm:$0xff]
      %v6611 = vld [vmem:[%s6598 + $0x90] sm:$0xff]
      %v6612 = vld [vmem:[%s6598 + $0x98] sm:$0xff]
      %v6613 = vld [vmem:[%s6598 + $0xa8] sm:$0xff]
      %v6614 = vld [vmem:[%s6598 + $0xb0] sm:$0xff]
      %v6615 = vld [vmem:[%s6598 + $0xc0] sm:$0xff]
      %v6616 = vld [vmem:[%s6598 + $0xc8] sm:$0xff]
      %v6617 = vld [vmem:[%s6598 + $0xd8] sm:$0xff]
      %v6618 = vld [vmem:[%s6598 + $0xe0] sm:$0xff]
      %v6619 = vld [vmem:[%s6598 + $0xf0] sm:$0xff]
      %v6620 = vld [vmem:[%s6598 + $0xf8] sm:$0xff]
      %v6621 = vld [vmem:[%s6598 + $0x108] sm:$0xff]
      %v6622 = vld [vmem:[%s6598 + $0x110] sm:$0xff]
      %v6623 = vld [vmem:[%s6598 + $0x120] sm:$0xff]
      %v6624 = vld [vmem:[%s6598 + $0x128] sm:$0xff]
      %v6625 = vld [vmem:[%s6598 + $0x138] sm:$0xff]
      %v6626 = vld [vmem:[%s6598 + $0x140] sm:$0xff]
      %v6627 = vld [vmem:[%s6598 + $0x150] sm:$0xff]
      %v6628 = vld [vmem:[%s6598 + $0x158] sm:$0xff]
      %v6629 = vld [vmem:[%s6598 + $0x168] sm:$0xff]
      %v6630 = vld [vmem:[%s6598 + $0x170] sm:$0xff]
      %s6631 = scalar_lea.vmem %s5, 24
      %v6632 = vld [vmem:[%s6631] sm:$0xf]
      %v6634 = vsel %vm415, %v6599, 0
      %v6637 = vsel %vm415, %v6600, 0
      %v6640 = vsel %vm415, %v6601, 0
      %v6643 = vsel %vm415, %v6602, 0
      %v6646 = vsel %vm415, %v6603, 0
      %v6649 = vsel %vm415, %v6604, 0
      %v6652 = vsel %vm415, %v6605, 0
      %v6655 = vsel %vm415, %v6606, 0
      %v6658 = vsel %vm415, %v6607, 0
      %v6661 = vsel %vm415, %v6608, 0
      %v6664 = vsel %vm415, %v6609, 0
      %v6667 = vsel %vm415, %v6610, 0
      %v6670 = vsel %vm415, %v6611, 0
      %v6673 = vsel %vm415, %v6612, 0
      %v6676 = vsel %vm415, %v6613, 0
      %v6679 = vsel %vm415, %v6614, 0
      %v6682 = vsel %vm415, %v6615, 0
      %v6685 = vsel %vm415, %v6616, 0
      %v6688 = vsel %vm415, %v6617, 0
      %v6691 = vsel %vm415, %v6618, 0
      %v6694 = vsel %vm415, %v6619, 0
      %v6697 = vsel %vm415, %v6620, 0
      %v6700 = vsel %vm415, %v6621, 0
      %v6703 = vsel %vm415, %v6622, 0
      %v6706 = vsel %vm415, %v6623, 0
      %v6709 = vsel %vm415, %v6624, 0
      %v6712 = vsel %vm415, %v6625, 0
      %v6715 = vsel %vm415, %v6626, 0
      %v6718 = vsel %vm415, %v6627, 0
      %v6721 = vsel %vm415, %v6628, 0
      %v6724 = vsel %vm415, %v6629, 0
      %v6727 = vsel %vm415, %v6630, 0
      %v6730 = vsel %vm4485, %v6632, 0
      %6732 = vmatprep.subr.mxu0 0.0
      %6733 = vmatpush1.msra.mxu0 0.0
      %6734 = vmatprep.subr.mxu0 0.0
      %6735 = vmatpush1.msra.mxu0 0.0
      %6736 = vmatprep.subr.mxu0 0.0
      %6737 = vmatpush1.msra.mxu0 0.0
      %6738 = vmatprep.subr.mxu0 0.0
      %6739 = vmatpush1.msra.mxu0 0.0
      %6740 = vmatprep.subr.mxu0 0.0
      %6741 = vmatpush1.msra.mxu0 0.0
      %6742 = vmatprep.subr.mxu0 0.0
      %6743 = vmatpush1.msra.mxu0 0.0
      %6744 = vmatprep.subr.mxu0 0.0
      %6745 = vmatpush1.msra.mxu0 0.0
      %6746 = vmatprep.subr.mxu0 0.0
      %6747 = vmatpush1.msra.mxu0 0.0
      %6748 = vmatprep.subr.mxu0 0.0
      %6749 = vmatpush1.msra.mxu0 0.0
      %6750 = vmatprep.subr.mxu0 0.0
      %6751 = vmatpush1.msra.mxu0 0.0
      %6752 = vmatprep.subr.mxu0 0.0
      %6753 = vmatpush1.msra.mxu0 0.0
      %6754 = vmatprep.subr.mxu0 0.0
      %6755 = vmatpush1.msra.mxu0 0.0
      %6756 = vmatprep.subr.mxu0 0.0
      %6757 = vmatpush1.msra.mxu0 0.0
      %6758 = vmatprep.subr.mxu0 0.0
      %6759 = vmatpush1.msra.mxu0 0.0
      %6760 = vmatprep.subr.mxu0 0.0
      %6761 = vmatpush1.msra.mxu0 0.0
      %6762 = vmatprep.subr.mxu0 0.0
      %6763 = vmatpush1.msra.mxu0 %v6730
      %6764 = vmatprep.subr.mxu0 0.0
      %6765 = vmatpush2.msra.mxu0 0.0
      %6766 = vmatprep.subr.mxu0 0.0
      %6767 = vmatpush2.msra.mxu0 0.0
      %6768 = vmatprep.subr.mxu0 0.0
      %6769 = vmatpush2.msra.mxu0 0.0
      %6770 = vmatprep.subr.mxu0 0.0
      %6771 = vmatpush2.msra.mxu0 0.0
      %6772 = vmatprep.subr.mxu0 0.0
      %6773 = vmatpush2.msra.mxu0 0.0
      %6774 = vmatprep.subr.mxu0 0.0
      %6775 = vmatpush2.msra.mxu0 0.0
      %6776 = vmatprep.subr.mxu0 0.0
      %6777 = vmatpush2.msra.mxu0 0.0
      %6778 = vmatprep.subr.mxu0 0.0
      %6779 = vmatpush2.msra.mxu0 0.0
      %6780 = vmatprep.subr.mxu0 0.0
      %6781 = vmatpush2.msra.mxu0 0.0
      %6782 = vmatprep.subr.mxu0 0.0
      %6783 = vmatpush2.msra.mxu0 0.0
      %6784 = vmatprep.subr.mxu0 0.0
      %6785 = vmatpush2.msra.mxu0 0.0
      %6786 = vmatprep.subr.mxu0 0.0
      %6787 = vmatpush2.msra.mxu0 0.0
      %6788 = vmatprep.subr.mxu0 0.0
      %6789 = vmatpush2.msra.mxu0 0.0
      %6790 = vmatprep.subr.mxu0 0.0
      %6791 = vmatpush2.msra.mxu0 0.0
      %6792 = vmatprep.subr.mxu0 0.0
      %6793 = vmatpush2.msra.mxu0 0.0
      %6794 = vmatprep.subr.mxu0 0.0
      %6795 = vmatpush2.msra.mxu0 0.0
      %6796 = vmatprep.mubr.f32.mxu0 0.0
      %6797 = vmatmul.mubr.f32.gmra.mxu0 %v6634
      %v6798 = vpop.f32.mrf.mxu0
      %v6799 = vadd.f32 0.0, %v6798
      %v6800 = vpop.f32.mrf.mxu0
      %6801 = vmatprep.mubr.f32.mxu0 0.0
      %6802 = vmatmul.mubr.f32.gmra.mxu0 %v6637
      %v6803 = vpop.f32.mrf.mxu0
      %v6804 = vadd.f32 0.0, %v6803
      %v6805 = vpop.f32.mrf.mxu0
      %6806 = vmatprep.mubr.f32.mxu0 0.0
      %6807 = vmatmul.mubr.f32.gmra.mxu0 %v6640
      %v6808 = vpop.f32.mrf.mxu0
      %v6809 = vadd.f32 0.0, %v6808
      %v6810 = vpop.f32.mrf.mxu0
      %6811 = vmatprep.mubr.f32.mxu0 0.0
      %6812 = vmatmul.mubr.f32.gmra.mxu0 %v6643
      %v6813 = vpop.f32.mrf.mxu0
      %v6814 = vadd.f32 0.0, %v6813
      %v6815 = vpop.f32.mrf.mxu0
      %6816 = vmatprep.mubr.f32.mxu0 0.0
      %6817 = vmatmul.mubr.f32.gmra.mxu0 %v6646
      %v6818 = vpop.f32.mrf.mxu0
      %v6819 = vadd.f32 0.0, %v6818
      %v6820 = vpop.f32.mrf.mxu0
      %6821 = vmatprep.mubr.f32.mxu0 0.0
      %6822 = vmatmul.mubr.f32.gmra.mxu0 %v6649
      %v6823 = vpop.f32.mrf.mxu0
      %v6824 = vadd.f32 0.0, %v6823
      %v6825 = vpop.f32.mrf.mxu0
      %6826 = vmatprep.mubr.f32.mxu0 0.0
      %6827 = vmatmul.mubr.f32.gmra.mxu0 %v6652
      %v6828 = vpop.f32.mrf.mxu0
      %v6829 = vadd.f32 0.0, %v6828
      %v6830 = vpop.f32.mrf.mxu0
      %6831 = vmatprep.mubr.f32.mxu0 0.0
      %6832 = vmatmul.mubr.f32.gmra.mxu0 %v6655
      %v6833 = vpop.f32.mrf.mxu0
      %v6834 = vadd.f32 0.0, %v6833
      %v6835 = vpop.f32.mrf.mxu0
      %6836 = vmatprep.mubr.f32.mxu0 0.0
      %6837 = vmatmul.mubr.f32.gmra.mxu0 %v6658
      %v6838 = vpop.f32.mrf.mxu0
      %v6839 = vadd.f32 0.0, %v6838
      %v6840 = vpop.f32.mrf.mxu0
      %6841 = vmatprep.mubr.f32.mxu0 0.0
      %6842 = vmatmul.mubr.f32.gmra.mxu0 %v6661
      %v6843 = vpop.f32.mrf.mxu0
      %v6844 = vadd.f32 0.0, %v6843
      %v6845 = vpop.f32.mrf.mxu0
      %6846 = vmatprep.mubr.f32.mxu0 0.0
      %6847 = vmatmul.mubr.f32.gmra.mxu0 %v6664
      %v6848 = vpop.f32.mrf.mxu0
      %v6849 = vadd.f32 0.0, %v6848
      %v6850 = vpop.f32.mrf.mxu0
      %6851 = vmatprep.mubr.f32.mxu0 0.0
      %6852 = vmatmul.mubr.f32.gmra.mxu0 %v6667
      %v6853 = vpop.f32.mrf.mxu0
      %v6854 = vadd.f32 0.0, %v6853
      %v6855 = vpop.f32.mrf.mxu0
      %6856 = vmatprep.mubr.f32.mxu0 0.0
      %6857 = vmatmul.mubr.f32.gmra.mxu0 %v6670
      %v6858 = vpop.f32.mrf.mxu0
      %v6859 = vadd.f32 0.0, %v6858
      %v6860 = vpop.f32.mrf.mxu0
      %6861 = vmatprep.mubr.f32.mxu0 0.0
      %6862 = vmatmul.mubr.f32.gmra.mxu0 %v6673
      %v6863 = vpop.f32.mrf.mxu0
      %v6864 = vadd.f32 0.0, %v6863
      %v6865 = vpop.f32.mrf.mxu0
      %6866 = vmatprep.mubr.f32.mxu0 0.0
      %6867 = vmatmul.mubr.f32.gmra.mxu0 %v6676
      %v6868 = vpop.f32.mrf.mxu0
      %v6869 = vadd.f32 0.0, %v6868
      %v6870 = vpop.f32.mrf.mxu0
      %6871 = vmatprep.mubr.f32.mxu0 0.0
      %6872 = vmatmul.mubr.f32.gmra.mxu0 %v6679
      %v6873 = vpop.f32.mrf.mxu0
      %v6874 = vadd.f32 0.0, %v6873
      %v6875 = vpop.f32.mrf.mxu0
      %6876 = vmatprep.mubr.f32.mxu0 0.0
      %6877 = vmatmul.mubr.f32.gmra.mxu0 %v6682
      %v6878 = vpop.f32.mrf.mxu0
      %v6879 = vadd.f32 0.0, %v6878
      %v6880 = vpop.f32.mrf.mxu0
      %6881 = vmatprep.mubr.f32.mxu0 0.0
      %6882 = vmatmul.mubr.f32.gmra.mxu0 %v6685
      %v6883 = vpop.f32.mrf.mxu0
      %v6884 = vadd.f32 0.0, %v6883
      %v6885 = vpop.f32.mrf.mxu0
      %6886 = vmatprep.mubr.f32.mxu0 0.0
      %6887 = vmatmul.mubr.f32.gmra.mxu0 %v6688
      %v6888 = vpop.f32.mrf.mxu0
      %v6889 = vadd.f32 0.0, %v6888
      %v6890 = vpop.f32.mrf.mxu0
      %6891 = vmatprep.mubr.f32.mxu0 0.0
      %6892 = vmatmul.mubr.f32.gmra.mxu0 %v6691
      %v6893 = vpop.f32.mrf.mxu0
      %v6894 = vadd.f32 0.0, %v6893
      %v6895 = vpop.f32.mrf.mxu0
      %6896 = vmatprep.mubr.f32.mxu0 0.0
      %6897 = vmatmul.mubr.f32.gmra.mxu0 %v6694
      %v6898 = vpop.f32.mrf.mxu0
      %v6899 = vadd.f32 0.0, %v6898
      %v6900 = vpop.f32.mrf.mxu0
      %6901 = vmatprep.mubr.f32.mxu0 0.0
      %6902 = vmatmul.mubr.f32.gmra.mxu0 %v6697
      %v6903 = vpop.f32.mrf.mxu0
      %v6904 = vadd.f32 0.0, %v6903
      %v6905 = vpop.f32.mrf.mxu0
      %6906 = vmatprep.mubr.f32.mxu0 0.0
      %6907 = vmatmul.mubr.f32.gmra.mxu0 %v6700
      %v6908 = vpop.f32.mrf.mxu0
      %v6909 = vadd.f32 0.0, %v6908
      %v6910 = vpop.f32.mrf.mxu0
      %6911 = vmatprep.mubr.f32.mxu0 0.0
      %6912 = vmatmul.mubr.f32.gmra.mxu0 %v6703
      %v6913 = vpop.f32.mrf.mxu0
      %v6914 = vadd.f32 0.0, %v6913
      %v6915 = vpop.f32.mrf.mxu0
      %6916 = vmatprep.mubr.f32.mxu0 0.0
      %6917 = vmatmul.mubr.f32.gmra.mxu0 %v6706
      %v6918 = vpop.f32.mrf.mxu0
      %v6919 = vadd.f32 0.0, %v6918
      %v6920 = vpop.f32.mrf.mxu0
      %6921 = vmatprep.mubr.f32.mxu0 0.0
      %6922 = vmatmul.mubr.f32.gmra.mxu0 %v6709
      %v6923 = vpop.f32.mrf.mxu0
      %v6924 = vadd.f32 0.0, %v6923
      %v6925 = vpop.f32.mrf.mxu0
      %6926 = vmatprep.mubr.f32.mxu0 0.0
      %6927 = vmatmul.mubr.f32.gmra.mxu0 %v6712
      %v6928 = vpop.f32.mrf.mxu0
      %v6929 = vadd.f32 0.0, %v6928
      %v6930 = vpop.f32.mrf.mxu0
      %6931 = vmatprep.mubr.f32.mxu0 0.0
      %6932 = vmatmul.mubr.f32.gmra.mxu0 %v6715
      %v6933 = vpop.f32.mrf.mxu0
      %v6934 = vadd.f32 0.0, %v6933
      %v6935 = vpop.f32.mrf.mxu0
      %6936 = vmatprep.mubr.f32.mxu0 0.0
      %6937 = vmatmul.mubr.f32.gmra.mxu0 %v6718
      %v6938 = vpop.f32.mrf.mxu0
      %v6939 = vadd.f32 0.0, %v6938
      %v6940 = vpop.f32.mrf.mxu0
      %6941 = vmatprep.mubr.f32.mxu0 0.0
      %6942 = vmatmul.mubr.f32.gmra.mxu0 %v6721
      %v6943 = vpop.f32.mrf.mxu0
      %v6944 = vadd.f32 0.0, %v6943
      %v6945 = vpop.f32.mrf.mxu0
      %6946 = vmatprep.mubr.f32.mxu0 0.0
      %6947 = vmatmul.mubr.f32.gmra.mxu0 %v6724
      %v6948 = vpop.f32.mrf.mxu0
      %v6949 = vadd.f32 0.0, %v6948
      %v6950 = vpop.f32.mrf.mxu0
      %6951 = vmatprep.mubr.f32.mxu0 0.0
      %6952 = vmatmul.mubr.f32.gmra.mxu0 %v6727
      %v6953 = vpop.f32.mrf.mxu0
      %v6954 = vadd.f32 0.0, %v6953
      %v6955 = vpop.f32.mrf.mxu0
      %6956 = vdwg.mxu0
      %v6957 = vadd.f32 %v6566, %v6799
      %v6958 = vadd.f32 %v6567, %v6804
      %v6959 = vadd.f32 %v6568, %v6809
      %v6960 = vadd.f32 %v6569, %v6814
      %v6961 = vadd.f32 %v6570, %v6819
      %v6962 = vadd.f32 %v6571, %v6824
      %v6963 = vadd.f32 %v6572, %v6829
      %v6964 = vadd.f32 %v6573, %v6834
      %v6965 = vadd.f32 %v6574, %v6839
      %v6966 = vadd.f32 %v6575, %v6844
      %v6967 = vadd.f32 %v6576, %v6849
      %v6968 = vadd.f32 %v6577, %v6854
      %v6969 = vadd.f32 %v6578, %v6859
      %v6970 = vadd.f32 %v6579, %v6864
      %v6971 = vadd.f32 %v6580, %v6869
      %v6972 = vadd.f32 %v6581, %v6874
      %v6973 = vadd.f32 %v6582, %v6879
      %v6974 = vadd.f32 %v6583, %v6884
      %v6975 = vadd.f32 %v6584, %v6889
      %v6976 = vadd.f32 %v6585, %v6894
      %v6977 = vadd.f32 %v6586, %v6899
      %v6978 = vadd.f32 %v6587, %v6904
      %v6979 = vadd.f32 %v6588, %v6909
      %v6980 = vadd.f32 %v6589, %v6914
      %v6981 = vadd.f32 %v6590, %v6919
      %v6982 = vadd.f32 %v6591, %v6924
      %v6983 = vadd.f32 %v6592, %v6929
      %v6984 = vadd.f32 %v6593, %v6934
      %v6985 = vadd.f32 %v6594, %v6939
      %v6986 = vadd.f32 %v6595, %v6944
      %v6987 = vadd.f32 %v6596, %v6949
      %v6988 = vadd.f32 %v6597, %v6954
      %v6989 = vld [vmem:[%s6598 + $0x1] sm:$0xff]
      %v6990 = vld [vmem:[%s6598 + $0x9] sm:$0xff]
      %v6991 = vld [vmem:[%s6598 + $0x19] sm:$0xff]
      %v6992 = vld [vmem:[%s6598 + $0x21] sm:$0xff]
      %v6993 = vld [vmem:[%s6598 + $0x31] sm:$0xff]
      %v6994 = vld [vmem:[%s6598 + $0x39] sm:$0xff]
      %v6995 = vld [vmem:[%s6598 + $0x49] sm:$0xff]
      %v6996 = vld [vmem:[%s6598 + $0x51] sm:$0xff]
      %v6997 = vld [vmem:[%s6598 + $0x61] sm:$0xff]
      %v6998 = vld [vmem:[%s6598 + $0x69] sm:$0xff]
      %v6999 = vld [vmem:[%s6598 + $0x79] sm:$0xff]
      %v7000 = vld [vmem:[%s6598 + $0x81] sm:$0xff]
      %v7001 = vld [vmem:[%s6598 + $0x91] sm:$0xff]
      %v7002 = vld [vmem:[%s6598 + $0x99] sm:$0xff]
      %v7003 = vld [vmem:[%s6598 + $0xa9] sm:$0xff]
      %v7004 = vld [vmem:[%s6598 + $0xb1] sm:$0xff]
      %v7005 = vld [vmem:[%s6598 + $0xc1] sm:$0xff]
      %v7006 = vld [vmem:[%s6598 + $0xc9] sm:$0xff]
      %v7007 = vld [vmem:[%s6598 + $0xd9] sm:$0xff]
      %v7008 = vld [vmem:[%s6598 + $0xe1] sm:$0xff]
      %v7009 = vld [vmem:[%s6598 + $0xf1] sm:$0xff]
      %v7010 = vld [vmem:[%s6598 + $0xf9] sm:$0xff]
      %v7011 = vld [vmem:[%s6598 + $0x109] sm:$0xff]
      %v7012 = vld [vmem:[%s6598 + $0x111] sm:$0xff]
      %v7013 = vld [vmem:[%s6598 + $0x121] sm:$0xff]
      %v7014 = vld [vmem:[%s6598 + $0x129] sm:$0xff]
      %v7015 = vld [vmem:[%s6598 + $0x139] sm:$0xff]
      %v7016 = vld [vmem:[%s6598 + $0x141] sm:$0xff]
      %v7017 = vld [vmem:[%s6598 + $0x151] sm:$0xff]
      %v7018 = vld [vmem:[%s6598 + $0x159] sm:$0xff]
      %v7019 = vld [vmem:[%s6598 + $0x169] sm:$0xff]
      %v7020 = vld [vmem:[%s6598 + $0x171] sm:$0xff]
      %s7021 = scalar_lea.vmem %s5, 28
      %v7022 = vld [vmem:[%s7021] sm:$0xf]
      %v7024 = vsel %vm415, %v6989, 0
      %v7027 = vsel %vm415, %v6990, 0
      %v7030 = vsel %vm415, %v6991, 0
      %v7033 = vsel %vm415, %v6992, 0
      %v7036 = vsel %vm415, %v6993, 0
      %v7039 = vsel %vm415, %v6994, 0
      %v7042 = vsel %vm415, %v6995, 0
      %v7045 = vsel %vm415, %v6996, 0
      %v7048 = vsel %vm415, %v6997, 0
      %v7051 = vsel %vm415, %v6998, 0
      %v7054 = vsel %vm415, %v6999, 0
      %v7057 = vsel %vm415, %v7000, 0
      %v7060 = vsel %vm415, %v7001, 0
      %v7063 = vsel %vm415, %v7002, 0
      %v7066 = vsel %vm415, %v7003, 0
      %v7069 = vsel %vm415, %v7004, 0
      %v7072 = vsel %vm415, %v7005, 0
      %v7075 = vsel %vm415, %v7006, 0
      %v7078 = vsel %vm415, %v7007, 0
      %v7081 = vsel %vm415, %v7008, 0
      %v7084 = vsel %vm415, %v7009, 0
      %v7087 = vsel %vm415, %v7010, 0
      %v7090 = vsel %vm415, %v7011, 0
      %v7093 = vsel %vm415, %v7012, 0
      %v7096 = vsel %vm415, %v7013, 0
      %v7099 = vsel %vm415, %v7014, 0
      %v7102 = vsel %vm415, %v7015, 0
      %v7105 = vsel %vm415, %v7016, 0
      %v7108 = vsel %vm415, %v7017, 0
      %v7111 = vsel %vm415, %v7018, 0
      %v7114 = vsel %vm415, %v7019, 0
      %v7117 = vsel %vm415, %v7020, 0
      %v7120 = vsel %vm4485, %v7022, 0
      %7122 = vmatprep.subr.mxu0 0.0
      %7123 = vmatpush1.msra.mxu0 0.0
      %7124 = vmatprep.subr.mxu0 0.0
      %7125 = vmatpush1.msra.mxu0 0.0
      %7126 = vmatprep.subr.mxu0 0.0
      %7127 = vmatpush1.msra.mxu0 0.0
      %7128 = vmatprep.subr.mxu0 0.0
      %7129 = vmatpush1.msra.mxu0 0.0
      %7130 = vmatprep.subr.mxu0 0.0
      %7131 = vmatpush1.msra.mxu0 0.0
      %7132 = vmatprep.subr.mxu0 0.0
      %7133 = vmatpush1.msra.mxu0 0.0
      %7134 = vmatprep.subr.mxu0 0.0
      %7135 = vmatpush1.msra.mxu0 0.0
      %7136 = vmatprep.subr.mxu0 0.0
      %7137 = vmatpush1.msra.mxu0 0.0
      %7138 = vmatprep.subr.mxu0 0.0
      %7139 = vmatpush1.msra.mxu0 0.0
      %7140 = vmatprep.subr.mxu0 0.0
      %7141 = vmatpush1.msra.mxu0 0.0
      %7142 = vmatprep.subr.mxu0 0.0
      %7143 = vmatpush1.msra.mxu0 0.0
      %7144 = vmatprep.subr.mxu0 0.0
      %7145 = vmatpush1.msra.mxu0 0.0
      %7146 = vmatprep.subr.mxu0 0.0
      %7147 = vmatpush1.msra.mxu0 0.0
      %7148 = vmatprep.subr.mxu0 0.0
      %7149 = vmatpush1.msra.mxu0 0.0
      %7150 = vmatprep.subr.mxu0 0.0
      %7151 = vmatpush1.msra.mxu0 0.0
      %7152 = vmatprep.subr.mxu0 0.0
      %7153 = vmatpush1.msra.mxu0 %v7120
      %7154 = vmatprep.subr.mxu0 0.0
      %7155 = vmatpush2.msra.mxu0 0.0
      %7156 = vmatprep.subr.mxu0 0.0
      %7157 = vmatpush2.msra.mxu0 0.0
      %7158 = vmatprep.subr.mxu0 0.0
      %7159 = vmatpush2.msra.mxu0 0.0
      %7160 = vmatprep.subr.mxu0 0.0
      %7161 = vmatpush2.msra.mxu0 0.0
      %7162 = vmatprep.subr.mxu0 0.0
      %7163 = vmatpush2.msra.mxu0 0.0
      %7164 = vmatprep.subr.mxu0 0.0
      %7165 = vmatpush2.msra.mxu0 0.0
      %7166 = vmatprep.subr.mxu0 0.0
      %7167 = vmatpush2.msra.mxu0 0.0
      %7168 = vmatprep.subr.mxu0 0.0
      %7169 = vmatpush2.msra.mxu0 0.0
      %7170 = vmatprep.subr.mxu0 0.0
      %7171 = vmatpush2.msra.mxu0 0.0
      %7172 = vmatprep.subr.mxu0 0.0
      %7173 = vmatpush2.msra.mxu0 0.0
      %7174 = vmatprep.subr.mxu0 0.0
      %7175 = vmatpush2.msra.mxu0 0.0
      %7176 = vmatprep.subr.mxu0 0.0
      %7177 = vmatpush2.msra.mxu0 0.0
      %7178 = vmatprep.subr.mxu0 0.0
      %7179 = vmatpush2.msra.mxu0 0.0
      %7180 = vmatprep.subr.mxu0 0.0
      %7181 = vmatpush2.msra.mxu0 0.0
      %7182 = vmatprep.subr.mxu0 0.0
      %7183 = vmatpush2.msra.mxu0 0.0
      %7184 = vmatprep.subr.mxu0 0.0
      %7185 = vmatpush2.msra.mxu0 0.0
      %7186 = vmatprep.mubr.f32.mxu0 0.0
      %7187 = vmatmul.mubr.f32.gmra.mxu0 %v7024
      %v7188 = vpop.f32.mrf.mxu0
      %v7189 = vadd.f32 0.0, %v7188
      %v7190 = vpop.f32.mrf.mxu0
      %7191 = vmatprep.mubr.f32.mxu0 0.0
      %7192 = vmatmul.mubr.f32.gmra.mxu0 %v7027
      %v7193 = vpop.f32.mrf.mxu0
      %v7194 = vadd.f32 0.0, %v7193
      %v7195 = vpop.f32.mrf.mxu0
      %7196 = vmatprep.mubr.f32.mxu0 0.0
      %7197 = vmatmul.mubr.f32.gmra.mxu0 %v7030
      %v7198 = vpop.f32.mrf.mxu0
      %v7199 = vadd.f32 0.0, %v7198
      %v7200 = vpop.f32.mrf.mxu0
      %7201 = vmatprep.mubr.f32.mxu0 0.0
      %7202 = vmatmul.mubr.f32.gmra.mxu0 %v7033
      %v7203 = vpop.f32.mrf.mxu0
      %v7204 = vadd.f32 0.0, %v7203
      %v7205 = vpop.f32.mrf.mxu0
      %7206 = vmatprep.mubr.f32.mxu0 0.0
      %7207 = vmatmul.mubr.f32.gmra.mxu0 %v7036
      %v7208 = vpop.f32.mrf.mxu0
      %v7209 = vadd.f32 0.0, %v7208
      %v7210 = vpop.f32.mrf.mxu0
      %7211 = vmatprep.mubr.f32.mxu0 0.0
      %7212 = vmatmul.mubr.f32.gmra.mxu0 %v7039
      %v7213 = vpop.f32.mrf.mxu0
      %v7214 = vadd.f32 0.0, %v7213
      %v7215 = vpop.f32.mrf.mxu0
      %7216 = vmatprep.mubr.f32.mxu0 0.0
      %7217 = vmatmul.mubr.f32.gmra.mxu0 %v7042
      %v7218 = vpop.f32.mrf.mxu0
      %v7219 = vadd.f32 0.0, %v7218
      %v7220 = vpop.f32.mrf.mxu0
      %7221 = vmatprep.mubr.f32.mxu0 0.0
      %7222 = vmatmul.mubr.f32.gmra.mxu0 %v7045
      %v7223 = vpop.f32.mrf.mxu0
      %v7224 = vadd.f32 0.0, %v7223
      %v7225 = vpop.f32.mrf.mxu0
      %7226 = vmatprep.mubr.f32.mxu0 0.0
      %7227 = vmatmul.mubr.f32.gmra.mxu0 %v7048
      %v7228 = vpop.f32.mrf.mxu0
      %v7229 = vadd.f32 0.0, %v7228
      %v7230 = vpop.f32.mrf.mxu0
      %7231 = vmatprep.mubr.f32.mxu0 0.0
      %7232 = vmatmul.mubr.f32.gmra.mxu0 %v7051
      %v7233 = vpop.f32.mrf.mxu0
      %v7234 = vadd.f32 0.0, %v7233
      %v7235 = vpop.f32.mrf.mxu0
      %7236 = vmatprep.mubr.f32.mxu0 0.0
      %7237 = vmatmul.mubr.f32.gmra.mxu0 %v7054
      %v7238 = vpop.f32.mrf.mxu0
      %v7239 = vadd.f32 0.0, %v7238
      %v7240 = vpop.f32.mrf.mxu0
      %7241 = vmatprep.mubr.f32.mxu0 0.0
      %7242 = vmatmul.mubr.f32.gmra.mxu0 %v7057
      %v7243 = vpop.f32.mrf.mxu0
      %v7244 = vadd.f32 0.0, %v7243
      %v7245 = vpop.f32.mrf.mxu0
      %7246 = vmatprep.mubr.f32.mxu0 0.0
      %7247 = vmatmul.mubr.f32.gmra.mxu0 %v7060
      %v7248 = vpop.f32.mrf.mxu0
      %v7249 = vadd.f32 0.0, %v7248
      %v7250 = vpop.f32.mrf.mxu0
      %7251 = vmatprep.mubr.f32.mxu0 0.0
      %7252 = vmatmul.mubr.f32.gmra.mxu0 %v7063
      %v7253 = vpop.f32.mrf.mxu0
      %v7254 = vadd.f32 0.0, %v7253
      %v7255 = vpop.f32.mrf.mxu0
      %7256 = vmatprep.mubr.f32.mxu0 0.0
      %7257 = vmatmul.mubr.f32.gmra.mxu0 %v7066
      %v7258 = vpop.f32.mrf.mxu0
      %v7259 = vadd.f32 0.0, %v7258
      %v7260 = vpop.f32.mrf.mxu0
      %7261 = vmatprep.mubr.f32.mxu0 0.0
      %7262 = vmatmul.mubr.f32.gmra.mxu0 %v7069
      %v7263 = vpop.f32.mrf.mxu0
      %v7264 = vadd.f32 0.0, %v7263
      %v7265 = vpop.f32.mrf.mxu0
      %7266 = vmatprep.mubr.f32.mxu0 0.0
      %7267 = vmatmul.mubr.f32.gmra.mxu0 %v7072
      %v7268 = vpop.f32.mrf.mxu0
      %v7269 = vadd.f32 0.0, %v7268
      %v7270 = vpop.f32.mrf.mxu0
      %7271 = vmatprep.mubr.f32.mxu0 0.0
      %7272 = vmatmul.mubr.f32.gmra.mxu0 %v7075
      %v7273 = vpop.f32.mrf.mxu0
      %v7274 = vadd.f32 0.0, %v7273
      %v7275 = vpop.f32.mrf.mxu0
      %7276 = vmatprep.mubr.f32.mxu0 0.0
      %7277 = vmatmul.mubr.f32.gmra.mxu0 %v7078
      %v7278 = vpop.f32.mrf.mxu0
      %v7279 = vadd.f32 0.0, %v7278
      %v7280 = vpop.f32.mrf.mxu0
      %7281 = vmatprep.mubr.f32.mxu0 0.0
      %7282 = vmatmul.mubr.f32.gmra.mxu0 %v7081
      %v7283 = vpop.f32.mrf.mxu0
      %v7284 = vadd.f32 0.0, %v7283
      %v7285 = vpop.f32.mrf.mxu0
      %7286 = vmatprep.mubr.f32.mxu0 0.0
      %7287 = vmatmul.mubr.f32.gmra.mxu0 %v7084
      %v7288 = vpop.f32.mrf.mxu0
      %v7289 = vadd.f32 0.0, %v7288
      %v7290 = vpop.f32.mrf.mxu0
      %7291 = vmatprep.mubr.f32.mxu0 0.0
      %7292 = vmatmul.mubr.f32.gmra.mxu0 %v7087
      %v7293 = vpop.f32.mrf.mxu0
      %v7294 = vadd.f32 0.0, %v7293
      %v7295 = vpop.f32.mrf.mxu0
      %7296 = vmatprep.mubr.f32.mxu0 0.0
      %7297 = vmatmul.mubr.f32.gmra.mxu0 %v7090
      %v7298 = vpop.f32.mrf.mxu0
      %v7299 = vadd.f32 0.0, %v7298
      %v7300 = vpop.f32.mrf.mxu0
      %7301 = vmatprep.mubr.f32.mxu0 0.0
      %7302 = vmatmul.mubr.f32.gmra.mxu0 %v7093
      %v7303 = vpop.f32.mrf.mxu0
      %v7304 = vadd.f32 0.0, %v7303
      %v7305 = vpop.f32.mrf.mxu0
      %7306 = vmatprep.mubr.f32.mxu0 0.0
      %7307 = vmatmul.mubr.f32.gmra.mxu0 %v7096
      %v7308 = vpop.f32.mrf.mxu0
      %v7309 = vadd.f32 0.0, %v7308
      %v7310 = vpop.f32.mrf.mxu0
      %7311 = vmatprep.mubr.f32.mxu0 0.0
      %7312 = vmatmul.mubr.f32.gmra.mxu0 %v7099
      %v7313 = vpop.f32.mrf.mxu0
      %v7314 = vadd.f32 0.0, %v7313
      %v7315 = vpop.f32.mrf.mxu0
      %7316 = vmatprep.mubr.f32.mxu0 0.0
      %7317 = vmatmul.mubr.f32.gmra.mxu0 %v7102
      %v7318 = vpop.f32.mrf.mxu0
      %v7319 = vadd.f32 0.0, %v7318
      %v7320 = vpop.f32.mrf.mxu0
      %7321 = vmatprep.mubr.f32.mxu0 0.0
      %7322 = vmatmul.mubr.f32.gmra.mxu0 %v7105
      %v7323 = vpop.f32.mrf.mxu0
      %v7324 = vadd.f32 0.0, %v7323
      %v7325 = vpop.f32.mrf.mxu0
      %7326 = vmatprep.mubr.f32.mxu0 0.0
      %7327 = vmatmul.mubr.f32.gmra.mxu0 %v7108
      %v7328 = vpop.f32.mrf.mxu0
      %v7329 = vadd.f32 0.0, %v7328
      %v7330 = vpop.f32.mrf.mxu0
      %7331 = vmatprep.mubr.f32.mxu0 0.0
      %7332 = vmatmul.mubr.f32.gmra.mxu0 %v7111
      %v7333 = vpop.f32.mrf.mxu0
      %v7334 = vadd.f32 0.0, %v7333
      %v7335 = vpop.f32.mrf.mxu0
      %7336 = vmatprep.mubr.f32.mxu0 0.0
      %7337 = vmatmul.mubr.f32.gmra.mxu0 %v7114
      %v7338 = vpop.f32.mrf.mxu0
      %v7339 = vadd.f32 0.0, %v7338
      %v7340 = vpop.f32.mrf.mxu0
      %7341 = vmatprep.mubr.f32.mxu0 0.0
      %7342 = vmatmul.mubr.f32.gmra.mxu0 %v7117
      %v7343 = vpop.f32.mrf.mxu0
      %v7344 = vadd.f32 0.0, %v7343
      %v7345 = vpop.f32.mrf.mxu0
      %7346 = vdwg.mxu0
      %v7347 = vadd.f32 %v6957, %v7189
      %v7348 = vadd.f32 %v6958, %v7194
      %v7349 = vadd.f32 %v6959, %v7199
      %v7350 = vadd.f32 %v6960, %v7204
      %v7351 = vadd.f32 %v6961, %v7209
      %v7352 = vadd.f32 %v6962, %v7214
      %v7353 = vadd.f32 %v6963, %v7219
      %v7354 = vadd.f32 %v6964, %v7224
      %v7355 = vadd.f32 %v6965, %v7229
      %v7356 = vadd.f32 %v6966, %v7234
      %v7357 = vadd.f32 %v6967, %v7239
      %v7358 = vadd.f32 %v6968, %v7244
      %v7359 = vadd.f32 %v6969, %v7249
      %v7360 = vadd.f32 %v6970, %v7254
      %v7361 = vadd.f32 %v6971, %v7259
      %v7362 = vadd.f32 %v6972, %v7264
      %v7363 = vadd.f32 %v6973, %v7269
      %v7364 = vadd.f32 %v6974, %v7274
      %v7365 = vadd.f32 %v6975, %v7279
      %v7366 = vadd.f32 %v6976, %v7284
      %v7367 = vadd.f32 %v6977, %v7289
      %v7368 = vadd.f32 %v6978, %v7294
      %v7369 = vadd.f32 %v6979, %v7299
      %v7370 = vadd.f32 %v6980, %v7304
      %v7371 = vadd.f32 %v6981, %v7309
      %v7372 = vadd.f32 %v6982, %v7314
      %v7373 = vadd.f32 %v6983, %v7319
      %v7374 = vadd.f32 %v6984, %v7324
      %v7375 = vadd.f32 %v6985, %v7329
      %v7376 = vadd.f32 %v6986, %v7334
      %v7377 = vadd.f32 %v6987, %v7339
      %v7378 = vadd.f32 %v6988, %v7344
      %v7379 = vld [vmem:[%s6598 + $0x2] sm:$0xff]
      %v7380 = vld [vmem:[%s6598 + $0xa] sm:$0xff]
      %v7381 = vld [vmem:[%s6598 + $0x1a] sm:$0xff]
      %v7382 = vld [vmem:[%s6598 + $0x22] sm:$0xff]
      %v7383 = vld [vmem:[%s6598 + $0x32] sm:$0xff]
      %v7384 = vld [vmem:[%s6598 + $0x3a] sm:$0xff]
      %v7385 = vld [vmem:[%s6598 + $0x4a] sm:$0xff]
      %v7386 = vld [vmem:[%s6598 + $0x52] sm:$0xff]
      %v7387 = vld [vmem:[%s6598 + $0x62] sm:$0xff]
      %v7388 = vld [vmem:[%s6598 + $0x6a] sm:$0xff]
      %v7389 = vld [vmem:[%s6598 + $0x7a] sm:$0xff]
      %v7390 = vld [vmem:[%s6598 + $0x82] sm:$0xff]
      %v7391 = vld [vmem:[%s6598 + $0x92] sm:$0xff]
      %v7392 = vld [vmem:[%s6598 + $0x9a] sm:$0xff]
      %v7393 = vld [vmem:[%s6598 + $0xaa] sm:$0xff]
      %v7394 = vld [vmem:[%s6598 + $0xb2] sm:$0xff]
      %v7395 = vld [vmem:[%s6598 + $0xc2] sm:$0xff]
      %v7396 = vld [vmem:[%s6598 + $0xca] sm:$0xff]
      %v7397 = vld [vmem:[%s6598 + $0xda] sm:$0xff]
      %v7398 = vld [vmem:[%s6598 + $0xe2] sm:$0xff]
      %v7399 = vld [vmem:[%s6598 + $0xf2] sm:$0xff]
      %v7400 = vld [vmem:[%s6598 + $0xfa] sm:$0xff]
      %v7401 = vld [vmem:[%s6598 + $0x10a] sm:$0xff]
      %v7402 = vld [vmem:[%s6598 + $0x112] sm:$0xff]
      %v7403 = vld [vmem:[%s6598 + $0x122] sm:$0xff]
      %v7404 = vld [vmem:[%s6598 + $0x12a] sm:$0xff]
      %v7405 = vld [vmem:[%s6598 + $0x13a] sm:$0xff]
      %v7406 = vld [vmem:[%s6598 + $0x142] sm:$0xff]
      %v7407 = vld [vmem:[%s6598 + $0x152] sm:$0xff]
      %v7408 = vld [vmem:[%s6598 + $0x15a] sm:$0xff]
      %v7409 = vld [vmem:[%s6598 + $0x16a] sm:$0xff]
      %v7410 = vld [vmem:[%s6598 + $0x172] sm:$0xff]
      %s7411 = scalar_lea.vmem %s5, 32
      %v7412 = vld [vmem:[%s7411] sm:$0xf]
      %v7414 = vsel %vm415, %v7379, 0
      %v7417 = vsel %vm415, %v7380, 0
      %v7420 = vsel %vm415, %v7381, 0
      %v7423 = vsel %vm415, %v7382, 0
      %v7426 = vsel %vm415, %v7383, 0
      %v7429 = vsel %vm415, %v7384, 0
      %v7432 = vsel %vm415, %v7385, 0
      %v7435 = vsel %vm415, %v7386, 0
      %v7438 = vsel %vm415, %v7387, 0
      %v7441 = vsel %vm415, %v7388, 0
      %v7444 = vsel %vm415, %v7389, 0
      %v7447 = vsel %vm415, %v7390, 0
      %v7450 = vsel %vm415, %v7391, 0
      %v7453 = vsel %vm415, %v7392, 0
      %v7456 = vsel %vm415, %v7393, 0
      %v7459 = vsel %vm415, %v7394, 0
      %v7462 = vsel %vm415, %v7395, 0
      %v7465 = vsel %vm415, %v7396, 0
      %v7468 = vsel %vm415, %v7397, 0
      %v7471 = vsel %vm415, %v7398, 0
      %v7474 = vsel %vm415, %v7399, 0
      %v7477 = vsel %vm415, %v7400, 0
      %v7480 = vsel %vm415, %v7401, 0
      %v7483 = vsel %vm415, %v7402, 0
      %v7486 = vsel %vm415, %v7403, 0
      %v7489 = vsel %vm415, %v7404, 0
      %v7492 = vsel %vm415, %v7405, 0
      %v7495 = vsel %vm415, %v7406, 0
      %v7498 = vsel %vm415, %v7407, 0
      %v7501 = vsel %vm415, %v7408, 0
      %v7504 = vsel %vm415, %v7409, 0
      %v7507 = vsel %vm415, %v7410, 0
      %v7510 = vsel %vm4485, %v7412, 0
      %7512 = vmatprep.subr.mxu0 0.0
      %7513 = vmatpush1.msra.mxu0 0.0
      %7514 = vmatprep.subr.mxu0 0.0
      %7515 = vmatpush1.msra.mxu0 0.0
      %7516 = vmatprep.subr.mxu0 0.0
      %7517 = vmatpush1.msra.mxu0 0.0
      %7518 = vmatprep.subr.mxu0 0.0
      %7519 = vmatpush1.msra.mxu0 0.0
      %7520 = vmatprep.subr.mxu0 0.0
      %7521 = vmatpush1.msra.mxu0 0.0
      %7522 = vmatprep.subr.mxu0 0.0
      %7523 = vmatpush1.msra.mxu0 0.0
      %7524 = vmatprep.subr.mxu0 0.0
      %7525 = vmatpush1.msra.mxu0 0.0
      %7526 = vmatprep.subr.mxu0 0.0
      %7527 = vmatpush1.msra.mxu0 0.0
      %7528 = vmatprep.subr.mxu0 0.0
      %7529 = vmatpush1.msra.mxu0 0.0
      %7530 = vmatprep.subr.mxu0 0.0
      %7531 = vmatpush1.msra.mxu0 0.0
      %7532 = vmatprep.subr.mxu0 0.0
      %7533 = vmatpush1.msra.mxu0 0.0
      %7534 = vmatprep.subr.mxu0 0.0
      %7535 = vmatpush1.msra.mxu0 0.0
      %7536 = vmatprep.subr.mxu0 0.0
      %7537 = vmatpush1.msra.mxu0 0.0
      %7538 = vmatprep.subr.mxu0 0.0
      %7539 = vmatpush1.msra.mxu0 0.0
      %7540 = vmatprep.subr.mxu0 0.0
      %7541 = vmatpush1.msra.mxu0 0.0
      %7542 = vmatprep.subr.mxu0 0.0
      %7543 = vmatpush1.msra.mxu0 %v7510
      %7544 = vmatprep.subr.mxu0 0.0
      %7545 = vmatpush2.msra.mxu0 0.0
      %7546 = vmatprep.subr.mxu0 0.0
      %7547 = vmatpush2.msra.mxu0 0.0
      %7548 = vmatprep.subr.mxu0 0.0
      %7549 = vmatpush2.msra.mxu0 0.0
      %7550 = vmatprep.subr.mxu0 0.0
      %7551 = vmatpush2.msra.mxu0 0.0
      %7552 = vmatprep.subr.mxu0 0.0
      %7553 = vmatpush2.msra.mxu0 0.0
      %7554 = vmatprep.subr.mxu0 0.0
      %7555 = vmatpush2.msra.mxu0 0.0
      %7556 = vmatprep.subr.mxu0 0.0
      %7557 = vmatpush2.msra.mxu0 0.0
      %7558 = vmatprep.subr.mxu0 0.0
      %7559 = vmatpush2.msra.mxu0 0.0
      %7560 = vmatprep.subr.mxu0 0.0
      %7561 = vmatpush2.msra.mxu0 0.0
      %7562 = vmatprep.subr.mxu0 0.0
      %7563 = vmatpush2.msra.mxu0 0.0
      %7564 = vmatprep.subr.mxu0 0.0
      %7565 = vmatpush2.msra.mxu0 0.0
      %7566 = vmatprep.subr.mxu0 0.0
      %7567 = vmatpush2.msra.mxu0 0.0
      %7568 = vmatprep.subr.mxu0 0.0
      %7569 = vmatpush2.msra.mxu0 0.0
      %7570 = vmatprep.subr.mxu0 0.0
      %7571 = vmatpush2.msra.mxu0 0.0
      %7572 = vmatprep.subr.mxu0 0.0
      %7573 = vmatpush2.msra.mxu0 0.0
      %7574 = vmatprep.subr.mxu0 0.0
      %7575 = vmatpush2.msra.mxu0 0.0
      %7576 = vmatprep.mubr.f32.mxu0 0.0
      %7577 = vmatmul.mubr.f32.gmra.mxu0 %v7414
      %v7578 = vpop.f32.mrf.mxu0
      %v7579 = vadd.f32 0.0, %v7578
      %v7580 = vpop.f32.mrf.mxu0
      %7581 = vmatprep.mubr.f32.mxu0 0.0
      %7582 = vmatmul.mubr.f32.gmra.mxu0 %v7417
      %v7583 = vpop.f32.mrf.mxu0
      %v7584 = vadd.f32 0.0, %v7583
      %v7585 = vpop.f32.mrf.mxu0
      %7586 = vmatprep.mubr.f32.mxu0 0.0
      %7587 = vmatmul.mubr.f32.gmra.mxu0 %v7420
      %v7588 = vpop.f32.mrf.mxu0
      %v7589 = vadd.f32 0.0, %v7588
      %v7590 = vpop.f32.mrf.mxu0
      %7591 = vmatprep.mubr.f32.mxu0 0.0
      %7592 = vmatmul.mubr.f32.gmra.mxu0 %v7423
      %v7593 = vpop.f32.mrf.mxu0
      %v7594 = vadd.f32 0.0, %v7593
      %v7595 = vpop.f32.mrf.mxu0
      %7596 = vmatprep.mubr.f32.mxu0 0.0
      %7597 = vmatmul.mubr.f32.gmra.mxu0 %v7426
      %v7598 = vpop.f32.mrf.mxu0
      %v7599 = vadd.f32 0.0, %v7598
      %v7600 = vpop.f32.mrf.mxu0
      %7601 = vmatprep.mubr.f32.mxu0 0.0
      %7602 = vmatmul.mubr.f32.gmra.mxu0 %v7429
      %v7603 = vpop.f32.mrf.mxu0
      %v7604 = vadd.f32 0.0, %v7603
      %v7605 = vpop.f32.mrf.mxu0
      %7606 = vmatprep.mubr.f32.mxu0 0.0
      %7607 = vmatmul.mubr.f32.gmra.mxu0 %v7432
      %v7608 = vpop.f32.mrf.mxu0
      %v7609 = vadd.f32 0.0, %v7608
      %v7610 = vpop.f32.mrf.mxu0
      %7611 = vmatprep.mubr.f32.mxu0 0.0
      %7612 = vmatmul.mubr.f32.gmra.mxu0 %v7435
      %v7613 = vpop.f32.mrf.mxu0
      %v7614 = vadd.f32 0.0, %v7613
      %v7615 = vpop.f32.mrf.mxu0
      %7616 = vmatprep.mubr.f32.mxu0 0.0
      %7617 = vmatmul.mubr.f32.gmra.mxu0 %v7438
      %v7618 = vpop.f32.mrf.mxu0
      %v7619 = vadd.f32 0.0, %v7618
      %v7620 = vpop.f32.mrf.mxu0
      %7621 = vmatprep.mubr.f32.mxu0 0.0
      %7622 = vmatmul.mubr.f32.gmra.mxu0 %v7441
      %v7623 = vpop.f32.mrf.mxu0
      %v7624 = vadd.f32 0.0, %v7623
      %v7625 = vpop.f32.mrf.mxu0
      %7626 = vmatprep.mubr.f32.mxu0 0.0
      %7627 = vmatmul.mubr.f32.gmra.mxu0 %v7444
      %v7628 = vpop.f32.mrf.mxu0
      %v7629 = vadd.f32 0.0, %v7628
      %v7630 = vpop.f32.mrf.mxu0
      %7631 = vmatprep.mubr.f32.mxu0 0.0
      %7632 = vmatmul.mubr.f32.gmra.mxu0 %v7447
      %v7633 = vpop.f32.mrf.mxu0
      %v7634 = vadd.f32 0.0, %v7633
      %v7635 = vpop.f32.mrf.mxu0
      %7636 = vmatprep.mubr.f32.mxu0 0.0
      %7637 = vmatmul.mubr.f32.gmra.mxu0 %v7450
      %v7638 = vpop.f32.mrf.mxu0
      %v7639 = vadd.f32 0.0, %v7638
      %v7640 = vpop.f32.mrf.mxu0
      %7641 = vmatprep.mubr.f32.mxu0 0.0
      %7642 = vmatmul.mubr.f32.gmra.mxu0 %v7453
      %v7643 = vpop.f32.mrf.mxu0
      %v7644 = vadd.f32 0.0, %v7643
      %v7645 = vpop.f32.mrf.mxu0
      %7646 = vmatprep.mubr.f32.mxu0 0.0
      %7647 = vmatmul.mubr.f32.gmra.mxu0 %v7456
      %v7648 = vpop.f32.mrf.mxu0
      %v7649 = vadd.f32 0.0, %v7648
      %v7650 = vpop.f32.mrf.mxu0
      %7651 = vmatprep.mubr.f32.mxu0 0.0
      %7652 = vmatmul.mubr.f32.gmra.mxu0 %v7459
      %v7653 = vpop.f32.mrf.mxu0
      %v7654 = vadd.f32 0.0, %v7653
      %v7655 = vpop.f32.mrf.mxu0
      %7656 = vmatprep.mubr.f32.mxu0 0.0
      %7657 = vmatmul.mubr.f32.gmra.mxu0 %v7462
      %v7658 = vpop.f32.mrf.mxu0
      %v7659 = vadd.f32 0.0, %v7658
      %v7660 = vpop.f32.mrf.mxu0
      %7661 = vmatprep.mubr.f32.mxu0 0.0
      %7662 = vmatmul.mubr.f32.gmra.mxu0 %v7465
      %v7663 = vpop.f32.mrf.mxu0
      %v7664 = vadd.f32 0.0, %v7663
      %v7665 = vpop.f32.mrf.mxu0
      %7666 = vmatprep.mubr.f32.mxu0 0.0
      %7667 = vmatmul.mubr.f32.gmra.mxu0 %v7468
      %v7668 = vpop.f32.mrf.mxu0
      %v7669 = vadd.f32 0.0, %v7668
      %v7670 = vpop.f32.mrf.mxu0
      %7671 = vmatprep.mubr.f32.mxu0 0.0
      %7672 = vmatmul.mubr.f32.gmra.mxu0 %v7471
      %v7673 = vpop.f32.mrf.mxu0
      %v7674 = vadd.f32 0.0, %v7673
      %v7675 = vpop.f32.mrf.mxu0
      %7676 = vmatprep.mubr.f32.mxu0 0.0
      %7677 = vmatmul.mubr.f32.gmra.mxu0 %v7474
      %v7678 = vpop.f32.mrf.mxu0
      %v7679 = vadd.f32 0.0, %v7678
      %v7680 = vpop.f32.mrf.mxu0
      %7681 = vmatprep.mubr.f32.mxu0 0.0
      %7682 = vmatmul.mubr.f32.gmra.mxu0 %v7477
      %v7683 = vpop.f32.mrf.mxu0
      %v7684 = vadd.f32 0.0, %v7683
      %v7685 = vpop.f32.mrf.mxu0
      %7686 = vmatprep.mubr.f32.mxu0 0.0
      %7687 = vmatmul.mubr.f32.gmra.mxu0 %v7480
      %v7688 = vpop.f32.mrf.mxu0
      %v7689 = vadd.f32 0.0, %v7688
      %v7690 = vpop.f32.mrf.mxu0
      %7691 = vmatprep.mubr.f32.mxu0 0.0
      %7692 = vmatmul.mubr.f32.gmra.mxu0 %v7483
      %v7693 = vpop.f32.mrf.mxu0
      %v7694 = vadd.f32 0.0, %v7693
      %v7695 = vpop.f32.mrf.mxu0
      %7696 = vmatprep.mubr.f32.mxu0 0.0
      %7697 = vmatmul.mubr.f32.gmra.mxu0 %v7486
      %v7698 = vpop.f32.mrf.mxu0
      %v7699 = vadd.f32 0.0, %v7698
      %v7700 = vpop.f32.mrf.mxu0
      %7701 = vmatprep.mubr.f32.mxu0 0.0
      %7702 = vmatmul.mubr.f32.gmra.mxu0 %v7489
      %v7703 = vpop.f32.mrf.mxu0
      %v7704 = vadd.f32 0.0, %v7703
      %v7705 = vpop.f32.mrf.mxu0
      %7706 = vmatprep.mubr.f32.mxu0 0.0
      %7707 = vmatmul.mubr.f32.gmra.mxu0 %v7492
      %v7708 = vpop.f32.mrf.mxu0
      %v7709 = vadd.f32 0.0, %v7708
      %v7710 = vpop.f32.mrf.mxu0
      %7711 = vmatprep.mubr.f32.mxu0 0.0
      %7712 = vmatmul.mubr.f32.gmra.mxu0 %v7495
      %v7713 = vpop.f32.mrf.mxu0
      %v7714 = vadd.f32 0.0, %v7713
      %v7715 = vpop.f32.mrf.mxu0
      %7716 = vmatprep.mubr.f32.mxu0 0.0
      %7717 = vmatmul.mubr.f32.gmra.mxu0 %v7498
      %v7718 = vpop.f32.mrf.mxu0
      %v7719 = vadd.f32 0.0, %v7718
      %v7720 = vpop.f32.mrf.mxu0
      %7721 = vmatprep.mubr.f32.mxu0 0.0
      %7722 = vmatmul.mubr.f32.gmra.mxu0 %v7501
      %v7723 = vpop.f32.mrf.mxu0
      %v7724 = vadd.f32 0.0, %v7723
      %v7725 = vpop.f32.mrf.mxu0
      %7726 = vmatprep.mubr.f32.mxu0 0.0
      %7727 = vmatmul.mubr.f32.gmra.mxu0 %v7504
      %v7728 = vpop.f32.mrf.mxu0
      %v7729 = vadd.f32 0.0, %v7728
      %v7730 = vpop.f32.mrf.mxu0
      %7731 = vmatprep.mubr.f32.mxu0 0.0
      %7732 = vmatmul.mubr.f32.gmra.mxu0 %v7507
      %v7733 = vpop.f32.mrf.mxu0
      %v7734 = vadd.f32 0.0, %v7733
      %v7735 = vpop.f32.mrf.mxu0
      %7736 = vdwg.mxu0
      %v7737 = vadd.f32 %v7347, %v7579
      %v7738 = vadd.f32 %v7348, %v7584
      %v7739 = vadd.f32 %v7349, %v7589
      %v7740 = vadd.f32 %v7350, %v7594
      %v7741 = vadd.f32 %v7351, %v7599
      %v7742 = vadd.f32 %v7352, %v7604
      %v7743 = vadd.f32 %v7353, %v7609
      %v7744 = vadd.f32 %v7354, %v7614
      %v7745 = vadd.f32 %v7355, %v7619
      %v7746 = vadd.f32 %v7356, %v7624
      %v7747 = vadd.f32 %v7357, %v7629
      %v7748 = vadd.f32 %v7358, %v7634
      %v7749 = vadd.f32 %v7359, %v7639
      %v7750 = vadd.f32 %v7360, %v7644
      %v7751 = vadd.f32 %v7361, %v7649
      %v7752 = vadd.f32 %v7362, %v7654
      %v7753 = vadd.f32 %v7363, %v7659
      %v7754 = vadd.f32 %v7364, %v7664
      %v7755 = vadd.f32 %v7365, %v7669
      %v7756 = vadd.f32 %v7366, %v7674
      %v7757 = vadd.f32 %v7367, %v7679
      %v7758 = vadd.f32 %v7368, %v7684
      %v7759 = vadd.f32 %v7369, %v7689
      %v7760 = vadd.f32 %v7370, %v7694
      %v7761 = vadd.f32 %v7371, %v7699
      %v7762 = vadd.f32 %v7372, %v7704
      %v7763 = vadd.f32 %v7373, %v7709
      %v7764 = vadd.f32 %v7374, %v7714
      %v7765 = vadd.f32 %v7375, %v7719
      %v7766 = vadd.f32 %v7376, %v7724
      %v7767 = vadd.f32 %v7377, %v7729
      %v7768 = vadd.f32 %v7378, %v7734
      %v7769 = vld [vmem:[%s6] sm:$0x1]
      %v7771 = vlaneseq
      %v7772 = vshrl.u32 %v7771, 7
      %v7773 = vsub.s32 0, %v7772
      %v7774 = vrot.slane %v7769, %v7773
      %v7776 = vmul.f32 %v7737, %v7774
      %v7777 = vmul.f32 %v7738, %v7774
      %v7778 = vmul.f32 %v7739, %v7774
      %v7779 = vmul.f32 %v7740, %v7774
      %v7780 = vmul.f32 %v7741, %v7774
      %v7781 = vmul.f32 %v7742, %v7774
      %v7782 = vmul.f32 %v7743, %v7774
      %v7783 = vmul.f32 %v7744, %v7774
      %v7784 = vmul.f32 %v7745, %v7774
      %v7785 = vmul.f32 %v7746, %v7774
      %v7786 = vmul.f32 %v7747, %v7774
      %v7787 = vmul.f32 %v7748, %v7774
      %v7788 = vmul.f32 %v7749, %v7774
      %v7789 = vmul.f32 %v7750, %v7774
      %v7790 = vmul.f32 %v7751, %v7774
      %v7791 = vmul.f32 %v7752, %v7774
      %v7792 = vmul.f32 %v7753, %v7774
      %v7793 = vmul.f32 %v7754, %v7774
      %v7794 = vmul.f32 %v7755, %v7774
      %v7795 = vmul.f32 %v7756, %v7774
      %v7796 = vmul.f32 %v7757, %v7774
      %v7797 = vmul.f32 %v7758, %v7774
      %v7798 = vmul.f32 %v7759, %v7774
      %v7799 = vmul.f32 %v7760, %v7774
      %v7800 = vmul.f32 %v7761, %v7774
      %v7801 = vmul.f32 %v7762, %v7774
      %v7802 = vmul.f32 %v7763, %v7774
      %v7803 = vmul.f32 %v7764, %v7774
      %v7804 = vmul.f32 %v7765, %v7774
      %v7805 = vmul.f32 %v7766, %v7774
      %v7806 = vmul.f32 %v7767, %v7774
      %v7807 = vmul.f32 %v7768, %v7774
      %v7808 = vld [vmem:[%s7] sm:$0x1]
      %v7810 = vlaneseq
      %v7811 = vshrl.u32 %v7810, 7
      %v7812 = vsub.s32 0, %v7811
      %v7813 = vrot.slane %v7808, %v7812
      %v7815 = vadd.f32 %v7776, %v7813
      %v7816 = vadd.f32 %v7777, %v7813
      %v7817 = vadd.f32 %v7778, %v7813
      %v7818 = vadd.f32 %v7779, %v7813
      %v7819 = vadd.f32 %v7780, %v7813
      %v7820 = vadd.f32 %v7781, %v7813
      %v7821 = vadd.f32 %v7782, %v7813
      %v7822 = vadd.f32 %v7783, %v7813
      %v7823 = vadd.f32 %v7784, %v7813
      %v7824 = vadd.f32 %v7785, %v7813
      %v7825 = vadd.f32 %v7786, %v7813
      %v7826 = vadd.f32 %v7787, %v7813
      %v7827 = vadd.f32 %v7788, %v7813
      %v7828 = vadd.f32 %v7789, %v7813
      %v7829 = vadd.f32 %v7790, %v7813
      %v7830 = vadd.f32 %v7791, %v7813
      %v7831 = vadd.f32 %v7792, %v7813
      %v7832 = vadd.f32 %v7793, %v7813
      %v7833 = vadd.f32 %v7794, %v7813
      %v7834 = vadd.f32 %v7795, %v7813
      %v7835 = vadd.f32 %v7796, %v7813
      %v7836 = vadd.f32 %v7797, %v7813
      %v7837 = vadd.f32 %v7798, %v7813
      %v7838 = vadd.f32 %v7799, %v7813
      %v7839 = vadd.f32 %v7800, %v7813
      %v7840 = vadd.f32 %v7801, %v7813
      %v7841 = vadd.f32 %v7802, %v7813
      %v7842 = vadd.f32 %v7803, %v7813
      %v7843 = vadd.f32 %v7804, %v7813
      %v7844 = vadd.f32 %v7805, %v7813
      %v7845 = vadd.f32 %v7806, %v7813
      %v7846 = vadd.f32 %v7807, %v7813
      %vm7847 = vcmp.ge.f32.partialorder %v7815, 0.0
      %vm7848 = vcmp.ge.f32.partialorder %v7816, 0.0
      %vm7849 = vcmp.ge.f32.partialorder %v7817, 0.0
      %vm7850 = vcmp.ge.f32.partialorder %v7818, 0.0
      %vm7851 = vcmp.ge.f32.partialorder %v7819, 0.0
      %vm7852 = vcmp.ge.f32.partialorder %v7820, 0.0
      %vm7853 = vcmp.ge.f32.partialorder %v7821, 0.0
      %vm7854 = vcmp.ge.f32.partialorder %v7822, 0.0
      %vm7855 = vcmp.ge.f32.partialorder %v7823, 0.0
      %vm7856 = vcmp.ge.f32.partialorder %v7824, 0.0
      %vm7857 = vcmp.ge.f32.partialorder %v7825, 0.0
      %vm7858 = vcmp.ge.f32.partialorder %v7826, 0.0
      %vm7859 = vcmp.ge.f32.partialorder %v7827, 0.0
      %vm7860 = vcmp.ge.f32.partialorder %v7828, 0.0
      %vm7861 = vcmp.ge.f32.partialorder %v7829, 0.0
      %vm7862 = vcmp.ge.f32.partialorder %v7830, 0.0
      %vm7863 = vcmp.ge.f32.partialorder %v7831, 0.0
      %vm7864 = vcmp.ge.f32.partialorder %v7832, 0.0
      %vm7865 = vcmp.ge.f32.partialorder %v7833, 0.0
      %vm7866 = vcmp.ge.f32.partialorder %v7834, 0.0
      %vm7867 = vcmp.ge.f32.partialorder %v7835, 0.0
      %vm7868 = vcmp.ge.f32.partialorder %v7836, 0.0
      %vm7869 = vcmp.ge.f32.partialorder %v7837, 0.0
      %vm7870 = vcmp.ge.f32.partialorder %v7838, 0.0
      %vm7871 = vcmp.ge.f32.partialorder %v7839, 0.0
      %vm7872 = vcmp.ge.f32.partialorder %v7840, 0.0
      %vm7873 = vcmp.ge.f32.partialorder %v7841, 0.0
      %vm7874 = vcmp.ge.f32.partialorder %v7842, 0.0
      %vm7875 = vcmp.ge.f32.partialorder %v7843, 0.0
      %vm7876 = vcmp.ge.f32.partialorder %v7844, 0.0
      %vm7877 = vcmp.ge.f32.partialorder %v7845, 0.0
      %vm7878 = vcmp.ge.f32.partialorder %v7846, 0.0
      %v7879 = vmul.f32 %v7815, 0.01
      %v7880 = vmul.f32 %v7816, 0.01
      %v7881 = vmul.f32 %v7817, 0.01
      %v7882 = vmul.f32 %v7818, 0.01
      %v7883 = vmul.f32 %v7819, 0.01
      %v7884 = vmul.f32 %v7820, 0.01
      %v7885 = vmul.f32 %v7821, 0.01
      %v7886 = vmul.f32 %v7822, 0.01
      %v7887 = vmul.f32 %v7823, 0.01
      %v7888 = vmul.f32 %v7824, 0.01
      %v7889 = vmul.f32 %v7825, 0.01
      %v7890 = vmul.f32 %v7826, 0.01
      %v7891 = vmul.f32 %v7827, 0.01
      %v7892 = vmul.f32 %v7828, 0.01
      %v7893 = vmul.f32 %v7829, 0.01
      %v7894 = vmul.f32 %v7830, 0.01
      %v7895 = vmul.f32 %v7831, 0.01
      %v7896 = vmul.f32 %v7832, 0.01
      %v7897 = vmul.f32 %v7833, 0.01
      %v7898 = vmul.f32 %v7834, 0.01
      %v7899 = vmul.f32 %v7835, 0.01
      %v7900 = vmul.f32 %v7836, 0.01
      %v7901 = vmul.f32 %v7837, 0.01
      %v7902 = vmul.f32 %v7838, 0.01
      %v7903 = vmul.f32 %v7839, 0.01
      %v7904 = vmul.f32 %v7840, 0.01
      %v7905 = vmul.f32 %v7841, 0.01
      %v7906 = vmul.f32 %v7842, 0.01
      %v7907 = vmul.f32 %v7843, 0.01
      %v7908 = vmul.f32 %v7844, 0.01
      %v7909 = vmul.f32 %v7845, 0.01
      %v7910 = vmul.f32 %v7846, 0.01
      %v7911 = vsel %vm7847, %v7815, %v7879
      %v7912 = vsel %vm7848, %v7816, %v7880
      %v7913 = vsel %vm7849, %v7817, %v7881
      %v7914 = vsel %vm7850, %v7818, %v7882
      %v7915 = vsel %vm7851, %v7819, %v7883
      %v7916 = vsel %vm7852, %v7820, %v7884
      %v7917 = vsel %vm7853, %v7821, %v7885
      %v7918 = vsel %vm7854, %v7822, %v7886
      %v7919 = vsel %vm7855, %v7823, %v7887
      %v7920 = vsel %vm7856, %v7824, %v7888
      %v7921 = vsel %vm7857, %v7825, %v7889
      %v7922 = vsel %vm7858, %v7826, %v7890
      %v7923 = vsel %vm7859, %v7827, %v7891
      %v7924 = vsel %vm7860, %v7828, %v7892
      %v7925 = vsel %vm7861, %v7829, %v7893
      %v7926 = vsel %vm7862, %v7830, %v7894
      %v7927 = vsel %vm7863, %v7831, %v7895
      %v7928 = vsel %vm7864, %v7832, %v7896
      %v7929 = vsel %vm7865, %v7833, %v7897
      %v7930 = vsel %vm7866, %v7834, %v7898
      %v7931 = vsel %vm7867, %v7835, %v7899
      %v7932 = vsel %vm7868, %v7836, %v7900
      %v7933 = vsel %vm7869, %v7837, %v7901
      %v7934 = vsel %vm7870, %v7838, %v7902
      %v7935 = vsel %vm7871, %v7839, %v7903
      %v7936 = vsel %vm7872, %v7840, %v7904
      %v7937 = vsel %vm7873, %v7841, %v7905
      %v7938 = vsel %vm7874, %v7842, %v7906
      %v7939 = vsel %vm7875, %v7843, %v7907
      %v7940 = vsel %vm7876, %v7844, %v7908
      %v7941 = vsel %vm7877, %v7845, %v7909
      %v7942 = vsel %vm7878, %v7846, %v7910
      %7943 = vst.msk [vmem:[%s325] sm:$0xff] %vm415, %v7911
      %7944 = vst.msk [vmem:[%s325 + $0x8] sm:$0xff] %vm415, %v7912
      %7945 = vst.msk [vmem:[%s325 + $0x10] sm:$0xff] %vm415, %v7913
      %7946 = vst.msk [vmem:[%s325 + $0x18] sm:$0xff] %vm415, %v7914
      %7947 = vst.msk [vmem:[%s325 + $0x20] sm:$0xff] %vm415, %v7915
      %7948 = vst.msk [vmem:[%s325 + $0x28] sm:$0xff] %vm415, %v7916
      %7949 = vst.msk [vmem:[%s325 + $0x30] sm:$0xff] %vm415, %v7917
      %7950 = vst.msk [vmem:[%s325 + $0x38] sm:$0xff] %vm415, %v7918
      %7951 = vst.msk [vmem:[%s325 + $0x40] sm:$0xff] %vm415, %v7919
      %7952 = vst.msk [vmem:[%s325 + $0x48] sm:$0xff] %vm415, %v7920
      %7953 = vst.msk [vmem:[%s325 + $0x50] sm:$0xff] %vm415, %v7921
      %7954 = vst.msk [vmem:[%s325 + $0x58] sm:$0xff] %vm415, %v7922
      %7955 = vst.msk [vmem:[%s325 + $0x60] sm:$0xff] %vm415, %v7923
      %7956 = vst.msk [vmem:[%s325 + $0x68] sm:$0xff] %vm415, %v7924
      %7957 = vst.msk [vmem:[%s325 + $0x70] sm:$0xff] %vm415, %v7925
      %7958 = vst.msk [vmem:[%s325 + $0x78] sm:$0xff] %vm415, %v7926
      %7959 = vst.msk [vmem:[%s325 + $0x80] sm:$0xff] %vm415, %v7927
      %7960 = vst.msk [vmem:[%s325 + $0x88] sm:$0xff] %vm415, %v7928
      %7961 = vst.msk [vmem:[%s325 + $0x90] sm:$0xff] %vm415, %v7929
      %7962 = vst.msk [vmem:[%s325 + $0x98] sm:$0xff] %vm415, %v7930
      %7963 = vst.msk [vmem:[%s325 + $0xa0] sm:$0xff] %vm415, %v7931
      %7964 = vst.msk [vmem:[%s325 + $0xa8] sm:$0xff] %vm415, %v7932
      %7965 = vst.msk [vmem:[%s325 + $0xb0] sm:$0xff] %vm415, %v7933
      %7966 = vst.msk [vmem:[%s325 + $0xb8] sm:$0xff] %vm415, %v7934
      %7967 = vst.msk [vmem:[%s325 + $0xc0] sm:$0xff] %vm415, %v7935
      %7968 = vst.msk [vmem:[%s325 + $0xc8] sm:$0xff] %vm415, %v7936
      %7969 = vst.msk [vmem:[%s325 + $0xd0] sm:$0xff] %vm415, %v7937
      %7970 = vst.msk [vmem:[%s325 + $0xd8] sm:$0xff] %vm415, %v7938
      %7971 = vst.msk [vmem:[%s325 + $0xe0] sm:$0xff] %vm415, %v7939
      %7972 = vst.msk [vmem:[%s325 + $0xe8] sm:$0xff] %vm415, %v7940
      %7973 = vst.msk [vmem:[%s325 + $0xf0] sm:$0xff] %vm415, %v7941
      %7974 = vst.msk [vmem:[%s325 + $0xf8] sm:$0xff] %vm415, %v7942
      %p7975 = scmp.lt.s32.totalorder %s19, 1
      %s7976 = scalar_select %p7975, %s19, 1
      %s7977 = smul.addr %s7976, 32
      %s7978 = smul.addr %s7977, 8
      %s7979 = scalar_lea.vmem %s8, %s7978
      // Predicated region
      $region53: #{decoder_block_forward.3} parent=51 // pred_check
        %p7980 = pneg %p215
      $region54: #{decoder_block_forward.3} parent=51 // pred_check_branch
        %7982 = sbr.rel (%p7980) target = $region56
      $region55: #{decoder_block_forward.3} parent=51 // pred_region
        _
      $region56: #{decoder_block_forward.3} parent=51 // pred_fallthru
        _
    $region52: #{decoder_block_forward.3} parent=5 // pred_fallthru
      _
    %p7983 = scmp.le.s32.totalorder 2, %s14
    // Predicated region
    $region57: #{decoder_block_forward.3} parent=5 // pred_check
      %p7984 = pneg %p7983
    $region58: #{decoder_block_forward.3} parent=5 // pred_check_branch
      %7986 = sbr.rel (%p7984) target = $region60
    $region59: #{decoder_block_forward.3} parent=5 // pred_region
      %s7987 = ssub.s32 %s14, 2
      // Predicated region
      $region61: #{decoder_block_forward.3} parent=59 // pred_check
        %p7988 = pneg %p221
      $region62: #{decoder_block_forward.3} parent=59 // pred_check_branch
        %7990 = sbr.rel (%p7988) target = $region64
      $region63: #{decoder_block_forward.3} parent=59 // pred_region
        %p7991 = scmp.lt.s32.totalorder %s20, 1
        %s7992 = scalar_select %p7991, %s20, 1
        %s7993 = smul.addr %s7992, 32
        %s7994 = smul.addr %s7993, 8
        %s7995 = scalar_lea.vmem %s8, %s7994
      $region64: #{decoder_block_forward.3} parent=59 // pred_fallthru
        _
    $region60: #{decoder_block_forward.3} parent=5 // pred_fallthru
      _
  $region6: #{decoder_block_forward.3} parent=0 // loop_footer
    %s18 = sadd.s32 1, %s14
  $region7: #{decoder_block_forward.3} parent=0 // loop_footer_branch
    %13 = sbr.rel target = $region3
  $region8: #{decoder_block_forward.3} parent=0 // loop_exit
    _

</llo_original>
